<compile_context>
chip_gen: v7x
topology: tpu7x:2x2x1
jax: 0.10.0
libtpu: 0.0.40
codegen_flags: <defaults>
</compile_context>

<pallas_src>
import jax
import jax.numpy as jnp
from jax import lax
from jax.experimental import pallas as pl
from jax.experimental.pallas import tpu as pltpu


# ----------------------------------------------------------------------------
# Fully fused kernel: SE -> 3x3 conv+BN+ReLU (x3 modalities) -> 1x1 CBR
# ----------------------------------------------------------------------------

def _fuse_kernel(rgb_ref, dep_ref, th_ref,
                 se_w1_ref, se_b1_ref, se_w2_ref, se_b2_ref,
                 cw_ref, cs_ref, cb_ref,
                 fw_ref, fs_ref, fb_ref,
                 o_ref, xpad_ref, ycat_ref):
    _, H, W, C = rgb_ref.shape
    HW = H * W
    COL0 = 8                      # interior starts at (row 1, col 8) of the scratch

    # ---- 'same' padding lives purely in VMEM: zero only the 1-pixel border the
    # taps can read (rows 0 / H+1, and 8-wide column strips covering cols 7 and
    # W+8).  The interior [1:H+1, COL0:COL0+W] is fully rewritten every modality,
    # so no full-scratch memset is needed (saves (H+2)*(W+16)*C stores per step).
    zrow = jnp.zeros((W + 16, C), jnp.bfloat16)
    xpad_ref[0] = zrow
    xpad_ref[H + 1] = zrow
    zcol = jnp.zeros((H, 8, C), jnp.bfloat16)
    xpad_ref[1:H + 1, 0:8, :] = zcol
    xpad_ref[1:H + 1, W + 8:W + 16, :] = zcol

    ones_row = jnp.ones((1, HW), jnp.bfloat16)     # hoisted: SE mean via the MXU

    for m, x_ref in enumerate((rgb_ref, dep_ref, th_ref)):
        xin = x_ref[0]                             # (H, W, C) bf16 -- never upcast
        xr = xin.reshape(HW, C)                    # free leading-dim merge

        # ---- Squeeze-and-Excitation: f32 accumulation straight from bf16 ----
        mean = jnp.dot(ones_row, xr, preferred_element_type=jnp.float32) * (1.0 / HW)
        h = jnp.maximum(
            jnp.dot(mean, se_w1_ref[m], preferred_element_type=jnp.float32)
            + se_b1_ref[m], 0.0)                                        # (1, C/r)
        g = jax.nn.sigmoid(
            jnp.dot(h, se_w2_ref[m], preferred_element_type=jnp.float32)
            + se_b2_ref[m])                                             # (1, C) f32
        xs = xin * g.astype(jnp.bfloat16).reshape(1, 1, C)              # bf16 gating

        # ---- 'same' padding in VMEM ----
        xpad_ref[1:H + 1, COL0:COL0 + W, :] = xs

        # ---- 3x3 conv (+folded BN + ReLU) as MXU matmul(s) over im2col taps ----
        def tap(dy, dx):
            # TODO(synk): dx=0/dx=2 windows are sublane-unaligned (cols 7 / 9);
            # a staggered-copy or XLU-roll patch build would move that relayout
            # off the load path if it ever becomes the binding slot.
            return xpad_ref[dy:dy + H,
                            COL0 - 1 + dx:COL0 - 1 + dx + W, :].reshape(HW, C)

        if C <= 64:
            # small C (this test): one K=9C GEMM maximises contraction depth.
            patch = jnp.concatenate(
                [tap(dy, dx) for dy in range(3) for dx in range(3)],
                axis=-1)                                                # (HW, 9C)
            conv = jnp.dot(patch, cw_ref[m], preferred_element_type=jnp.float32)
        else:
            # real MFINet widths (C >= 128): avoid the 9x im2col blow-up, split
            # per kernel row into three accumulated K=3C GEMMs.
            conv = jnp.zeros((HW, 128), jnp.float32)
            for dy in range(3):
                patch = jnp.concatenate([tap(dy, dx) for dx in range(3)], axis=-1)
                conv = conv + jnp.dot(
                    patch, cw_ref[m, dy * 3 * C:(dy + 1) * 3 * C, :],
                    preferred_element_type=jnp.float32)

        y = jnp.maximum(conv * cs_ref[m] + cb_ref[m], 0.0)              # folded BN
        y = y.astype(jnp.bfloat16)                                      # (HW, 128)

        # ---- stage at a 128-lane-aligned column of the VMEM concat scratch:
        # no HBM round-trip, nothing traced stays live across the modality loop,
        # and the 1x1 CBR below becomes one deep-K GEMM.
        ycat_ref[:, m * 128:(m + 1) * 128] = y

    # ---- 1x1 CBR (conv 384 -> C, folded BN, ReLU), single K=384 GEMM ----
    fuse = jnp.dot(ycat_ref[...], fw_ref[...], preferred_element_type=jnp.float32)
    out = jnp.maximum(fuse * fs_ref[...] + fb_ref[...], 0.0)            # (HW, C) f32
    # bf16 writeback halves the largest HBM stream per image.
    # TODO(synk): at C<128 this store is lane-masked; packing a (H, W*C) slab
    # needs a minor-dim-merge relayout that costs about what it saves here --
    # real MFINet layers (C=128..512) are already lane-dense.
    o_ref[...] = out.astype(jnp.bfloat16).reshape(1, H, W, C)


def _vmem_limit_bytes(H, W, C, cr):
    bf, f4 = 2, 4
    x_in = H * W * C * bf
    out = H * W * C * bf
    xpad = (H + 2) * (W + 16) * C * bf
    ycat = H * W * 3 * 128 * bf
    weights = (3 * (C * cr + cr + cr * C + C) * f4            # SE
               + 3 * 9 * C * 128 * bf + 2 * 3 * 128 * f4      # 3x3 conv w + folded BN
               + 3 * 128 * C * bf + 2 * C * f4)               # 1x1 CBR w + folded BN
    # double-buffered inputs/outputs/weights + persistent scratch + headroom for
    # the compiler's im2col / relayout temporaries.
    need = int(1.5 * (2 * (3 * x_in + out + weights) + xpad + ycat)) + (16 << 20)
    try:
        cap = pltpu.get_tpu_info().vmem_capacity_bytes        # 128 MiB v5e/v6e, 64 MiB v7x
    except Exception:
        cap = 64 << 20
    usable = int(cap) * 3 // 4                                # leave runtime headroom
    return max(min(need, usable), 16 << 20)


def fuse_module_pallas(rgb, depth, thermal, params):
    """Inputs (bf16, NHWC) in order (rgb, depth, thermal) matching the param stacks."""
    N, H, W, C = rgb.shape
    cr = params["se_w1"].shape[-1]

    return pl.pallas_call(
        _fuse_kernel,
        out_shape=jax.ShapeDtypeStruct((N, H, W, C), jnp.bfloat16),
        grid=(N,),
        in_specs=[
            pl.BlockSpec((1, H, W, C), lambda n: (n, 0, 0, 0)),
            pl.BlockSpec((1, H, W, C), lambda n: (n, 0, 0, 0)),
            pl.BlockSpec((1, H, W, C), lambda n: (n, 0, 0, 0)),
            pl.BlockSpec((3, C, cr), lambda n: (0, 0, 0)),
            pl.BlockSpec((3, 1, cr), lambda n: (0, 0, 0)),
            pl.BlockSpec((3, cr, C), lambda n: (0, 0, 0)),
            pl.BlockSpec((3, 1, C), lambda n: (0, 0, 0)),
            pl.BlockSpec((3, 9 * C, 128), lambda n: (0, 0, 0)),
            pl.BlockSpec((3, 1, 128), lambda n: (0, 0, 0)),
            pl.BlockSpec((3, 1, 128), lambda n: (0, 0, 0)),
            pl.BlockSpec((3 * 128, C), lambda n: (0, 0)),
            pl.BlockSpec((1, C), lambda n: (0, 0)),
            pl.BlockSpec((1, C), lambda n: (0, 0)),
        ],
        out_specs=pl.BlockSpec((1, H, W, C), lambda n: (n, 0, 0, 0)),
        scratch_shapes=[
            pltpu.VMEM((H + 2, W + 16, C), jnp.bfloat16),   # zero-bordered 'same' pad
            pltpu.VMEM((H * W, 3 * 128), jnp.bfloat16),     # concat of the 3 conv outs
        ],
        compiler_params=pltpu.CompilerParams(
            dimension_semantics=("parallel",),
            vmem_limit_bytes=_vmem_limit_bytes(H, W, C, cr)),
    )(rgb, depth, thermal,
      params["se_w1"], params["se_b1"], params["se_w2"], params["se_b2"],
      params["conv_w"], params["conv_scale"], params["conv_bias"],
      params["cbr_w"], params["cbr_scale"], params["cbr_bias"])


@jax.jit
def fuse_module_forward(rgb, thermal, depth, params):
    """Same argument order as the PyTorch forward(rgb, thermal, depth)."""
    rgb = rgb.astype(jnp.bfloat16)
    thermal = thermal.astype(jnp.bfloat16)
    depth = depth.astype(jnp.bfloat16)
    return fuse_module_pallas(rgb, depth, thermal, params)


# ----------------------------------------------------------------------------
# Parameter construction (deterministic, synthetic).  Modality order everywhere
# is [rgb, depth, thermal], matching torch.cat((rgb_, depth_, thermal_), dim=1).
# ----------------------------------------------------------------------------

def _fold_bn(key, cout, eps=1e-5):
    k1, k2, k3, k4 = jax.random.split(key, 4)
    gamma = 1.0 + 0.1 * jax.random.normal(k1, (cout,), jnp.float32)
    beta = 0.05 * jax.random.normal(k2, (cout,), jnp.float32)
    mean = 0.1 * jax.random.normal(k3, (cout,), jnp.float32)
    var = 1.0 + 0.2 * jnp.abs(jax.random.normal(k4, (cout,), jnp.float32))
    scale = gamma / jnp.sqrt(var + eps)
    bias = beta - mean * scale
    return scale[None, :], bias[None, :]


def make_params(key, c_in, reduction=16):
    cr = max(c_in // reduction, 1)
    keys = jax.random.split(key, 8)

    se_w1, se_b1, se_w2, se_b2 = [], [], [], []
    for i in range(3):                                # rgb, depth, thermal
        k1, k2, k3, k4 = jax.random.split(keys[i], 4)
        se_w1.append(0.1 * jax.random.normal(k1, (c_in, cr), jnp.float32))
        se_b1.append(0.05 * jax.random.normal(k2, (1, cr), jnp.float32))
        se_w2.append(0.1 * jax.random.normal(k3, (cr, c_in), jnp.float32))
        se_b2.append(0.05 * jax.random.normal(k4, (1, c_in), jnp.float32))

    conv_w, conv_scale, conv_bias = [], [], []
    for i in range(3):                                # conv_r, conv_d, conv_t
        kw, kb = jax.random.split(keys[3 + i], 2)
        w = 0.05 * jax.random.normal(kw, (3, 3, c_in, 128), jnp.float32)   # HWIO
        s, b = _fold_bn(kb, 128)
        conv_w.append(w.reshape(9 * c_in, 128).astype(jnp.bfloat16))
        conv_scale.append(s)
        conv_bias.append(b)

    kw, kb = jax.random.split(keys[6], 2)
    cbr_w = 0.05 * jax.random.normal(kw, (384, c_in), jnp.float32)
    cbr_scale, cbr_bias = _fold_bn(kb, c_in)

    return dict(
        se_w1=jnp.stack(se_w1), se_b1=jnp.stack(se_b1),
        se_w2=jnp.stack(se_w2), se_b2=jnp.stack(se_b2),
        conv_w=jnp.stack(conv_w),
        conv_scale=jnp.stack(conv_scale), conv_bias=jnp.stack(conv_bias),
        cbr_w=cbr_w.astype(jnp.bfloat16),             # (384, C), rows = [rgb|depth|thermal]
        cbr_scale=cbr_scale, cbr_bias=cbr_bias,
    )


# ----------------------------------------------------------------------------
# Pure-JAX reference (mirrors the kernel's bf16 cast points for a tight comparison)
# ----------------------------------------------------------------------------

def reference_forward(rgb, thermal, depth, params):
    C = rgb.shape[-1]
    f32 = jnp.float32

    feats = []
    for m, x in enumerate((rgb, depth, thermal)):     # same modality order
        xb = x.astype(jnp.bfloat16)
        mean = jnp.mean(xb.astype(f32), axis=(1, 2))                     # (N, C)
        h = jnp.maximum(mean @ params["se_w1"][m] + params["se_b1"][m], 0.0)
        g = jax.nn.sigmoid(h @ params["se_w2"][m] + params["se_b2"][m])
        xs = (xb * g.astype(jnp.bfloat16)[:, None, None, :]).astype(f32)
        w = params["conv_w"][m].astype(f32).reshape(3, 3, C, 128)
        y = lax.conv_general_dilated(xs, w, (1, 1), ((1, 1), (1, 1)),
                                     dimension_numbers=("NHWC", "HWIO", "NHWC"))
        y = jnp.maximum(y * params["conv_scale"][m] + params["conv_bias"][m], 0.0)
        feats.append(y.astype(jnp.bfloat16).astype(f32))
    cat = jnp.concatenate(feats, axis=-1)                                # (N,H,W,384)
    w1 = params["cbr_w"].astype(f32)                                     # (384, C)
    z = jnp.einsum("nhwk,ko->nhwo", cat, w1)
    return jnp.maximum(z * params["cbr_scale"] + params["cbr_bias"], 0.0)


# ----------------------------------------------------------------------------

if __name__ == "__main__":
    N, C, H, W = 2, 32, 16, 16        # channels_in = 32 (divisible by SE reduction 16)
    key = jax.random.PRNGKey(0)
    k_rgb, k_th, k_dep, k_par = jax.random.split(key, 4)

    rgb = jax.random.normal(k_rgb, (N, H, W, C), jnp.float32)
    thermal = jax.random.normal(k_th, (N, H, W, C), jnp.float32)
    depth = jax.random.normal(k_dep, (N, H, W, C), jnp.float32)
    params = make_params(k_par, C)

    out = jax.block_until_ready(fuse_module_forward(rgb, thermal, depth, params))
    ref = jax.block_until_ready(reference_forward(rgb, thermal, depth, params))

    assert out.shape == (N, H, W, C), out.shape
    out_f = out.astype(jnp.float32)
    max_err = float(jnp.max(jnp.abs(out_f - ref)))
    assert jnp.allclose(out_f, ref, rtol=1e-2, atol=1e-2), max_err

    print("KERNEL_OK")
</pallas_src>

<mosaic_0001>
module attributes {stable_mosaic.version = 11 : i64} {
  func.func @_fuse_kernel(%arg0: i32, %arg1: memref<1x16x16x32xbf16, #tpu.memory_space<vmem>>, %arg2: memref<1x16x16x32xbf16, #tpu.memory_space<vmem>>, %arg3: memref<1x16x16x32xbf16, #tpu.memory_space<vmem>>, %arg4: memref<3x32x2xf32, #tpu.memory_space<vmem>>, %arg5: memref<3x1x2xf32, #tpu.memory_space<vmem>>, %arg6: memref<3x2x32xf32, #tpu.memory_space<vmem>>, %arg7: memref<3x1x32xf32, #tpu.memory_space<vmem>>, %arg8: memref<3x288x128xbf16, #tpu.memory_space<vmem>>, %arg9: memref<3x1x128xf32, #tpu.memory_space<vmem>>, %arg10: memref<3x1x128xf32, #tpu.memory_space<vmem>>, %arg11: memref<384x32xbf16, #tpu.memory_space<vmem>>, %arg12: memref<1x32xf32, #tpu.memory_space<vmem>>, %arg13: memref<1x32xf32, #tpu.memory_space<vmem>>, %arg14: memref<1x16x16x32xbf16, #tpu.memory_space<vmem>>, %arg15: memref<18x32x32xbf16, #tpu.memory_space<vmem>>, %arg16: memref<256x384xbf16, #tpu.memory_space<vmem>>) attributes {dimension_semantics = [#tpu.dimension_semantics<parallel>], iteration_bounds = array<i64: 2>, scalar_prefetch = 0 : i64, scratch_operands = 2 : i64, tpu.core_type = #tpu.core_type<tc>, window_params = [{transform_indices = @transform_0, window_bounds = array<i64: 1, 16, 16, 32>}, {transform_indices = @transform_1, window_bounds = array<i64: 1, 16, 16, 32>}, {transform_indices = @transform_2, window_bounds = array<i64: 1, 16, 16, 32>}, {pipeline_mode = #tpu.pipeline_mode<synchronous>, transform_indices = @transform_3, window_bounds = array<i64: 3, 32, 2>}, {pipeline_mode = #tpu.pipeline_mode<synchronous>, transform_indices = @transform_4, window_bounds = array<i64: 3, 1, 2>}, {pipeline_mode = #tpu.pipeline_mode<synchronous>, transform_indices = @transform_5, window_bounds = array<i64: 3, 2, 32>}, {pipeline_mode = #tpu.pipeline_mode<synchronous>, transform_indices = @transform_6, window_bounds = array<i64: 3, 1, 32>}, {pipeline_mode = #tpu.pipeline_mode<synchronous>, transform_indices = @transform_7, window_bounds = array<i64: 3, 288, 128>}, {pipeline_mode = #tpu.pipeline_mode<synchronous>, transform_indices = @transform_8, window_bounds = array<i64: 3, 1, 128>}, {pipeline_mode = #tpu.pipeline_mode<synchronous>, transform_indices = @transform_9, window_bounds = array<i64: 3, 1, 128>}, {pipeline_mode = #tpu.pipeline_mode<synchronous>, transform_indices = @transform_10, window_bounds = array<i64: 384, 32>}, {pipeline_mode = #tpu.pipeline_mode<synchronous>, transform_indices = @transform_11, window_bounds = array<i64: 1, 32>}, {pipeline_mode = #tpu.pipeline_mode<synchronous>, transform_indices = @transform_12, window_bounds = array<i64: 1, 32>}, {transform_indices = @transform_13, window_bounds = array<i64: 1, 16, 16, 32>}]} {
    %cst = arith.constant 0.000000e+00 : bf16
    %0 = vector.broadcast %cst : bf16 to vector<32x32xbf16>
    %c0 = arith.constant 0 : index
    %c0_0 = arith.constant 0 : index
    %c0_1 = arith.constant 0 : index
    %1 = vector.load %arg15[%c0, %c0_0, %c0_1] : memref<18x32x32xbf16, #tpu.memory_space<vmem>>, vector<1x32x32xbf16>
    %2 = vector.shape_cast %1 : vector<1x32x32xbf16> to vector<32x32xbf16>
    %3 = vector.shape_cast %0 : vector<32x32xbf16> to vector<1x32x32xbf16>
    tpu.vector_store %arg15[%c0, %c0_0, %c0_1], %3 {strides = array<i32>} : memref<18x32x32xbf16, #tpu.memory_space<vmem>>, vector<1x32x32xbf16>,
    %c17 = arith.constant 17 : index
    %c0_2 = arith.constant 0 : index
    %c0_3 = arith.constant 0 : index
    %4 = vector.load %arg15[%c17, %c0_2, %c0_3] : memref<18x32x32xbf16, #tpu.memory_space<vmem>>, vector<1x32x32xbf16>
    %5 = vector.shape_cast %4 : vector<1x32x32xbf16> to vector<32x32xbf16>
    %6 = vector.shape_cast %0 : vector<32x32xbf16> to vector<1x32x32xbf16>
    tpu.vector_store %arg15[%c17, %c0_2, %c0_3], %6 {strides = array<i32>} : memref<18x32x32xbf16, #tpu.memory_space<vmem>>, vector<1x32x32xbf16>,
    %cst_4 = arith.constant 0.000000e+00 : bf16
    %7 = vector.broadcast %cst_4 : bf16 to vector<16x8x32xbf16>
    %c1 = arith.constant 1 : index
    %c0_5 = arith.constant 0 : index
    %c0_6 = arith.constant 0 : index
    %8 = vector.load %arg15[%c1, %c0_5, %c0_6] : memref<18x32x32xbf16, #tpu.memory_space<vmem>>, vector<16x8x32xbf16>
    tpu.vector_store %arg15[%c1, %c0_5, %c0_6], %7 {strides = array<i32>} : memref<18x32x32xbf16, #tpu.memory_space<vmem>>, vector<16x8x32xbf16>,
    %c1_7 = arith.constant 1 : index
    %c24 = arith.constant 24 : index
    %c0_8 = arith.constant 0 : index
    %9 = vector.load %arg15[%c1_7, %c24, %c0_8] : memref<18x32x32xbf16, #tpu.memory_space<vmem>>, vector<16x8x32xbf16>
    tpu.vector_store %arg15[%c1_7, %c24, %c0_8], %7 {strides = array<i32>} : memref<18x32x32xbf16, #tpu.memory_space<vmem>>, vector<16x8x32xbf16>,
    %cst_9 = arith.constant 1.000000e+00 : bf16
    %10 = vector.broadcast %cst_9 : bf16 to vector<1x256xbf16>
    %c0_10 = arith.constant 0 : index
    %c0_11 = arith.constant 0 : index
    %c0_12 = arith.constant 0 : index
    %c0_13 = arith.constant 0 : index
    %11 = vector.load %arg1[%c0_10, %c0_11, %c0_12, %c0_13] : memref<1x16x16x32xbf16, #tpu.memory_space<vmem>>, vector<1x16x16x32xbf16>
    %12 = vector.shape_cast %11 : vector<1x16x16x32xbf16> to vector<16x16x32xbf16>
    %13 = vector.shape_cast %12 : vector<16x16x32xbf16> to vector<256x32xbf16>
    %cst_14 = arith.constant dense<0.000000e+00> : vector<1x32xf32>
    %14 = tpu.matmul %10, %13, %cst_14 {dimension_numbers = #tpu.dot_dimension_numbers<[1], [0], [0], [1], [0, 0, 1, 1], [], []>} : vector<1x256xbf16>, vector<256x32xbf16>, vector<1x32xf32> -> vector<1x32xf32>
    %cst_15 = arith.constant 3.906250e-03 : f32
    %15 = vector.broadcast %cst_15 : f32 to vector<1x32xf32>
    %16 = arith.mulf %14, %15 : vector<1x32xf32>
    %c0_16 = arith.constant 0 : index
    %c0_17 = arith.constant 0 : index
    %c0_18 = arith.constant 0 : index
    %17 = vector.load %arg4[%c0_16, %c0_17, %c0_18] : memref<3x32x2xf32, #tpu.memory_space<vmem>>, vector<1x32x2xf32>
    %18 = vector.shape_cast %17 : vector<1x32x2xf32> to vector<32x2xf32>
    %cst_19 = arith.constant dense<0.000000e+00> : vector<1x2xf32>
    %19 = tpu.matmul %16, %18, %cst_19 {dimension_numbers = #tpu.dot_dimension_numbers<[1], [0], [0], [1], [0, 0, 1, 1], [], []>} : vector<1x32xf32>, vector<32x2xf32>, vector<1x2xf32> -> vector<1x2xf32>
    %c0_20 = arith.constant 0 : index
    %c0_21 = arith.constant 0 : index
    %c0_22 = arith.constant 0 : index
    %20 = vector.load %arg5[%c0_20, %c0_21, %c0_22] : memref<3x1x2xf32, #tpu.memory_space<vmem>>, vector<1x1x2xf32>
    %21 = vector.shape_cast %20 : vector<1x1x2xf32> to vector<1x2xf32>
    %22 = arith.addf %19, %21 : vector<1x2xf32>
    %cst_23 = arith.constant 0.000000e+00 : f32
    %23 = vector.broadcast %cst_23 : f32 to vector<1x2xf32>
    %24 = arith.maximumf %22, %23 : vector<1x2xf32>
    %c0_24 = arith.constant 0 : index
    %c0_25 = arith.constant 0 : index
    %c0_26 = arith.constant 0 : index
    %25 = vector.load %arg6[%c0_24, %c0_25, %c0_26] : memref<3x2x32xf32, #tpu.memory_space<vmem>>, vector<1x2x32xf32>
    %26 = vector.shape_cast %25 : vector<1x2x32xf32> to vector<2x32xf32>
    %cst_27 = arith.constant dense<0.000000e+00> : vector<1x32xf32>
    %27 = tpu.matmul %24, %26, %cst_27 {dimension_numbers = #tpu.dot_dimension_numbers<[1], [0], [0], [1], [0, 0, 1, 1], [], []>} : vector<1x2xf32>, vector<2x32xf32>, vector<1x32xf32> -> vector<1x32xf32>
    %c0_28 = arith.constant 0 : index
    %c0_29 = arith.constant 0 : index
    %c0_30 = arith.constant 0 : index
    %28 = vector.load %arg7[%c0_28, %c0_29, %c0_30] : memref<3x1x32xf32, #tpu.memory_space<vmem>>, vector<1x1x32xf32>
    %29 = vector.shape_cast %28 : vector<1x1x32xf32> to vector<1x32xf32>
    %30 = arith.addf %27, %29 : vector<1x32xf32>
    %31 = arith.negf %30 : vector<1x32xf32>
    %32 = math.exp %31 : vector<1x32xf32>
    %cst_31 = arith.constant 1.000000e+00 : f32
    %33 = vector.broadcast %cst_31 : f32 to vector<1x32xf32>
    %34 = arith.addf %33, %32 : vector<1x32xf32>
    %35 = arith.divf %33, %34 : vector<1x32xf32>
    %36 = arith.truncf %35 : vector<1x32xf32> to vector<1x32xbf16>
    %37 = vector.shape_cast %36 : vector<1x32xbf16> to vector<1x1x32xbf16>
    %38 = vector.broadcast %37 : vector<1x1x32xbf16> to vector<16x16x32xbf16>
    %39 = arith.mulf %12, %38 : vector<16x16x32xbf16>
    %c1_32 = arith.constant 1 : index
    %c8 = arith.constant 8 : index
    %c0_33 = arith.constant 0 : index
    %40 = vector.load %arg15[%c1_32, %c8, %c0_33] : memref<18x32x32xbf16, #tpu.memory_space<vmem>>, vector<16x16x32xbf16>
    tpu.vector_store %arg15[%c1_32, %c8, %c0_33], %39 {strides = array<i32>} : memref<18x32x32xbf16, #tpu.memory_space<vmem>>, vector<16x16x32xbf16>,
    %c0_34 = arith.constant 0 : index
    %c7 = arith.constant 7 : index
    %c0_35 = arith.constant 0 : index
    %41 = vector.load %arg15[%c0_34, %c7, %c0_35] : memref<18x32x32xbf16, #tpu.memory_space<vmem>>, vector<16x16x32xbf16>
    %42 = vector.shape_cast %41 : vector<16x16x32xbf16> to vector<256x32xbf16>
    %c0_36 = arith.constant 0 : index
    %c8_37 = arith.constant 8 : index
    %c0_38 = arith.constant 0 : index
    %43 = vector.load %arg15[%c0_36, %c8_37, %c0_38] : memref<18x32x32xbf16, #tpu.memory_space<vmem>>, vector<16x16x32xbf16>
    %44 = vector.shape_cast %43 : vector<16x16x32xbf16> to vector<256x32xbf16>
    %c0_39 = arith.constant 0 : index
    %c9 = arith.constant 9 : index
    %c0_40 = arith.constant 0 : index
    %45 = vector.load %arg15[%c0_39, %c9, %c0_40] : memref<18x32x32xbf16, #tpu.memory_space<vmem>>, vector<16x16x32xbf16>
    %46 = vector.shape_cast %45 : vector<16x16x32xbf16> to vector<256x32xbf16>
    %c1_41 = arith.constant 1 : index
    %c7_42 = arith.constant 7 : index
    %c0_43 = arith.constant 0 : index
    %47 = vector.load %arg15[%c1_41, %c7_42, %c0_43] : memref<18x32x32xbf16, #tpu.memory_space<vmem>>, vector<16x16x32xbf16>
    %48 = vector.shape_cast %47 : vector<16x16x32xbf16> to vector<256x32xbf16>
    %c1_44 = arith.constant 1 : index
    %c8_45 = arith.constant 8 : index
    %c0_46 = arith.constant 0 : index
    %49 = vector.load %arg15[%c1_44, %c8_45, %c0_46] : memref<18x32x32xbf16, #tpu.memory_space<vmem>>, vector<16x16x32xbf16>
    %50 = vector.shape_cast %49 : vector<16x16x32xbf16> to vector<256x32xbf16>
    %c1_47 = arith.constant 1 : index
    %c9_48 = arith.constant 9 : index
    %c0_49 = arith.constant 0 : index
    %51 = vector.load %arg15[%c1_47, %c9_48, %c0_49] : memref<18x32x32xbf16, #tpu.memory_space<vmem>>, vector<16x16x32xbf16>
    %52 = vector.shape_cast %51 : vector<16x16x32xbf16> to vector<256x32xbf16>
    %c2 = arith.constant 2 : index
    %c7_50 = arith.constant 7 : index
    %c0_51 = arith.constant 0 : index
    %53 = vector.load %arg15[%c2, %c7_50, %c0_51] : memref<18x32x32xbf16, #tpu.memory_space<vmem>>, vector<16x16x32xbf16>
    %54 = vector.shape_cast %53 : vector<16x16x32xbf16> to vector<256x32xbf16>
    %c2_52 = arith.constant 2 : index
    %c8_53 = arith.constant 8 : index
    %c0_54 = arith.constant 0 : index
    %55 = vector.load %arg15[%c2_52, %c8_53, %c0_54] : memref<18x32x32xbf16, #tpu.memory_space<vmem>>, vector<16x16x32xbf16>
    %56 = vector.shape_cast %55 : vector<16x16x32xbf16> to vector<256x32xbf16>
    %c2_55 = arith.constant 2 : index
    %c9_56 = arith.constant 9 : index
    %c0_57 = arith.constant 0 : index
    %57 = vector.load %arg15[%c2_55, %c9_56, %c0_57] : memref<18x32x32xbf16, #tpu.memory_space<vmem>>, vector<16x16x32xbf16>
    %58 = vector.shape_cast %57 : vector<16x16x32xbf16> to vector<256x32xbf16>
    %59 = tpu.concatenate %42, %44, %46, %48, %50, %52, %54, %56, %58 in 1 : vector<256x32xbf16>, vector<256x32xbf16>, vector<256x32xbf16>, vector<256x32xbf16>, vector<256x32xbf16>, vector<256x32xbf16>, vector<256x32xbf16>, vector<256x32xbf16>, vector<256x32xbf16> -> vector<256x288xbf16>
    %c0_58 = arith.constant 0 : index
    %c0_59 = arith.constant 0 : index
    %c0_60 = arith.constant 0 : index
    %60 = vector.load %arg8[%c0_58, %c0_59, %c0_60] : memref<3x288x128xbf16, #tpu.memory_space<vmem>>, vector<1x288x128xbf16>
    %61 = vector.shape_cast %60 : vector<1x288x128xbf16> to vector<288x128xbf16>
    %cst_61 = arith.constant dense<0.000000e+00> : vector<256x128xf32>
    %62 = tpu.matmul %59, %61, %cst_61 {dimension_numbers = #tpu.dot_dimension_numbers<[1], [0], [0], [1], [0, 0, 1, 1], [], []>} : vector<256x288xbf16>, vector<288x128xbf16>, vector<256x128xf32> -> vector<256x128xf32>
    %c0_62 = arith.constant 0 : index
    %c0_63 = arith.constant 0 : index
    %c0_64 = arith.constant 0 : index
    %63 = vector.load %arg9[%c0_62, %c0_63, %c0_64] : memref<3x1x128xf32, #tpu.memory_space<vmem>>, vector<1x1x128xf32>
    %64 = vector.shape_cast %63 : vector<1x1x128xf32> to vector<1x128xf32>
    %65 = vector.broadcast %64 : vector<1x128xf32> to vector<256x128xf32>
    %66 = arith.mulf %62, %65 : vector<256x128xf32>
    %c0_65 = arith.constant 0 : index
    %c0_66 = arith.constant 0 : index
    %c0_67 = arith.constant 0 : index
    %67 = vector.load %arg10[%c0_65, %c0_66, %c0_67] : memref<3x1x128xf32, #tpu.memory_space<vmem>>, vector<1x1x128xf32>
    %68 = vector.shape_cast %67 : vector<1x1x128xf32> to vector<1x128xf32>
    %69 = vector.broadcast %68 : vector<1x128xf32> to vector<256x128xf32>
    %70 = arith.addf %66, %69 : vector<256x128xf32>
    %cst_68 = arith.constant 0.000000e+00 : f32
    %71 = vector.broadcast %cst_68 : f32 to vector<256x128xf32>
    %72 = arith.maximumf %70, %71 : vector<256x128xf32>
    %73 = arith.truncf %72 : vector<256x128xf32> to vector<256x128xbf16>
    %c0_69 = arith.constant 0 : index
    %c0_70 = arith.constant 0 : index
    %74 = vector.load %arg16[%c0_69, %c0_70] : memref<256x384xbf16, #tpu.memory_space<vmem>>, vector<256x128xbf16>
    tpu.vector_store %arg16[%c0_69, %c0_70], %73 {strides = array<i32>} : memref<256x384xbf16, #tpu.memory_space<vmem>>, vector<256x128xbf16>,
    %c0_71 = arith.constant 0 : index
    %c0_72 = arith.constant 0 : index
    %c0_73 = arith.constant 0 : index
    %c0_74 = arith.constant 0 : index
    %75 = vector.load %arg2[%c0_71, %c0_72, %c0_73, %c0_74] : memref<1x16x16x32xbf16, #tpu.memory_space<vmem>>, vector<1x16x16x32xbf16>
    %76 = vector.shape_cast %75 : vector<1x16x16x32xbf16> to vector<16x16x32xbf16>
    %77 = vector.shape_cast %76 : vector<16x16x32xbf16> to vector<256x32xbf16>
    %cst_75 = arith.constant dense<0.000000e+00> : vector<1x32xf32>
    %78 = tpu.matmul %10, %77, %cst_75 {dimension_numbers = #tpu.dot_dimension_numbers<[1], [0], [0], [1], [0, 0, 1, 1], [], []>} : vector<1x256xbf16>, vector<256x32xbf16>, vector<1x32xf32> -> vector<1x32xf32>
    %cst_76 = arith.constant 3.906250e-03 : f32
    %79 = vector.broadcast %cst_76 : f32 to vector<1x32xf32>
    %80 = arith.mulf %78, %79 : vector<1x32xf32>
    %c1_77 = arith.constant 1 : index
    %c0_78 = arith.constant 0 : index
    %c0_79 = arith.constant 0 : index
    %81 = vector.load %arg4[%c1_77, %c0_78, %c0_79] : memref<3x32x2xf32, #tpu.memory_space<vmem>>, vector<1x32x2xf32>
    %82 = vector.shape_cast %81 : vector<1x32x2xf32> to vector<32x2xf32>
    %cst_80 = arith.constant dense<0.000000e+00> : vector<1x2xf32>
    %83 = tpu.matmul %80, %82, %cst_80 {dimension_numbers = #tpu.dot_dimension_numbers<[1], [0], [0], [1], [0, 0, 1, 1], [], []>} : vector<1x32xf32>, vector<32x2xf32>, vector<1x2xf32> -> vector<1x2xf32>
    %c1_81 = arith.constant 1 : index
    %c0_82 = arith.constant 0 : index
    %c0_83 = arith.constant 0 : index
    %84 = vector.load %arg5[%c1_81, %c0_82, %c0_83] : memref<3x1x2xf32, #tpu.memory_space<vmem>>, vector<1x1x2xf32>
    %85 = vector.shape_cast %84 : vector<1x1x2xf32> to vector<1x2xf32>
    %86 = arith.addf %83, %85 : vector<1x2xf32>
    %cst_84 = arith.constant 0.000000e+00 : f32
    %87 = vector.broadcast %cst_84 : f32 to vector<1x2xf32>
    %88 = arith.maximumf %86, %87 : vector<1x2xf32>
    %c1_85 = arith.constant 1 : index
    %c0_86 = arith.constant 0 : index
    %c0_87 = arith.constant 0 : index
    %89 = vector.load %arg6[%c1_85, %c0_86, %c0_87] : memref<3x2x32xf32, #tpu.memory_space<vmem>>, vector<1x2x32xf32>
    %90 = vector.shape_cast %89 : vector<1x2x32xf32> to vector<2x32xf32>
    %cst_88 = arith.constant dense<0.000000e+00> : vector<1x32xf32>
    %91 = tpu.matmul %88, %90, %cst_88 {dimension_numbers = #tpu.dot_dimension_numbers<[1], [0], [0], [1], [0, 0, 1, 1], [], []>} : vector<1x2xf32>, vector<2x32xf32>, vector<1x32xf32> -> vector<1x32xf32>
    %c1_89 = arith.constant 1 : index
    %c0_90 = arith.constant 0 : index
    %c0_91 = arith.constant 0 : index
    %92 = vector.load %arg7[%c1_89, %c0_90, %c0_91] : memref<3x1x32xf32, #tpu.memory_space<vmem>>, vector<1x1x32xf32>
    %93 = vector.shape_cast %92 : vector<1x1x32xf32> to vector<1x32xf32>
    %94 = arith.addf %91, %93 : vector<1x32xf32>
    %95 = arith.negf %94 : vector<1x32xf32>
    %96 = math.exp %95 : vector<1x32xf32>
    %cst_92 = arith.constant 1.000000e+00 : f32
    %97 = vector.broadcast %cst_92 : f32 to vector<1x32xf32>
    %98 = arith.addf %97, %96 : vector<1x32xf32>
    %99 = arith.divf %97, %98 : vector<1x32xf32>
    %100 = arith.truncf %99 : vector<1x32xf32> to vector<1x32xbf16>
    %101 = vector.shape_cast %100 : vector<1x32xbf16> to vector<1x1x32xbf16>
    %102 = vector.broadcast %101 : vector<1x1x32xbf16> to vector<16x16x32xbf16>
    %103 = arith.mulf %76, %102 : vector<16x16x32xbf16>
    %c1_93 = arith.constant 1 : index
    %c8_94 = arith.constant 8 : index
    %c0_95 = arith.constant 0 : index
    %104 = vector.load %arg15[%c1_93, %c8_94, %c0_95] : memref<18x32x32xbf16, #tpu.memory_space<vmem>>, vector<16x16x32xbf16>
    tpu.vector_store %arg15[%c1_93, %c8_94, %c0_95], %103 {strides = array<i32>} : memref<18x32x32xbf16, #tpu.memory_space<vmem>>, vector<16x16x32xbf16>,
    %c0_96 = arith.constant 0 : index
    %c7_97 = arith.constant 7 : index
    %c0_98 = arith.constant 0 : index
    %105 = vector.load %arg15[%c0_96, %c7_97, %c0_98] : memref<18x32x32xbf16, #tpu.memory_space<vmem>>, vector<16x16x32xbf16>
    %106 = vector.shape_cast %105 : vector<16x16x32xbf16> to vector<256x32xbf16>
    %c0_99 = arith.constant 0 : index
    %c8_100 = arith.constant 8 : index
    %c0_101 = arith.constant 0 : index
    %107 = vector.load %arg15[%c0_99, %c8_100, %c0_101] : memref<18x32x32xbf16, #tpu.memory_space<vmem>>, vector<16x16x32xbf16>
    %108 = vector.shape_cast %107 : vector<16x16x32xbf16> to vector<256x32xbf16>
    %c0_102 = arith.constant 0 : index
    %c9_103 = arith.constant 9 : index
    %c0_104 = arith.constant 0 : index
    %109 = vector.load %arg15[%c0_102, %c9_103, %c0_104] : memref<18x32x32xbf16, #tpu.memory_space<vmem>>, vector<16x16x32xbf16>
    %110 = vector.shape_cast %109 : vector<16x16x32xbf16> to vector<256x32xbf16>
    %c1_105 = arith.constant 1 : index
    %c7_106 = arith.constant 7 : index
    %c0_107 = arith.constant 0 : index
    %111 = vector.load %arg15[%c1_105, %c7_106, %c0_107] : memref<18x32x32xbf16, #tpu.memory_space<vmem>>, vector<16x16x32xbf16>
    %112 = vector.shape_cast %111 : vector<16x16x32xbf16> to vector<256x32xbf16>
    %c1_108 = arith.constant 1 : index
    %c8_109 = arith.constant 8 : index
    %c0_110 = arith.constant 0 : index
    %113 = vector.load %arg15[%c1_108, %c8_109, %c0_110] : memref<18x32x32xbf16, #tpu.memory_space<vmem>>, vector<16x16x32xbf16>
    %114 = vector.shape_cast %113 : vector<16x16x32xbf16> to vector<256x32xbf16>
    %c1_111 = arith.constant 1 : index
    %c9_112 = arith.constant 9 : index
    %c0_113 = arith.constant 0 : index
    %115 = vector.load %arg15[%c1_111, %c9_112, %c0_113] : memref<18x32x32xbf16, #tpu.memory_space<vmem>>, vector<16x16x32xbf16>
    %116 = vector.shape_cast %115 : vector<16x16x32xbf16> to vector<256x32xbf16>
    %c2_114 = arith.constant 2 : index
    %c7_115 = arith.constant 7 : index
    %c0_116 = arith.constant 0 : index
    %117 = vector.load %arg15[%c2_114, %c7_115, %c0_116] : memref<18x32x32xbf16, #tpu.memory_space<vmem>>, vector<16x16x32xbf16>
    %118 = vector.shape_cast %117 : vector<16x16x32xbf16> to vector<256x32xbf16>
    %c2_117 = arith.constant 2 : index
    %c8_118 = arith.constant 8 : index
    %c0_119 = arith.constant 0 : index
    %119 = vector.load %arg15[%c2_117, %c8_118, %c0_119] : memref<18x32x32xbf16, #tpu.memory_space<vmem>>, vector<16x16x32xbf16>
    %120 = vector.shape_cast %119 : vector<16x16x32xbf16> to vector<256x32xbf16>
    %c2_120 = arith.constant 2 : index
    %c9_121 = arith.constant 9 : index
    %c0_122 = arith.constant 0 : index
    %121 = vector.load %arg15[%c2_120, %c9_121, %c0_122] : memref<18x32x32xbf16, #tpu.memory_space<vmem>>, vector<16x16x32xbf16>
    %122 = vector.shape_cast %121 : vector<16x16x32xbf16> to vector<256x32xbf16>
    %123 = tpu.concatenate %106, %108, %110, %112, %114, %116, %118, %120, %122 in 1 : vector<256x32xbf16>, vector<256x32xbf16>, vector<256x32xbf16>, vector<256x32xbf16>, vector<256x32xbf16>, vector<256x32xbf16>, vector<256x32xbf16>, vector<256x32xbf16>, vector<256x32xbf16> -> vector<256x288xbf16>
    %c1_123 = arith.constant 1 : index
    %c0_124 = arith.constant 0 : index
    %c0_125 = arith.constant 0 : index
    %124 = vector.load %arg8[%c1_123, %c0_124, %c0_125] : memref<3x288x128xbf16, #tpu.memory_space<vmem>>, vector<1x288x128xbf16>
    %125 = vector.shape_cast %124 : vector<1x288x128xbf16> to vector<288x128xbf16>
    %cst_126 = arith.constant dense<0.000000e+00> : vector<256x128xf32>
    %126 = tpu.matmul %123, %125, %cst_126 {dimension_numbers = #tpu.dot_dimension_numbers<[1], [0], [0], [1], [0, 0, 1, 1], [], []>} : vector<256x288xbf16>, vector<288x128xbf16>, vector<256x128xf32> -> vector<256x128xf32>
    %c1_127 = arith.constant 1 : index
    %c0_128 = arith.constant 0 : index
    %c0_129 = arith.constant 0 : index
    %127 = vector.load %arg9[%c1_127, %c0_128, %c0_129] : memref<3x1x128xf32, #tpu.memory_space<vmem>>, vector<1x1x128xf32>
    %128 = vector.shape_cast %127 : vector<1x1x128xf32> to vector<1x128xf32>
    %129 = vector.broadcast %128 : vector<1x128xf32> to vector<256x128xf32>
    %130 = arith.mulf %126, %129 : vector<256x128xf32>
    %c1_130 = arith.constant 1 : index
    %c0_131 = arith.constant 0 : index
    %c0_132 = arith.constant 0 : index
    %131 = vector.load %arg10[%c1_130, %c0_131, %c0_132] : memref<3x1x128xf32, #tpu.memory_space<vmem>>, vector<1x1x128xf32>
    %132 = vector.shape_cast %131 : vector<1x1x128xf32> to vector<1x128xf32>
    %133 = vector.broadcast %132 : vector<1x128xf32> to vector<256x128xf32>
    %134 = arith.addf %130, %133 : vector<256x128xf32>
    %cst_133 = arith.constant 0.000000e+00 : f32
    %135 = vector.broadcast %cst_133 : f32 to vector<256x128xf32>
    %136 = arith.maximumf %134, %135 : vector<256x128xf32>
    %137 = arith.truncf %136 : vector<256x128xf32> to vector<256x128xbf16>
    %c0_134 = arith.constant 0 : index
    %c128 = arith.constant 128 : index
    %138 = vector.load %arg16[%c0_134, %c128] : memref<256x384xbf16, #tpu.memory_space<vmem>>, vector<256x128xbf16>
    tpu.vector_store %arg16[%c0_134, %c128], %137 {strides = array<i32>} : memref<256x384xbf16, #tpu.memory_space<vmem>>, vector<256x128xbf16>,
    %c0_135 = arith.constant 0 : index
    %c0_136 = arith.constant 0 : index
    %c0_137 = arith.constant 0 : index
    %c0_138 = arith.constant 0 : index
    %139 = vector.load %arg3[%c0_135, %c0_136, %c0_137, %c0_138] : memref<1x16x16x32xbf16, #tpu.memory_space<vmem>>, vector<1x16x16x32xbf16>
    %140 = vector.shape_cast %139 : vector<1x16x16x32xbf16> to vector<16x16x32xbf16>
    %141 = vector.shape_cast %140 : vector<16x16x32xbf16> to vector<256x32xbf16>
    %cst_139 = arith.constant dense<0.000000e+00> : vector<1x32xf32>
    %142 = tpu.matmul %10, %141, %cst_139 {dimension_numbers = #tpu.dot_dimension_numbers<[1], [0], [0], [1], [0, 0, 1, 1], [], []>} : vector<1x256xbf16>, vector<256x32xbf16>, vector<1x32xf32> -> vector<1x32xf32>
    %cst_140 = arith.constant 3.906250e-03 : f32
    %143 = vector.broadcast %cst_140 : f32 to vector<1x32xf32>
    %144 = arith.mulf %142, %143 : vector<1x32xf32>
    %c2_141 = arith.constant 2 : index
    %c0_142 = arith.constant 0 : index
    %c0_143 = arith.constant 0 : index
    %145 = vector.load %arg4[%c2_141, %c0_142, %c0_143] : memref<3x32x2xf32, #tpu.memory_space<vmem>>, vector<1x32x2xf32>
    %146 = vector.shape_cast %145 : vector<1x32x2xf32> to vector<32x2xf32>
    %cst_144 = arith.constant dense<0.000000e+00> : vector<1x2xf32>
    %147 = tpu.matmul %144, %146, %cst_144 {dimension_numbers = #tpu.dot_dimension_numbers<[1], [0], [0], [1], [0, 0, 1, 1], [], []>} : vector<1x32xf32>, vector<32x2xf32>, vector<1x2xf32> -> vector<1x2xf32>
    %c2_145 = arith.constant 2 : index
    %c0_146 = arith.constant 0 : index
    %c0_147 = arith.constant 0 : index
    %148 = vector.load %arg5[%c2_145, %c0_146, %c0_147] : memref<3x1x2xf32, #tpu.memory_space<vmem>>, vector<1x1x2xf32>
    %149 = vector.shape_cast %148 : vector<1x1x2xf32> to vector<1x2xf32>
    %150 = arith.addf %147, %149 : vector<1x2xf32>
    %cst_148 = arith.constant 0.000000e+00 : f32
    %151 = vector.broadcast %cst_148 : f32 to vector<1x2xf32>
    %152 = arith.maximumf %150, %151 : vector<1x2xf32>
    %c2_149 = arith.constant 2 : index
    %c0_150 = arith.constant 0 : index
    %c0_151 = arith.constant 0 : index
    %153 = vector.load %arg6[%c2_149, %c0_150, %c0_151] : memref<3x2x32xf32, #tpu.memory_space<vmem>>, vector<1x2x32xf32>
    %154 = vector.shape_cast %153 : vector<1x2x32xf32> to vector<2x32xf32>
    %cst_152 = arith.constant dense<0.000000e+00> : vector<1x32xf32>
    %155 = tpu.matmul %152, %154, %cst_152 {dimension_numbers = #tpu.dot_dimension_numbers<[1], [0], [0], [1], [0, 0, 1, 1], [], []>} : vector<1x2xf32>, vector<2x32xf32>, vector<1x32xf32> -> vector<1x32xf32>
    %c2_153 = arith.constant 2 : index
    %c0_154 = arith.constant 0 : index
    %c0_155 = arith.constant 0 : index
    %156 = vector.load %arg7[%c2_153, %c0_154, %c0_155] : memref<3x1x32xf32, #tpu.memory_space<vmem>>, vector<1x1x32xf32>
    %157 = vector.shape_cast %156 : vector<1x1x32xf32> to vector<1x32xf32>
    %158 = arith.addf %155, %157 : vector<1x32xf32>
    %159 = arith.negf %158 : vector<1x32xf32>
    %160 = math.exp %159 : vector<1x32xf32>
    %cst_156 = arith.constant 1.000000e+00 : f32
    %161 = vector.broadcast %cst_156 : f32 to vector<1x32xf32>
    %162 = arith.addf %161, %160 : vector<1x32xf32>
    %163 = arith.divf %161, %162 : vector<1x32xf32>
    %164 = arith.truncf %163 : vector<1x32xf32> to vector<1x32xbf16>
    %165 = vector.shape_cast %164 : vector<1x32xbf16> to vector<1x1x32xbf16>
    %166 = vector.broadcast %165 : vector<1x1x32xbf16> to vector<16x16x32xbf16>
    %167 = arith.mulf %140, %166 : vector<16x16x32xbf16>
    %c1_157 = arith.constant 1 : index
    %c8_158 = arith.constant 8 : index
    %c0_159 = arith.constant 0 : index
    %168 = vector.load %arg15[%c1_157, %c8_158, %c0_159] : memref<18x32x32xbf16, #tpu.memory_space<vmem>>, vector<16x16x32xbf16>
    tpu.vector_store %arg15[%c1_157, %c8_158, %c0_159], %167 {strides = array<i32>} : memref<18x32x32xbf16, #tpu.memory_space<vmem>>, vector<16x16x32xbf16>,
    %c0_160 = arith.constant 0 : index
    %c7_161 = arith.constant 7 : index
    %c0_162 = arith.constant 0 : index
    %169 = vector.load %arg15[%c0_160, %c7_161, %c0_162] : memref<18x32x32xbf16, #tpu.memory_space<vmem>>, vector<16x16x32xbf16>
    %170 = vector.shape_cast %169 : vector<16x16x32xbf16> to vector<256x32xbf16>
    %c0_163 = arith.constant 0 : index
    %c8_164 = arith.constant 8 : index
    %c0_165 = arith.constant 0 : index
    %171 = vector.load %arg15[%c0_163, %c8_164, %c0_165] : memref<18x32x32xbf16, #tpu.memory_space<vmem>>, vector<16x16x32xbf16>
    %172 = vector.shape_cast %171 : vector<16x16x32xbf16> to vector<256x32xbf16>
    %c0_166 = arith.constant 0 : index
    %c9_167 = arith.constant 9 : index
    %c0_168 = arith.constant 0 : index
    %173 = vector.load %arg15[%c0_166, %c9_167, %c0_168] : memref<18x32x32xbf16, #tpu.memory_space<vmem>>, vector<16x16x32xbf16>
    %174 = vector.shape_cast %173 : vector<16x16x32xbf16> to vector<256x32xbf16>
    %c1_169 = arith.constant 1 : index
    %c7_170 = arith.constant 7 : index
    %c0_171 = arith.constant 0 : index
    %175 = vector.load %arg15[%c1_169, %c7_170, %c0_171] : memref<18x32x32xbf16, #tpu.memory_space<vmem>>, vector<16x16x32xbf16>
    %176 = vector.shape_cast %175 : vector<16x16x32xbf16> to vector<256x32xbf16>
    %c1_172 = arith.constant 1 : index
    %c8_173 = arith.constant 8 : index
    %c0_174 = arith.constant 0 : index
    %177 = vector.load %arg15[%c1_172, %c8_173, %c0_174] : memref<18x32x32xbf16, #tpu.memory_space<vmem>>, vector<16x16x32xbf16>
    %178 = vector.shape_cast %177 : vector<16x16x32xbf16> to vector<256x32xbf16>
    %c1_175 = arith.constant 1 : index
    %c9_176 = arith.constant 9 : index
    %c0_177 = arith.constant 0 : index
    %179 = vector.load %arg15[%c1_175, %c9_176, %c0_177] : memref<18x32x32xbf16, #tpu.memory_space<vmem>>, vector<16x16x32xbf16>
    %180 = vector.shape_cast %179 : vector<16x16x32xbf16> to vector<256x32xbf16>
    %c2_178 = arith.constant 2 : index
    %c7_179 = arith.constant 7 : index
    %c0_180 = arith.constant 0 : index
    %181 = vector.load %arg15[%c2_178, %c7_179, %c0_180] : memref<18x32x32xbf16, #tpu.memory_space<vmem>>, vector<16x16x32xbf16>
    %182 = vector.shape_cast %181 : vector<16x16x32xbf16> to vector<256x32xbf16>
    %c2_181 = arith.constant 2 : index
    %c8_182 = arith.constant 8 : index
    %c0_183 = arith.constant 0 : index
    %183 = vector.load %arg15[%c2_181, %c8_182, %c0_183] : memref<18x32x32xbf16, #tpu.memory_space<vmem>>, vector<16x16x32xbf16>
    %184 = vector.shape_cast %183 : vector<16x16x32xbf16> to vector<256x32xbf16>
    %c2_184 = arith.constant 2 : index
    %c9_185 = arith.constant 9 : index
    %c0_186 = arith.constant 0 : index
    %185 = vector.load %arg15[%c2_184, %c9_185, %c0_186] : memref<18x32x32xbf16, #tpu.memory_space<vmem>>, vector<16x16x32xbf16>
    %186 = vector.shape_cast %185 : vector<16x16x32xbf16> to vector<256x32xbf16>
    %187 = tpu.concatenate %170, %172, %174, %176, %178, %180, %182, %184, %186 in 1 : vector<256x32xbf16>, vector<256x32xbf16>, vector<256x32xbf16>, vector<256x32xbf16>, vector<256x32xbf16>, vector<256x32xbf16>, vector<256x32xbf16>, vector<256x32xbf16>, vector<256x32xbf16> -> vector<256x288xbf16>
    %c2_187 = arith.constant 2 : index
    %c0_188 = arith.constant 0 : index
    %c0_189 = arith.constant 0 : index
    %188 = vector.load %arg8[%c2_187, %c0_188, %c0_189] : memref<3x288x128xbf16, #tpu.memory_space<vmem>>, vector<1x288x128xbf16>
    %189 = vector.shape_cast %188 : vector<1x288x128xbf16> to vector<288x128xbf16>
    %cst_190 = arith.constant dense<0.000000e+00> : vector<256x128xf32>
    %190 = tpu.matmul %187, %189, %cst_190 {dimension_numbers = #tpu.dot_dimension_numbers<[1], [0], [0], [1], [0, 0, 1, 1], [], []>} : vector<256x288xbf16>, vector<288x128xbf16>, vector<256x128xf32> -> vector<256x128xf32>
    %c2_191 = arith.constant 2 : index
    %c0_192 = arith.constant 0 : index
    %c0_193 = arith.constant 0 : index
    %191 = vector.load %arg9[%c2_191, %c0_192, %c0_193] : memref<3x1x128xf32, #tpu.memory_space<vmem>>, vector<1x1x128xf32>
    %192 = vector.shape_cast %191 : vector<1x1x128xf32> to vector<1x128xf32>
    %193 = vector.broadcast %192 : vector<1x128xf32> to vector<256x128xf32>
    %194 = arith.mulf %190, %193 : vector<256x128xf32>
    %c2_194 = arith.constant 2 : index
    %c0_195 = arith.constant 0 : index
    %c0_196 = arith.constant 0 : index
    %195 = vector.load %arg10[%c2_194, %c0_195, %c0_196] : memref<3x1x128xf32, #tpu.memory_space<vmem>>, vector<1x1x128xf32>
    %196 = vector.shape_cast %195 : vector<1x1x128xf32> to vector<1x128xf32>
    %197 = vector.broadcast %196 : vector<1x128xf32> to vector<256x128xf32>
    %198 = arith.addf %194, %197 : vector<256x128xf32>
    %cst_197 = arith.constant 0.000000e+00 : f32
    %199 = vector.broadcast %cst_197 : f32 to vector<256x128xf32>
    %200 = arith.maximumf %198, %199 : vector<256x128xf32>
    %201 = arith.truncf %200 : vector<256x128xf32> to vector<256x128xbf16>
    %c0_198 = arith.constant 0 : index
    %c256 = arith.constant 256 : index
    %202 = vector.load %arg16[%c0_198, %c256] : memref<256x384xbf16, #tpu.memory_space<vmem>>, vector<256x128xbf16>
    tpu.vector_store %arg16[%c0_198, %c256], %201 {strides = array<i32>} : memref<256x384xbf16, #tpu.memory_space<vmem>>, vector<256x128xbf16>,
    %c0_199 = arith.constant 0 : index
    %c0_200 = arith.constant 0 : index
    %203 = vector.load %arg16[%c0_199, %c0_200] : memref<256x384xbf16, #tpu.memory_space<vmem>>, vector<256x384xbf16>
    %c0_201 = arith.constant 0 : index
    %c0_202 = arith.constant 0 : index
    %204 = vector.load %arg11[%c0_201, %c0_202] : memref<384x32xbf16, #tpu.memory_space<vmem>>, vector<384x32xbf16>
    %cst_203 = arith.constant dense<0.000000e+00> : vector<256x32xf32>
    %205 = tpu.matmul %203, %204, %cst_203 {dimension_numbers = #tpu.dot_dimension_numbers<[1], [0], [0], [1], [0, 0, 1, 1], [], []>} : vector<256x384xbf16>, vector<384x32xbf16>, vector<256x32xf32> -> vector<256x32xf32>
    %c0_204 = arith.constant 0 : index
    %c0_205 = arith.constant 0 : index
    %206 = vector.load %arg12[%c0_204, %c0_205] : memref<1x32xf32, #tpu.memory_space<vmem>>, vector<1x32xf32>
    %207 = vector.broadcast %206 : vector<1x32xf32> to vector<256x32xf32>
    %208 = arith.mulf %205, %207 : vector<256x32xf32>
    %c0_206 = arith.constant 0 : index
    %c0_207 = arith.constant 0 : index
    %209 = vector.load %arg13[%c0_206, %c0_207] : memref<1x32xf32, #tpu.memory_space<vmem>>, vector<1x32xf32>
    %210 = vector.broadcast %209 : vector<1x32xf32> to vector<256x32xf32>
    %211 = arith.addf %208, %210 : vector<256x32xf32>
    %cst_208 = arith.constant 0.000000e+00 : f32
    %212 = vector.broadcast %cst_208 : f32 to vector<256x32xf32>
    %213 = arith.maximumf %211, %212 : vector<256x32xf32>
    %214 = arith.truncf %213 : vector<256x32xf32> to vector<256x32xbf16>
    %215 = vector.shape_cast %214 : vector<256x32xbf16> to vector<1x16x16x32xbf16>
    %c0_209 = arith.constant 0 : index
    %c0_210 = arith.constant 0 : index
    %c0_211 = arith.constant 0 : index
    %c0_212 = arith.constant 0 : index
    %216 = vector.load %arg14[%c0_209, %c0_210, %c0_211, %c0_212] : memref<1x16x16x32xbf16, #tpu.memory_space<vmem>>, vector<1x16x16x32xbf16>
    tpu.vector_store %arg14[%c0_209, %c0_210, %c0_211, %c0_212], %215 {strides = array<i32>} : memref<1x16x16x32xbf16, #tpu.memory_space<vmem>>, vector<1x16x16x32xbf16>,
    return
  }
  func.func @transform_0(%arg0: i32) -> (i32, i32, i32, i32) {
    %c0_i32 = arith.constant 0 : i32
    %c0_i32_0 = arith.constant 0 : i32
    %c0_i32_1 = arith.constant 0 : i32
    %c0_i32_2 = arith.constant 0 : i32
    return %arg0, %c0_i32, %c0_i32_0, %c0_i32_1 : i32, i32, i32, i32
  }
  func.func @transform_1(%arg0: i32) -> (i32, i32, i32, i32) {
    %c0_i32 = arith.constant 0 : i32
    %c0_i32_0 = arith.constant 0 : i32
    %c0_i32_1 = arith.constant 0 : i32
    %c0_i32_2 = arith.constant 0 : i32
    return %arg0, %c0_i32, %c0_i32_0, %c0_i32_1 : i32, i32, i32, i32
  }
  func.func @transform_2(%arg0: i32) -> (i32, i32, i32, i32) {
    %c0_i32 = arith.constant 0 : i32
    %c0_i32_0 = arith.constant 0 : i32
    %c0_i32_1 = arith.constant 0 : i32
    %c0_i32_2 = arith.constant 0 : i32
    return %arg0, %c0_i32, %c0_i32_0, %c0_i32_1 : i32, i32, i32, i32
  }
  func.func @transform_3(%arg0: i32) -> (i32, i32, i32) {
    %c0_i32 = arith.constant 0 : i32
    %c0_i32_0 = arith.constant 0 : i32
    %c0_i32_1 = arith.constant 0 : i32
    %c0_i32_2 = arith.constant 0 : i32
    return %c0_i32, %c0_i32_0, %c0_i32_1 : i32, i32, i32
  }
  func.func @transform_4(%arg0: i32) -> (i32, i32, i32) {
    %c0_i32 = arith.constant 0 : i32
    %c0_i32_0 = arith.constant 0 : i32
    %c0_i32_1 = arith.constant 0 : i32
    %c0_i32_2 = arith.constant 0 : i32
    return %c0_i32, %c0_i32_0, %c0_i32_1 : i32, i32, i32
  }
  func.func @transform_5(%arg0: i32) -> (i32, i32, i32) {
    %c0_i32 = arith.constant 0 : i32
    %c0_i32_0 = arith.constant 0 : i32
    %c0_i32_1 = arith.constant 0 : i32
    %c0_i32_2 = arith.constant 0 : i32
    return %c0_i32, %c0_i32_0, %c0_i32_1 : i32, i32, i32
  }
  func.func @transform_6(%arg0: i32) -> (i32, i32, i32) {
    %c0_i32 = arith.constant 0 : i32
    %c0_i32_0 = arith.constant 0 : i32
    %c0_i32_1 = arith.constant 0 : i32
    %c0_i32_2 = arith.constant 0 : i32
    return %c0_i32, %c0_i32_0, %c0_i32_1 : i32, i32, i32
  }
  func.func @transform_7(%arg0: i32) -> (i32, i32, i32) {
    %c0_i32 = arith.constant 0 : i32
    %c0_i32_0 = arith.constant 0 : i32
    %c0_i32_1 = arith.constant 0 : i32
    %c0_i32_2 = arith.constant 0 : i32
    return %c0_i32, %c0_i32_0, %c0_i32_1 : i32, i32, i32
  }
  func.func @transform_8(%arg0: i32) -> (i32, i32, i32) {
    %c0_i32 = arith.constant 0 : i32
    %c0_i32_0 = arith.constant 0 : i32
    %c0_i32_1 = arith.constant 0 : i32
    %c0_i32_2 = arith.constant 0 : i32
    return %c0_i32, %c0_i32_0, %c0_i32_1 : i32, i32, i32
  }
  func.func @transform_9(%arg0: i32) -> (i32, i32, i32) {
    %c0_i32 = arith.constant 0 : i32
    %c0_i32_0 = arith.constant 0 : i32
    %c0_i32_1 = arith.constant 0 : i32
    %c0_i32_2 = arith.constant 0 : i32
    return %c0_i32, %c0_i32_0, %c0_i32_1 : i32, i32, i32
  }
  func.func @transform_10(%arg0: i32) -> (i32, i32) {
    %c0_i32 = arith.constant 0 : i32
    %c0_i32_0 = arith.constant 0 : i32
    %c0_i32_1 = arith.constant 0 : i32
    return %c0_i32, %c0_i32_0 : i32, i32
  }
  func.func @transform_11(%arg0: i32) -> (i32, i32) {
    %c0_i32 = arith.constant 0 : i32
    %c0_i32_0 = arith.constant 0 : i32
    %c0_i32_1 = arith.constant 0 : i32
    return %c0_i32, %c0_i32_0 : i32, i32
  }
  func.func @transform_12(%arg0: i32) -> (i32, i32) {
    %c0_i32 = arith.constant 0 : i32
    %c0_i32_0 = arith.constant 0 : i32
    %c0_i32_1 = arith.constant 0 : i32
    return %c0_i32, %c0_i32_0 : i32, i32
  }
  func.func @transform_13(%arg0: i32) -> (i32, i32, i32, i32) {
    %c0_i32 = arith.constant 0 : i32
    %c0_i32_0 = arith.constant 0 : i32
    %c0_i32_1 = arith.constant 0 : i32
    %c0_i32_2 = arith.constant 0 : i32
    return %arg0, %c0_i32, %c0_i32_0, %c0_i32_1 : i32, i32, i32, i32
  }
}

</mosaic_0001>

<llo_original>
// kernel: fuse_module_forward.1
$region0: #{fuse_module_forward.1}
  #allocation0 [shape = 'u32[]', space=smem, size = 0x4, offset = 0x4, fixed_abs, tag = 'smem constant byte address 0x4 - core index']
  #allocation1 [shape = 'u32[144,128]{1,0:T(1,128)}', space=vmem, size = 0x12000, scoped, tag = 'internal scratch']
  #allocation2 [shape = 'bf16[18,32,32]{2,1,0:T(16,128)(2,1)}', space=vmem, size = 0x24000, scoped, tag = 'scratch operand']
  #allocation3 [shape = 'bf16[256,384]{1,0:T(16,128)(2,1)}', space=vmem, size = 0x30000, scoped, tag = 'scratch operand']
  %s0 = inlined_call_operand.vmem [shape: bf16[2,16,16,32], index: 0, kind: input, shape index: {}]
  %s1 = inlined_call_operand.vmem [shape: bf16[2,16,16,32], index: 1, kind: input, shape index: {}]
  %s2 = inlined_call_operand.vmem [shape: bf16[2,16,16,32], index: 2, kind: input, shape index: {}]
  %s3 = inlined_call_operand.vmem [shape: f32[3,32,2], index: 3, kind: input, shape index: {}]
  %s4 = inlined_call_operand.vmem [shape: f32[3,1,2], index: 4, kind: input, shape index: {}]
  %s5 = inlined_call_operand.vmem [shape: f32[3,2,32], index: 5, kind: input, shape index: {}]
  %s6 = inlined_call_operand.vmem [shape: f32[3,1,32], index: 6, kind: input, shape index: {}]
  %s7 = inlined_call_operand.vmem [shape: bf16[3,288,128], index: 7, kind: input, shape index: {}]
  %s8 = inlined_call_operand.vmem [shape: f32[3,1,128], index: 8, kind: input, shape index: {}]
  %s9 = inlined_call_operand.vmem [shape: f32[3,1,128], index: 9, kind: input, shape index: {}]
  %s10 = inlined_call_operand.vmem [shape: bf16[384,32], index: 10, kind: input, shape index: {}]
  %s11 = inlined_call_operand.vmem [shape: f32[1,32], index: 11, kind: input, shape index: {}]
  %s12 = inlined_call_operand.vmem [shape: f32[1,32], index: 12, kind: input, shape index: {}]
  %s13 = inlined_call_operand.hbm [shape: bf16[2,16,16,32], index: 13, kind: output, shape index: {}]
  %s14 = sld [smem:[#allocation0]]
  $region85: #{fuse_module_forward.1} parent=0
    _
  %s16 = ssub.s32 1, %s14
  %s17 = scalar_select 0, %s16, %s14
  $region1: #{fuse_module_forward.1} parent=0
    #allocation4 [shape = 'u8[131072]{0}', space=vmem, size = 0x20000, scoped, tag = 'output window, operand 0']
    #allocation5 [shape = 's32[2]{0}', space=sflag, size = 0x8, scoped, tag = 'scoped memory for fuse_module_forward.1']
    %18 = vsyncpa [#allocation5], 0
    %s19 = scalar_lea.sflag [#allocation5], 1
    %20 = vsyncpa %s19, 0
    loop: start=0, step=1, limit=4
    $region2: #{fuse_module_forward.1} parent=1 // loop_pre_header
      _
    $region3: #{fuse_module_forward.1} parent=1 // loop_header
      %s22 = sphi 0, %s26
      %p23 = scmp.ge.s32.totalorder %s22, 4
      %s32 = sphi 0, %s34
      %s35 = sphi 0, %s32
      %s36 = sphi 0, %s35
      %s52 = sphi 0, %s36
      %s58 = sphi 0, %s60
      %s61 = sphi 0, %s58
      %s62 = sphi 0, %s61
      %s78 = sphi 0, %s62
      %s84 = sphi 0, %s86
      %s87 = sphi 0, %s84
      %s88 = sphi 0, %s87
      %s104 = sphi 0, %s88
      %s108 = sphi 0, %s108
      %s110 = sphi 0, %s108
      %s111 = sphi 0, %s110
      %s125 = sphi 0, %s111
      %s129 = sphi 0, %s129
      %s131 = sphi 0, %s129
      %s132 = sphi 0, %s131
      %s146 = sphi 0, %s132
      %s150 = sphi 0, %s150
      %s152 = sphi 0, %s150
      %s153 = sphi 0, %s152
      %s167 = sphi 0, %s153
      %s171 = sphi 0, %s171
      %s173 = sphi 0, %s171
      %s174 = sphi 0, %s173
      %s188 = sphi 0, %s174
      %s192 = sphi 0, %s192
      %s194 = sphi 0, %s192
      %s195 = sphi 0, %s194
      %s209 = sphi 0, %s195
      %s213 = sphi 0, %s213
      %s215 = sphi 0, %s213
      %s216 = sphi 0, %s215
      %s230 = sphi 0, %s216
      %s234 = sphi 0, %s234
      %s236 = sphi 0, %s234
      %s237 = sphi 0, %s236
      %s251 = sphi 0, %s237
      %s255 = sphi 0, %s255
      %s257 = sphi 0, %s255
      %s258 = sphi 0, %s257
      %s272 = sphi 0, %s258
      %s276 = sphi 0, %s276
      %s278 = sphi 0, %s276
      %s279 = sphi 0, %s278
      %s293 = sphi 0, %s279
      %s297 = sphi 0, %s297
      %s299 = sphi 0, %s297
      %s300 = sphi 0, %s299
      %s314 = sphi 0, %s300
      %s320 = sphi 0, %s322
      %s323 = sphi 0, %s320
      %s324 = sphi 0, %s323
      %s340 = sphi 0, %s324
    $region4: #{fuse_module_forward.1} parent=1 // loop_header_branch
      %25 = sbr.rel (%p23) target = $region8
    $region5: #{fuse_module_forward.1} parent=1 // loop_body
      %s27 = ssub.s32 %s22, 1
      %s28 = ssub.s32 %s22, 2
      %s29 = sadd.s32 %s22, 1
      %s30 = ssub.s32 %s22, %s29
      %p31 = scmp.eq.s32.totalorder %s30, 0
      %s33 = sadd.s32 %s32, 1
      %s34 = scalar_select %p31, %s32, %s33
      %p37 = pneg %p31
      %p38 = scmp.eq.s32.totalorder %s22, 1
      %p39 = por %p37, %p38
      %p40 = scmp.ne.s32.totalorder %s32, %s35
      %p41 = scmp.eq.s32.totalorder %s22, 0
      %p42 = por %p40, %p41
      %p43 = scmp.ne.s32.totalorder %s32, %s35
      %p44 = scmp.eq.s32.totalorder %s27, 1
      %p45 = por %p43, %p44
      %p46 = scmp.ne.s32.totalorder %s35, %s36
      %p47 = scmp.eq.s32.totalorder %s27, 0
      %p48 = por %p46, %p47
      %p49 = scmp.ne.s32.totalorder %s35, %s36
      %p50 = scmp.eq.s32.totalorder %s28, 1
      %p51 = por %p49, %p50
      %p53 = scmp.ne.s32.totalorder %s36, %s52
      %p54 = scmp.eq.s32.totalorder %s28, 0
      %p55 = por %p53, %p54
      %s56 = ssub.s32 %s22, %s29
      %p57 = scmp.eq.s32.totalorder %s56, 0
      %s59 = sadd.s32 %s58, 1
      %s60 = scalar_select %p57, %s58, %s59
      %p63 = pneg %p57
      %p64 = scmp.eq.s32.totalorder %s22, 1
      %p65 = por %p63, %p64
      %p66 = scmp.ne.s32.totalorder %s58, %s61
      %p67 = scmp.eq.s32.totalorder %s22, 0
      %p68 = por %p66, %p67
      %p69 = scmp.ne.s32.totalorder %s58, %s61
      %p70 = scmp.eq.s32.totalorder %s27, 1
      %p71 = por %p69, %p70
      %p72 = scmp.ne.s32.totalorder %s61, %s62
      %p73 = scmp.eq.s32.totalorder %s27, 0
      %p74 = por %p72, %p73
      %p75 = scmp.ne.s32.totalorder %s61, %s62
      %p76 = scmp.eq.s32.totalorder %s28, 1
      %p77 = por %p75, %p76
      %p79 = scmp.ne.s32.totalorder %s62, %s78
      %p80 = scmp.eq.s32.totalorder %s28, 0
      %p81 = por %p79, %p80
      %s82 = ssub.s32 %s22, %s29
      %p83 = scmp.eq.s32.totalorder %s82, 0
      %s85 = sadd.s32 %s84, 1
      %s86 = scalar_select %p83, %s84, %s85
      %p89 = pneg %p83
      %p90 = scmp.eq.s32.totalorder %s22, 1
      %p91 = por %p89, %p90
      %p92 = scmp.ne.s32.totalorder %s84, %s87
      %p93 = scmp.eq.s32.totalorder %s22, 0
      %p94 = por %p92, %p93
      %p95 = scmp.ne.s32.totalorder %s84, %s87
      %p96 = scmp.eq.s32.totalorder %s27, 1
      %p97 = por %p95, %p96
      %p98 = scmp.ne.s32.totalorder %s87, %s88
      %p99 = scmp.eq.s32.totalorder %s27, 0
      %p100 = por %p98, %p99
      %p101 = scmp.ne.s32.totalorder %s87, %s88
      %p102 = scmp.eq.s32.totalorder %s28, 1
      %p103 = por %p101, %p102
      %p105 = scmp.ne.s32.totalorder %s88, %s104
      %p106 = scmp.eq.s32.totalorder %s28, 0
      %p107 = por %p105, %p106
      %s109 = sadd.s32 %s108, 1
      %p112 = scmp.eq.s32.totalorder %s22, 1
      %p113 = scmp.ne.s32.totalorder %s108, %s110
      %p114 = scmp.eq.s32.totalorder %s22, 0
      %p115 = por %p113, %p114
      %p116 = scmp.ne.s32.totalorder %s108, %s110
      %p117 = scmp.eq.s32.totalorder %s27, 1
      %p118 = por %p116, %p117
      %p119 = scmp.ne.s32.totalorder %s110, %s111
      %p120 = scmp.eq.s32.totalorder %s27, 0
      %p121 = por %p119, %p120
      %p122 = scmp.ne.s32.totalorder %s110, %s111
      %p123 = scmp.eq.s32.totalorder %s28, 1
      %p124 = por %p122, %p123
      %p126 = scmp.ne.s32.totalorder %s111, %s125
      %p127 = scmp.eq.s32.totalorder %s28, 0
      %p128 = por %p126, %p127
      %s130 = sadd.s32 %s129, 1
      %p133 = scmp.eq.s32.totalorder %s22, 1
      %p134 = scmp.ne.s32.totalorder %s129, %s131
      %p135 = scmp.eq.s32.totalorder %s22, 0
      %p136 = por %p134, %p135
      %p137 = scmp.ne.s32.totalorder %s129, %s131
      %p138 = scmp.eq.s32.totalorder %s27, 1
      %p139 = por %p137, %p138
      %p140 = scmp.ne.s32.totalorder %s131, %s132
      %p141 = scmp.eq.s32.totalorder %s27, 0
      %p142 = por %p140, %p141
      %p143 = scmp.ne.s32.totalorder %s131, %s132
      %p144 = scmp.eq.s32.totalorder %s28, 1
      %p145 = por %p143, %p144
      %p147 = scmp.ne.s32.totalorder %s132, %s146
      %p148 = scmp.eq.s32.totalorder %s28, 0
      %p149 = por %p147, %p148
      %s151 = sadd.s32 %s150, 1
      %p154 = scmp.eq.s32.totalorder %s22, 1
      %p155 = scmp.ne.s32.totalorder %s150, %s152
      %p156 = scmp.eq.s32.totalorder %s22, 0
      %p157 = por %p155, %p156
      %p158 = scmp.ne.s32.totalorder %s150, %s152
      %p159 = scmp.eq.s32.totalorder %s27, 1
      %p160 = por %p158, %p159
      %p161 = scmp.ne.s32.totalorder %s152, %s153
      %p162 = scmp.eq.s32.totalorder %s27, 0
      %p163 = por %p161, %p162
      %p164 = scmp.ne.s32.totalorder %s152, %s153
      %p165 = scmp.eq.s32.totalorder %s28, 1
      %p166 = por %p164, %p165
      %p168 = scmp.ne.s32.totalorder %s153, %s167
      %p169 = scmp.eq.s32.totalorder %s28, 0
      %p170 = por %p168, %p169
      %s172 = sadd.s32 %s171, 1
      %p175 = scmp.eq.s32.totalorder %s22, 1
      %p176 = scmp.ne.s32.totalorder %s171, %s173
      %p177 = scmp.eq.s32.totalorder %s22, 0
      %p178 = por %p176, %p177
      %p179 = scmp.ne.s32.totalorder %s171, %s173
      %p180 = scmp.eq.s32.totalorder %s27, 1
      %p181 = por %p179, %p180
      %p182 = scmp.ne.s32.totalorder %s173, %s174
      %p183 = scmp.eq.s32.totalorder %s27, 0
      %p184 = por %p182, %p183
      %p185 = scmp.ne.s32.totalorder %s173, %s174
      %p186 = scmp.eq.s32.totalorder %s28, 1
      %p187 = por %p185, %p186
      %p189 = scmp.ne.s32.totalorder %s174, %s188
      %p190 = scmp.eq.s32.totalorder %s28, 0
      %p191 = por %p189, %p190
      %s193 = sadd.s32 %s192, 1
      %p196 = scmp.eq.s32.totalorder %s22, 1
      %p197 = scmp.ne.s32.totalorder %s192, %s194
      %p198 = scmp.eq.s32.totalorder %s22, 0
      %p199 = por %p197, %p198
      %p200 = scmp.ne.s32.totalorder %s192, %s194
      %p201 = scmp.eq.s32.totalorder %s27, 1
      %p202 = por %p200, %p201
      %p203 = scmp.ne.s32.totalorder %s194, %s195
      %p204 = scmp.eq.s32.totalorder %s27, 0
      %p205 = por %p203, %p204
      %p206 = scmp.ne.s32.totalorder %s194, %s195
      %p207 = scmp.eq.s32.totalorder %s28, 1
      %p208 = por %p206, %p207
      %p210 = scmp.ne.s32.totalorder %s195, %s209
      %p211 = scmp.eq.s32.totalorder %s28, 0
      %p212 = por %p210, %p211
      %s214 = sadd.s32 %s213, 1
      %p217 = scmp.eq.s32.totalorder %s22, 1
      %p218 = scmp.ne.s32.totalorder %s213, %s215
      %p219 = scmp.eq.s32.totalorder %s22, 0
      %p220 = por %p218, %p219
      %p221 = scmp.ne.s32.totalorder %s213, %s215
      %p222 = scmp.eq.s32.totalorder %s27, 1
      %p223 = por %p221, %p222
      %p224 = scmp.ne.s32.totalorder %s215, %s216
      %p225 = scmp.eq.s32.totalorder %s27, 0
      %p226 = por %p224, %p225
      %p227 = scmp.ne.s32.totalorder %s215, %s216
      %p228 = scmp.eq.s32.totalorder %s28, 1
      %p229 = por %p227, %p228
      %p231 = scmp.ne.s32.totalorder %s216, %s230
      %p232 = scmp.eq.s32.totalorder %s28, 0
      %p233 = por %p231, %p232
      %s235 = sadd.s32 %s234, 1
      %p238 = scmp.eq.s32.totalorder %s22, 1
      %p239 = scmp.ne.s32.totalorder %s234, %s236
      %p240 = scmp.eq.s32.totalorder %s22, 0
      %p241 = por %p239, %p240
      %p242 = scmp.ne.s32.totalorder %s234, %s236
      %p243 = scmp.eq.s32.totalorder %s27, 1
      %p244 = por %p242, %p243
      %p245 = scmp.ne.s32.totalorder %s236, %s237
      %p246 = scmp.eq.s32.totalorder %s27, 0
      %p247 = por %p245, %p246
      %p248 = scmp.ne.s32.totalorder %s236, %s237
      %p249 = scmp.eq.s32.totalorder %s28, 1
      %p250 = por %p248, %p249
      %p252 = scmp.ne.s32.totalorder %s237, %s251
      %p253 = scmp.eq.s32.totalorder %s28, 0
      %p254 = por %p252, %p253
      %s256 = sadd.s32 %s255, 1
      %p259 = scmp.eq.s32.totalorder %s22, 1
      %p260 = scmp.ne.s32.totalorder %s255, %s257
      %p261 = scmp.eq.s32.totalorder %s22, 0
      %p262 = por %p260, %p261
      %p263 = scmp.ne.s32.totalorder %s255, %s257
      %p264 = scmp.eq.s32.totalorder %s27, 1
      %p265 = por %p263, %p264
      %p266 = scmp.ne.s32.totalorder %s257, %s258
      %p267 = scmp.eq.s32.totalorder %s27, 0
      %p268 = por %p266, %p267
      %p269 = scmp.ne.s32.totalorder %s257, %s258
      %p270 = scmp.eq.s32.totalorder %s28, 1
      %p271 = por %p269, %p270
      %p273 = scmp.ne.s32.totalorder %s258, %s272
      %p274 = scmp.eq.s32.totalorder %s28, 0
      %p275 = por %p273, %p274
      %s277 = sadd.s32 %s276, 1
      %p280 = scmp.eq.s32.totalorder %s22, 1
      %p281 = scmp.ne.s32.totalorder %s276, %s278
      %p282 = scmp.eq.s32.totalorder %s22, 0
      %p283 = por %p281, %p282
      %p284 = scmp.ne.s32.totalorder %s276, %s278
      %p285 = scmp.eq.s32.totalorder %s27, 1
      %p286 = por %p284, %p285
      %p287 = scmp.ne.s32.totalorder %s278, %s279
      %p288 = scmp.eq.s32.totalorder %s27, 0
      %p289 = por %p287, %p288
      %p290 = scmp.ne.s32.totalorder %s278, %s279
      %p291 = scmp.eq.s32.totalorder %s28, 1
      %p292 = por %p290, %p291
      %p294 = scmp.ne.s32.totalorder %s279, %s293
      %p295 = scmp.eq.s32.totalorder %s28, 0
      %p296 = por %p294, %p295
      %s298 = sadd.s32 %s297, 1
      %p301 = scmp.eq.s32.totalorder %s22, 1
      %p302 = scmp.ne.s32.totalorder %s297, %s299
      %p303 = scmp.eq.s32.totalorder %s22, 0
      %p304 = por %p302, %p303
      %p305 = scmp.ne.s32.totalorder %s297, %s299
      %p306 = scmp.eq.s32.totalorder %s27, 1
      %p307 = por %p305, %p306
      %p308 = scmp.ne.s32.totalorder %s299, %s300
      %p309 = scmp.eq.s32.totalorder %s27, 0
      %p310 = por %p308, %p309
      %p311 = scmp.ne.s32.totalorder %s299, %s300
      %p312 = scmp.eq.s32.totalorder %s28, 1
      %p313 = por %p311, %p312
      %p315 = scmp.ne.s32.totalorder %s300, %s314
      %p316 = scmp.eq.s32.totalorder %s28, 0
      %p317 = por %p315, %p316
      %s318 = ssub.s32 %s22, %s29
      %p319 = scmp.eq.s32.totalorder %s318, 0
      %s321 = sadd.s32 %s320, 1
      %s322 = scalar_select %p319, %s320, %s321
      %p325 = pneg %p319
      %p326 = scmp.eq.s32.totalorder %s22, 1
      %p327 = por %p325, %p326
      %p328 = scmp.ne.s32.totalorder %s320, %s323
      %p329 = scmp.eq.s32.totalorder %s22, 0
      %p330 = por %p328, %p329
      %p331 = scmp.ne.s32.totalorder %s320, %s323
      %p332 = scmp.eq.s32.totalorder %s27, 1
      %p333 = por %p331, %p332
      %p334 = scmp.ne.s32.totalorder %s323, %s324
      %p335 = scmp.eq.s32.totalorder %s27, 0
      %p336 = por %p334, %p335
      %p337 = scmp.ne.s32.totalorder %s323, %s324
      %p338 = scmp.eq.s32.totalorder %s28, 1
      %p339 = por %p337, %p338
      %p341 = scmp.ne.s32.totalorder %s324, %s340
      %p342 = scmp.eq.s32.totalorder %s28, 0
      %p343 = por %p341, %p342
      %p344 = scmp.le.s32.totalorder 1, %s22
      %p345 = scmp.lt.s32.totalorder %s22, 3
      %p346 = pnand %p344, %p345
      %p347 = pneg %p346
      // Predicated region
      $region9: #{fuse_module_forward.1} parent=5 // pred_check
        _
      $region10: #{fuse_module_forward.1} parent=5 // pred_check_branch
        %349 = sbr.rel (%p346) target = $region12
      $region11: #{fuse_module_forward.1} parent=5 // pred_region
        %s350 = ssub.s32 %s22, 1
        // Predicated region
        $region13: #{fuse_module_forward.1} parent=11 // pred_check
          %p351 = pneg %p121
        $region14: #{fuse_module_forward.1} parent=11 // pred_check_branch
          %353 = sbr.rel (%p351) target = $region16
        $region15: #{fuse_module_forward.1} parent=11 // pred_region
          _
        $region16: #{fuse_module_forward.1} parent=11 // pred_fallthru
          _
        // Predicated region
        $region17: #{fuse_module_forward.1} parent=11 // pred_check
          %p354 = pneg %p142
        $region18: #{fuse_module_forward.1} parent=11 // pred_check_branch
          %356 = sbr.rel (%p354) target = $region20
        $region19: #{fuse_module_forward.1} parent=11 // pred_region
          _
        $region20: #{fuse_module_forward.1} parent=11 // pred_fallthru
          _
        // Predicated region
        $region21: #{fuse_module_forward.1} parent=11 // pred_check
          %p357 = pneg %p163
        $region22: #{fuse_module_forward.1} parent=11 // pred_check_branch
          %359 = sbr.rel (%p357) target = $region24
        $region23: #{fuse_module_forward.1} parent=11 // pred_region
          _
        $region24: #{fuse_module_forward.1} parent=11 // pred_fallthru
          _
        // Predicated region
        $region25: #{fuse_module_forward.1} parent=11 // pred_check
          %p360 = pneg %p184
        $region26: #{fuse_module_forward.1} parent=11 // pred_check_branch
          %362 = sbr.rel (%p360) target = $region28
        $region27: #{fuse_module_forward.1} parent=11 // pred_region
          _
        $region28: #{fuse_module_forward.1} parent=11 // pred_fallthru
          _
        // Predicated region
        $region29: #{fuse_module_forward.1} parent=11 // pred_check
          %p363 = pneg %p205
        $region30: #{fuse_module_forward.1} parent=11 // pred_check_branch
          %365 = sbr.rel (%p363) target = $region32
        $region31: #{fuse_module_forward.1} parent=11 // pred_region
          _
        $region32: #{fuse_module_forward.1} parent=11 // pred_fallthru
          _
        // Predicated region
        $region33: #{fuse_module_forward.1} parent=11 // pred_check
          %p366 = pneg %p226
        $region34: #{fuse_module_forward.1} parent=11 // pred_check_branch
          %368 = sbr.rel (%p366) target = $region36
        $region35: #{fuse_module_forward.1} parent=11 // pred_region
          _
        $region36: #{fuse_module_forward.1} parent=11 // pred_fallthru
          _
        // Predicated region
        $region37: #{fuse_module_forward.1} parent=11 // pred_check
          %p369 = pneg %p247
        $region38: #{fuse_module_forward.1} parent=11 // pred_check_branch
          %371 = sbr.rel (%p369) target = $region40
        $region39: #{fuse_module_forward.1} parent=11 // pred_region
          _
        $region40: #{fuse_module_forward.1} parent=11 // pred_fallthru
          _
        // Predicated region
        $region41: #{fuse_module_forward.1} parent=11 // pred_check
          %p372 = pneg %p268
        $region42: #{fuse_module_forward.1} parent=11 // pred_check_branch
          %374 = sbr.rel (%p372) target = $region44
        $region43: #{fuse_module_forward.1} parent=11 // pred_region
          _
        $region44: #{fuse_module_forward.1} parent=11 // pred_fallthru
          _
        // Predicated region
        $region45: #{fuse_module_forward.1} parent=11 // pred_check
          %p375 = pneg %p289
        $region46: #{fuse_module_forward.1} parent=11 // pred_check_branch
          %377 = sbr.rel (%p375) target = $region48
        $region47: #{fuse_module_forward.1} parent=11 // pred_region
          _
        $region48: #{fuse_module_forward.1} parent=11 // pred_fallthru
          _
        // Predicated region
        $region49: #{fuse_module_forward.1} parent=11 // pred_check
          %p378 = pneg %p310
        $region50: #{fuse_module_forward.1} parent=11 // pred_check_branch
          %380 = sbr.rel (%p378) target = $region52
        $region51: #{fuse_module_forward.1} parent=11 // pred_region
          _
        $region52: #{fuse_module_forward.1} parent=11 // pred_fallthru
          _
      $region12: #{fuse_module_forward.1} parent=5 // pred_fallthru
        _
      %p381 = scmp.lt.s32.totalorder %s22, 2
      // Predicated region
      $region53: #{fuse_module_forward.1} parent=5 // pred_check
        %p382 = pneg %p381
      $region54: #{fuse_module_forward.1} parent=5 // pred_check_branch
        %384 = sbr.rel (%p382) target = $region56
      $region55: #{fuse_module_forward.1} parent=5 // pred_region
        // Predicated region
        $region57: #{fuse_module_forward.1} parent=55 // pred_check
          %p385 = pneg %p42
        $region58: #{fuse_module_forward.1} parent=55 // pred_check_branch
          %387 = sbr.rel (%p385) target = $region60
        $region59: #{fuse_module_forward.1} parent=55 // pred_region
          %p388 = scmp.lt.s32.totalorder %s22, 1
          %s389 = scalar_select %p388, %s22, 1
          %s390 = smul.addr %s389, 32
          %s391 = smul.addr %s390, 4
          %s392 = scalar_lea.vmem %s0, %s391
        $region60: #{fuse_module_forward.1} parent=55 // pred_fallthru
          _
        // Predicated region
        $region61: #{fuse_module_forward.1} parent=55 // pred_check
          %p393 = pneg %p68
        $region62: #{fuse_module_forward.1} parent=55 // pred_check_branch
          %395 = sbr.rel (%p393) target = $region64
        $region63: #{fuse_module_forward.1} parent=55 // pred_region
          %p396 = scmp.lt.s32.totalorder %s22, 1
          %s397 = scalar_select %p396, %s22, 1
          %s398 = smul.addr %s397, 32
          %s399 = smul.addr %s398, 4
          %s400 = scalar_lea.vmem %s1, %s399
        $region64: #{fuse_module_forward.1} parent=55 // pred_fallthru
          _
        // Predicated region
        $region65: #{fuse_module_forward.1} parent=55 // pred_check
          %p401 = pneg %p94
        $region66: #{fuse_module_forward.1} parent=55 // pred_check_branch
          %403 = sbr.rel (%p401) target = $region68
        $region67: #{fuse_module_forward.1} parent=55 // pred_region
          %p404 = scmp.lt.s32.totalorder %s22, 1
          %s405 = scalar_select %p404, %s22, 1
          %s406 = smul.addr %s405, 32
          %s407 = smul.addr %s406, 4
          %s408 = scalar_lea.vmem %s2, %s407
        $region68: #{fuse_module_forward.1} parent=55 // pred_fallthru
          _
      $region56: #{fuse_module_forward.1} parent=5 // pred_fallthru
        _
      %p409 = scmp.le.s32.totalorder 1, %s22
      %p410 = scmp.lt.s32.totalorder %s22, 3
      %p411 = pnand %p409, %p410
      %p412 = pneg %p411
      // Predicated region
      $region69: #{fuse_module_forward.1} parent=5 // pred_check
        _
      $region70: #{fuse_module_forward.1} parent=5 // pred_check_branch
        %414 = sbr.rel (%p411) target = $region72
      $region71: #{fuse_module_forward.1} parent=5 // pred_region
        %s415 = ssub.s32 %s22, 1
        %p416 = scmp.lt.s32.totalorder %s27, 1
        %s417 = scalar_select %p416, %s27, 1
        %s418 = smul.addr %s417, 32
        %s419 = smul.addr %s418, 4
        %s420 = scalar_lea.vmem %s0, %s419
        %p421 = pneg %p48
        %p422 = pneg %p45
        %p423 = scmp.lt.s32.totalorder %s27, 1
        %s424 = scalar_select %p423, %s27, 1
        %s425 = smul.addr %s424, 32
        %s426 = smul.addr %s425, 4
        %s427 = scalar_lea.vmem %s1, %s426
        %p428 = pneg %p74
        %p429 = pneg %p71
        %p430 = scmp.lt.s32.totalorder %s27, 1
        %s431 = scalar_select %p430, %s27, 1
        %s432 = smul.addr %s431, 32
        %s433 = smul.addr %s432, 4
        %s434 = scalar_lea.vmem %s2, %s433
        %p435 = pneg %p100
        %p436 = pneg %p97
        %p437 = pneg %p121
        %p438 = pneg %p118
        %p439 = pneg %p142
        %p440 = pneg %p139
        %p441 = pneg %p163
        %p442 = pneg %p160
        %p443 = pneg %p184
        %p444 = pneg %p181
        %p445 = pneg %p205
        %p446 = pneg %p202
        %p447 = pneg %p226
        %p448 = pneg %p223
        %p449 = pneg %p247
        %p450 = pneg %p244
        %p451 = pneg %p268
        %p452 = pneg %p265
        %p453 = pneg %p289
        %p454 = pneg %p286
        %p455 = pneg %p310
        %p456 = pneg %p307
        %p457 = pneg %p336
        %p458 = pneg %p333
        %s459 = sand.u32 %s323, 1
        %s460 = scalar_lea.sflag [#allocation5], %s459
        %s461 = sand.u32 %s323, 1
        %s462 = smul.addr %s461, 128
        %s463 = scalar_lea.vmem [#allocation4], %s462
        %p464 = scmp.lt.s32.totalorder %s27, 1
        %s465 = scalar_select %p464, %s27, 1
        %s466 = smul.addr %s465, 32
        %s467 = smul.addr %s466, 4
        %s468 = scalar_lea.vmem %s0, %s467
        %p469 = scmp.lt.s32.totalorder %s27, 1
        %s470 = scalar_select %p469, %s27, 1
        %s471 = smul.addr %s470, 32
        %s472 = smul.addr %s471, 4
        %s473 = scalar_lea.vmem %s1, %s472
        %p474 = scmp.lt.s32.totalorder %s27, 1
        %s475 = scalar_select %p474, %s27, 1
        %s476 = smul.addr %s475, 32
        %s477 = smul.addr %s476, 4
        %s478 = scalar_lea.vmem %s2, %s477
        %vm481 = vcmask 261120
        %482 = vst.msk [vmem:[#allocation2] sm:$0xff] %vm481, 0
        %483 = vst.msk [vmem:[#allocation2 + $0x8] sm:$0xff] %vm481, 0
        %s484 = scalar_lea.vmem [#allocation2], 272
        %485 = vst.msk [vmem:[%s484] sm:$0xff] %vm481, 0
        %486 = vst.msk [vmem:[%s484 + $0x8] sm:$0xff] %vm481, 0
        %s487 = scalar_lea.vmem [#allocation2], 16
        %vm488 = vcmask 257024
        %489 = vst.msk [vmem:[%s487] sm:$0xf] %vm488, 0
        %490 = vst.msk [vmem:[%s487 + $0x10] sm:$0xf] %vm488, 0
        %491 = vst.msk [vmem:[%s487 + $0x20] sm:$0xf] %vm488, 0
        %492 = vst.msk [vmem:[%s487 + $0x30] sm:$0xf] %vm488, 0
        %493 = vst.msk [vmem:[%s487 + $0x40] sm:$0xf] %vm488, 0
        %494 = vst.msk [vmem:[%s487 + $0x50] sm:$0xf] %vm488, 0
        %495 = vst.msk [vmem:[%s487 + $0x60] sm:$0xf] %vm488, 0
        %496 = vst.msk [vmem:[%s487 + $0x70] sm:$0xf] %vm488, 0
        %497 = vst.msk [vmem:[%s487 + $0x80] sm:$0xf] %vm488, 0
        %498 = vst.msk [vmem:[%s487 + $0x90] sm:$0xf] %vm488, 0
        %499 = vst.msk [vmem:[%s487 + $0xa0] sm:$0xf] %vm488, 0
        %500 = vst.msk [vmem:[%s487 + $0xb0] sm:$0xf] %vm488, 0
        %501 = vst.msk [vmem:[%s487 + $0xc0] sm:$0xf] %vm488, 0
        %502 = vst.msk [vmem:[%s487 + $0xd0] sm:$0xf] %vm488, 0
        %503 = vst.msk [vmem:[%s487 + $0xe0] sm:$0xf] %vm488, 0
        %504 = vst.msk [vmem:[%s487 + $0xf0] sm:$0xf] %vm488, 0
        %vm505 = vcmask 261124
        %506 = vst.msk [vmem:[%s487 + $0x8] sm:$0xf0] %vm505, 0
        %507 = vst.msk [vmem:[%s487 + $0x18] sm:$0xf0] %vm505, 0
        %508 = vst.msk [vmem:[%s487 + $0x28] sm:$0xf0] %vm505, 0
        %509 = vst.msk [vmem:[%s487 + $0x38] sm:$0xf0] %vm505, 0
        %510 = vst.msk [vmem:[%s487 + $0x48] sm:$0xf0] %vm505, 0
        %511 = vst.msk [vmem:[%s487 + $0x58] sm:$0xf0] %vm505, 0
        %512 = vst.msk [vmem:[%s487 + $0x68] sm:$0xf0] %vm505, 0
        %513 = vst.msk [vmem:[%s487 + $0x78] sm:$0xf0] %vm505, 0
        %514 = vst.msk [vmem:[%s487 + $0x88] sm:$0xf0] %vm505, 0
        %515 = vst.msk [vmem:[%s487 + $0x98] sm:$0xf0] %vm505, 0
        %516 = vst.msk [vmem:[%s487 + $0xa8] sm:$0xf0] %vm505, 0
        %517 = vst.msk [vmem:[%s487 + $0xb8] sm:$0xf0] %vm505, 0
        %518 = vst.msk [vmem:[%s487 + $0xc8] sm:$0xf0] %vm505, 0
        %519 = vst.msk [vmem:[%s487 + $0xd8] sm:$0xf0] %vm505, 0
        %520 = vst.msk [vmem:[%s487 + $0xe8] sm:$0xf0] %vm505, 0
        %521 = vst.msk [vmem:[%s487 + $0xf8] sm:$0xf0] %vm505, 0
        %v522 = vld [vmem:[%s468] sm:$0xf]
        %v523 = vld [vmem:[%s468 + $0x4] sm:$0xf]
        %v524 = vld [vmem:[%s468 + $0x8] sm:$0xf]
        %v525 = vld [vmem:[%s468 + $0xc] sm:$0xf]
        %v526 = vld [vmem:[%s468 + $0x10] sm:$0xf]
        %v527 = vld [vmem:[%s468 + $0x14] sm:$0xf]
        %v528 = vld [vmem:[%s468 + $0x18] sm:$0xf]
        %v529 = vld [vmem:[%s468 + $0x1c] sm:$0xf]
        %v530 = vld [vmem:[%s468 + $0x20] sm:$0xf]
        %v531 = vld [vmem:[%s468 + $0x24] sm:$0xf]
        %v532 = vld [vmem:[%s468 + $0x28] sm:$0xf]
        %v533 = vld [vmem:[%s468 + $0x2c] sm:$0xf]
        %v534 = vld [vmem:[%s468 + $0x30] sm:$0xf]
        %v535 = vld [vmem:[%s468 + $0x34] sm:$0xf]
        %v536 = vld [vmem:[%s468 + $0x38] sm:$0xf]
        %v537 = vld [vmem:[%s468 + $0x3c] sm:$0xf]
        %v538 = vld [vmem:[%s468 + $0x40] sm:$0xf]
        %v539 = vld [vmem:[%s468 + $0x44] sm:$0xf]
        %v540 = vld [vmem:[%s468 + $0x48] sm:$0xf]
        %v541 = vld [vmem:[%s468 + $0x4c] sm:$0xf]
        %v542 = vld [vmem:[%s468 + $0x50] sm:$0xf]
        %v543 = vld [vmem:[%s468 + $0x54] sm:$0xf]
        %v544 = vld [vmem:[%s468 + $0x58] sm:$0xf]
        %v545 = vld [vmem:[%s468 + $0x5c] sm:$0xf]
        %v546 = vld [vmem:[%s468 + $0x60] sm:$0xf]
        %v547 = vld [vmem:[%s468 + $0x64] sm:$0xf]
        %v548 = vld [vmem:[%s468 + $0x68] sm:$0xf]
        %v549 = vld [vmem:[%s468 + $0x6c] sm:$0xf]
        %v550 = vld [vmem:[%s468 + $0x70] sm:$0xf]
        %v551 = vld [vmem:[%s468 + $0x74] sm:$0xf]
        %v552 = vld [vmem:[%s468 + $0x78] sm:$0xf]
        %v553 = vld [vmem:[%s468 + $0x7c] sm:$0xf]
        %v586 = vunpack.c.l.b16 %v522
        %v587 = vunpack.c.l.b16 %v523
        %v588 = vunpack.c.l.b16 %v524
        %v589 = vunpack.c.l.b16 %v525
        %v590 = vunpack.c.l.b16 %v526
        %v591 = vunpack.c.l.b16 %v527
        %v592 = vunpack.c.l.b16 %v528
        %v593 = vunpack.c.l.b16 %v529
        %v594 = vunpack.c.l.b16 %v530
        %v595 = vunpack.c.l.b16 %v531
        %v596 = vunpack.c.l.b16 %v532
        %v597 = vunpack.c.l.b16 %v533
        %v598 = vunpack.c.l.b16 %v534
        %v599 = vunpack.c.l.b16 %v535
        %v600 = vunpack.c.l.b16 %v536
        %v601 = vunpack.c.l.b16 %v537
        %v602 = vunpack.c.l.b16 %v538
        %v603 = vunpack.c.l.b16 %v539
        %v604 = vunpack.c.l.b16 %v540
        %v605 = vunpack.c.l.b16 %v541
        %v606 = vunpack.c.l.b16 %v542
        %v607 = vunpack.c.l.b16 %v543
        %v608 = vunpack.c.l.b16 %v544
        %v609 = vunpack.c.l.b16 %v545
        %v610 = vunpack.c.l.b16 %v546
        %v611 = vunpack.c.l.b16 %v547
        %v612 = vunpack.c.l.b16 %v548
        %v613 = vunpack.c.l.b16 %v549
        %v614 = vunpack.c.l.b16 %v550
        %v615 = vunpack.c.l.b16 %v551
        %v616 = vunpack.c.l.b16 %v552
        %v617 = vunpack.c.l.b16 %v553
        %v618 = vpack.c.b16 %v587, %v586
        %v619 = vpack.c.b16 %v589, %v588
        %v620 = vpack.c.b16 %v591, %v590
        %v621 = vpack.c.b16 %v593, %v592
        %v622 = vpack.c.b16 %v595, %v594
        %v623 = vpack.c.b16 %v597, %v596
        %v624 = vpack.c.b16 %v599, %v598
        %v625 = vpack.c.b16 %v601, %v600
        %v626 = vpack.c.b16 %v603, %v602
        %v627 = vpack.c.b16 %v605, %v604
        %v628 = vpack.c.b16 %v607, %v606
        %v629 = vpack.c.b16 %v609, %v608
        %v630 = vpack.c.b16 %v611, %v610
        %v631 = vpack.c.b16 %v613, %v612
        %v632 = vpack.c.b16 %v615, %v614
        %v633 = vpack.c.b16 %v617, %v616
        %650 = vmatprep.subr.bf16.mxu0 0
        %651 = vmatpush1.bf16.msra.mxu0 %v618
        %652 = vmatprep.subr.bf16.mxu0 0
        %653 = vmatpush1.bf16.msra.mxu0 %v619
        %654 = vmatprep.subr.bf16.mxu0 0
        %655 = vmatpush1.bf16.msra.mxu0 %v620
        %656 = vmatprep.subr.bf16.mxu0 0
        %657 = vmatpush1.bf16.msra.mxu0 %v621
        %658 = vmatprep.subr.bf16.mxu0 0
        %659 = vmatpush1.bf16.msra.mxu0 %v622
        %660 = vmatprep.subr.bf16.mxu0 0
        %661 = vmatpush1.bf16.msra.mxu0 %v623
        %662 = vmatprep.subr.bf16.mxu0 0
        %663 = vmatpush1.bf16.msra.mxu0 %v624
        %664 = vmatprep.subr.bf16.mxu0 0
        %665 = vmatpush1.bf16.msra.mxu0 %v625
        %666 = vmatprep.subr.bf16.mxu0 0
        %667 = vmatpush1.bf16.msra.mxu0 %v626
        %668 = vmatprep.subr.bf16.mxu0 0
        %669 = vmatpush1.bf16.msra.mxu0 %v627
        %670 = vmatprep.subr.bf16.mxu0 0
        %671 = vmatpush1.bf16.msra.mxu0 %v628
        %672 = vmatprep.subr.bf16.mxu0 0
        %673 = vmatpush1.bf16.msra.mxu0 %v629
        %674 = vmatprep.subr.bf16.mxu0 0
        %675 = vmatpush1.bf16.msra.mxu0 %v630
        %676 = vmatprep.subr.bf16.mxu0 0
        %677 = vmatpush1.bf16.msra.mxu0 %v631
        %678 = vmatprep.subr.bf16.mxu0 0
        %679 = vmatpush1.bf16.msra.mxu0 %v632
        %680 = vmatprep.subr.bf16.mxu0 0
        %681 = vmatpush1.bf16.msra.mxu0 %v633
        %682 = vmatprep.mubr.bf16.mxu0 1065369472
        %683 = vmatmul.mubr.bf16.gmra.mrb[0].mxu0 1065369472
        %v684 = vpop.f32.mrb[0].mxu0
        %v685 = vadd.f32 0.0, %v684
        %v686 = vpop.f32.mrb[0].mxu0
        %v687 = vpop.f32.mrb[0].mxu0
        %v688 = vpop.f32.mrb[0].mxu0
        %689 = vdwg.mxu0
        %v690 = vmul.f32 %v685, 0.00390625
        %v691 = vld [vmem:[%s3] sm:$0xff]
        %v692 = vld [vmem:[%s3 + $0x8] sm:$0xff]
        %v693 = vld [vmem:[%s3 + $0x10] sm:$0xff]
        %v694 = vld [vmem:[%s3 + $0x18] sm:$0xff]
        %v695 = vld [vmem:[%s4] sm:$0x1]
        %v697 = vsel %vm481, %v690, 0
        %699 = vmatprep.subr.mxu0 0.0
        %700 = vmatpush1.msra.mxu0 %v691
        %701 = vmatprep.subr.mxu0 0.0
        %702 = vmatpush1.msra.mxu0 %v692
        %703 = vmatprep.subr.mxu0 0.0
        %704 = vmatpush1.msra.mxu0 %v693
        %705 = vmatprep.subr.mxu0 0.0
        %706 = vmatpush1.msra.mxu0 %v694
        %707 = vmatprep.subr.mxu0 0.0
        %708 = vmatpush1.msra.mxu0 0.0
        %709 = vmatprep.subr.mxu0 0.0
        %710 = vmatpush1.msra.mxu0 0.0
        %711 = vmatprep.subr.mxu0 0.0
        %712 = vmatpush1.msra.mxu0 0.0
        %713 = vmatprep.subr.mxu0 0.0
        %714 = vmatpush1.msra.mxu0 0.0
        %715 = vmatprep.subr.mxu0 0.0
        %716 = vmatpush1.msra.mxu0 0.0
        %717 = vmatprep.subr.mxu0 0.0
        %718 = vmatpush1.msra.mxu0 0.0
        %719 = vmatprep.subr.mxu0 0.0
        %720 = vmatpush1.msra.mxu0 0.0
        %721 = vmatprep.subr.mxu0 0.0
        %722 = vmatpush1.msra.mxu0 0.0
        %723 = vmatprep.subr.mxu0 0.0
        %724 = vmatpush1.msra.mxu0 0.0
        %725 = vmatprep.subr.mxu0 0.0
        %726 = vmatpush1.msra.mxu0 0.0
        %727 = vmatprep.subr.mxu0 0.0
        %728 = vmatpush1.msra.mxu0 0.0
        %729 = vmatprep.subr.mxu0 0.0
        %730 = vmatpush1.msra.mxu0 0.0
        %731 = vmatprep.subr.mxu0 0.0
        %732 = vmatpush1.msra.mxu0 0.0
        %733 = vmatprep.subr.mxu0 0.0
        %734 = vmatpush1.msra.mxu0 0.0
        %735 = vmatprep.subr.mxu0 0.0
        %736 = vmatpush1.msra.mxu0 0.0
        %737 = vmatprep.subr.mxu0 0.0
        %738 = vmatpush1.msra.mxu0 0.0
        %739 = vmatprep.subr.mxu0 0.0
        %740 = vmatpush1.msra.mxu0 0.0
        %741 = vmatprep.subr.mxu0 0.0
        %742 = vmatpush1.msra.mxu0 0.0
        %743 = vmatprep.subr.mxu0 0.0
        %744 = vmatpush1.msra.mxu0 0.0
        %745 = vmatprep.subr.mxu0 0.0
        %746 = vmatpush1.msra.mxu0 0.0
        %747 = vmatprep.subr.mxu0 0.0
        %748 = vmatpush1.msra.mxu0 0.0
        %749 = vmatprep.subr.mxu0 0.0
        %750 = vmatpush1.msra.mxu0 0.0
        %751 = vmatprep.subr.mxu0 0.0
        %752 = vmatpush1.msra.mxu0 0.0
        %753 = vmatprep.subr.mxu0 0.0
        %754 = vmatpush1.msra.mxu0 0.0
        %755 = vmatprep.subr.mxu0 0.0
        %756 = vmatpush1.msra.mxu0 0.0
        %757 = vmatprep.subr.mxu0 0.0
        %758 = vmatpush1.msra.mxu0 0.0
        %759 = vmatprep.subr.mxu0 0.0
        %760 = vmatpush1.msra.mxu0 0.0
        %761 = vmatprep.subr.mxu0 0.0
        %762 = vmatpush1.msra.mxu0 0.0
        %763 = vmatprep.mubr.f32.mxu0 0.0
        %764 = vmatmul.mubr.f32.gmra.mrb[0].mxu0 %v697
        %v765 = vpop.f32.mrb[0].mxu0
        %v766 = vadd.f32 %v695, %v765
        %v767 = vpop.f32.mrb[0].mxu0
        %768 = vdwg.mxu0
        %v769 = vmax.f32 %v766, 0.0
        %v770 = vld [vmem:[%s5] sm:$0x3]
        %v771 = vld [vmem:[%s6] sm:$0x1]
        %vm772 = vcmask 15360
        %v774 = vsel %vm772, %v769, 0
        %vm776 = vcmask 1041408
        %v778 = vsel %vm776, %v770, 0
        %780 = vmatprep.subr.mxu0 0.0
        %781 = vmatpush1.msra.mxu0 %v778
        %782 = vmatprep.subr.mxu0 0.0
        %783 = vmatpush1.msra.mxu0 0.0
        %784 = vmatprep.subr.mxu0 0.0
        %785 = vmatpush1.msra.mxu0 0.0
        %786 = vmatprep.subr.mxu0 0.0
        %787 = vmatpush1.msra.mxu0 0.0
        %788 = vmatprep.subr.mxu0 0.0
        %789 = vmatpush1.msra.mxu0 0.0
        %790 = vmatprep.subr.mxu0 0.0
        %791 = vmatpush1.msra.mxu0 0.0
        %792 = vmatprep.subr.mxu0 0.0
        %793 = vmatpush1.msra.mxu0 0.0
        %794 = vmatprep.subr.mxu0 0.0
        %795 = vmatpush1.msra.mxu0 0.0
        %796 = vmatprep.subr.mxu0 0.0
        %797 = vmatpush1.msra.mxu0 0.0
        %798 = vmatprep.subr.mxu0 0.0
        %799 = vmatpush1.msra.mxu0 0.0
        %800 = vmatprep.subr.mxu0 0.0
        %801 = vmatpush1.msra.mxu0 0.0
        %802 = vmatprep.subr.mxu0 0.0
        %803 = vmatpush1.msra.mxu0 0.0
        %804 = vmatprep.subr.mxu0 0.0
        %805 = vmatpush1.msra.mxu0 0.0
        %806 = vmatprep.subr.mxu0 0.0
        %807 = vmatpush1.msra.mxu0 0.0
        %808 = vmatprep.subr.mxu0 0.0
        %809 = vmatpush1.msra.mxu0 0.0
        %810 = vmatprep.subr.mxu0 0.0
        %811 = vmatpush1.msra.mxu0 0.0
        %812 = vmatprep.subr.mxu0 0.0
        %813 = vmatpush1.msra.mxu0 0.0
        %814 = vmatprep.subr.mxu0 0.0
        %815 = vmatpush1.msra.mxu0 0.0
        %816 = vmatprep.subr.mxu0 0.0
        %817 = vmatpush1.msra.mxu0 0.0
        %818 = vmatprep.subr.mxu0 0.0
        %819 = vmatpush1.msra.mxu0 0.0
        %820 = vmatprep.subr.mxu0 0.0
        %821 = vmatpush1.msra.mxu0 0.0
        %822 = vmatprep.subr.mxu0 0.0
        %823 = vmatpush1.msra.mxu0 0.0
        %824 = vmatprep.subr.mxu0 0.0
        %825 = vmatpush1.msra.mxu0 0.0
        %826 = vmatprep.subr.mxu0 0.0
        %827 = vmatpush1.msra.mxu0 0.0
        %828 = vmatprep.subr.mxu0 0.0
        %829 = vmatpush1.msra.mxu0 0.0
        %830 = vmatprep.subr.mxu0 0.0
        %831 = vmatpush1.msra.mxu0 0.0
        %832 = vmatprep.subr.mxu0 0.0
        %833 = vmatpush1.msra.mxu0 0.0
        %834 = vmatprep.subr.mxu0 0.0
        %835 = vmatpush1.msra.mxu0 0.0
        %836 = vmatprep.subr.mxu0 0.0
        %837 = vmatpush1.msra.mxu0 0.0
        %838 = vmatprep.subr.mxu0 0.0
        %839 = vmatpush1.msra.mxu0 0.0
        %840 = vmatprep.subr.mxu0 0.0
        %841 = vmatpush1.msra.mxu0 0.0
        %842 = vmatprep.subr.mxu0 0.0
        %843 = vmatpush1.msra.mxu0 0.0
        %844 = vmatprep.mubr.f32.mxu0 0.0
        %845 = vmatmul.mubr.f32.gmra.mrb[0].mxu0 %v774
        %v846 = vpop.f32.mrb[0].mxu0
        %v847 = vadd.f32 %v771, %v846
        %v848 = vpop.f32.mrb[0].mxu0
        %849 = vdwg.mxu0
        %v850 = vxor.u32 %v847, 2147483648
        %v851 = vmul.f32 %v850, 1.442695
        %v852 = vpow.pop %v851
        %v853 = vadd.f32 %v852, 1.0
        %v854 = vrcp.pop %v853
        %v855 = vmul.f32 1.0, %v854
        %v856 = vpack.c.bf16 %v855, %v855
        %v858 = vpack.i.b16 %v856, %v856
        %v860 = vlaneseq
        %v861 = vshrl.u32 %v860, 7
        %v862 = vsub.s32 0, %v861
        %v863 = vrot.slane %v858, %v862
        %v865 = vunpack.c.l.b16 %v863
        %v866 = vpack.c.b16 %v865, %v865
        %v868 = vmul.bf16 %v522, %v866
        %v869 = vmul.bf16 %v523, %v866
        %v870 = vmul.bf16 %v524, %v866
        %v871 = vmul.bf16 %v525, %v866
        %v872 = vmul.bf16 %v526, %v866
        %v873 = vmul.bf16 %v527, %v866
        %v874 = vmul.bf16 %v528, %v866
        %v875 = vmul.bf16 %v529, %v866
        %v876 = vmul.bf16 %v530, %v866
        %v877 = vmul.bf16 %v531, %v866
        %v878 = vmul.bf16 %v532, %v866
        %v879 = vmul.bf16 %v533, %v866
        %v880 = vmul.bf16 %v534, %v866
        %v881 = vmul.bf16 %v535, %v866
        %v882 = vmul.bf16 %v536, %v866
        %v883 = vmul.bf16 %v537, %v866
        %v884 = vmul.bf16 %v538, %v866
        %v885 = vmul.bf16 %v539, %v866
        %v886 = vmul.bf16 %v540, %v866
        %v887 = vmul.bf16 %v541, %v866
        %v888 = vmul.bf16 %v542, %v866
        %v889 = vmul.bf16 %v543, %v866
        %v890 = vmul.bf16 %v544, %v866
        %v891 = vmul.bf16 %v545, %v866
        %v892 = vmul.bf16 %v546, %v866
        %v893 = vmul.bf16 %v547, %v866
        %v894 = vmul.bf16 %v548, %v866
        %v895 = vmul.bf16 %v549, %v866
        %v896 = vmul.bf16 %v550, %v866
        %v897 = vmul.bf16 %v551, %v866
        %v898 = vmul.bf16 %v552, %v866
        %v899 = vmul.bf16 %v553, %v866
        %v932 = vunpack.c.l.b16 %v868
        %v933 = vunpack.c.l.b16 %v869
        %v934 = vunpack.c.l.b16 %v870
        %v935 = vunpack.c.l.b16 %v871
        %v936 = vunpack.c.l.b16 %v872
        %v937 = vunpack.c.l.b16 %v873
        %v938 = vunpack.c.l.b16 %v874
        %v939 = vunpack.c.l.b16 %v875
        %v940 = vunpack.c.l.b16 %v876
        %v941 = vunpack.c.l.b16 %v877
        %v942 = vunpack.c.l.b16 %v878
        %v943 = vunpack.c.l.b16 %v879
        %v944 = vunpack.c.l.b16 %v880
        %v945 = vunpack.c.l.b16 %v881
        %v946 = vunpack.c.l.b16 %v882
        %v947 = vunpack.c.l.b16 %v883
        %v948 = vunpack.c.l.b16 %v884
        %v949 = vunpack.c.l.b16 %v885
        %v950 = vunpack.c.l.b16 %v886
        %v951 = vunpack.c.l.b16 %v887
        %v952 = vunpack.c.l.b16 %v888
        %v953 = vunpack.c.l.b16 %v889
        %v954 = vunpack.c.l.b16 %v890
        %v955 = vunpack.c.l.b16 %v891
        %v956 = vunpack.c.l.b16 %v892
        %v957 = vunpack.c.l.b16 %v893
        %v958 = vunpack.c.l.b16 %v894
        %v959 = vunpack.c.l.b16 %v895
        %v960 = vunpack.c.l.b16 %v896
        %v961 = vunpack.c.l.b16 %v897
        %v962 = vunpack.c.l.b16 %v898
        %v963 = vunpack.c.l.b16 %v899
        %v964 = vpack.c.b16 %v932, %v932
        %v965 = vpack.c.b16 %v933, %v933
        %v966 = vpack.c.b16 %v934, %v934
        %v967 = vpack.c.b16 %v935, %v935
        %v968 = vpack.c.b16 %v936, %v936
        %v969 = vpack.c.b16 %v937, %v937
        %v970 = vpack.c.b16 %v938, %v938
        %v971 = vpack.c.b16 %v939, %v939
        %v972 = vpack.c.b16 %v940, %v940
        %v973 = vpack.c.b16 %v941, %v941
        %v974 = vpack.c.b16 %v942, %v942
        %v975 = vpack.c.b16 %v943, %v943
        %v976 = vpack.c.b16 %v944, %v944
        %v977 = vpack.c.b16 %v945, %v945
        %v978 = vpack.c.b16 %v946, %v946
        %v979 = vpack.c.b16 %v947, %v947
        %v980 = vpack.c.b16 %v948, %v948
        %v981 = vpack.c.b16 %v949, %v949
        %v982 = vpack.c.b16 %v950, %v950
        %v983 = vpack.c.b16 %v951, %v951
        %v984 = vpack.c.b16 %v952, %v952
        %v985 = vpack.c.b16 %v953, %v953
        %v986 = vpack.c.b16 %v954, %v954
        %v987 = vpack.c.b16 %v955, %v955
        %v988 = vpack.c.b16 %v956, %v956
        %v989 = vpack.c.b16 %v957, %v957
        %v990 = vpack.c.b16 %v958, %v958
        %v991 = vpack.c.b16 %v959, %v959
        %v992 = vpack.c.b16 %v960, %v960
        %v993 = vpack.c.b16 %v961, %v961
        %v994 = vpack.c.b16 %v962, %v962
        %v995 = vpack.c.b16 %v963, %v963
        %1028 = vst.msk [vmem:[%s487] sm:$0xf0] %vm505, %v964
        %1029 = vst.msk [vmem:[%s487 + $0x8] sm:$0xf] %vm488, %v965
        %1030 = vst.msk [vmem:[%s487 + $0x10] sm:$0xf0] %vm505, %v966
        %1031 = vst.msk [vmem:[%s487 + $0x18] sm:$0xf] %vm488, %v967
        %1032 = vst.msk [vmem:[%s487 + $0x20] sm:$0xf0] %vm505, %v968
        %1033 = vst.msk [vmem:[%s487 + $0x28] sm:$0xf] %vm488, %v969
        %1034 = vst.msk [vmem:[%s487 + $0x30] sm:$0xf0] %vm505, %v970
        %1035 = vst.msk [vmem:[%s487 + $0x38] sm:$0xf] %vm488, %v971
        %1036 = vst.msk [vmem:[%s487 + $0x40] sm:$0xf0] %vm505, %v972
        %1037 = vst.msk [vmem:[%s487 + $0x48] sm:$0xf] %vm488, %v973
        %1038 = vst.msk [vmem:[%s487 + $0x50] sm:$0xf0] %vm505, %v974
        %1039 = vst.msk [vmem:[%s487 + $0x58] sm:$0xf] %vm488, %v975
        %1040 = vst.msk [vmem:[%s487 + $0x60] sm:$0xf0] %vm505, %v976
        %1041 = vst.msk [vmem:[%s487 + $0x68] sm:$0xf] %vm488, %v977
        %1042 = vst.msk [vmem:[%s487 + $0x70] sm:$0xf0] %vm505, %v978
        %1043 = vst.msk [vmem:[%s487 + $0x78] sm:$0xf] %vm488, %v979
        %1044 = vst.msk [vmem:[%s487 + $0x80] sm:$0xf0] %vm505, %v980
        %1045 = vst.msk [vmem:[%s487 + $0x88] sm:$0xf] %vm488, %v981
        %1046 = vst.msk [vmem:[%s487 + $0x90] sm:$0xf0] %vm505, %v982
        %1047 = vst.msk [vmem:[%s487 + $0x98] sm:$0xf] %vm488, %v983
        %1048 = vst.msk [vmem:[%s487 + $0xa0] sm:$0xf0] %vm505, %v984
        %1049 = vst.msk [vmem:[%s487 + $0xa8] sm:$0xf] %vm488, %v985
        %1050 = vst.msk [vmem:[%s487 + $0xb0] sm:$0xf0] %vm505, %v986
        %1051 = vst.msk [vmem:[%s487 + $0xb8] sm:$0xf] %vm488, %v987
        %1052 = vst.msk [vmem:[%s487 + $0xc0] sm:$0xf0] %vm505, %v988
        %1053 = vst.msk [vmem:[%s487 + $0xc8] sm:$0xf] %vm488, %v989
        %1054 = vst.msk [vmem:[%s487 + $0xd0] sm:$0xf0] %vm505, %v990
        %1055 = vst.msk [vmem:[%s487 + $0xd8] sm:$0xf] %vm488, %v991
        %1056 = vst.msk [vmem:[%s487 + $0xe0] sm:$0xf0] %vm505, %v992
        %1057 = vst.msk [vmem:[%s487 + $0xe8] sm:$0xf] %vm488, %v993
        %1058 = vst.msk [vmem:[%s487 + $0xf0] sm:$0xf0] %vm505, %v994
        %1059 = vst.msk [vmem:[%s487 + $0xf8] sm:$0xf] %vm488, %v995
        %v1060 = vld [vmem:[#allocation2] sm:$0xf8]
        %v1061 = vld [vmem:[#allocation2 + $0x8] sm:$0xf]
        %v1062 = vld [vmem:[#allocation2 + $0x10] sm:$0xf8]
        %v1063 = vld [vmem:[#allocation2 + $0x18] sm:$0xf]
        %v1064 = vld [vmem:[#allocation2 + $0x20] sm:$0xf8]
        %v1065 = vld [vmem:[#allocation2 + $0x28] sm:$0xf]
        %v1066 = vld [vmem:[#allocation2 + $0x30] sm:$0xf8]
        %v1067 = vld [vmem:[#allocation2 + $0x38] sm:$0xf]
        %v1068 = vld [vmem:[#allocation2 + $0x40] sm:$0xf8]
        %v1069 = vld [vmem:[#allocation2 + $0x48] sm:$0xf]
        %v1070 = vld [vmem:[#allocation2 + $0x50] sm:$0xf8]
        %v1071 = vld [vmem:[#allocation2 + $0x58] sm:$0xf]
        %v1072 = vld [vmem:[#allocation2 + $0x60] sm:$0xf8]
        %v1073 = vld [vmem:[#allocation2 + $0x68] sm:$0xf]
        %v1074 = vld [vmem:[#allocation2 + $0x70] sm:$0xf8]
        %v1075 = vld [vmem:[#allocation2 + $0x78] sm:$0xf]
        %v1076 = vld [vmem:[#allocation2 + $0x80] sm:$0xf8]
        %v1077 = vld [vmem:[#allocation2 + $0x88] sm:$0xf]
        %v1078 = vld [vmem:[#allocation2 + $0x90] sm:$0xf8]
        %v1079 = vld [vmem:[#allocation2 + $0x98] sm:$0xf]
        %v1080 = vld [vmem:[#allocation2 + $0xa0] sm:$0xf8]
        %v1081 = vld [vmem:[#allocation2 + $0xa8] sm:$0xf]
        %v1082 = vld [vmem:[#allocation2 + $0xb0] sm:$0xf8]
        %v1083 = vld [vmem:[#allocation2 + $0xb8] sm:$0xf]
        %v1084 = vld [vmem:[#allocation2 + $0xc0] sm:$0xf8]
        %v1085 = vld [vmem:[#allocation2 + $0xc8] sm:$0xf]
        %v1086 = vld [vmem:[#allocation2 + $0xd0] sm:$0xf8]
        %v1087 = vld [vmem:[#allocation2 + $0xd8] sm:$0xf]
        %v1088 = vld [vmem:[#allocation2 + $0xe0] sm:$0xf8]
        %v1089 = vld [vmem:[#allocation2 + $0xe8] sm:$0xf]
        %v1090 = vld [vmem:[#allocation2 + $0xf0] sm:$0xf8]
        %v1091 = vld [vmem:[#allocation2 + $0xf8] sm:$0xf]
        %vm1092 = vsmask.f32 4352
        %v1094 = vshrl.u32 %v1060, 16
        %v1096 = vrot.slane %v1094, 3
        %v1097 = vshll.u32 %v1060, 16
        %v1099 = vrot.slane %v1097, 4
        %v1100 = vor.u32 %v1096, %v1099
        %v1102 = vshrl.u32 %v1061, 16
        %v1104 = vrot.slane %v1102, 3
        %v1105 = vshll.u32 %v1061, 16
        %v1107 = vrot.slane %v1105, 4
        %v1108 = vor.u32 %v1104, %v1107
        %v1109 = vsel %vm1092, %v1100, %v1108
        %v1111 = vshrl.u32 %v1062, 16
        %v1113 = vrot.slane %v1111, 3
        %v1114 = vshll.u32 %v1062, 16
        %v1116 = vrot.slane %v1114, 4
        %v1117 = vor.u32 %v1113, %v1116
        %v1119 = vshrl.u32 %v1063, 16
        %v1121 = vrot.slane %v1119, 3
        %v1122 = vshll.u32 %v1063, 16
        %v1124 = vrot.slane %v1122, 4
        %v1125 = vor.u32 %v1121, %v1124
        %v1126 = vsel %vm1092, %v1117, %v1125
        %v1128 = vshrl.u32 %v1064, 16
        %v1130 = vrot.slane %v1128, 3
        %v1131 = vshll.u32 %v1064, 16
        %v1133 = vrot.slane %v1131, 4
        %v1134 = vor.u32 %v1130, %v1133
        %v1136 = vshrl.u32 %v1065, 16
        %v1138 = vrot.slane %v1136, 3
        %v1139 = vshll.u32 %v1065, 16
        %v1141 = vrot.slane %v1139, 4
        %v1142 = vor.u32 %v1138, %v1141
        %v1143 = vsel %vm1092, %v1134, %v1142
        %v1145 = vshrl.u32 %v1066, 16
        %v1147 = vrot.slane %v1145, 3
        %v1148 = vshll.u32 %v1066, 16
        %v1150 = vrot.slane %v1148, 4
        %v1151 = vor.u32 %v1147, %v1150
        %v1153 = vshrl.u32 %v1067, 16
        %v1155 = vrot.slane %v1153, 3
        %v1156 = vshll.u32 %v1067, 16
        %v1158 = vrot.slane %v1156, 4
        %v1159 = vor.u32 %v1155, %v1158
        %v1160 = vsel %vm1092, %v1151, %v1159
        %v1162 = vshrl.u32 %v1068, 16
        %v1164 = vrot.slane %v1162, 3
        %v1165 = vshll.u32 %v1068, 16
        %v1167 = vrot.slane %v1165, 4
        %v1168 = vor.u32 %v1164, %v1167
        %v1170 = vshrl.u32 %v1069, 16
        %v1172 = vrot.slane %v1170, 3
        %v1173 = vshll.u32 %v1069, 16
        %v1175 = vrot.slane %v1173, 4
        %v1176 = vor.u32 %v1172, %v1175
        %v1177 = vsel %vm1092, %v1168, %v1176
        %v1179 = vshrl.u32 %v1070, 16
        %v1181 = vrot.slane %v1179, 3
        %v1182 = vshll.u32 %v1070, 16
        %v1184 = vrot.slane %v1182, 4
        %v1185 = vor.u32 %v1181, %v1184
        %v1187 = vshrl.u32 %v1071, 16
        %v1189 = vrot.slane %v1187, 3
        %v1190 = vshll.u32 %v1071, 16
        %v1192 = vrot.slane %v1190, 4
        %v1193 = vor.u32 %v1189, %v1192
        %v1194 = vsel %vm1092, %v1185, %v1193
        %v1196 = vshrl.u32 %v1072, 16
        %v1198 = vrot.slane %v1196, 3
        %v1199 = vshll.u32 %v1072, 16
        %v1201 = vrot.slane %v1199, 4
        %v1202 = vor.u32 %v1198, %v1201
        %v1204 = vshrl.u32 %v1073, 16
        %v1206 = vrot.slane %v1204, 3
        %v1207 = vshll.u32 %v1073, 16
        %v1209 = vrot.slane %v1207, 4
        %v1210 = vor.u32 %v1206, %v1209
        %v1211 = vsel %vm1092, %v1202, %v1210
        %v1213 = vshrl.u32 %v1074, 16
        %v1215 = vrot.slane %v1213, 3
        %v1216 = vshll.u32 %v1074, 16
        %v1218 = vrot.slane %v1216, 4
        %v1219 = vor.u32 %v1215, %v1218
        %v1221 = vshrl.u32 %v1075, 16
        %v1223 = vrot.slane %v1221, 3
        %v1224 = vshll.u32 %v1075, 16
        %v1226 = vrot.slane %v1224, 4
        %v1227 = vor.u32 %v1223, %v1226
        %v1228 = vsel %vm1092, %v1219, %v1227
        %v1230 = vshrl.u32 %v1076, 16
        %v1232 = vrot.slane %v1230, 3
        %v1233 = vshll.u32 %v1076, 16
        %v1235 = vrot.slane %v1233, 4
        %v1236 = vor.u32 %v1232, %v1235
        %v1238 = vshrl.u32 %v1077, 16
        %v1240 = vrot.slane %v1238, 3
        %v1241 = vshll.u32 %v1077, 16
        %v1243 = vrot.slane %v1241, 4
        %v1244 = vor.u32 %v1240, %v1243
        %v1245 = vsel %vm1092, %v1236, %v1244
        %v1247 = vshrl.u32 %v1078, 16
        %v1249 = vrot.slane %v1247, 3
        %v1250 = vshll.u32 %v1078, 16
        %v1252 = vrot.slane %v1250, 4
        %v1253 = vor.u32 %v1249, %v1252
        %v1255 = vshrl.u32 %v1079, 16
        %v1257 = vrot.slane %v1255, 3
        %v1258 = vshll.u32 %v1079, 16
        %v1260 = vrot.slane %v1258, 4
        %v1261 = vor.u32 %v1257, %v1260
        %v1262 = vsel %vm1092, %v1253, %v1261
        %v1264 = vshrl.u32 %v1080, 16
        %v1266 = vrot.slane %v1264, 3
        %v1267 = vshll.u32 %v1080, 16
        %v1269 = vrot.slane %v1267, 4
        %v1270 = vor.u32 %v1266, %v1269
        %v1272 = vshrl.u32 %v1081, 16
        %v1274 = vrot.slane %v1272, 3
        %v1275 = vshll.u32 %v1081, 16
        %v1277 = vrot.slane %v1275, 4
        %v1278 = vor.u32 %v1274, %v1277
        %v1279 = vsel %vm1092, %v1270, %v1278
        %v1281 = vshrl.u32 %v1082, 16
        %v1283 = vrot.slane %v1281, 3
        %v1284 = vshll.u32 %v1082, 16
        %v1286 = vrot.slane %v1284, 4
        %v1287 = vor.u32 %v1283, %v1286
        %v1289 = vshrl.u32 %v1083, 16
        %v1291 = vrot.slane %v1289, 3
        %v1292 = vshll.u32 %v1083, 16
        %v1294 = vrot.slane %v1292, 4
        %v1295 = vor.u32 %v1291, %v1294
        %v1296 = vsel %vm1092, %v1287, %v1295
        %v1298 = vshrl.u32 %v1084, 16
        %v1300 = vrot.slane %v1298, 3
        %v1301 = vshll.u32 %v1084, 16
        %v1303 = vrot.slane %v1301, 4
        %v1304 = vor.u32 %v1300, %v1303
        %v1306 = vshrl.u32 %v1085, 16
        %v1308 = vrot.slane %v1306, 3
        %v1309 = vshll.u32 %v1085, 16
        %v1311 = vrot.slane %v1309, 4
        %v1312 = vor.u32 %v1308, %v1311
        %v1313 = vsel %vm1092, %v1304, %v1312
        %v1315 = vshrl.u32 %v1086, 16
        %v1317 = vrot.slane %v1315, 3
        %v1318 = vshll.u32 %v1086, 16
        %v1320 = vrot.slane %v1318, 4
        %v1321 = vor.u32 %v1317, %v1320
        %v1323 = vshrl.u32 %v1087, 16
        %v1325 = vrot.slane %v1323, 3
        %v1326 = vshll.u32 %v1087, 16
        %v1328 = vrot.slane %v1326, 4
        %v1329 = vor.u32 %v1325, %v1328
        %v1330 = vsel %vm1092, %v1321, %v1329
        %v1332 = vshrl.u32 %v1088, 16
        %v1334 = vrot.slane %v1332, 3
        %v1335 = vshll.u32 %v1088, 16
        %v1337 = vrot.slane %v1335, 4
        %v1338 = vor.u32 %v1334, %v1337
        %v1340 = vshrl.u32 %v1089, 16
        %v1342 = vrot.slane %v1340, 3
        %v1343 = vshll.u32 %v1089, 16
        %v1345 = vrot.slane %v1343, 4
        %v1346 = vor.u32 %v1342, %v1345
        %v1347 = vsel %vm1092, %v1338, %v1346
        %v1349 = vshrl.u32 %v1090, 16
        %v1351 = vrot.slane %v1349, 3
        %v1352 = vshll.u32 %v1090, 16
        %v1354 = vrot.slane %v1352, 4
        %v1355 = vor.u32 %v1351, %v1354
        %v1357 = vshrl.u32 %v1091, 16
        %v1359 = vrot.slane %v1357, 3
        %v1360 = vshll.u32 %v1091, 16
        %v1362 = vrot.slane %v1360, 4
        %v1363 = vor.u32 %v1359, %v1362
        %v1364 = vsel %vm1092, %v1355, %v1363
        %v1365 = vld [vmem:[#allocation2] sm:$0xf0]
        %v1366 = vld [vmem:[#allocation2 + $0x10] sm:$0xf0]
        %v1367 = vld [vmem:[#allocation2 + $0x20] sm:$0xf0]
        %v1368 = vld [vmem:[#allocation2 + $0x30] sm:$0xf0]
        %v1369 = vld [vmem:[#allocation2 + $0x40] sm:$0xf0]
        %v1370 = vld [vmem:[#allocation2 + $0x50] sm:$0xf0]
        %v1371 = vld [vmem:[#allocation2 + $0x60] sm:$0xf0]
        %v1372 = vld [vmem:[#allocation2 + $0x70] sm:$0xf0]
        %v1373 = vld [vmem:[#allocation2 + $0x80] sm:$0xf0]
        %v1374 = vld [vmem:[#allocation2 + $0x90] sm:$0xf0]
        %v1375 = vld [vmem:[#allocation2 + $0xa0] sm:$0xf0]
        %v1376 = vld [vmem:[#allocation2 + $0xb0] sm:$0xf0]
        %v1377 = vld [vmem:[#allocation2 + $0xc0] sm:$0xf0]
        %v1378 = vld [vmem:[#allocation2 + $0xd0] sm:$0xf0]
        %v1379 = vld [vmem:[#allocation2 + $0xe0] sm:$0xf0]
        %v1380 = vld [vmem:[#allocation2 + $0xf0] sm:$0xf0]
        %vm1413 = vcmask 1043456
        %v1414 = vrot.slane %v1365, 4
        %v1415 = vrot.slane %v1061, 4
        %v1416 = vsel %vm1413, %v1414, %v1415
        %v1417 = vrot.slane %v1366, 4
        %v1418 = vrot.slane %v1063, 4
        %v1419 = vsel %vm1413, %v1417, %v1418
        %v1420 = vrot.slane %v1367, 4
        %v1421 = vrot.slane %v1065, 4
        %v1422 = vsel %vm1413, %v1420, %v1421
        %v1423 = vrot.slane %v1368, 4
        %v1424 = vrot.slane %v1067, 4
        %v1425 = vsel %vm1413, %v1423, %v1424
        %v1426 = vrot.slane %v1369, 4
        %v1427 = vrot.slane %v1069, 4
        %v1428 = vsel %vm1413, %v1426, %v1427
        %v1429 = vrot.slane %v1370, 4
        %v1430 = vrot.slane %v1071, 4
        %v1431 = vsel %vm1413, %v1429, %v1430
        %v1432 = vrot.slane %v1371, 4
        %v1433 = vrot.slane %v1073, 4
        %v1434 = vsel %vm1413, %v1432, %v1433
        %v1435 = vrot.slane %v1372, 4
        %v1436 = vrot.slane %v1075, 4
        %v1437 = vsel %vm1413, %v1435, %v1436
        %v1438 = vrot.slane %v1373, 4
        %v1439 = vrot.slane %v1077, 4
        %v1440 = vsel %vm1413, %v1438, %v1439
        %v1441 = vrot.slane %v1374, 4
        %v1442 = vrot.slane %v1079, 4
        %v1443 = vsel %vm1413, %v1441, %v1442
        %v1444 = vrot.slane %v1375, 4
        %v1445 = vrot.slane %v1081, 4
        %v1446 = vsel %vm1413, %v1444, %v1445
        %v1447 = vrot.slane %v1376, 4
        %v1448 = vrot.slane %v1083, 4
        %v1449 = vsel %vm1413, %v1447, %v1448
        %v1450 = vrot.slane %v1377, 4
        %v1451 = vrot.slane %v1085, 4
        %v1452 = vsel %vm1413, %v1450, %v1451
        %v1453 = vrot.slane %v1378, 4
        %v1454 = vrot.slane %v1087, 4
        %v1455 = vsel %vm1413, %v1453, %v1454
        %v1456 = vrot.slane %v1379, 4
        %v1457 = vrot.slane %v1089, 4
        %v1458 = vsel %vm1413, %v1456, %v1457
        %v1459 = vrot.slane %v1380, 4
        %v1460 = vrot.slane %v1091, 4
        %v1461 = vsel %vm1413, %v1459, %v1460
        %v1462 = vld [vmem:[#allocation2 + $0x8] sm:$0x1f]
        %v1463 = vld [vmem:[#allocation2 + $0x18] sm:$0x1f]
        %v1464 = vld [vmem:[#allocation2 + $0x28] sm:$0x1f]
        %v1465 = vld [vmem:[#allocation2 + $0x38] sm:$0x1f]
        %v1466 = vld [vmem:[#allocation2 + $0x48] sm:$0x1f]
        %v1467 = vld [vmem:[#allocation2 + $0x58] sm:$0x1f]
        %v1468 = vld [vmem:[#allocation2 + $0x68] sm:$0x1f]
        %v1469 = vld [vmem:[#allocation2 + $0x78] sm:$0x1f]
        %v1470 = vld [vmem:[#allocation2 + $0x88] sm:$0x1f]
        %v1471 = vld [vmem:[#allocation2 + $0x98] sm:$0x1f]
        %v1472 = vld [vmem:[#allocation2 + $0xa8] sm:$0x1f]
        %v1473 = vld [vmem:[#allocation2 + $0xb8] sm:$0x1f]
        %v1474 = vld [vmem:[#allocation2 + $0xc8] sm:$0x1f]
        %v1475 = vld [vmem:[#allocation2 + $0xd8] sm:$0x1f]
        %v1476 = vld [vmem:[#allocation2 + $0xe8] sm:$0x1f]
        %v1477 = vld [vmem:[#allocation2 + $0xf8] sm:$0x1f]
        %vm1478 = vsmask.f32 3328
        %v1480 = vshrl.u32 %v1365, 16
        %v1482 = vrot.slane %v1480, 4
        %v1483 = vshll.u32 %v1365, 16
        %v1485 = vrot.slane %v1483, 5
        %v1486 = vor.u32 %v1482, %v1485
        %v1488 = vshrl.u32 %v1462, 16
        %v1490 = vrot.slane %v1488, 4
        %v1491 = vshll.u32 %v1462, 16
        %v1493 = vrot.slane %v1491, 5
        %v1494 = vor.u32 %v1490, %v1493
        %v1495 = vsel %vm1478, %v1486, %v1494
        %v1497 = vshrl.u32 %v1366, 16
        %v1499 = vrot.slane %v1497, 4
        %v1500 = vshll.u32 %v1366, 16
        %v1502 = vrot.slane %v1500, 5
        %v1503 = vor.u32 %v1499, %v1502
        %v1505 = vshrl.u32 %v1463, 16
        %v1507 = vrot.slane %v1505, 4
        %v1508 = vshll.u32 %v1463, 16
        %v1510 = vrot.slane %v1508, 5
        %v1511 = vor.u32 %v1507, %v1510
        %v1512 = vsel %vm1478, %v1503, %v1511
        %v1514 = vshrl.u32 %v1367, 16
        %v1516 = vrot.slane %v1514, 4
        %v1517 = vshll.u32 %v1367, 16
        %v1519 = vrot.slane %v1517, 5
        %v1520 = vor.u32 %v1516, %v1519
        %v1522 = vshrl.u32 %v1464, 16
        %v1524 = vrot.slane %v1522, 4
        %v1525 = vshll.u32 %v1464, 16
        %v1527 = vrot.slane %v1525, 5
        %v1528 = vor.u32 %v1524, %v1527
        %v1529 = vsel %vm1478, %v1520, %v1528
        %v1531 = vshrl.u32 %v1368, 16
        %v1533 = vrot.slane %v1531, 4
        %v1534 = vshll.u32 %v1368, 16
        %v1536 = vrot.slane %v1534, 5
        %v1537 = vor.u32 %v1533, %v1536
        %v1539 = vshrl.u32 %v1465, 16
        %v1541 = vrot.slane %v1539, 4
        %v1542 = vshll.u32 %v1465, 16
        %v1544 = vrot.slane %v1542, 5
        %v1545 = vor.u32 %v1541, %v1544
        %v1546 = vsel %vm1478, %v1537, %v1545
        %v1548 = vshrl.u32 %v1369, 16
        %v1550 = vrot.slane %v1548, 4
        %v1551 = vshll.u32 %v1369, 16
        %v1553 = vrot.slane %v1551, 5
        %v1554 = vor.u32 %v1550, %v1553
        %v1556 = vshrl.u32 %v1466, 16
        %v1558 = vrot.slane %v1556, 4
        %v1559 = vshll.u32 %v1466, 16
        %v1561 = vrot.slane %v1559, 5
        %v1562 = vor.u32 %v1558, %v1561
        %v1563 = vsel %vm1478, %v1554, %v1562
        %v1565 = vshrl.u32 %v1370, 16
        %v1567 = vrot.slane %v1565, 4
        %v1568 = vshll.u32 %v1370, 16
        %v1570 = vrot.slane %v1568, 5
        %v1571 = vor.u32 %v1567, %v1570
        %v1573 = vshrl.u32 %v1467, 16
        %v1575 = vrot.slane %v1573, 4
        %v1576 = vshll.u32 %v1467, 16
        %v1578 = vrot.slane %v1576, 5
        %v1579 = vor.u32 %v1575, %v1578
        %v1580 = vsel %vm1478, %v1571, %v1579
        %v1582 = vshrl.u32 %v1371, 16
        %v1584 = vrot.slane %v1582, 4
        %v1585 = vshll.u32 %v1371, 16
        %v1587 = vrot.slane %v1585, 5
        %v1588 = vor.u32 %v1584, %v1587
        %v1590 = vshrl.u32 %v1468, 16
        %v1592 = vrot.slane %v1590, 4
        %v1593 = vshll.u32 %v1468, 16
        %v1595 = vrot.slane %v1593, 5
        %v1596 = vor.u32 %v1592, %v1595
        %v1597 = vsel %vm1478, %v1588, %v1596
        %v1599 = vshrl.u32 %v1372, 16
        %v1601 = vrot.slane %v1599, 4
        %v1602 = vshll.u32 %v1372, 16
        %v1604 = vrot.slane %v1602, 5
        %v1605 = vor.u32 %v1601, %v1604
        %v1607 = vshrl.u32 %v1469, 16
        %v1609 = vrot.slane %v1607, 4
        %v1610 = vshll.u32 %v1469, 16
        %v1612 = vrot.slane %v1610, 5
        %v1613 = vor.u32 %v1609, %v1612
        %v1614 = vsel %vm1478, %v1605, %v1613
        %v1616 = vshrl.u32 %v1373, 16
        %v1618 = vrot.slane %v1616, 4
        %v1619 = vshll.u32 %v1373, 16
        %v1621 = vrot.slane %v1619, 5
        %v1622 = vor.u32 %v1618, %v1621
        %v1624 = vshrl.u32 %v1470, 16
        %v1626 = vrot.slane %v1624, 4
        %v1627 = vshll.u32 %v1470, 16
        %v1629 = vrot.slane %v1627, 5
        %v1630 = vor.u32 %v1626, %v1629
        %v1631 = vsel %vm1478, %v1622, %v1630
        %v1633 = vshrl.u32 %v1374, 16
        %v1635 = vrot.slane %v1633, 4
        %v1636 = vshll.u32 %v1374, 16
        %v1638 = vrot.slane %v1636, 5
        %v1639 = vor.u32 %v1635, %v1638
        %v1641 = vshrl.u32 %v1471, 16
        %v1643 = vrot.slane %v1641, 4
        %v1644 = vshll.u32 %v1471, 16
        %v1646 = vrot.slane %v1644, 5
        %v1647 = vor.u32 %v1643, %v1646
        %v1648 = vsel %vm1478, %v1639, %v1647
        %v1650 = vshrl.u32 %v1375, 16
        %v1652 = vrot.slane %v1650, 4
        %v1653 = vshll.u32 %v1375, 16
        %v1655 = vrot.slane %v1653, 5
        %v1656 = vor.u32 %v1652, %v1655
        %v1658 = vshrl.u32 %v1472, 16
        %v1660 = vrot.slane %v1658, 4
        %v1661 = vshll.u32 %v1472, 16
        %v1663 = vrot.slane %v1661, 5
        %v1664 = vor.u32 %v1660, %v1663
        %v1665 = vsel %vm1478, %v1656, %v1664
        %v1667 = vshrl.u32 %v1376, 16
        %v1669 = vrot.slane %v1667, 4
        %v1670 = vshll.u32 %v1376, 16
        %v1672 = vrot.slane %v1670, 5
        %v1673 = vor.u32 %v1669, %v1672
        %v1675 = vshrl.u32 %v1473, 16
        %v1677 = vrot.slane %v1675, 4
        %v1678 = vshll.u32 %v1473, 16
        %v1680 = vrot.slane %v1678, 5
        %v1681 = vor.u32 %v1677, %v1680
        %v1682 = vsel %vm1478, %v1673, %v1681
        %v1684 = vshrl.u32 %v1377, 16
        %v1686 = vrot.slane %v1684, 4
        %v1687 = vshll.u32 %v1377, 16
        %v1689 = vrot.slane %v1687, 5
        %v1690 = vor.u32 %v1686, %v1689
        %v1692 = vshrl.u32 %v1474, 16
        %v1694 = vrot.slane %v1692, 4
        %v1695 = vshll.u32 %v1474, 16
        %v1697 = vrot.slane %v1695, 5
        %v1698 = vor.u32 %v1694, %v1697
        %v1699 = vsel %vm1478, %v1690, %v1698
        %v1701 = vshrl.u32 %v1378, 16
        %v1703 = vrot.slane %v1701, 4
        %v1704 = vshll.u32 %v1378, 16
        %v1706 = vrot.slane %v1704, 5
        %v1707 = vor.u32 %v1703, %v1706
        %v1709 = vshrl.u32 %v1475, 16
        %v1711 = vrot.slane %v1709, 4
        %v1712 = vshll.u32 %v1475, 16
        %v1714 = vrot.slane %v1712, 5
        %v1715 = vor.u32 %v1711, %v1714
        %v1716 = vsel %vm1478, %v1707, %v1715
        %v1718 = vshrl.u32 %v1379, 16
        %v1720 = vrot.slane %v1718, 4
        %v1721 = vshll.u32 %v1379, 16
        %v1723 = vrot.slane %v1721, 5
        %v1724 = vor.u32 %v1720, %v1723
        %v1726 = vshrl.u32 %v1476, 16
        %v1728 = vrot.slane %v1726, 4
        %v1729 = vshll.u32 %v1476, 16
        %v1731 = vrot.slane %v1729, 5
        %v1732 = vor.u32 %v1728, %v1731
        %v1733 = vsel %vm1478, %v1724, %v1732
        %v1735 = vshrl.u32 %v1380, 16
        %v1737 = vrot.slane %v1735, 4
        %v1738 = vshll.u32 %v1380, 16
        %v1740 = vrot.slane %v1738, 5
        %v1741 = vor.u32 %v1737, %v1740
        %v1743 = vshrl.u32 %v1477, 16
        %v1745 = vrot.slane %v1743, 4
        %v1746 = vshll.u32 %v1477, 16
        %v1748 = vrot.slane %v1746, 5
        %v1749 = vor.u32 %v1745, %v1748
        %v1750 = vsel %vm1478, %v1741, %v1749
        %v1751 = vld [vmem:[%s487] sm:$0xf8]
        %v1752 = vld [vmem:[%s487 + $0x8] sm:$0xf]
        %v1753 = vld [vmem:[%s487 + $0x10] sm:$0xf8]
        %v1754 = vld [vmem:[%s487 + $0x18] sm:$0xf]
        %v1755 = vld [vmem:[%s487 + $0x20] sm:$0xf8]
        %v1756 = vld [vmem:[%s487 + $0x28] sm:$0xf]
        %v1757 = vld [vmem:[%s487 + $0x30] sm:$0xf8]
        %v1758 = vld [vmem:[%s487 + $0x38] sm:$0xf]
        %v1759 = vld [vmem:[%s487 + $0x40] sm:$0xf8]
        %v1760 = vld [vmem:[%s487 + $0x48] sm:$0xf]
        %v1761 = vld [vmem:[%s487 + $0x50] sm:$0xf8]
        %v1762 = vld [vmem:[%s487 + $0x58] sm:$0xf]
        %v1763 = vld [vmem:[%s487 + $0x60] sm:$0xf8]
        %v1764 = vld [vmem:[%s487 + $0x68] sm:$0xf]
        %v1765 = vld [vmem:[%s487 + $0x70] sm:$0xf8]
        %v1766 = vld [vmem:[%s487 + $0x78] sm:$0xf]
        %v1767 = vld [vmem:[%s487 + $0x80] sm:$0xf8]
        %v1768 = vld [vmem:[%s487 + $0x88] sm:$0xf]
        %v1769 = vld [vmem:[%s487 + $0x90] sm:$0xf8]
        %v1770 = vld [vmem:[%s487 + $0x98] sm:$0xf]
        %v1771 = vld [vmem:[%s487 + $0xa0] sm:$0xf8]
        %v1772 = vld [vmem:[%s487 + $0xa8] sm:$0xf]
        %v1773 = vld [vmem:[%s487 + $0xb0] sm:$0xf8]
        %v1774 = vld [vmem:[%s487 + $0xb8] sm:$0xf]
        %v1775 = vld [vmem:[%s487 + $0xc0] sm:$0xf8]
        %v1776 = vld [vmem:[%s487 + $0xc8] sm:$0xf]
        %v1777 = vld [vmem:[%s487 + $0xd0] sm:$0xf8]
        %v1778 = vld [vmem:[%s487 + $0xd8] sm:$0xf]
        %v1779 = vld [vmem:[%s487 + $0xe0] sm:$0xf8]
        %v1780 = vld [vmem:[%s487 + $0xe8] sm:$0xf]
        %v1781 = vld [vmem:[%s487 + $0xf0] sm:$0xf8]
        %v1782 = vld [vmem:[%s487 + $0xf8] sm:$0xf]
        %v1784 = vshrl.u32 %v1751, 16
        %v1786 = vrot.slane %v1784, 3
        %v1787 = vshll.u32 %v1751, 16
        %v1789 = vrot.slane %v1787, 4
        %v1790 = vor.u32 %v1786, %v1789
        %v1792 = vshrl.u32 %v1752, 16
        %v1794 = vrot.slane %v1792, 3
        %v1795 = vshll.u32 %v1752, 16
        %v1797 = vrot.slane %v1795, 4
        %v1798 = vor.u32 %v1794, %v1797
        %v1799 = vsel %vm1092, %v1790, %v1798
        %v1801 = vshrl.u32 %v1753, 16
        %v1803 = vrot.slane %v1801, 3
        %v1804 = vshll.u32 %v1753, 16
        %v1806 = vrot.slane %v1804, 4
        %v1807 = vor.u32 %v1803, %v1806
        %v1809 = vshrl.u32 %v1754, 16
        %v1811 = vrot.slane %v1809, 3
        %v1812 = vshll.u32 %v1754, 16
        %v1814 = vrot.slane %v1812, 4
        %v1815 = vor.u32 %v1811, %v1814
        %v1816 = vsel %vm1092, %v1807, %v1815
        %v1818 = vshrl.u32 %v1755, 16
        %v1820 = vrot.slane %v1818, 3
        %v1821 = vshll.u32 %v1755, 16
        %v1823 = vrot.slane %v1821, 4
        %v1824 = vor.u32 %v1820, %v1823
        %v1826 = vshrl.u32 %v1756, 16
        %v1828 = vrot.slane %v1826, 3
        %v1829 = vshll.u32 %v1756, 16
        %v1831 = vrot.slane %v1829, 4
        %v1832 = vor.u32 %v1828, %v1831
        %v1833 = vsel %vm1092, %v1824, %v1832
        %v1835 = vshrl.u32 %v1757, 16
        %v1837 = vrot.slane %v1835, 3
        %v1838 = vshll.u32 %v1757, 16
        %v1840 = vrot.slane %v1838, 4
        %v1841 = vor.u32 %v1837, %v1840
        %v1843 = vshrl.u32 %v1758, 16
        %v1845 = vrot.slane %v1843, 3
        %v1846 = vshll.u32 %v1758, 16
        %v1848 = vrot.slane %v1846, 4
        %v1849 = vor.u32 %v1845, %v1848
        %v1850 = vsel %vm1092, %v1841, %v1849
        %v1852 = vshrl.u32 %v1759, 16
        %v1854 = vrot.slane %v1852, 3
        %v1855 = vshll.u32 %v1759, 16
        %v1857 = vrot.slane %v1855, 4
        %v1858 = vor.u32 %v1854, %v1857
        %v1860 = vshrl.u32 %v1760, 16
        %v1862 = vrot.slane %v1860, 3
        %v1863 = vshll.u32 %v1760, 16
        %v1865 = vrot.slane %v1863, 4
        %v1866 = vor.u32 %v1862, %v1865
        %v1867 = vsel %vm1092, %v1858, %v1866
        %v1869 = vshrl.u32 %v1761, 16
        %v1871 = vrot.slane %v1869, 3
        %v1872 = vshll.u32 %v1761, 16
        %v1874 = vrot.slane %v1872, 4
        %v1875 = vor.u32 %v1871, %v1874
        %v1877 = vshrl.u32 %v1762, 16
        %v1879 = vrot.slane %v1877, 3
        %v1880 = vshll.u32 %v1762, 16
        %v1882 = vrot.slane %v1880, 4
        %v1883 = vor.u32 %v1879, %v1882
        %v1884 = vsel %vm1092, %v1875, %v1883
        %v1886 = vshrl.u32 %v1763, 16
        %v1888 = vrot.slane %v1886, 3
        %v1889 = vshll.u32 %v1763, 16
        %v1891 = vrot.slane %v1889, 4
        %v1892 = vor.u32 %v1888, %v1891
        %v1894 = vshrl.u32 %v1764, 16
        %v1896 = vrot.slane %v1894, 3
        %v1897 = vshll.u32 %v1764, 16
        %v1899 = vrot.slane %v1897, 4
        %v1900 = vor.u32 %v1896, %v1899
        %v1901 = vsel %vm1092, %v1892, %v1900
        %v1903 = vshrl.u32 %v1765, 16
        %v1905 = vrot.slane %v1903, 3
        %v1906 = vshll.u32 %v1765, 16
        %v1908 = vrot.slane %v1906, 4
        %v1909 = vor.u32 %v1905, %v1908
        %v1911 = vshrl.u32 %v1766, 16
        %v1913 = vrot.slane %v1911, 3
        %v1914 = vshll.u32 %v1766, 16
        %v1916 = vrot.slane %v1914, 4
        %v1917 = vor.u32 %v1913, %v1916
        %v1918 = vsel %vm1092, %v1909, %v1917
        %v1920 = vshrl.u32 %v1767, 16
        %v1922 = vrot.slane %v1920, 3
        %v1923 = vshll.u32 %v1767, 16
        %v1925 = vrot.slane %v1923, 4
        %v1926 = vor.u32 %v1922, %v1925
        %v1928 = vshrl.u32 %v1768, 16
        %v1930 = vrot.slane %v1928, 3
        %v1931 = vshll.u32 %v1768, 16
        %v1933 = vrot.slane %v1931, 4
        %v1934 = vor.u32 %v1930, %v1933
        %v1935 = vsel %vm1092, %v1926, %v1934
        %v1937 = vshrl.u32 %v1769, 16
        %v1939 = vrot.slane %v1937, 3
        %v1940 = vshll.u32 %v1769, 16
        %v1942 = vrot.slane %v1940, 4
        %v1943 = vor.u32 %v1939, %v1942
        %v1945 = vshrl.u32 %v1770, 16
        %v1947 = vrot.slane %v1945, 3
        %v1948 = vshll.u32 %v1770, 16
        %v1950 = vrot.slane %v1948, 4
        %v1951 = vor.u32 %v1947, %v1950
        %v1952 = vsel %vm1092, %v1943, %v1951
        %v1954 = vshrl.u32 %v1771, 16
        %v1956 = vrot.slane %v1954, 3
        %v1957 = vshll.u32 %v1771, 16
        %v1959 = vrot.slane %v1957, 4
        %v1960 = vor.u32 %v1956, %v1959
        %v1962 = vshrl.u32 %v1772, 16
        %v1964 = vrot.slane %v1962, 3
        %v1965 = vshll.u32 %v1772, 16
        %v1967 = vrot.slane %v1965, 4
        %v1968 = vor.u32 %v1964, %v1967
        %v1969 = vsel %vm1092, %v1960, %v1968
        %v1971 = vshrl.u32 %v1773, 16
        %v1973 = vrot.slane %v1971, 3
        %v1974 = vshll.u32 %v1773, 16
        %v1976 = vrot.slane %v1974, 4
        %v1977 = vor.u32 %v1973, %v1976
        %v1979 = vshrl.u32 %v1774, 16
        %v1981 = vrot.slane %v1979, 3
        %v1982 = vshll.u32 %v1774, 16
        %v1984 = vrot.slane %v1982, 4
        %v1985 = vor.u32 %v1981, %v1984
        %v1986 = vsel %vm1092, %v1977, %v1985
        %v1988 = vshrl.u32 %v1775, 16
        %v1990 = vrot.slane %v1988, 3
        %v1991 = vshll.u32 %v1775, 16
        %v1993 = vrot.slane %v1991, 4
        %v1994 = vor.u32 %v1990, %v1993
        %v1996 = vshrl.u32 %v1776, 16
        %v1998 = vrot.slane %v1996, 3
        %v1999 = vshll.u32 %v1776, 16
        %v2001 = vrot.slane %v1999, 4
        %v2002 = vor.u32 %v1998, %v2001
        %v2003 = vsel %vm1092, %v1994, %v2002
        %v2005 = vshrl.u32 %v1777, 16
        %v2007 = vrot.slane %v2005, 3
        %v2008 = vshll.u32 %v1777, 16
        %v2010 = vrot.slane %v2008, 4
        %v2011 = vor.u32 %v2007, %v2010
        %v2013 = vshrl.u32 %v1778, 16
        %v2015 = vrot.slane %v2013, 3
        %v2016 = vshll.u32 %v1778, 16
        %v2018 = vrot.slane %v2016, 4
        %v2019 = vor.u32 %v2015, %v2018
        %v2020 = vsel %vm1092, %v2011, %v2019
        %v2022 = vshrl.u32 %v1779, 16
        %v2024 = vrot.slane %v2022, 3
        %v2025 = vshll.u32 %v1779, 16
        %v2027 = vrot.slane %v2025, 4
        %v2028 = vor.u32 %v2024, %v2027
        %v2030 = vshrl.u32 %v1780, 16
        %v2032 = vrot.slane %v2030, 3
        %v2033 = vshll.u32 %v1780, 16
        %v2035 = vrot.slane %v2033, 4
        %v2036 = vor.u32 %v2032, %v2035
        %v2037 = vsel %vm1092, %v2028, %v2036
        %v2039 = vshrl.u32 %v1781, 16
        %v2041 = vrot.slane %v2039, 3
        %v2042 = vshll.u32 %v1781, 16
        %v2044 = vrot.slane %v2042, 4
        %v2045 = vor.u32 %v2041, %v2044
        %v2047 = vshrl.u32 %v1782, 16
        %v2049 = vrot.slane %v2047, 3
        %v2050 = vshll.u32 %v1782, 16
        %v2052 = vrot.slane %v2050, 4
        %v2053 = vor.u32 %v2049, %v2052
        %v2054 = vsel %vm1092, %v2045, %v2053
        %v2055 = vld [vmem:[%s487] sm:$0xf0]
        %v2056 = vld [vmem:[%s487 + $0x10] sm:$0xf0]
        %v2057 = vld [vmem:[%s487 + $0x20] sm:$0xf0]
        %v2058 = vld [vmem:[%s487 + $0x30] sm:$0xf0]
        %v2059 = vld [vmem:[%s487 + $0x40] sm:$0xf0]
        %v2060 = vld [vmem:[%s487 + $0x50] sm:$0xf0]
        %v2061 = vld [vmem:[%s487 + $0x60] sm:$0xf0]
        %v2062 = vld [vmem:[%s487 + $0x70] sm:$0xf0]
        %v2063 = vld [vmem:[%s487 + $0x80] sm:$0xf0]
        %v2064 = vld [vmem:[%s487 + $0x90] sm:$0xf0]
        %v2065 = vld [vmem:[%s487 + $0xa0] sm:$0xf0]
        %v2066 = vld [vmem:[%s487 + $0xb0] sm:$0xf0]
        %v2067 = vld [vmem:[%s487 + $0xc0] sm:$0xf0]
        %v2068 = vld [vmem:[%s487 + $0xd0] sm:$0xf0]
        %v2069 = vld [vmem:[%s487 + $0xe0] sm:$0xf0]
        %v2070 = vld [vmem:[%s487 + $0xf0] sm:$0xf0]
        %v2103 = vrot.slane %v2055, 4
        %v2104 = vrot.slane %v1752, 4
        %v2105 = vsel %vm1413, %v2103, %v2104
        %v2106 = vrot.slane %v2056, 4
        %v2107 = vrot.slane %v1754, 4
        %v2108 = vsel %vm1413, %v2106, %v2107
        %v2109 = vrot.slane %v2057, 4
        %v2110 = vrot.slane %v1756, 4
        %v2111 = vsel %vm1413, %v2109, %v2110
        %v2112 = vrot.slane %v2058, 4
        %v2113 = vrot.slane %v1758, 4
        %v2114 = vsel %vm1413, %v2112, %v2113
        %v2115 = vrot.slane %v2059, 4
        %v2116 = vrot.slane %v1760, 4
        %v2117 = vsel %vm1413, %v2115, %v2116
        %v2118 = vrot.slane %v2060, 4
        %v2119 = vrot.slane %v1762, 4
        %v2120 = vsel %vm1413, %v2118, %v2119
        %v2121 = vrot.slane %v2061, 4
        %v2122 = vrot.slane %v1764, 4
        %v2123 = vsel %vm1413, %v2121, %v2122
        %v2124 = vrot.slane %v2062, 4
        %v2125 = vrot.slane %v1766, 4
        %v2126 = vsel %vm1413, %v2124, %v2125
        %v2127 = vrot.slane %v2063, 4
        %v2128 = vrot.slane %v1768, 4
        %v2129 = vsel %vm1413, %v2127, %v2128
        %v2130 = vrot.slane %v2064, 4
        %v2131 = vrot.slane %v1770, 4
        %v2132 = vsel %vm1413, %v2130, %v2131
        %v2133 = vrot.slane %v2065, 4
        %v2134 = vrot.slane %v1772, 4
        %v2135 = vsel %vm1413, %v2133, %v2134
        %v2136 = vrot.slane %v2066, 4
        %v2137 = vrot.slane %v1774, 4
        %v2138 = vsel %vm1413, %v2136, %v2137
        %v2139 = vrot.slane %v2067, 4
        %v2140 = vrot.slane %v1776, 4
        %v2141 = vsel %vm1413, %v2139, %v2140
        %v2142 = vrot.slane %v2068, 4
        %v2143 = vrot.slane %v1778, 4
        %v2144 = vsel %vm1413, %v2142, %v2143
        %v2145 = vrot.slane %v2069, 4
        %v2146 = vrot.slane %v1780, 4
        %v2147 = vsel %vm1413, %v2145, %v2146
        %v2148 = vrot.slane %v2070, 4
        %v2149 = vrot.slane %v1782, 4
        %v2150 = vsel %vm1413, %v2148, %v2149
        %v2151 = vld [vmem:[%s487 + $0x8] sm:$0x1f]
        %v2152 = vld [vmem:[%s487 + $0x18] sm:$0x1f]
        %v2153 = vld [vmem:[%s487 + $0x28] sm:$0x1f]
        %v2154 = vld [vmem:[%s487 + $0x38] sm:$0x1f]
        %v2155 = vld [vmem:[%s487 + $0x48] sm:$0x1f]
        %v2156 = vld [vmem:[%s487 + $0x58] sm:$0x1f]
        %v2157 = vld [vmem:[%s487 + $0x68] sm:$0x1f]
        %v2158 = vld [vmem:[%s487 + $0x78] sm:$0x1f]
        %v2159 = vld [vmem:[%s487 + $0x88] sm:$0x1f]
        %v2160 = vld [vmem:[%s487 + $0x98] sm:$0x1f]
        %v2161 = vld [vmem:[%s487 + $0xa8] sm:$0x1f]
        %v2162 = vld [vmem:[%s487 + $0xb8] sm:$0x1f]
        %v2163 = vld [vmem:[%s487 + $0xc8] sm:$0x1f]
        %v2164 = vld [vmem:[%s487 + $0xd8] sm:$0x1f]
        %v2165 = vld [vmem:[%s487 + $0xe8] sm:$0x1f]
        %v2166 = vld [vmem:[%s487 + $0xf8] sm:$0x1f]
        %v2168 = vshrl.u32 %v2055, 16
        %v2170 = vrot.slane %v2168, 4
        %v2171 = vshll.u32 %v2055, 16
        %v2173 = vrot.slane %v2171, 5
        %v2174 = vor.u32 %v2170, %v2173
        %v2176 = vshrl.u32 %v2151, 16
        %v2178 = vrot.slane %v2176, 4
        %v2179 = vshll.u32 %v2151, 16
        %v2181 = vrot.slane %v2179, 5
        %v2182 = vor.u32 %v2178, %v2181
        %v2183 = vsel %vm1478, %v2174, %v2182
        %v2185 = vshrl.u32 %v2056, 16
        %v2187 = vrot.slane %v2185, 4
        %v2188 = vshll.u32 %v2056, 16
        %v2190 = vrot.slane %v2188, 5
        %v2191 = vor.u32 %v2187, %v2190
        %v2193 = vshrl.u32 %v2152, 16
        %v2195 = vrot.slane %v2193, 4
        %v2196 = vshll.u32 %v2152, 16
        %v2198 = vrot.slane %v2196, 5
        %v2199 = vor.u32 %v2195, %v2198
        %v2200 = vsel %vm1478, %v2191, %v2199
        %v2202 = vshrl.u32 %v2057, 16
        %v2204 = vrot.slane %v2202, 4
        %v2205 = vshll.u32 %v2057, 16
        %v2207 = vrot.slane %v2205, 5
        %v2208 = vor.u32 %v2204, %v2207
        %v2210 = vshrl.u32 %v2153, 16
        %v2212 = vrot.slane %v2210, 4
        %v2213 = vshll.u32 %v2153, 16
        %v2215 = vrot.slane %v2213, 5
        %v2216 = vor.u32 %v2212, %v2215
        %v2217 = vsel %vm1478, %v2208, %v2216
        %v2219 = vshrl.u32 %v2058, 16
        %v2221 = vrot.slane %v2219, 4
        %v2222 = vshll.u32 %v2058, 16
        %v2224 = vrot.slane %v2222, 5
        %v2225 = vor.u32 %v2221, %v2224
        %v2227 = vshrl.u32 %v2154, 16
        %v2229 = vrot.slane %v2227, 4
        %v2230 = vshll.u32 %v2154, 16
        %v2232 = vrot.slane %v2230, 5
        %v2233 = vor.u32 %v2229, %v2232
        %v2234 = vsel %vm1478, %v2225, %v2233
        %v2236 = vshrl.u32 %v2059, 16
        %v2238 = vrot.slane %v2236, 4
        %v2239 = vshll.u32 %v2059, 16
        %v2241 = vrot.slane %v2239, 5
        %v2242 = vor.u32 %v2238, %v2241
        %v2244 = vshrl.u32 %v2155, 16
        %v2246 = vrot.slane %v2244, 4
        %v2247 = vshll.u32 %v2155, 16
        %v2249 = vrot.slane %v2247, 5
        %v2250 = vor.u32 %v2246, %v2249
        %v2251 = vsel %vm1478, %v2242, %v2250
        %v2253 = vshrl.u32 %v2060, 16
        %v2255 = vrot.slane %v2253, 4
        %v2256 = vshll.u32 %v2060, 16
        %v2258 = vrot.slane %v2256, 5
        %v2259 = vor.u32 %v2255, %v2258
        %v2261 = vshrl.u32 %v2156, 16
        %v2263 = vrot.slane %v2261, 4
        %v2264 = vshll.u32 %v2156, 16
        %v2266 = vrot.slane %v2264, 5
        %v2267 = vor.u32 %v2263, %v2266
        %v2268 = vsel %vm1478, %v2259, %v2267
        %v2270 = vshrl.u32 %v2061, 16
        %v2272 = vrot.slane %v2270, 4
        %v2273 = vshll.u32 %v2061, 16
        %v2275 = vrot.slane %v2273, 5
        %v2276 = vor.u32 %v2272, %v2275
        %v2278 = vshrl.u32 %v2157, 16
        %v2280 = vrot.slane %v2278, 4
        %v2281 = vshll.u32 %v2157, 16
        %v2283 = vrot.slane %v2281, 5
        %v2284 = vor.u32 %v2280, %v2283
        %v2285 = vsel %vm1478, %v2276, %v2284
        %v2287 = vshrl.u32 %v2062, 16
        %v2289 = vrot.slane %v2287, 4
        %v2290 = vshll.u32 %v2062, 16
        %v2292 = vrot.slane %v2290, 5
        %v2293 = vor.u32 %v2289, %v2292
        %v2295 = vshrl.u32 %v2158, 16
        %v2297 = vrot.slane %v2295, 4
        %v2298 = vshll.u32 %v2158, 16
        %v2300 = vrot.slane %v2298, 5
        %v2301 = vor.u32 %v2297, %v2300
        %v2302 = vsel %vm1478, %v2293, %v2301
        %v2304 = vshrl.u32 %v2063, 16
        %v2306 = vrot.slane %v2304, 4
        %v2307 = vshll.u32 %v2063, 16
        %v2309 = vrot.slane %v2307, 5
        %v2310 = vor.u32 %v2306, %v2309
        %v2312 = vshrl.u32 %v2159, 16
        %v2314 = vrot.slane %v2312, 4
        %v2315 = vshll.u32 %v2159, 16
        %v2317 = vrot.slane %v2315, 5
        %v2318 = vor.u32 %v2314, %v2317
        %v2319 = vsel %vm1478, %v2310, %v2318
        %v2321 = vshrl.u32 %v2064, 16
        %v2323 = vrot.slane %v2321, 4
        %v2324 = vshll.u32 %v2064, 16
        %v2326 = vrot.slane %v2324, 5
        %v2327 = vor.u32 %v2323, %v2326
        %v2329 = vshrl.u32 %v2160, 16
        %v2331 = vrot.slane %v2329, 4
        %v2332 = vshll.u32 %v2160, 16
        %v2334 = vrot.slane %v2332, 5
        %v2335 = vor.u32 %v2331, %v2334
        %v2336 = vsel %vm1478, %v2327, %v2335
        %v2338 = vshrl.u32 %v2065, 16
        %v2340 = vrot.slane %v2338, 4
        %v2341 = vshll.u32 %v2065, 16
        %v2343 = vrot.slane %v2341, 5
        %v2344 = vor.u32 %v2340, %v2343
        %v2346 = vshrl.u32 %v2161, 16
        %v2348 = vrot.slane %v2346, 4
        %v2349 = vshll.u32 %v2161, 16
        %v2351 = vrot.slane %v2349, 5
        %v2352 = vor.u32 %v2348, %v2351
        %v2353 = vsel %vm1478, %v2344, %v2352
        %v2355 = vshrl.u32 %v2066, 16
        %v2357 = vrot.slane %v2355, 4
        %v2358 = vshll.u32 %v2066, 16
        %v2360 = vrot.slane %v2358, 5
        %v2361 = vor.u32 %v2357, %v2360
        %v2363 = vshrl.u32 %v2162, 16
        %v2365 = vrot.slane %v2363, 4
        %v2366 = vshll.u32 %v2162, 16
        %v2368 = vrot.slane %v2366, 5
        %v2369 = vor.u32 %v2365, %v2368
        %v2370 = vsel %vm1478, %v2361, %v2369
        %v2372 = vshrl.u32 %v2067, 16
        %v2374 = vrot.slane %v2372, 4
        %v2375 = vshll.u32 %v2067, 16
        %v2377 = vrot.slane %v2375, 5
        %v2378 = vor.u32 %v2374, %v2377
        %v2380 = vshrl.u32 %v2163, 16
        %v2382 = vrot.slane %v2380, 4
        %v2383 = vshll.u32 %v2163, 16
        %v2385 = vrot.slane %v2383, 5
        %v2386 = vor.u32 %v2382, %v2385
        %v2387 = vsel %vm1478, %v2378, %v2386
        %v2389 = vshrl.u32 %v2068, 16
        %v2391 = vrot.slane %v2389, 4
        %v2392 = vshll.u32 %v2068, 16
        %v2394 = vrot.slane %v2392, 5
        %v2395 = vor.u32 %v2391, %v2394
        %v2397 = vshrl.u32 %v2164, 16
        %v2399 = vrot.slane %v2397, 4
        %v2400 = vshll.u32 %v2164, 16
        %v2402 = vrot.slane %v2400, 5
        %v2403 = vor.u32 %v2399, %v2402
        %v2404 = vsel %vm1478, %v2395, %v2403
        %v2406 = vshrl.u32 %v2069, 16
        %v2408 = vrot.slane %v2406, 4
        %v2409 = vshll.u32 %v2069, 16
        %v2411 = vrot.slane %v2409, 5
        %v2412 = vor.u32 %v2408, %v2411
        %v2414 = vshrl.u32 %v2165, 16
        %v2416 = vrot.slane %v2414, 4
        %v2417 = vshll.u32 %v2165, 16
        %v2419 = vrot.slane %v2417, 5
        %v2420 = vor.u32 %v2416, %v2419
        %v2421 = vsel %vm1478, %v2412, %v2420
        %v2423 = vshrl.u32 %v2070, 16
        %v2425 = vrot.slane %v2423, 4
        %v2426 = vshll.u32 %v2070, 16
        %v2428 = vrot.slane %v2426, 5
        %v2429 = vor.u32 %v2425, %v2428
        %v2431 = vshrl.u32 %v2166, 16
        %v2433 = vrot.slane %v2431, 4
        %v2434 = vshll.u32 %v2166, 16
        %v2436 = vrot.slane %v2434, 5
        %v2437 = vor.u32 %v2433, %v2436
        %v2438 = vsel %vm1478, %v2429, %v2437
        %s2439 = scalar_lea.vmem [#allocation2], 32
        %v2440 = vld [vmem:[%s2439] sm:$0xf8]
        %v2441 = vld [vmem:[%s2439 + $0x8] sm:$0xf]
        %v2442 = vld [vmem:[%s2439 + $0x10] sm:$0xf8]
        %v2443 = vld [vmem:[%s2439 + $0x18] sm:$0xf]
        %v2444 = vld [vmem:[%s2439 + $0x20] sm:$0xf8]
        %v2445 = vld [vmem:[%s2439 + $0x28] sm:$0xf]
        %v2446 = vld [vmem:[%s2439 + $0x30] sm:$0xf8]
        %v2447 = vld [vmem:[%s2439 + $0x38] sm:$0xf]
        %v2448 = vld [vmem:[%s2439 + $0x40] sm:$0xf8]
        %v2449 = vld [vmem:[%s2439 + $0x48] sm:$0xf]
        %v2450 = vld [vmem:[%s2439 + $0x50] sm:$0xf8]
        %v2451 = vld [vmem:[%s2439 + $0x58] sm:$0xf]
        %v2452 = vld [vmem:[%s2439 + $0x60] sm:$0xf8]
        %v2453 = vld [vmem:[%s2439 + $0x68] sm:$0xf]
        %v2454 = vld [vmem:[%s2439 + $0x70] sm:$0xf8]
        %v2455 = vld [vmem:[%s2439 + $0x78] sm:$0xf]
        %v2456 = vld [vmem:[%s2439 + $0x80] sm:$0xf8]
        %v2457 = vld [vmem:[%s2439 + $0x88] sm:$0xf]
        %v2458 = vld [vmem:[%s2439 + $0x90] sm:$0xf8]
        %v2459 = vld [vmem:[%s2439 + $0x98] sm:$0xf]
        %v2460 = vld [vmem:[%s2439 + $0xa0] sm:$0xf8]
        %v2461 = vld [vmem:[%s2439 + $0xa8] sm:$0xf]
        %v2462 = vld [vmem:[%s2439 + $0xb0] sm:$0xf8]
        %v2463 = vld [vmem:[%s2439 + $0xb8] sm:$0xf]
        %v2464 = vld [vmem:[%s2439 + $0xc0] sm:$0xf8]
        %v2465 = vld [vmem:[%s2439 + $0xc8] sm:$0xf]
        %v2466 = vld [vmem:[%s2439 + $0xd0] sm:$0xf8]
        %v2467 = vld [vmem:[%s2439 + $0xd8] sm:$0xf]
        %v2468 = vld [vmem:[%s2439 + $0xe0] sm:$0xf8]
        %v2469 = vld [vmem:[%s2439 + $0xe8] sm:$0xf]
        %v2470 = vld [vmem:[%s2439 + $0xf0] sm:$0xf8]
        %v2471 = vld [vmem:[%s2439 + $0xf8] sm:$0xf]
        %v2473 = vshrl.u32 %v2440, 16
        %v2475 = vrot.slane %v2473, 3
        %v2476 = vshll.u32 %v2440, 16
        %v2478 = vrot.slane %v2476, 4
        %v2479 = vor.u32 %v2475, %v2478
        %v2481 = vshrl.u32 %v2441, 16
        %v2483 = vrot.slane %v2481, 3
        %v2484 = vshll.u32 %v2441, 16
        %v2486 = vrot.slane %v2484, 4
        %v2487 = vor.u32 %v2483, %v2486
        %v2488 = vsel %vm1092, %v2479, %v2487
        %v2490 = vshrl.u32 %v2442, 16
        %v2492 = vrot.slane %v2490, 3
        %v2493 = vshll.u32 %v2442, 16
        %v2495 = vrot.slane %v2493, 4
        %v2496 = vor.u32 %v2492, %v2495
        %v2498 = vshrl.u32 %v2443, 16
        %v2500 = vrot.slane %v2498, 3
        %v2501 = vshll.u32 %v2443, 16
        %v2503 = vrot.slane %v2501, 4
        %v2504 = vor.u32 %v2500, %v2503
        %v2505 = vsel %vm1092, %v2496, %v2504
        %v2507 = vshrl.u32 %v2444, 16
        %v2509 = vrot.slane %v2507, 3
        %v2510 = vshll.u32 %v2444, 16
        %v2512 = vrot.slane %v2510, 4
        %v2513 = vor.u32 %v2509, %v2512
        %v2515 = vshrl.u32 %v2445, 16
        %v2517 = vrot.slane %v2515, 3
        %v2518 = vshll.u32 %v2445, 16
        %v2520 = vrot.slane %v2518, 4
        %v2521 = vor.u32 %v2517, %v2520
        %v2522 = vsel %vm1092, %v2513, %v2521
        %v2524 = vshrl.u32 %v2446, 16
        %v2526 = vrot.slane %v2524, 3
        %v2527 = vshll.u32 %v2446, 16
        %v2529 = vrot.slane %v2527, 4
        %v2530 = vor.u32 %v2526, %v2529
        %v2532 = vshrl.u32 %v2447, 16
        %v2534 = vrot.slane %v2532, 3
        %v2535 = vshll.u32 %v2447, 16
        %v2537 = vrot.slane %v2535, 4
        %v2538 = vor.u32 %v2534, %v2537
        %v2539 = vsel %vm1092, %v2530, %v2538
        %v2541 = vshrl.u32 %v2448, 16
        %v2543 = vrot.slane %v2541, 3
        %v2544 = vshll.u32 %v2448, 16
        %v2546 = vrot.slane %v2544, 4
        %v2547 = vor.u32 %v2543, %v2546
        %v2549 = vshrl.u32 %v2449, 16
        %v2551 = vrot.slane %v2549, 3
        %v2552 = vshll.u32 %v2449, 16
        %v2554 = vrot.slane %v2552, 4
        %v2555 = vor.u32 %v2551, %v2554
        %v2556 = vsel %vm1092, %v2547, %v2555
        %v2558 = vshrl.u32 %v2450, 16
        %v2560 = vrot.slane %v2558, 3
        %v2561 = vshll.u32 %v2450, 16
        %v2563 = vrot.slane %v2561, 4
        %v2564 = vor.u32 %v2560, %v2563
        %v2566 = vshrl.u32 %v2451, 16
        %v2568 = vrot.slane %v2566, 3
        %v2569 = vshll.u32 %v2451, 16
        %v2571 = vrot.slane %v2569, 4
        %v2572 = vor.u32 %v2568, %v2571
        %v2573 = vsel %vm1092, %v2564, %v2572
        %v2575 = vshrl.u32 %v2452, 16
        %v2577 = vrot.slane %v2575, 3
        %v2578 = vshll.u32 %v2452, 16
        %v2580 = vrot.slane %v2578, 4
        %v2581 = vor.u32 %v2577, %v2580
        %v2583 = vshrl.u32 %v2453, 16
        %v2585 = vrot.slane %v2583, 3
        %v2586 = vshll.u32 %v2453, 16
        %v2588 = vrot.slane %v2586, 4
        %v2589 = vor.u32 %v2585, %v2588
        %v2590 = vsel %vm1092, %v2581, %v2589
        %v2592 = vshrl.u32 %v2454, 16
        %v2594 = vrot.slane %v2592, 3
        %v2595 = vshll.u32 %v2454, 16
        %v2597 = vrot.slane %v2595, 4
        %v2598 = vor.u32 %v2594, %v2597
        %v2600 = vshrl.u32 %v2455, 16
        %v2602 = vrot.slane %v2600, 3
        %v2603 = vshll.u32 %v2455, 16
        %v2605 = vrot.slane %v2603, 4
        %v2606 = vor.u32 %v2602, %v2605
        %v2607 = vsel %vm1092, %v2598, %v2606
        %v2609 = vshrl.u32 %v2456, 16
        %v2611 = vrot.slane %v2609, 3
        %v2612 = vshll.u32 %v2456, 16
        %v2614 = vrot.slane %v2612, 4
        %v2615 = vor.u32 %v2611, %v2614
        %v2617 = vshrl.u32 %v2457, 16
        %v2619 = vrot.slane %v2617, 3
        %v2620 = vshll.u32 %v2457, 16
        %v2622 = vrot.slane %v2620, 4
        %v2623 = vor.u32 %v2619, %v2622
        %v2624 = vsel %vm1092, %v2615, %v2623
        %v2626 = vshrl.u32 %v2458, 16
        %v2628 = vrot.slane %v2626, 3
        %v2629 = vshll.u32 %v2458, 16
        %v2631 = vrot.slane %v2629, 4
        %v2632 = vor.u32 %v2628, %v2631
        %v2634 = vshrl.u32 %v2459, 16
        %v2636 = vrot.slane %v2634, 3
        %v2637 = vshll.u32 %v2459, 16
        %v2639 = vrot.slane %v2637, 4
        %v2640 = vor.u32 %v2636, %v2639
        %v2641 = vsel %vm1092, %v2632, %v2640
        %v2643 = vshrl.u32 %v2460, 16
        %v2645 = vrot.slane %v2643, 3
        %v2646 = vshll.u32 %v2460, 16
        %v2648 = vrot.slane %v2646, 4
        %v2649 = vor.u32 %v2645, %v2648
        %v2651 = vshrl.u32 %v2461, 16
        %v2653 = vrot.slane %v2651, 3
        %v2654 = vshll.u32 %v2461, 16
        %v2656 = vrot.slane %v2654, 4
        %v2657 = vor.u32 %v2653, %v2656
        %v2658 = vsel %vm1092, %v2649, %v2657
        %v2660 = vshrl.u32 %v2462, 16
        %v2662 = vrot.slane %v2660, 3
        %v2663 = vshll.u32 %v2462, 16
        %v2665 = vrot.slane %v2663, 4
        %v2666 = vor.u32 %v2662, %v2665
        %v2668 = vshrl.u32 %v2463, 16
        %v2670 = vrot.slane %v2668, 3
        %v2671 = vshll.u32 %v2463, 16
        %v2673 = vrot.slane %v2671, 4
        %v2674 = vor.u32 %v2670, %v2673
        %v2675 = vsel %vm1092, %v2666, %v2674
        %v2677 = vshrl.u32 %v2464, 16
        %v2679 = vrot.slane %v2677, 3
        %v2680 = vshll.u32 %v2464, 16
        %v2682 = vrot.slane %v2680, 4
        %v2683 = vor.u32 %v2679, %v2682
        %v2685 = vshrl.u32 %v2465, 16
        %v2687 = vrot.slane %v2685, 3
        %v2688 = vshll.u32 %v2465, 16
        %v2690 = vrot.slane %v2688, 4
        %v2691 = vor.u32 %v2687, %v2690
        %v2692 = vsel %vm1092, %v2683, %v2691
        %v2694 = vshrl.u32 %v2466, 16
        %v2696 = vrot.slane %v2694, 3
        %v2697 = vshll.u32 %v2466, 16
        %v2699 = vrot.slane %v2697, 4
        %v2700 = vor.u32 %v2696, %v2699
        %v2702 = vshrl.u32 %v2467, 16
        %v2704 = vrot.slane %v2702, 3
        %v2705 = vshll.u32 %v2467, 16
        %v2707 = vrot.slane %v2705, 4
        %v2708 = vor.u32 %v2704, %v2707
        %v2709 = vsel %vm1092, %v2700, %v2708
        %v2711 = vshrl.u32 %v2468, 16
        %v2713 = vrot.slane %v2711, 3
        %v2714 = vshll.u32 %v2468, 16
        %v2716 = vrot.slane %v2714, 4
        %v2717 = vor.u32 %v2713, %v2716
        %v2719 = vshrl.u32 %v2469, 16
        %v2721 = vrot.slane %v2719, 3
        %v2722 = vshll.u32 %v2469, 16
        %v2724 = vrot.slane %v2722, 4
        %v2725 = vor.u32 %v2721, %v2724
        %v2726 = vsel %vm1092, %v2717, %v2725
        %v2728 = vshrl.u32 %v2470, 16
        %v2730 = vrot.slane %v2728, 3
        %v2731 = vshll.u32 %v2470, 16
        %v2733 = vrot.slane %v2731, 4
        %v2734 = vor.u32 %v2730, %v2733
        %v2736 = vshrl.u32 %v2471, 16
        %v2738 = vrot.slane %v2736, 3
        %v2739 = vshll.u32 %v2471, 16
        %v2741 = vrot.slane %v2739, 4
        %v2742 = vor.u32 %v2738, %v2741
        %v2743 = vsel %vm1092, %v2734, %v2742
        %v2744 = vld [vmem:[%s2439] sm:$0xf0]
        %v2745 = vld [vmem:[%s2439 + $0x10] sm:$0xf0]
        %v2746 = vld [vmem:[%s2439 + $0x20] sm:$0xf0]
        %v2747 = vld [vmem:[%s2439 + $0x30] sm:$0xf0]
        %v2748 = vld [vmem:[%s2439 + $0x40] sm:$0xf0]
        %v2749 = vld [vmem:[%s2439 + $0x50] sm:$0xf0]
        %v2750 = vld [vmem:[%s2439 + $0x60] sm:$0xf0]
        %v2751 = vld [vmem:[%s2439 + $0x70] sm:$0xf0]
        %v2752 = vld [vmem:[%s2439 + $0x80] sm:$0xf0]
        %v2753 = vld [vmem:[%s2439 + $0x90] sm:$0xf0]
        %v2754 = vld [vmem:[%s2439 + $0xa0] sm:$0xf0]
        %v2755 = vld [vmem:[%s2439 + $0xb0] sm:$0xf0]
        %v2756 = vld [vmem:[%s2439 + $0xc0] sm:$0xf0]
        %v2757 = vld [vmem:[%s2439 + $0xd0] sm:$0xf0]
        %v2758 = vld [vmem:[%s2439 + $0xe0] sm:$0xf0]
        %v2759 = vld [vmem:[%s2439 + $0xf0] sm:$0xf0]
        %v2792 = vrot.slane %v2744, 4
        %v2793 = vrot.slane %v2441, 4
        %v2794 = vsel %vm1413, %v2792, %v2793
        %v2795 = vrot.slane %v2745, 4
        %v2796 = vrot.slane %v2443, 4
        %v2797 = vsel %vm1413, %v2795, %v2796
        %v2798 = vrot.slane %v2746, 4
        %v2799 = vrot.slane %v2445, 4
        %v2800 = vsel %vm1413, %v2798, %v2799
        %v2801 = vrot.slane %v2747, 4
        %v2802 = vrot.slane %v2447, 4
        %v2803 = vsel %vm1413, %v2801, %v2802
        %v2804 = vrot.slane %v2748, 4
        %v2805 = vrot.slane %v2449, 4
        %v2806 = vsel %vm1413, %v2804, %v2805
        %v2807 = vrot.slane %v2749, 4
        %v2808 = vrot.slane %v2451, 4
        %v2809 = vsel %vm1413, %v2807, %v2808
        %v2810 = vrot.slane %v2750, 4
        %v2811 = vrot.slane %v2453, 4
        %v2812 = vsel %vm1413, %v2810, %v2811
        %v2813 = vrot.slane %v2751, 4
        %v2814 = vrot.slane %v2455, 4
        %v2815 = vsel %vm1413, %v2813, %v2814
        %v2816 = vrot.slane %v2752, 4
        %v2817 = vrot.slane %v2457, 4
        %v2818 = vsel %vm1413, %v2816, %v2817
        %v2819 = vrot.slane %v2753, 4
        %v2820 = vrot.slane %v2459, 4
        %v2821 = vsel %vm1413, %v2819, %v2820
        %v2822 = vrot.slane %v2754, 4
        %v2823 = vrot.slane %v2461, 4
        %v2824 = vsel %vm1413, %v2822, %v2823
        %v2825 = vrot.slane %v2755, 4
        %v2826 = vrot.slane %v2463, 4
        %v2827 = vsel %vm1413, %v2825, %v2826
        %v2828 = vrot.slane %v2756, 4
        %v2829 = vrot.slane %v2465, 4
        %v2830 = vsel %vm1413, %v2828, %v2829
        %v2831 = vrot.slane %v2757, 4
        %v2832 = vrot.slane %v2467, 4
        %v2833 = vsel %vm1413, %v2831, %v2832
        %v2834 = vrot.slane %v2758, 4
        %v2835 = vrot.slane %v2469, 4
        %v2836 = vsel %vm1413, %v2834, %v2835
        %v2837 = vrot.slane %v2759, 4
        %v2838 = vrot.slane %v2471, 4
        %v2839 = vsel %vm1413, %v2837, %v2838
        %v2840 = vld [vmem:[%s2439 + $0x8] sm:$0x1f]
        %v2841 = vld [vmem:[%s2439 + $0x18] sm:$0x1f]
        %v2842 = vld [vmem:[%s2439 + $0x28] sm:$0x1f]
        %v2843 = vld [vmem:[%s2439 + $0x38] sm:$0x1f]
        %v2844 = vld [vmem:[%s2439 + $0x48] sm:$0x1f]
        %v2845 = vld [vmem:[%s2439 + $0x58] sm:$0x1f]
        %v2846 = vld [vmem:[%s2439 + $0x68] sm:$0x1f]
        %v2847 = vld [vmem:[%s2439 + $0x78] sm:$0x1f]
        %v2848 = vld [vmem:[%s2439 + $0x88] sm:$0x1f]
        %v2849 = vld [vmem:[%s2439 + $0x98] sm:$0x1f]
        %v2850 = vld [vmem:[%s2439 + $0xa8] sm:$0x1f]
        %v2851 = vld [vmem:[%s2439 + $0xb8] sm:$0x1f]
        %v2852 = vld [vmem:[%s2439 + $0xc8] sm:$0x1f]
        %v2853 = vld [vmem:[%s2439 + $0xd8] sm:$0x1f]
        %v2854 = vld [vmem:[%s2439 + $0xe8] sm:$0x1f]
        %v2855 = vld [vmem:[%s2439 + $0xf8] sm:$0x1f]
        %v2857 = vshrl.u32 %v2744, 16
        %v2859 = vrot.slane %v2857, 4
        %v2860 = vshll.u32 %v2744, 16
        %v2862 = vrot.slane %v2860, 5
        %v2863 = vor.u32 %v2859, %v2862
        %v2865 = vshrl.u32 %v2840, 16
        %v2867 = vrot.slane %v2865, 4
        %v2868 = vshll.u32 %v2840, 16
        %v2870 = vrot.slane %v2868, 5
        %v2871 = vor.u32 %v2867, %v2870
        %v2872 = vsel %vm1478, %v2863, %v2871
        %v2874 = vshrl.u32 %v2745, 16
        %v2876 = vrot.slane %v2874, 4
        %v2877 = vshll.u32 %v2745, 16
        %v2879 = vrot.slane %v2877, 5
        %v2880 = vor.u32 %v2876, %v2879
        %v2882 = vshrl.u32 %v2841, 16
        %v2884 = vrot.slane %v2882, 4
        %v2885 = vshll.u32 %v2841, 16
        %v2887 = vrot.slane %v2885, 5
        %v2888 = vor.u32 %v2884, %v2887
        %v2889 = vsel %vm1478, %v2880, %v2888
        %v2891 = vshrl.u32 %v2746, 16
        %v2893 = vrot.slane %v2891, 4
        %v2894 = vshll.u32 %v2746, 16
        %v2896 = vrot.slane %v2894, 5
        %v2897 = vor.u32 %v2893, %v2896
        %v2899 = vshrl.u32 %v2842, 16
        %v2901 = vrot.slane %v2899, 4
        %v2902 = vshll.u32 %v2842, 16
        %v2904 = vrot.slane %v2902, 5
        %v2905 = vor.u32 %v2901, %v2904
        %v2906 = vsel %vm1478, %v2897, %v2905
        %v2908 = vshrl.u32 %v2747, 16
        %v2910 = vrot.slane %v2908, 4
        %v2911 = vshll.u32 %v2747, 16
        %v2913 = vrot.slane %v2911, 5
        %v2914 = vor.u32 %v2910, %v2913
        %v2916 = vshrl.u32 %v2843, 16
        %v2918 = vrot.slane %v2916, 4
        %v2919 = vshll.u32 %v2843, 16
        %v2921 = vrot.slane %v2919, 5
        %v2922 = vor.u32 %v2918, %v2921
        %v2923 = vsel %vm1478, %v2914, %v2922
        %v2925 = vshrl.u32 %v2748, 16
        %v2927 = vrot.slane %v2925, 4
        %v2928 = vshll.u32 %v2748, 16
        %v2930 = vrot.slane %v2928, 5
        %v2931 = vor.u32 %v2927, %v2930
        %v2933 = vshrl.u32 %v2844, 16
        %v2935 = vrot.slane %v2933, 4
        %v2936 = vshll.u32 %v2844, 16
        %v2938 = vrot.slane %v2936, 5
        %v2939 = vor.u32 %v2935, %v2938
        %v2940 = vsel %vm1478, %v2931, %v2939
        %v2942 = vshrl.u32 %v2749, 16
        %v2944 = vrot.slane %v2942, 4
        %v2945 = vshll.u32 %v2749, 16
        %v2947 = vrot.slane %v2945, 5
        %v2948 = vor.u32 %v2944, %v2947
        %v2950 = vshrl.u32 %v2845, 16
        %v2952 = vrot.slane %v2950, 4
        %v2953 = vshll.u32 %v2845, 16
        %v2955 = vrot.slane %v2953, 5
        %v2956 = vor.u32 %v2952, %v2955
        %v2957 = vsel %vm1478, %v2948, %v2956
        %v2959 = vshrl.u32 %v2750, 16
        %v2961 = vrot.slane %v2959, 4
        %v2962 = vshll.u32 %v2750, 16
        %v2964 = vrot.slane %v2962, 5
        %v2965 = vor.u32 %v2961, %v2964
        %v2967 = vshrl.u32 %v2846, 16
        %v2969 = vrot.slane %v2967, 4
        %v2970 = vshll.u32 %v2846, 16
        %v2972 = vrot.slane %v2970, 5
        %v2973 = vor.u32 %v2969, %v2972
        %v2974 = vsel %vm1478, %v2965, %v2973
        %v2976 = vshrl.u32 %v2751, 16
        %v2978 = vrot.slane %v2976, 4
        %v2979 = vshll.u32 %v2751, 16
        %v2981 = vrot.slane %v2979, 5
        %v2982 = vor.u32 %v2978, %v2981
        %v2984 = vshrl.u32 %v2847, 16
        %v2986 = vrot.slane %v2984, 4
        %v2987 = vshll.u32 %v2847, 16
        %v2989 = vrot.slane %v2987, 5
        %v2990 = vor.u32 %v2986, %v2989
        %v2991 = vsel %vm1478, %v2982, %v2990
        %v2993 = vshrl.u32 %v2752, 16
        %v2995 = vrot.slane %v2993, 4
        %v2996 = vshll.u32 %v2752, 16
        %v2998 = vrot.slane %v2996, 5
        %v2999 = vor.u32 %v2995, %v2998
        %v3001 = vshrl.u32 %v2848, 16
        %v3003 = vrot.slane %v3001, 4
        %v3004 = vshll.u32 %v2848, 16
        %v3006 = vrot.slane %v3004, 5
        %v3007 = vor.u32 %v3003, %v3006
        %v3008 = vsel %vm1478, %v2999, %v3007
        %v3010 = vshrl.u32 %v2753, 16
        %v3012 = vrot.slane %v3010, 4
        %v3013 = vshll.u32 %v2753, 16
        %v3015 = vrot.slane %v3013, 5
        %v3016 = vor.u32 %v3012, %v3015
        %v3018 = vshrl.u32 %v2849, 16
        %v3020 = vrot.slane %v3018, 4
        %v3021 = vshll.u32 %v2849, 16
        %v3023 = vrot.slane %v3021, 5
        %v3024 = vor.u32 %v3020, %v3023
        %v3025 = vsel %vm1478, %v3016, %v3024
        %v3027 = vshrl.u32 %v2754, 16
        %v3029 = vrot.slane %v3027, 4
        %v3030 = vshll.u32 %v2754, 16
        %v3032 = vrot.slane %v3030, 5
        %v3033 = vor.u32 %v3029, %v3032
        %v3035 = vshrl.u32 %v2850, 16
        %v3037 = vrot.slane %v3035, 4
        %v3038 = vshll.u32 %v2850, 16
        %v3040 = vrot.slane %v3038, 5
        %v3041 = vor.u32 %v3037, %v3040
        %v3042 = vsel %vm1478, %v3033, %v3041
        %v3044 = vshrl.u32 %v2755, 16
        %v3046 = vrot.slane %v3044, 4
        %v3047 = vshll.u32 %v2755, 16
        %v3049 = vrot.slane %v3047, 5
        %v3050 = vor.u32 %v3046, %v3049
        %v3052 = vshrl.u32 %v2851, 16
        %v3054 = vrot.slane %v3052, 4
        %v3055 = vshll.u32 %v2851, 16
        %v3057 = vrot.slane %v3055, 5
        %v3058 = vor.u32 %v3054, %v3057
        %v3059 = vsel %vm1478, %v3050, %v3058
        %v3061 = vshrl.u32 %v2756, 16
        %v3063 = vrot.slane %v3061, 4
        %v3064 = vshll.u32 %v2756, 16
        %v3066 = vrot.slane %v3064, 5
        %v3067 = vor.u32 %v3063, %v3066
        %v3069 = vshrl.u32 %v2852, 16
        %v3071 = vrot.slane %v3069, 4
        %v3072 = vshll.u32 %v2852, 16
        %v3074 = vrot.slane %v3072, 5
        %v3075 = vor.u32 %v3071, %v3074
        %v3076 = vsel %vm1478, %v3067, %v3075
        %v3078 = vshrl.u32 %v2757, 16
        %v3080 = vrot.slane %v3078, 4
        %v3081 = vshll.u32 %v2757, 16
        %v3083 = vrot.slane %v3081, 5
        %v3084 = vor.u32 %v3080, %v3083
        %v3086 = vshrl.u32 %v2853, 16
        %v3088 = vrot.slane %v3086, 4
        %v3089 = vshll.u32 %v2853, 16
        %v3091 = vrot.slane %v3089, 5
        %v3092 = vor.u32 %v3088, %v3091
        %v3093 = vsel %vm1478, %v3084, %v3092
        %v3095 = vshrl.u32 %v2758, 16
        %v3097 = vrot.slane %v3095, 4
        %v3098 = vshll.u32 %v2758, 16
        %v3100 = vrot.slane %v3098, 5
        %v3101 = vor.u32 %v3097, %v3100
        %v3103 = vshrl.u32 %v2854, 16
        %v3105 = vrot.slane %v3103, 4
        %v3106 = vshll.u32 %v2854, 16
        %v3108 = vrot.slane %v3106, 5
        %v3109 = vor.u32 %v3105, %v3108
        %v3110 = vsel %vm1478, %v3101, %v3109
        %v3112 = vshrl.u32 %v2759, 16
        %v3114 = vrot.slane %v3112, 4
        %v3115 = vshll.u32 %v2759, 16
        %v3117 = vrot.slane %v3115, 5
        %v3118 = vor.u32 %v3114, %v3117
        %v3120 = vshrl.u32 %v2855, 16
        %v3122 = vrot.slane %v3120, 4
        %v3123 = vshll.u32 %v2855, 16
        %v3125 = vrot.slane %v3123, 5
        %v3126 = vor.u32 %v3122, %v3125
        %v3127 = vsel %vm1478, %v3118, %v3126
        %3128 = vrot.lane.b32.xlu0 %v1416, 32
        %v3129 = vpop.permute.xlu0 %3128
        %3130 = vrot.lane.b32.xlu0 %v1419, 32
        %v3131 = vpop.permute.xlu0 %3130
        %3132 = vrot.lane.b32.xlu0 %v1422, 32
        %v3133 = vpop.permute.xlu0 %3132
        %3134 = vrot.lane.b32.xlu0 %v1425, 32
        %v3135 = vpop.permute.xlu0 %3134
        %3136 = vrot.lane.b32.xlu0 %v1428, 32
        %v3137 = vpop.permute.xlu0 %3136
        %3138 = vrot.lane.b32.xlu0 %v1431, 32
        %v3139 = vpop.permute.xlu0 %3138
        %3140 = vrot.lane.b32.xlu0 %v1434, 32
        %v3141 = vpop.permute.xlu0 %3140
        %3142 = vrot.lane.b32.xlu0 %v1437, 32
        %v3143 = vpop.permute.xlu0 %3142
        %3144 = vrot.lane.b32.xlu0 %v1440, 32
        %v3145 = vpop.permute.xlu0 %3144
        %3146 = vrot.lane.b32.xlu0 %v1443, 32
        %v3147 = vpop.permute.xlu0 %3146
        %3148 = vrot.lane.b32.xlu0 %v1446, 32
        %v3149 = vpop.permute.xlu0 %3148
        %3150 = vrot.lane.b32.xlu0 %v1449, 32
        %v3151 = vpop.permute.xlu0 %3150
        %3152 = vrot.lane.b32.xlu0 %v1452, 32
        %v3153 = vpop.permute.xlu0 %3152
        %3154 = vrot.lane.b32.xlu0 %v1455, 32
        %v3155 = vpop.permute.xlu0 %3154
        %3156 = vrot.lane.b32.xlu0 %v1458, 32
        %v3157 = vpop.permute.xlu0 %3156
        %3158 = vrot.lane.b32.xlu0 %v1461, 32
        %v3159 = vpop.permute.xlu0 %3158
        %3160 = vrot.lane.b32.xlu0 %v1495, 64
        %v3161 = vpop.permute.xlu0 %3160
        %3162 = vrot.lane.b32.xlu0 %v1512, 64
        %v3163 = vpop.permute.xlu0 %3162
        %3164 = vrot.lane.b32.xlu0 %v1529, 64
        %v3165 = vpop.permute.xlu0 %3164
        %3166 = vrot.lane.b32.xlu0 %v1546, 64
        %v3167 = vpop.permute.xlu0 %3166
        %3168 = vrot.lane.b32.xlu0 %v1563, 64
        %v3169 = vpop.permute.xlu0 %3168
        %3170 = vrot.lane.b32.xlu0 %v1580, 64
        %v3171 = vpop.permute.xlu0 %3170
        %3172 = vrot.lane.b32.xlu0 %v1597, 64
        %v3173 = vpop.permute.xlu0 %3172
        %3174 = vrot.lane.b32.xlu0 %v1614, 64
        %v3175 = vpop.permute.xlu0 %3174
        %3176 = vrot.lane.b32.xlu0 %v1631, 64
        %v3177 = vpop.permute.xlu0 %3176
        %3178 = vrot.lane.b32.xlu0 %v1648, 64
        %v3179 = vpop.permute.xlu0 %3178
        %3180 = vrot.lane.b32.xlu0 %v1665, 64
        %v3181 = vpop.permute.xlu0 %3180
        %3182 = vrot.lane.b32.xlu0 %v1682, 64
        %v3183 = vpop.permute.xlu0 %3182
        %3184 = vrot.lane.b32.xlu0 %v1699, 64
        %v3185 = vpop.permute.xlu0 %3184
        %3186 = vrot.lane.b32.xlu0 %v1716, 64
        %v3187 = vpop.permute.xlu0 %3186
        %3188 = vrot.lane.b32.xlu0 %v1733, 64
        %v3189 = vpop.permute.xlu0 %3188
        %3190 = vrot.lane.b32.xlu0 %v1750, 64
        %v3191 = vpop.permute.xlu0 %3190
        %3192 = vrot.lane.b32.xlu0 %v1799, 96
        %v3193 = vpop.permute.xlu0 %3192
        %3194 = vrot.lane.b32.xlu0 %v1816, 96
        %v3195 = vpop.permute.xlu0 %3194
        %3196 = vrot.lane.b32.xlu0 %v1833, 96
        %v3197 = vpop.permute.xlu0 %3196
        %3198 = vrot.lane.b32.xlu0 %v1850, 96
        %v3199 = vpop.permute.xlu0 %3198
        %3200 = vrot.lane.b32.xlu0 %v1867, 96
        %v3201 = vpop.permute.xlu0 %3200
        %3202 = vrot.lane.b32.xlu0 %v1884, 96
        %v3203 = vpop.permute.xlu0 %3202
        %3204 = vrot.lane.b32.xlu0 %v1901, 96
        %v3205 = vpop.permute.xlu0 %3204
        %3206 = vrot.lane.b32.xlu0 %v1918, 96
        %v3207 = vpop.permute.xlu0 %3206
        %3208 = vrot.lane.b32.xlu0 %v1935, 96
        %v3209 = vpop.permute.xlu0 %3208
        %3210 = vrot.lane.b32.xlu0 %v1952, 96
        %v3211 = vpop.permute.xlu0 %3210
        %3212 = vrot.lane.b32.xlu0 %v1969, 96
        %v3213 = vpop.permute.xlu0 %3212
        %3214 = vrot.lane.b32.xlu0 %v1986, 96
        %v3215 = vpop.permute.xlu0 %3214
        %3216 = vrot.lane.b32.xlu0 %v2003, 96
        %v3217 = vpop.permute.xlu0 %3216
        %3218 = vrot.lane.b32.xlu0 %v2020, 96
        %v3219 = vpop.permute.xlu0 %3218
        %3220 = vrot.lane.b32.xlu0 %v2037, 96
        %v3221 = vpop.permute.xlu0 %3220
        %3222 = vrot.lane.b32.xlu0 %v2054, 96
        %v3223 = vpop.permute.xlu0 %3222
        %3224 = vrot.lane.b32.xlu0 %v2183, 32
        %v3225 = vpop.permute.xlu0 %3224
        %3226 = vrot.lane.b32.xlu0 %v2200, 32
        %v3227 = vpop.permute.xlu0 %3226
        %3228 = vrot.lane.b32.xlu0 %v2217, 32
        %v3229 = vpop.permute.xlu0 %3228
        %3230 = vrot.lane.b32.xlu0 %v2234, 32
        %v3231 = vpop.permute.xlu0 %3230
        %3232 = vrot.lane.b32.xlu0 %v2251, 32
        %v3233 = vpop.permute.xlu0 %3232
        %3234 = vrot.lane.b32.xlu0 %v2268, 32
        %v3235 = vpop.permute.xlu0 %3234
        %3236 = vrot.lane.b32.xlu0 %v2285, 32
        %v3237 = vpop.permute.xlu0 %3236
        %3238 = vrot.lane.b32.xlu0 %v2302, 32
        %v3239 = vpop.permute.xlu0 %3238
        %3240 = vrot.lane.b32.xlu0 %v2319, 32
        %v3241 = vpop.permute.xlu0 %3240
        %3242 = vrot.lane.b32.xlu0 %v2336, 32
        %v3243 = vpop.permute.xlu0 %3242
        %3244 = vrot.lane.b32.xlu0 %v2353, 32
        %v3245 = vpop.permute.xlu0 %3244
        %3246 = vrot.lane.b32.xlu0 %v2370, 32
        %v3247 = vpop.permute.xlu0 %3246
        %3248 = vrot.lane.b32.xlu0 %v2387, 32
        %v3249 = vpop.permute.xlu0 %3248
        %3250 = vrot.lane.b32.xlu0 %v2404, 32
        %v3251 = vpop.permute.xlu0 %3250
        %3252 = vrot.lane.b32.xlu0 %v2421, 32
        %v3253 = vpop.permute.xlu0 %3252
        %3254 = vrot.lane.b32.xlu0 %v2438, 32
        %v3255 = vpop.permute.xlu0 %3254
        %3256 = vrot.lane.b32.xlu0 %v2488, 64
        %v3257 = vpop.permute.xlu0 %3256
        %3258 = vrot.lane.b32.xlu0 %v2505, 64
        %v3259 = vpop.permute.xlu0 %3258
        %3260 = vrot.lane.b32.xlu0 %v2522, 64
        %v3261 = vpop.permute.xlu0 %3260
        %3262 = vrot.lane.b32.xlu0 %v2539, 64
        %v3263 = vpop.permute.xlu0 %3262
        %3264 = vrot.lane.b32.xlu0 %v2556, 64
        %v3265 = vpop.permute.xlu0 %3264
        %3266 = vrot.lane.b32.xlu0 %v2573, 64
        %v3267 = vpop.permute.xlu0 %3266
        %3268 = vrot.lane.b32.xlu0 %v2590, 64
        %v3269 = vpop.permute.xlu0 %3268
        %3270 = vrot.lane.b32.xlu0 %v2607, 64
        %v3271 = vpop.permute.xlu0 %3270
        %3272 = vrot.lane.b32.xlu0 %v2624, 64
        %v3273 = vpop.permute.xlu0 %3272
        %3274 = vrot.lane.b32.xlu0 %v2641, 64
        %v3275 = vpop.permute.xlu0 %3274
        %3276 = vrot.lane.b32.xlu0 %v2658, 64
        %v3277 = vpop.permute.xlu0 %3276
        %3278 = vrot.lane.b32.xlu0 %v2675, 64
        %v3279 = vpop.permute.xlu0 %3278
        %3280 = vrot.lane.b32.xlu0 %v2692, 64
        %v3281 = vpop.permute.xlu0 %3280
        %3282 = vrot.lane.b32.xlu0 %v2709, 64
        %v3283 = vpop.permute.xlu0 %3282
        %3284 = vrot.lane.b32.xlu0 %v2726, 64
        %v3285 = vpop.permute.xlu0 %3284
        %3286 = vrot.lane.b32.xlu0 %v2743, 64
        %v3287 = vpop.permute.xlu0 %3286
        %3288 = vrot.lane.b32.xlu0 %v2794, 96
        %v3289 = vpop.permute.xlu0 %3288
        %3290 = vrot.lane.b32.xlu0 %v2797, 96
        %v3291 = vpop.permute.xlu0 %3290
        %3292 = vrot.lane.b32.xlu0 %v2800, 96
        %v3293 = vpop.permute.xlu0 %3292
        %3294 = vrot.lane.b32.xlu0 %v2803, 96
        %v3295 = vpop.permute.xlu0 %3294
        %3296 = vrot.lane.b32.xlu0 %v2806, 96
        %v3297 = vpop.permute.xlu0 %3296
        %3298 = vrot.lane.b32.xlu0 %v2809, 96
        %v3299 = vpop.permute.xlu0 %3298
        %3300 = vrot.lane.b32.xlu0 %v2812, 96
        %v3301 = vpop.permute.xlu0 %3300
        %3302 = vrot.lane.b32.xlu0 %v2815, 96
        %v3303 = vpop.permute.xlu0 %3302
        %3304 = vrot.lane.b32.xlu0 %v2818, 96
        %v3305 = vpop.permute.xlu0 %3304
        %3306 = vrot.lane.b32.xlu0 %v2821, 96
        %v3307 = vpop.permute.xlu0 %3306
        %3308 = vrot.lane.b32.xlu0 %v2824, 96
        %v3309 = vpop.permute.xlu0 %3308
        %3310 = vrot.lane.b32.xlu0 %v2827, 96
        %v3311 = vpop.permute.xlu0 %3310
        %3312 = vrot.lane.b32.xlu0 %v2830, 96
        %v3313 = vpop.permute.xlu0 %3312
        %3314 = vrot.lane.b32.xlu0 %v2833, 96
        %v3315 = vpop.permute.xlu0 %3314
        %3316 = vrot.lane.b32.xlu0 %v2836, 96
        %v3317 = vpop.permute.xlu0 %3316
        %3318 = vrot.lane.b32.xlu0 %v2839, 96
        %v3319 = vpop.permute.xlu0 %3318
        %v3322 = vsel %vm481, %v1109, %v3129
        %v3325 = vsel %vm481, %v1126, %v3131
        %v3328 = vsel %vm481, %v1143, %v3133
        %v3331 = vsel %vm481, %v1160, %v3135
        %v3334 = vsel %vm481, %v1177, %v3137
        %v3337 = vsel %vm481, %v1194, %v3139
        %v3340 = vsel %vm481, %v1211, %v3141
        %v3343 = vsel %vm481, %v1228, %v3143
        %v3346 = vsel %vm481, %v1245, %v3145
        %v3349 = vsel %vm481, %v1262, %v3147
        %v3352 = vsel %vm481, %v1279, %v3149
        %v3355 = vsel %vm481, %v1296, %v3151
        %v3358 = vsel %vm481, %v1313, %v3153
        %v3361 = vsel %vm481, %v1330, %v3155
        %v3364 = vsel %vm481, %v1347, %v3157
        %v3367 = vsel %vm481, %v1364, %v3159
        %vm3368 = vcmask 523264
        %v3370 = vsel %vm3368, %v3322, %v3161
        %v3372 = vsel %vm3368, %v3325, %v3163
        %v3374 = vsel %vm3368, %v3328, %v3165
        %v3376 = vsel %vm3368, %v3331, %v3167
        %v3378 = vsel %vm3368, %v3334, %v3169
        %v3380 = vsel %vm3368, %v3337, %v3171
        %v3382 = vsel %vm3368, %v3340, %v3173
        %v3384 = vsel %vm3368, %v3343, %v3175
        %v3386 = vsel %vm3368, %v3346, %v3177
        %v3388 = vsel %vm3368, %v3349, %v3179
        %v3390 = vsel %vm3368, %v3352, %v3181
        %v3392 = vsel %vm3368, %v3355, %v3183
        %v3394 = vsel %vm3368, %v3358, %v3185
        %v3396 = vsel %vm3368, %v3361, %v3187
        %v3398 = vsel %vm3368, %v3364, %v3189
        %v3400 = vsel %vm3368, %v3367, %v3191
        %vm3401 = vcmask 785408
        %v3403 = vsel %vm3401, %v3370, %v3193
        %v3406 = vsel %vm3401, %v3372, %v3195
        %v3409 = vsel %vm3401, %v3374, %v3197
        %v3412 = vsel %vm3401, %v3376, %v3199
        %v3415 = vsel %vm3401, %v3378, %v3201
        %v3418 = vsel %vm3401, %v3380, %v3203
        %v3421 = vsel %vm3401, %v3382, %v3205
        %v3424 = vsel %vm3401, %v3384, %v3207
        %v3427 = vsel %vm3401, %v3386, %v3209
        %v3430 = vsel %vm3401, %v3388, %v3211
        %v3433 = vsel %vm3401, %v3390, %v3213
        %v3436 = vsel %vm3401, %v3392, %v3215
        %v3439 = vsel %vm3401, %v3394, %v3217
        %v3442 = vsel %vm3401, %v3396, %v3219
        %v3445 = vsel %vm3401, %v3398, %v3221
        %v3448 = vsel %vm3401, %v3400, %v3223
        %v3452 = vsel %vm481, %v2105, %v3225
        %v3455 = vsel %vm481, %v2108, %v3227
        %v3458 = vsel %vm481, %v2111, %v3229
        %v3461 = vsel %vm481, %v2114, %v3231
        %v3464 = vsel %vm481, %v2117, %v3233
        %v3467 = vsel %vm481, %v2120, %v3235
        %v3470 = vsel %vm481, %v2123, %v3237
        %v3473 = vsel %vm481, %v2126, %v3239
        %v3476 = vsel %vm481, %v2129, %v3241
        %v3479 = vsel %vm481, %v2132, %v3243
        %v3482 = vsel %vm481, %v2135, %v3245
        %v3485 = vsel %vm481, %v2138, %v3247
        %v3488 = vsel %vm481, %v2141, %v3249
        %v3491 = vsel %vm481, %v2144, %v3251
        %v3494 = vsel %vm481, %v2147, %v3253
        %v3497 = vsel %vm481, %v2150, %v3255
        %v3499 = vsel %vm3368, %v3452, %v3257
        %v3501 = vsel %vm3368, %v3455, %v3259
        %v3503 = vsel %vm3368, %v3458, %v3261
        %v3505 = vsel %vm3368, %v3461, %v3263
        %v3507 = vsel %vm3368, %v3464, %v3265
        %v3509 = vsel %vm3368, %v3467, %v3267
        %v3511 = vsel %vm3368, %v3470, %v3269
        %v3513 = vsel %vm3368, %v3473, %v3271
        %v3515 = vsel %vm3368, %v3476, %v3273
        %v3517 = vsel %vm3368, %v3479, %v3275
        %v3519 = vsel %vm3368, %v3482, %v3277
        %v3521 = vsel %vm3368, %v3485, %v3279
        %v3523 = vsel %vm3368, %v3488, %v3281
        %v3525 = vsel %vm3368, %v3491, %v3283
        %v3527 = vsel %vm3368, %v3494, %v3285
        %v3529 = vsel %vm3368, %v3497, %v3287
        %v3531 = vsel %vm3401, %v3499, %v3289
        %v3534 = vsel %vm3401, %v3501, %v3291
        %v3537 = vsel %vm3401, %v3503, %v3293
        %v3540 = vsel %vm3401, %v3505, %v3295
        %v3543 = vsel %vm3401, %v3507, %v3297
        %v3546 = vsel %vm3401, %v3509, %v3299
        %v3549 = vsel %vm3401, %v3511, %v3301
        %v3552 = vsel %vm3401, %v3513, %v3303
        %v3555 = vsel %vm3401, %v3515, %v3305
        %v3558 = vsel %vm3401, %v3517, %v3307
        %v3561 = vsel %vm3401, %v3519, %v3309
        %v3564 = vsel %vm3401, %v3521, %v3311
        %v3567 = vsel %vm3401, %v3523, %v3313
        %v3570 = vsel %vm3401, %v3525, %v3315
        %v3573 = vsel %vm3401, %v3527, %v3317
        %v3576 = vsel %vm3401, %v3529, %v3319
        %v3578 = vld [vmem:[%s7] sm:$0xf]
        %v3579 = vld [vmem:[%s7 + $0x4] sm:$0xf]
        %v3580 = vld [vmem:[%s7 + $0x8] sm:$0xf]
        %v3581 = vld [vmem:[%s7 + $0xc] sm:$0xf]
        %v3582 = vld [vmem:[%s7 + $0x10] sm:$0xf]
        %v3583 = vld [vmem:[%s7 + $0x14] sm:$0xf]
        %v3584 = vld [vmem:[%s7 + $0x18] sm:$0xf]
        %v3585 = vld [vmem:[%s7 + $0x1c] sm:$0xf]
        %v3586 = vld [vmem:[%s7 + $0x20] sm:$0xf]
        %v3587 = vld [vmem:[%s7 + $0x24] sm:$0xf]
        %v3588 = vld [vmem:[%s7 + $0x28] sm:$0xf]
        %v3589 = vld [vmem:[%s7 + $0x2c] sm:$0xf]
        %v3590 = vld [vmem:[%s7 + $0x30] sm:$0xf]
        %v3591 = vld [vmem:[%s7 + $0x34] sm:$0xf]
        %v3592 = vld [vmem:[%s7 + $0x38] sm:$0xf]
        %v3593 = vld [vmem:[%s7 + $0x3c] sm:$0xf]
        %v3594 = vld [vmem:[%s7 + $0x40] sm:$0xf]
        %v3595 = vld [vmem:[%s7 + $0x44] sm:$0xf]
        %v3596 = vld [vmem:[%s7 + $0x48] sm:$0xf]
        %v3597 = vld [vmem:[%s7 + $0x4c] sm:$0xf]
        %v3598 = vld [vmem:[%s7 + $0x50] sm:$0xf]
        %v3599 = vld [vmem:[%s7 + $0x54] sm:$0xf]
        %v3600 = vld [vmem:[%s7 + $0x58] sm:$0xf]
        %v3601 = vld [vmem:[%s7 + $0x5c] sm:$0xf]
        %v3602 = vld [vmem:[%s7 + $0x60] sm:$0xf]
        %v3603 = vld [vmem:[%s7 + $0x64] sm:$0xf]
        %v3604 = vld [vmem:[%s7 + $0x68] sm:$0xf]
        %v3605 = vld [vmem:[%s7 + $0x6c] sm:$0xf]
        %v3606 = vld [vmem:[%s7 + $0x70] sm:$0xf]
        %v3607 = vld [vmem:[%s7 + $0x74] sm:$0xf]
        %v3608 = vld [vmem:[%s7 + $0x78] sm:$0xf]
        %v3609 = vld [vmem:[%s7 + $0x7c] sm:$0xf]
        %v3610 = vld [vmem:[%s7 + $0x80] sm:$0xf]
        %v3611 = vld [vmem:[%s7 + $0x84] sm:$0xf]
        %v3612 = vld [vmem:[%s7 + $0x88] sm:$0xf]
        %v3613 = vld [vmem:[%s7 + $0x8c] sm:$0xf]
        %v3650 = vunpack.c.l.b16 %v3578
        %v3651 = vunpack.c.l.b16 %v3579
        %v3652 = vunpack.c.l.b16 %v3580
        %v3653 = vunpack.c.l.b16 %v3581
        %v3654 = vunpack.c.l.b16 %v3582
        %v3655 = vunpack.c.l.b16 %v3583
        %v3656 = vunpack.c.l.b16 %v3584
        %v3657 = vunpack.c.l.b16 %v3585
        %v3658 = vunpack.c.l.b16 %v3586
        %v3659 = vunpack.c.l.b16 %v3587
        %v3660 = vunpack.c.l.b16 %v3588
        %v3661 = vunpack.c.l.b16 %v3589
        %v3662 = vunpack.c.l.b16 %v3590
        %v3663 = vunpack.c.l.b16 %v3591
        %v3664 = vunpack.c.l.b16 %v3592
        %v3665 = vunpack.c.l.b16 %v3593
        %v3666 = vunpack.c.l.b16 %v3594
        %v3667 = vunpack.c.l.b16 %v3595
        %v3668 = vunpack.c.l.b16 %v3596
        %v3669 = vunpack.c.l.b16 %v3597
        %v3670 = vunpack.c.l.b16 %v3598
        %v3671 = vunpack.c.l.b16 %v3599
        %v3672 = vunpack.c.l.b16 %v3600
        %v3673 = vunpack.c.l.b16 %v3601
        %v3674 = vunpack.c.l.b16 %v3602
        %v3675 = vunpack.c.l.b16 %v3603
        %v3676 = vunpack.c.l.b16 %v3604
        %v3677 = vunpack.c.l.b16 %v3605
        %v3678 = vunpack.c.l.b16 %v3606
        %v3679 = vunpack.c.l.b16 %v3607
        %v3680 = vunpack.c.l.b16 %v3608
        %v3681 = vunpack.c.l.b16 %v3609
        %v3682 = vunpack.c.l.b16 %v3610
        %v3683 = vunpack.c.l.b16 %v3611
        %v3684 = vunpack.c.l.b16 %v3612
        %v3685 = vunpack.c.l.b16 %v3613
        %v3686 = vpack.c.b16 %v3651, %v3650
        %v3687 = vpack.c.b16 %v3653, %v3652
        %v3688 = vpack.c.b16 %v3655, %v3654
        %v3689 = vpack.c.b16 %v3657, %v3656
        %v3690 = vpack.c.b16 %v3659, %v3658
        %v3691 = vpack.c.b16 %v3661, %v3660
        %v3692 = vpack.c.b16 %v3663, %v3662
        %v3693 = vpack.c.b16 %v3665, %v3664
        %v3694 = vpack.c.b16 %v3667, %v3666
        %v3695 = vpack.c.b16 %v3669, %v3668
        %v3696 = vpack.c.b16 %v3671, %v3670
        %v3697 = vpack.c.b16 %v3673, %v3672
        %v3698 = vpack.c.b16 %v3675, %v3674
        %v3699 = vpack.c.b16 %v3677, %v3676
        %v3700 = vpack.c.b16 %v3679, %v3678
        %v3701 = vpack.c.b16 %v3681, %v3680
        %v3702 = vpack.c.b16 %v3683, %v3682
        %v3703 = vpack.c.b16 %v3685, %v3684
        %v3723 = vsel %vm481, %v2872, 0
        %v3726 = vsel %vm481, %v2889, 0
        %v3729 = vsel %vm481, %v2906, 0
        %v3732 = vsel %vm481, %v2923, 0
        %v3735 = vsel %vm481, %v2940, 0
        %v3738 = vsel %vm481, %v2957, 0
        %v3741 = vsel %vm481, %v2974, 0
        %v3744 = vsel %vm481, %v2991, 0
        %v3747 = vsel %vm481, %v3008, 0
        %v3750 = vsel %vm481, %v3025, 0
        %v3753 = vsel %vm481, %v3042, 0
        %v3756 = vsel %vm481, %v3059, 0
        %v3759 = vsel %vm481, %v3076, 0
        %v3762 = vsel %vm481, %v3093, 0
        %v3765 = vsel %vm481, %v3110, 0
        %v3768 = vsel %vm481, %v3127, 0
        %3770 = vmatprep.subr.bf16.mxu0 0
        %3771 = vmatpush1.bf16.msra.mxu0 %v3686
        %3772 = vmatprep.subr.bf16.mxu0 0
        %3773 = vmatpush1.bf16.msra.mxu0 %v3687
        %3774 = vmatprep.subr.bf16.mxu0 0
        %3775 = vmatpush1.bf16.msra.mxu0 %v3688
        %3776 = vmatprep.subr.bf16.mxu0 0
        %3777 = vmatpush1.bf16.msra.mxu0 %v3689
        %3778 = vmatprep.subr.bf16.mxu0 0
        %3779 = vmatpush1.bf16.msra.mxu0 %v3690
        %3780 = vmatprep.subr.bf16.mxu0 0
        %3781 = vmatpush1.bf16.msra.mxu0 %v3691
        %3782 = vmatprep.subr.bf16.mxu0 0
        %3783 = vmatpush1.bf16.msra.mxu0 %v3692
        %3784 = vmatprep.subr.bf16.mxu0 0
        %3785 = vmatpush1.bf16.msra.mxu0 %v3693
        %3786 = vmatprep.subr.bf16.mxu0 0
        %3787 = vmatpush1.bf16.msra.mxu0 %v3694
        %3788 = vmatprep.subr.bf16.mxu0 0
        %3789 = vmatpush1.bf16.msra.mxu0 %v3695
        %3790 = vmatprep.subr.bf16.mxu0 0
        %3791 = vmatpush1.bf16.msra.mxu0 %v3696
        %3792 = vmatprep.subr.bf16.mxu0 0
        %3793 = vmatpush1.bf16.msra.mxu0 %v3697
        %3794 = vmatprep.subr.bf16.mxu0 0
        %3795 = vmatpush1.bf16.msra.mxu0 %v3698
        %3796 = vmatprep.subr.bf16.mxu0 0
        %3797 = vmatpush1.bf16.msra.mxu0 %v3699
        %3798 = vmatprep.subr.bf16.mxu0 0
        %3799 = vmatpush1.bf16.msra.mxu0 %v3700
        %3800 = vmatprep.subr.bf16.mxu0 0
        %3801 = vmatpush1.bf16.msra.mxu0 %v3701
        %3802 = vmatprep.mubr.bf16.mxu0 %v3531
        %3803 = vmatmul.mubr.bf16.gmra.mrb[0].mxu0 %v3403
        %v3804 = vpop.f32.mrb[0].mxu0
        %v3805 = vadd.f32 0.0, %v3804
        %v3806 = vpop.f32.mrb[0].mxu0
        %v3807 = vpop.f32.mrb[0].mxu0
        %v3808 = vadd.f32 0.0, %v3807
        %v3809 = vpop.f32.mrb[0].mxu0
        %3810 = vmatprep.mubr.bf16.mxu0 %v3534
        %3811 = vmatmul.mubr.bf16.gmra.mrb[0].mxu0 %v3406
        %v3812 = vpop.f32.mrb[0].mxu0
        %v3813 = vadd.f32 0.0, %v3812
        %v3814 = vpop.f32.mrb[0].mxu0
        %v3815 = vpop.f32.mrb[0].mxu0
        %v3816 = vadd.f32 0.0, %v3815
        %v3817 = vpop.f32.mrb[0].mxu0
        %3818 = vmatprep.mubr.bf16.mxu0 %v3537
        %3819 = vmatmul.mubr.bf16.gmra.mrb[0].mxu0 %v3409
        %v3820 = vpop.f32.mrb[0].mxu0
        %v3821 = vadd.f32 0.0, %v3820
        %v3822 = vpop.f32.mrb[0].mxu0
        %v3823 = vpop.f32.mrb[0].mxu0
        %v3824 = vadd.f32 0.0, %v3823
        %v3825 = vpop.f32.mrb[0].mxu0
        %3826 = vmatprep.mubr.bf16.mxu0 %v3540
        %3827 = vmatmul.mubr.bf16.gmra.mrb[0].mxu0 %v3412
        %v3828 = vpop.f32.mrb[0].mxu0
        %v3829 = vadd.f32 0.0, %v3828
        %v3830 = vpop.f32.mrb[0].mxu0
        %v3831 = vpop.f32.mrb[0].mxu0
        %v3832 = vadd.f32 0.0, %v3831
        %v3833 = vpop.f32.mrb[0].mxu0
        %3834 = vmatprep.mubr.bf16.mxu0 %v3543
        %3835 = vmatmul.mubr.bf16.gmra.mrb[0].mxu0 %v3415
        %v3836 = vpop.f32.mrb[0].mxu0
        %v3837 = vadd.f32 0.0, %v3836
        %v3838 = vpop.f32.mrb[0].mxu0
        %v3839 = vpop.f32.mrb[0].mxu0
        %v3840 = vadd.f32 0.0, %v3839
        %v3841 = vpop.f32.mrb[0].mxu0
        %3842 = vmatprep.mubr.bf16.mxu0 %v3546
        %3843 = vmatmul.mubr.bf16.gmra.mrb[0].mxu0 %v3418
        %v3844 = vpop.f32.mrb[0].mxu0
        %v3845 = vadd.f32 0.0, %v3844
        %v3846 = vpop.f32.mrb[0].mxu0
        %v3847 = vpop.f32.mrb[0].mxu0
        %v3848 = vadd.f32 0.0, %v3847
        %v3849 = vpop.f32.mrb[0].mxu0
        %3850 = vmatprep.mubr.bf16.mxu0 %v3549
        %3851 = vmatmul.mubr.bf16.gmra.mrb[0].mxu0 %v3421
        %v3852 = vpop.f32.mrb[0].mxu0
        %v3853 = vadd.f32 0.0, %v3852
        %v3854 = vpop.f32.mrb[0].mxu0
        %v3855 = vpop.f32.mrb[0].mxu0
        %v3856 = vadd.f32 0.0, %v3855
        %v3857 = vpop.f32.mrb[0].mxu0
        %3858 = vmatprep.mubr.bf16.mxu0 %v3552
        %3859 = vmatmul.mubr.bf16.gmra.mrb[0].mxu0 %v3424
        %v3860 = vpop.f32.mrb[0].mxu0
        %v3861 = vadd.f32 0.0, %v3860
        %v3862 = vpop.f32.mrb[0].mxu0
        %v3863 = vpop.f32.mrb[0].mxu0
        %v3864 = vadd.f32 0.0, %v3863
        %v3865 = vpop.f32.mrb[0].mxu0
        %3866 = vmatprep.mubr.bf16.mxu0 %v3555
        %3867 = vmatmul.mubr.bf16.gmra.mrb[0].mxu0 %v3427
        %v3868 = vpop.f32.mrb[0].mxu0
        %v3869 = vadd.f32 0.0, %v3868
        %v3870 = vpop.f32.mrb[0].mxu0
        %v3871 = vpop.f32.mrb[0].mxu0
        %v3872 = vadd.f32 0.0, %v3871
        %v3873 = vpop.f32.mrb[0].mxu0
        %3874 = vmatprep.mubr.bf16.mxu0 %v3558
        %3875 = vmatmul.mubr.bf16.gmra.mrb[0].mxu0 %v3430
        %v3876 = vpop.f32.mrb[0].mxu0
        %v3877 = vadd.f32 0.0, %v3876
        %v3878 = vpop.f32.mrb[0].mxu0
        %v3879 = vpop.f32.mrb[0].mxu0
        %v3880 = vadd.f32 0.0, %v3879
        %v3881 = vpop.f32.mrb[0].mxu0
        %3882 = vmatprep.mubr.bf16.mxu0 %v3561
        %3883 = vmatmul.mubr.bf16.gmra.mrb[0].mxu0 %v3433
        %v3884 = vpop.f32.mrb[0].mxu0
        %v3885 = vadd.f32 0.0, %v3884
        %v3886 = vpop.f32.mrb[0].mxu0
        %v3887 = vpop.f32.mrb[0].mxu0
        %v3888 = vadd.f32 0.0, %v3887
        %v3889 = vpop.f32.mrb[0].mxu0
        %3890 = vmatprep.mubr.bf16.mxu0 %v3564
        %3891 = vmatmul.mubr.bf16.gmra.mrb[0].mxu0 %v3436
        %v3892 = vpop.f32.mrb[0].mxu0
        %v3893 = vadd.f32 0.0, %v3892
        %v3894 = vpop.f32.mrb[0].mxu0
        %v3895 = vpop.f32.mrb[0].mxu0
        %v3896 = vadd.f32 0.0, %v3895
        %v3897 = vpop.f32.mrb[0].mxu0
        %3898 = vmatprep.mubr.bf16.mxu0 %v3567
        %3899 = vmatmul.mubr.bf16.gmra.mrb[0].mxu0 %v3439
        %v3900 = vpop.f32.mrb[0].mxu0
        %v3901 = vadd.f32 0.0, %v3900
        %v3902 = vpop.f32.mrb[0].mxu0
        %v3903 = vpop.f32.mrb[0].mxu0
        %v3904 = vadd.f32 0.0, %v3903
        %v3905 = vpop.f32.mrb[0].mxu0
        %3906 = vmatprep.mubr.bf16.mxu0 %v3570
        %3907 = vmatmul.mubr.bf16.gmra.mrb[0].mxu0 %v3442
        %v3908 = vpop.f32.mrb[0].mxu0
        %v3909 = vadd.f32 0.0, %v3908
        %v3910 = vpop.f32.mrb[0].mxu0
        %v3911 = vpop.f32.mrb[0].mxu0
        %v3912 = vadd.f32 0.0, %v3911
        %v3913 = vpop.f32.mrb[0].mxu0
        %3914 = vmatprep.mubr.bf16.mxu0 %v3573
        %3915 = vmatmul.mubr.bf16.gmra.mrb[0].mxu0 %v3445
        %v3916 = vpop.f32.mrb[0].mxu0
        %v3917 = vadd.f32 0.0, %v3916
        %v3918 = vpop.f32.mrb[0].mxu0
        %v3919 = vpop.f32.mrb[0].mxu0
        %v3920 = vadd.f32 0.0, %v3919
        %v3921 = vpop.f32.mrb[0].mxu0
        %3922 = vmatprep.mubr.bf16.mxu0 %v3576
        %3923 = vmatmul.mubr.bf16.gmra.mrb[0].mxu0 %v3448
        %v3924 = vpop.f32.mrb[0].mxu0
        %v3925 = vadd.f32 0.0, %v3924
        %v3926 = vpop.f32.mrb[0].mxu0
        %v3927 = vpop.f32.mrb[0].mxu0
        %v3928 = vadd.f32 0.0, %v3927
        %v3929 = vpop.f32.mrb[0].mxu0
        %3930 = vdwg.mxu0
        %3931 = vmatprep.subr.bf16.mxu0 0
        %3932 = vmatpush1.bf16.msra.mxu0 %v3702
        %3933 = vmatprep.subr.bf16.mxu0 0
        %3934 = vmatpush1.bf16.msra.mxu0 %v3703
        %3935 = vmatprep.subr.bf16.mxu0 0
        %3936 = vmatpush1.bf16.msra.mxu0 0
        %3937 = vmatprep.subr.bf16.mxu0 0
        %3938 = vmatpush1.bf16.msra.mxu0 0
        %3939 = vmatprep.subr.bf16.mxu0 0
        %3940 = vmatpush1.bf16.msra.mxu0 0
        %3941 = vmatprep.subr.bf16.mxu0 0
        %3942 = vmatpush1.bf16.msra.mxu0 0
        %3943 = vmatprep.subr.bf16.mxu0 0
        %3944 = vmatpush1.bf16.msra.mxu0 0
        %3945 = vmatprep.subr.bf16.mxu0 0
        %3946 = vmatpush1.bf16.msra.mxu0 0
        %3947 = vmatprep.subr.bf16.mxu0 0
        %3948 = vmatpush1.bf16.msra.mxu0 0
        %3949 = vmatprep.subr.bf16.mxu0 0
        %3950 = vmatpush1.bf16.msra.mxu0 0
        %3951 = vmatprep.subr.bf16.mxu0 0
        %3952 = vmatpush1.bf16.msra.mxu0 0
        %3953 = vmatprep.subr.bf16.mxu0 0
        %3954 = vmatpush1.bf16.msra.mxu0 0
        %3955 = vmatprep.subr.bf16.mxu0 0
        %3956 = vmatpush1.bf16.msra.mxu0 0
        %3957 = vmatprep.subr.bf16.mxu0 0
        %3958 = vmatpush1.bf16.msra.mxu0 0
        %3959 = vmatprep.subr.bf16.mxu0 0
        %3960 = vmatpush1.bf16.msra.mxu0 0
        %3961 = vmatprep.subr.bf16.mxu0 0
        %3962 = vmatpush1.bf16.msra.mxu0 0
        %3963 = vmatprep.mubr.bf16.mxu0 0
        %3964 = vmatmul.mubr.bf16.gmra.mrb[0].mxu0 %v3723
        %v3965 = vpop.f32.mrb[0].mxu0
        %v3966 = vadd.f32 %v3805, %v3965
        %v3967 = vpop.f32.mrb[0].mxu0
        %v3968 = vpop.f32.mrb[0].mxu0
        %v3969 = vadd.f32 %v3808, %v3968
        %v3970 = vpop.f32.mrb[0].mxu0
        %3971 = vmatprep.mubr.bf16.mxu0 0
        %3972 = vmatmul.mubr.bf16.gmra.mrb[0].mxu0 %v3726
        %v3973 = vpop.f32.mrb[0].mxu0
        %v3974 = vadd.f32 %v3813, %v3973
        %v3975 = vpop.f32.mrb[0].mxu0
        %v3976 = vpop.f32.mrb[0].mxu0
        %v3977 = vadd.f32 %v3816, %v3976
        %v3978 = vpop.f32.mrb[0].mxu0
        %3979 = vmatprep.mubr.bf16.mxu0 0
        %3980 = vmatmul.mubr.bf16.gmra.mrb[0].mxu0 %v3729
        %v3981 = vpop.f32.mrb[0].mxu0
        %v3982 = vadd.f32 %v3821, %v3981
        %v3983 = vpop.f32.mrb[0].mxu0
        %v3984 = vpop.f32.mrb[0].mxu0
        %v3985 = vadd.f32 %v3824, %v3984
        %v3986 = vpop.f32.mrb[0].mxu0
        %3987 = vmatprep.mubr.bf16.mxu0 0
        %3988 = vmatmul.mubr.bf16.gmra.mrb[0].mxu0 %v3732
        %v3989 = vpop.f32.mrb[0].mxu0
        %v3990 = vadd.f32 %v3829, %v3989
        %v3991 = vpop.f32.mrb[0].mxu0
        %v3992 = vpop.f32.mrb[0].mxu0
        %v3993 = vadd.f32 %v3832, %v3992
        %v3994 = vpop.f32.mrb[0].mxu0
        %3995 = vmatprep.mubr.bf16.mxu0 0
        %3996 = vmatmul.mubr.bf16.gmra.mrb[0].mxu0 %v3735
        %v3997 = vpop.f32.mrb[0].mxu0
        %v3998 = vadd.f32 %v3837, %v3997
        %v3999 = vpop.f32.mrb[0].mxu0
        %v4000 = vpop.f32.mrb[0].mxu0
        %v4001 = vadd.f32 %v3840, %v4000
        %v4002 = vpop.f32.mrb[0].mxu0
        %4003 = vmatprep.mubr.bf16.mxu0 0
        %4004 = vmatmul.mubr.bf16.gmra.mrb[0].mxu0 %v3738
        %v4005 = vpop.f32.mrb[0].mxu0
        %v4006 = vadd.f32 %v3845, %v4005
        %v4007 = vpop.f32.mrb[0].mxu0
        %v4008 = vpop.f32.mrb[0].mxu0
        %v4009 = vadd.f32 %v3848, %v4008
        %v4010 = vpop.f32.mrb[0].mxu0
        %4011 = vmatprep.mubr.bf16.mxu0 0
        %4012 = vmatmul.mubr.bf16.gmra.mrb[0].mxu0 %v3741
        %v4013 = vpop.f32.mrb[0].mxu0
        %v4014 = vadd.f32 %v3853, %v4013
        %v4015 = vpop.f32.mrb[0].mxu0
        %v4016 = vpop.f32.mrb[0].mxu0
        %v4017 = vadd.f32 %v3856, %v4016
        %v4018 = vpop.f32.mrb[0].mxu0
        %4019 = vmatprep.mubr.bf16.mxu0 0
        %4020 = vmatmul.mubr.bf16.gmra.mrb[0].mxu0 %v3744
        %v4021 = vpop.f32.mrb[0].mxu0
        %v4022 = vadd.f32 %v3861, %v4021
        %v4023 = vpop.f32.mrb[0].mxu0
        %v4024 = vpop.f32.mrb[0].mxu0
        %v4025 = vadd.f32 %v3864, %v4024
        %v4026 = vpop.f32.mrb[0].mxu0
        %4027 = vmatprep.mubr.bf16.mxu0 0
        %4028 = vmatmul.mubr.bf16.gmra.mrb[0].mxu0 %v3747
        %v4029 = vpop.f32.mrb[0].mxu0
        %v4030 = vadd.f32 %v3869, %v4029
        %v4031 = vpop.f32.mrb[0].mxu0
        %v4032 = vpop.f32.mrb[0].mxu0
        %v4033 = vadd.f32 %v3872, %v4032
        %v4034 = vpop.f32.mrb[0].mxu0
        %4035 = vmatprep.mubr.bf16.mxu0 0
        %4036 = vmatmul.mubr.bf16.gmra.mrb[0].mxu0 %v3750
        %v4037 = vpop.f32.mrb[0].mxu0
        %v4038 = vadd.f32 %v3877, %v4037
        %v4039 = vpop.f32.mrb[0].mxu0
        %v4040 = vpop.f32.mrb[0].mxu0
        %v4041 = vadd.f32 %v3880, %v4040
        %v4042 = vpop.f32.mrb[0].mxu0
        %4043 = vmatprep.mubr.bf16.mxu0 0
        %4044 = vmatmul.mubr.bf16.gmra.mrb[0].mxu0 %v3753
        %v4045 = vpop.f32.mrb[0].mxu0
        %v4046 = vadd.f32 %v3885, %v4045
        %v4047 = vpop.f32.mrb[0].mxu0
        %v4048 = vpop.f32.mrb[0].mxu0
        %v4049 = vadd.f32 %v3888, %v4048
        %v4050 = vpop.f32.mrb[0].mxu0
        %4051 = vmatprep.mubr.bf16.mxu0 0
        %4052 = vmatmul.mubr.bf16.gmra.mrb[0].mxu0 %v3756
        %v4053 = vpop.f32.mrb[0].mxu0
        %v4054 = vadd.f32 %v3893, %v4053
        %v4055 = vpop.f32.mrb[0].mxu0
        %v4056 = vpop.f32.mrb[0].mxu0
        %v4057 = vadd.f32 %v3896, %v4056
        %v4058 = vpop.f32.mrb[0].mxu0
        %4059 = vmatprep.mubr.bf16.mxu0 0
        %4060 = vmatmul.mubr.bf16.gmra.mrb[0].mxu0 %v3759
        %v4061 = vpop.f32.mrb[0].mxu0
        %v4062 = vadd.f32 %v3901, %v4061
        %v4063 = vpop.f32.mrb[0].mxu0
        %v4064 = vpop.f32.mrb[0].mxu0
        %v4065 = vadd.f32 %v3904, %v4064
        %v4066 = vpop.f32.mrb[0].mxu0
        %4067 = vmatprep.mubr.bf16.mxu0 0
        %4068 = vmatmul.mubr.bf16.gmra.mrb[0].mxu0 %v3762
        %v4069 = vpop.f32.mrb[0].mxu0
        %v4070 = vadd.f32 %v3909, %v4069
        %v4071 = vpop.f32.mrb[0].mxu0
        %v4072 = vpop.f32.mrb[0].mxu0
        %v4073 = vadd.f32 %v3912, %v4072
        %v4074 = vpop.f32.mrb[0].mxu0
        %4075 = vmatprep.mubr.bf16.mxu0 0
        %4076 = vmatmul.mubr.bf16.gmra.mrb[0].mxu0 %v3765
        %v4077 = vpop.f32.mrb[0].mxu0
        %v4078 = vadd.f32 %v3917, %v4077
        %v4079 = vpop.f32.mrb[0].mxu0
        %v4080 = vpop.f32.mrb[0].mxu0
        %v4081 = vadd.f32 %v3920, %v4080
        %v4082 = vpop.f32.mrb[0].mxu0
        %4083 = vmatprep.mubr.bf16.mxu0 0
        %4084 = vmatmul.mubr.bf16.gmra.mrb[0].mxu0 %v3768
        %v4085 = vpop.f32.mrb[0].mxu0
        %v4086 = vadd.f32 %v3925, %v4085
        %v4087 = vpop.f32.mrb[0].mxu0
        %v4088 = vpop.f32.mrb[0].mxu0
        %v4089 = vadd.f32 %v3928, %v4088
        %v4090 = vpop.f32.mrb[0].mxu0
        %4091 = vdwg.mxu0
        %v4092 = vld [vmem:[%s8] sm:$0x1]
        %v4094 = vlaneseq
        %v4095 = vshrl.u32 %v4094, 7
        %v4096 = vsub.s32 0, %v4095
        %v4097 = vrot.slane %v4092, %v4096
        %v4099 = vmul.f32 %v3966, %v4097
        %v4100 = vmul.f32 %v3969, %v4097
        %v4101 = vmul.f32 %v3974, %v4097
        %v4102 = vmul.f32 %v3977, %v4097
        %v4103 = vmul.f32 %v3982, %v4097
        %v4104 = vmul.f32 %v3985, %v4097
        %v4105 = vmul.f32 %v3990, %v4097
        %v4106 = vmul.f32 %v3993, %v4097
        %v4107 = vmul.f32 %v3998, %v4097
        %v4108 = vmul.f32 %v4001, %v4097
        %v4109 = vmul.f32 %v4006, %v4097
        %v4110 = vmul.f32 %v4009, %v4097
        %v4111 = vmul.f32 %v4014, %v4097
        %v4112 = vmul.f32 %v4017, %v4097
        %v4113 = vmul.f32 %v4022, %v4097
        %v4114 = vmul.f32 %v4025, %v4097
        %v4115 = vmul.f32 %v4030, %v4097
        %v4116 = vmul.f32 %v4033, %v4097
        %v4117 = vmul.f32 %v4038, %v4097
        %v4118 = vmul.f32 %v4041, %v4097
        %v4119 = vmul.f32 %v4046, %v4097
        %v4120 = vmul.f32 %v4049, %v4097
        %v4121 = vmul.f32 %v4054, %v4097
        %v4122 = vmul.f32 %v4057, %v4097
        %v4123 = vmul.f32 %v4062, %v4097
        %v4124 = vmul.f32 %v4065, %v4097
        %v4125 = vmul.f32 %v4070, %v4097
        %v4126 = vmul.f32 %v4073, %v4097
        %v4127 = vmul.f32 %v4078, %v4097
        %v4128 = vmul.f32 %v4081, %v4097
        %v4129 = vmul.f32 %v4086, %v4097
        %v4130 = vmul.f32 %v4089, %v4097
        %v4131 = vld [vmem:[%s9] sm:$0x1]
        %v4133 = vlaneseq
        %v4134 = vshrl.u32 %v4133, 7
        %v4135 = vsub.s32 0, %v4134
        %v4136 = vrot.slane %v4131, %v4135
        %v4138 = vadd.f32 %v4099, %v4136
        %v4139 = vadd.f32 %v4100, %v4136
        %v4140 = vadd.f32 %v4101, %v4136
        %v4141 = vadd.f32 %v4102, %v4136
        %v4142 = vadd.f32 %v4103, %v4136
        %v4143 = vadd.f32 %v4104, %v4136
        %v4144 = vadd.f32 %v4105, %v4136
        %v4145 = vadd.f32 %v4106, %v4136
        %v4146 = vadd.f32 %v4107, %v4136
        %v4147 = vadd.f32 %v4108, %v4136
        %v4148 = vadd.f32 %v4109, %v4136
        %v4149 = vadd.f32 %v4110, %v4136
        %v4150 = vadd.f32 %v4111, %v4136
        %v4151 = vadd.f32 %v4112, %v4136
        %v4152 = vadd.f32 %v4113, %v4136
        %v4153 = vadd.f32 %v4114, %v4136
        %v4154 = vadd.f32 %v4115, %v4136
        %v4155 = vadd.f32 %v4116, %v4136
        %v4156 = vadd.f32 %v4117, %v4136
        %v4157 = vadd.f32 %v4118, %v4136
        %v4158 = vadd.f32 %v4119, %v4136
        %v4159 = vadd.f32 %v4120, %v4136
        %v4160 = vadd.f32 %v4121, %v4136
        %v4161 = vadd.f32 %v4122, %v4136
        %v4162 = vadd.f32 %v4123, %v4136
        %v4163 = vadd.f32 %v4124, %v4136
        %v4164 = vadd.f32 %v4125, %v4136
        %v4165 = vadd.f32 %v4126, %v4136
        %v4166 = vadd.f32 %v4127, %v4136
        %v4167 = vadd.f32 %v4128, %v4136
        %v4168 = vadd.f32 %v4129, %v4136
        %v4169 = vadd.f32 %v4130, %v4136
        %v4170 = vmax.f32 %v4138, 0.0
        %v4171 = vmax.f32 %v4139, 0.0
        %v4172 = vmax.f32 %v4140, 0.0
        %v4173 = vmax.f32 %v4141, 0.0
        %v4174 = vmax.f32 %v4142, 0.0
        %v4175 = vmax.f32 %v4143, 0.0
        %v4176 = vmax.f32 %v4144, 0.0
        %v4177 = vmax.f32 %v4145, 0.0
        %v4178 = vmax.f32 %v4146, 0.0
        %v4179 = vmax.f32 %v4147, 0.0
        %v4180 = vmax.f32 %v4148, 0.0
        %v4181 = vmax.f32 %v4149, 0.0
        %v4182 = vmax.f32 %v4150, 0.0
        %v4183 = vmax.f32 %v4151, 0.0
        %v4184 = vmax.f32 %v4152, 0.0
        %v4185 = vmax.f32 %v4153, 0.0
        %v4186 = vmax.f32 %v4154, 0.0
        %v4187 = vmax.f32 %v4155, 0.0
        %v4188 = vmax.f32 %v4156, 0.0
        %v4189 = vmax.f32 %v4157, 0.0
        %v4190 = vmax.f32 %v4158, 0.0
        %v4191 = vmax.f32 %v4159, 0.0
        %v4192 = vmax.f32 %v4160, 0.0
        %v4193 = vmax.f32 %v4161, 0.0
        %v4194 = vmax.f32 %v4162, 0.0
        %v4195 = vmax.f32 %v4163, 0.0
        %v4196 = vmax.f32 %v4164, 0.0
        %v4197 = vmax.f32 %v4165, 0.0
        %v4198 = vmax.f32 %v4166, 0.0
        %v4199 = vmax.f32 %v4167, 0.0
        %v4200 = vmax.f32 %v4168, 0.0
        %v4201 = vmax.f32 %v4169, 0.0
        %v4202 = vpack.c.bf16 %v4171, %v4170
        %v4203 = vpack.c.bf16 %v4173, %v4172
        %v4204 = vpack.c.bf16 %v4175, %v4174
        %v4205 = vpack.c.bf16 %v4177, %v4176
        %v4206 = vpack.c.bf16 %v4179, %v4178
        %v4207 = vpack.c.bf16 %v4181, %v4180
        %v4208 = vpack.c.bf16 %v4183, %v4182
        %v4209 = vpack.c.bf16 %v4185, %v4184
        %v4210 = vpack.c.bf16 %v4187, %v4186
        %v4211 = vpack.c.bf16 %v4189, %v4188
        %v4212 = vpack.c.bf16 %v4191, %v4190
        %v4213 = vpack.c.bf16 %v4193, %v4192
        %v4214 = vpack.c.bf16 %v4195, %v4194
        %v4215 = vpack.c.bf16 %v4197, %v4196
        %v4216 = vpack.c.bf16 %v4199, %v4198
        %v4217 = vpack.c.bf16 %v4201, %v4200
        %4218 = vst [vmem:[#allocation3] sm:$0xff] %v4202
        %4219 = vst [vmem:[#allocation3 + $0x18] sm:$0xff] %v4203
        %4220 = vst [vmem:[#allocation3 + $0x30] sm:$0xff] %v4204
        %4221 = vst [vmem:[#allocation3 + $0x48] sm:$0xff] %v4205
        %4222 = vst [vmem:[#allocation3 + $0x60] sm:$0xff] %v4206
        %4223 = vst [vmem:[#allocation3 + $0x78] sm:$0xff] %v4207
        %4224 = vst [vmem:[#allocation3 + $0x90] sm:$0xff] %v4208
        %4225 = vst [vmem:[#allocation3 + $0xa8] sm:$0xff] %v4209
        %4226 = vst [vmem:[#allocation3 + $0xc0] sm:$0xff] %v4210
        %4227 = vst [vmem:[#allocation3 + $0xd8] sm:$0xff] %v4211
        %4228 = vst [vmem:[#allocation3 + $0xf0] sm:$0xff] %v4212
        %4229 = vst [vmem:[#allocation3 + $0x108] sm:$0xff] %v4213
        %4230 = vst [vmem:[#allocation3 + $0x120] sm:$0xff] %v4214
        %4231 = vst [vmem:[#allocation3 + $0x138] sm:$0xff] %v4215
        %4232 = vst [vmem:[#allocation3 + $0x150] sm:$0xff] %v4216
        %4233 = vst [vmem:[#allocation3 + $0x168] sm:$0xff] %v4217
        %v4234 = vld [vmem:[%s473] sm:$0xf]
        %v4235 = vld [vmem:[%s473 + $0x4] sm:$0xf]
        %v4236 = vld [vmem:[%s473 + $0x8] sm:$0xf]
        %v4237 = vld [vmem:[%s473 + $0xc] sm:$0xf]
        %v4238 = vld [vmem:[%s473 + $0x10] sm:$0xf]
        %v4239 = vld [vmem:[%s473 + $0x14] sm:$0xf]
        %v4240 = vld [vmem:[%s473 + $0x18] sm:$0xf]
        %v4241 = vld [vmem:[%s473 + $0x1c] sm:$0xf]
        %v4242 = vld [vmem:[%s473 + $0x20] sm:$0xf]
        %v4243 = vld [vmem:[%s473 + $0x24] sm:$0xf]
        %v4244 = vld [vmem:[%s473 + $0x28] sm:$0xf]
        %v4245 = vld [vmem:[%s473 + $0x2c] sm:$0xf]
        %v4246 = vld [vmem:[%s473 + $0x30] sm:$0xf]
        %v4247 = vld [vmem:[%s473 + $0x34] sm:$0xf]
        %v4248 = vld [vmem:[%s473 + $0x38] sm:$0xf]
        %v4249 = vld [vmem:[%s473 + $0x3c] sm:$0xf]
        %v4250 = vld [vmem:[%s473 + $0x40] sm:$0xf]
        %v4251 = vld [vmem:[%s473 + $0x44] sm:$0xf]
        %v4252 = vld [vmem:[%s473 + $0x48] sm:$0xf]
        %v4253 = vld [vmem:[%s473 + $0x4c] sm:$0xf]
        %v4254 = vld [vmem:[%s473 + $0x50] sm:$0xf]
        %v4255 = vld [vmem:[%s473 + $0x54] sm:$0xf]
        %v4256 = vld [vmem:[%s473 + $0x58] sm:$0xf]
        %v4257 = vld [vmem:[%s473 + $0x5c] sm:$0xf]
        %v4258 = vld [vmem:[%s473 + $0x60] sm:$0xf]
        %v4259 = vld [vmem:[%s473 + $0x64] sm:$0xf]
        %v4260 = vld [vmem:[%s473 + $0x68] sm:$0xf]
        %v4261 = vld [vmem:[%s473 + $0x6c] sm:$0xf]
        %v4262 = vld [vmem:[%s473 + $0x70] sm:$0xf]
        %v4263 = vld [vmem:[%s473 + $0x74] sm:$0xf]
        %v4264 = vld [vmem:[%s473 + $0x78] sm:$0xf]
        %v4265 = vld [vmem:[%s473 + $0x7c] sm:$0xf]
        %v4298 = vunpack.c.l.b16 %v4234
        %v4299 = vunpack.c.l.b16 %v4235
        %v4300 = vunpack.c.l.b16 %v4236
        %v4301 = vunpack.c.l.b16 %v4237
        %v4302 = vunpack.c.l.b16 %v4238
        %v4303 = vunpack.c.l.b16 %v4239
        %v4304 = vunpack.c.l.b16 %v4240
        %v4305 = vunpack.c.l.b16 %v4241
        %v4306 = vunpack.c.l.b16 %v4242
        %v4307 = vunpack.c.l.b16 %v4243
        %v4308 = vunpack.c.l.b16 %v4244
        %v4309 = vunpack.c.l.b16 %v4245
        %v4310 = vunpack.c.l.b16 %v4246
        %v4311 = vunpack.c.l.b16 %v4247
        %v4312 = vunpack.c.l.b16 %v4248
        %v4313 = vunpack.c.l.b16 %v4249
        %v4314 = vunpack.c.l.b16 %v4250
        %v4315 = vunpack.c.l.b16 %v4251
        %v4316 = vunpack.c.l.b16 %v4252
        %v4317 = vunpack.c.l.b16 %v4253
        %v4318 = vunpack.c.l.b16 %v4254
        %v4319 = vunpack.c.l.b16 %v4255
        %v4320 = vunpack.c.l.b16 %v4256
        %v4321 = vunpack.c.l.b16 %v4257
        %v4322 = vunpack.c.l.b16 %v4258
        %v4323 = vunpack.c.l.b16 %v4259
        %v4324 = vunpack.c.l.b16 %v4260
        %v4325 = vunpack.c.l.b16 %v4261
        %v4326 = vunpack.c.l.b16 %v4262
        %v4327 = vunpack.c.l.b16 %v4263
        %v4328 = vunpack.c.l.b16 %v4264
        %v4329 = vunpack.c.l.b16 %v4265
        %v4330 = vpack.c.b16 %v4299, %v4298
        %v4331 = vpack.c.b16 %v4301, %v4300
        %v4332 = vpack.c.b16 %v4303, %v4302
        %v4333 = vpack.c.b16 %v4305, %v4304
        %v4334 = vpack.c.b16 %v4307, %v4306
        %v4335 = vpack.c.b16 %v4309, %v4308
        %v4336 = vpack.c.b16 %v4311, %v4310
        %v4337 = vpack.c.b16 %v4313, %v4312
        %v4338 = vpack.c.b16 %v4315, %v4314
        %v4339 = vpack.c.b16 %v4317, %v4316
        %v4340 = vpack.c.b16 %v4319, %v4318
        %v4341 = vpack.c.b16 %v4321, %v4320
        %v4342 = vpack.c.b16 %v4323, %v4322
        %v4343 = vpack.c.b16 %v4325, %v4324
        %v4344 = vpack.c.b16 %v4327, %v4326
        %v4345 = vpack.c.b16 %v4329, %v4328
        %4362 = vmatprep.subr.bf16.mxu0 0
        %4363 = vmatpush1.bf16.msra.mxu0 %v4330
        %4364 = vmatprep.subr.bf16.mxu0 0
        %4365 = vmatpush1.bf16.msra.mxu0 %v4331
        %4366 = vmatprep.subr.bf16.mxu0 0
        %4367 = vmatpush1.bf16.msra.mxu0 %v4332
        %4368 = vmatprep.subr.bf16.mxu0 0
        %4369 = vmatpush1.bf16.msra.mxu0 %v4333
        %4370 = vmatprep.subr.bf16.mxu0 0
        %4371 = vmatpush1.bf16.msra.mxu0 %v4334
        %4372 = vmatprep.subr.bf16.mxu0 0
        %4373 = vmatpush1.bf16.msra.mxu0 %v4335
        %4374 = vmatprep.subr.bf16.mxu0 0
        %4375 = vmatpush1.bf16.msra.mxu0 %v4336
        %4376 = vmatprep.subr.bf16.mxu0 0
        %4377 = vmatpush1.bf16.msra.mxu0 %v4337
        %4378 = vmatprep.subr.bf16.mxu0 0
        %4379 = vmatpush1.bf16.msra.mxu0 %v4338
        %4380 = vmatprep.subr.bf16.mxu0 0
        %4381 = vmatpush1.bf16.msra.mxu0 %v4339
        %4382 = vmatprep.subr.bf16.mxu0 0
        %4383 = vmatpush1.bf16.msra.mxu0 %v4340
        %4384 = vmatprep.subr.bf16.mxu0 0
        %4385 = vmatpush1.bf16.msra.mxu0 %v4341
        %4386 = vmatprep.subr.bf16.mxu0 0
        %4387 = vmatpush1.bf16.msra.mxu0 %v4342
        %4388 = vmatprep.subr.bf16.mxu0 0
        %4389 = vmatpush1.bf16.msra.mxu0 %v4343
        %4390 = vmatprep.subr.bf16.mxu0 0
        %4391 = vmatpush1.bf16.msra.mxu0 %v4344
        %4392 = vmatprep.subr.bf16.mxu0 0
        %4393 = vmatpush1.bf16.msra.mxu0 %v4345
        %4394 = vmatprep.mubr.bf16.mxu0 1065369472
        %4395 = vmatmul.mubr.bf16.gmra.mrb[0].mxu0 1065369472
        %v4396 = vpop.f32.mrb[0].mxu0
        %v4397 = vadd.f32 0.0, %v4396
        %v4398 = vpop.f32.mrb[0].mxu0
        %v4399 = vpop.f32.mrb[0].mxu0
        %v4400 = vpop.f32.mrb[0].mxu0
        %4401 = vdwg.mxu0
        %v4402 = vmul.f32 %v4397, 0.00390625
        %s4403 = scalar_lea.vmem %s3, 32
        %v4404 = vld [vmem:[%s4403] sm:$0xff]
        %v4405 = vld [vmem:[%s4403 + $0x8] sm:$0xff]
        %v4406 = vld [vmem:[%s4403 + $0x10] sm:$0xff]
        %v4407 = vld [vmem:[%s4403 + $0x18] sm:$0xff]
        %s4408 = scalar_lea.vmem %s4, 1
        %v4409 = vld [vmem:[%s4408] sm:$0x1]
        %v4411 = vsel %vm481, %v4402, 0
        %4413 = vmatprep.subr.mxu0 0.0
        %4414 = vmatpush1.msra.mxu0 %v4404
        %4415 = vmatprep.subr.mxu0 0.0
        %4416 = vmatpush1.msra.mxu0 %v4405
        %4417 = vmatprep.subr.mxu0 0.0
        %4418 = vmatpush1.msra.mxu0 %v4406
        %4419 = vmatprep.subr.mxu0 0.0
        %4420 = vmatpush1.msra.mxu0 %v4407
        %4421 = vmatprep.subr.mxu0 0.0
        %4422 = vmatpush1.msra.mxu0 0.0
        %4423 = vmatprep.subr.mxu0 0.0
        %4424 = vmatpush1.msra.mxu0 0.0
        %4425 = vmatprep.subr.mxu0 0.0
        %4426 = vmatpush1.msra.mxu0 0.0
        %4427 = vmatprep.subr.mxu0 0.0
        %4428 = vmatpush1.msra.mxu0 0.0
        %4429 = vmatprep.subr.mxu0 0.0
        %4430 = vmatpush1.msra.mxu0 0.0
        %4431 = vmatprep.subr.mxu0 0.0
        %4432 = vmatpush1.msra.mxu0 0.0
        %4433 = vmatprep.subr.mxu0 0.0
        %4434 = vmatpush1.msra.mxu0 0.0
        %4435 = vmatprep.subr.mxu0 0.0
        %4436 = vmatpush1.msra.mxu0 0.0
        %4437 = vmatprep.subr.mxu0 0.0
        %4438 = vmatpush1.msra.mxu0 0.0
        %4439 = vmatprep.subr.mxu0 0.0
        %4440 = vmatpush1.msra.mxu0 0.0
        %4441 = vmatprep.subr.mxu0 0.0
        %4442 = vmatpush1.msra.mxu0 0.0
        %4443 = vmatprep.subr.mxu0 0.0
        %4444 = vmatpush1.msra.mxu0 0.0
        %4445 = vmatprep.subr.mxu0 0.0
        %4446 = vmatpush1.msra.mxu0 0.0
        %4447 = vmatprep.subr.mxu0 0.0
        %4448 = vmatpush1.msra.mxu0 0.0
        %4449 = vmatprep.subr.mxu0 0.0
        %4450 = vmatpush1.msra.mxu0 0.0
        %4451 = vmatprep.subr.mxu0 0.0
        %4452 = vmatpush1.msra.mxu0 0.0
        %4453 = vmatprep.subr.mxu0 0.0
        %4454 = vmatpush1.msra.mxu0 0.0
        %4455 = vmatprep.subr.mxu0 0.0
        %4456 = vmatpush1.msra.mxu0 0.0
        %4457 = vmatprep.subr.mxu0 0.0
        %4458 = vmatpush1.msra.mxu0 0.0
        %4459 = vmatprep.subr.mxu0 0.0
        %4460 = vmatpush1.msra.mxu0 0.0
        %4461 = vmatprep.subr.mxu0 0.0
        %4462 = vmatpush1.msra.mxu0 0.0
        %4463 = vmatprep.subr.mxu0 0.0
        %4464 = vmatpush1.msra.mxu0 0.0
        %4465 = vmatprep.subr.mxu0 0.0
        %4466 = vmatpush1.msra.mxu0 0.0
        %4467 = vmatprep.subr.mxu0 0.0
        %4468 = vmatpush1.msra.mxu0 0.0
        %4469 = vmatprep.subr.mxu0 0.0
        %4470 = vmatpush1.msra.mxu0 0.0
        %4471 = vmatprep.subr.mxu0 0.0
        %4472 = vmatpush1.msra.mxu0 0.0
        %4473 = vmatprep.subr.mxu0 0.0
        %4474 = vmatpush1.msra.mxu0 0.0
        %4475 = vmatprep.subr.mxu0 0.0
        %4476 = vmatpush1.msra.mxu0 0.0
        %4477 = vmatprep.mubr.f32.mxu0 0.0
        %4478 = vmatmul.mubr.f32.gmra.mrb[0].mxu0 %v4411
        %v4479 = vpop.f32.mrb[0].mxu0
        %v4480 = vadd.f32 %v4409, %v4479
        %v4481 = vpop.f32.mrb[0].mxu0
        %4482 = vdwg.mxu0
        %v4483 = vmax.f32 %v4480, 0.0
        %s4484 = scalar_lea.vmem %s5, 2
        %v4485 = vld [vmem:[%s4484] sm:$0x3]
        %s4486 = scalar_lea.vmem %s6, 1
        %v4487 = vld [vmem:[%s4486] sm:$0x1]
        %v4489 = vsel %vm772, %v4483, 0
        %v4492 = vsel %vm776, %v4485, 0
        %4494 = vmatprep.subr.mxu0 0.0
        %4495 = vmatpush1.msra.mxu0 %v4492
        %4496 = vmatprep.subr.mxu0 0.0
        %4497 = vmatpush1.msra.mxu0 0.0
        %4498 = vmatprep.subr.mxu0 0.0
        %4499 = vmatpush1.msra.mxu0 0.0
        %4500 = vmatprep.subr.mxu0 0.0
        %4501 = vmatpush1.msra.mxu0 0.0
        %4502 = vmatprep.subr.mxu0 0.0
        %4503 = vmatpush1.msra.mxu0 0.0
        %4504 = vmatprep.subr.mxu0 0.0
        %4505 = vmatpush1.msra.mxu0 0.0
        %4506 = vmatprep.subr.mxu0 0.0
        %4507 = vmatpush1.msra.mxu0 0.0
        %4508 = vmatprep.subr.mxu0 0.0
        %4509 = vmatpush1.msra.mxu0 0.0
        %4510 = vmatprep.subr.mxu0 0.0
        %4511 = vmatpush1.msra.mxu0 0.0
        %4512 = vmatprep.subr.mxu0 0.0
        %4513 = vmatpush1.msra.mxu0 0.0
        %4514 = vmatprep.subr.mxu0 0.0
        %4515 = vmatpush1.msra.mxu0 0.0
        %4516 = vmatprep.subr.mxu0 0.0
        %4517 = vmatpush1.msra.mxu0 0.0
        %4518 = vmatprep.subr.mxu0 0.0
        %4519 = vmatpush1.msra.mxu0 0.0
        %4520 = vmatprep.subr.mxu0 0.0
        %4521 = vmatpush1.msra.mxu0 0.0
        %4522 = vmatprep.subr.mxu0 0.0
        %4523 = vmatpush1.msra.mxu0 0.0
        %4524 = vmatprep.subr.mxu0 0.0
        %4525 = vmatpush1.msra.mxu0 0.0
        %4526 = vmatprep.subr.mxu0 0.0
        %4527 = vmatpush1.msra.mxu0 0.0
        %4528 = vmatprep.subr.mxu0 0.0
        %4529 = vmatpush1.msra.mxu0 0.0
        %4530 = vmatprep.subr.mxu0 0.0
        %4531 = vmatpush1.msra.mxu0 0.0
        %4532 = vmatprep.subr.mxu0 0.0
        %4533 = vmatpush1.msra.mxu0 0.0
        %4534 = vmatprep.subr.mxu0 0.0
        %4535 = vmatpush1.msra.mxu0 0.0
        %4536 = vmatprep.subr.mxu0 0.0
        %4537 = vmatpush1.msra.mxu0 0.0
        %4538 = vmatprep.subr.mxu0 0.0
        %4539 = vmatpush1.msra.mxu0 0.0
        %4540 = vmatprep.subr.mxu0 0.0
        %4541 = vmatpush1.msra.mxu0 0.0
        %4542 = vmatprep.subr.mxu0 0.0
        %4543 = vmatpush1.msra.mxu0 0.0
        %4544 = vmatprep.subr.mxu0 0.0
        %4545 = vmatpush1.msra.mxu0 0.0
        %4546 = vmatprep.subr.mxu0 0.0
        %4547 = vmatpush1.msra.mxu0 0.0
        %4548 = vmatprep.subr.mxu0 0.0
        %4549 = vmatpush1.msra.mxu0 0.0
        %4550 = vmatprep.subr.mxu0 0.0
        %4551 = vmatpush1.msra.mxu0 0.0
        %4552 = vmatprep.subr.mxu0 0.0
        %4553 = vmatpush1.msra.mxu0 0.0
        %4554 = vmatprep.subr.mxu0 0.0
        %4555 = vmatpush1.msra.mxu0 0.0
        %4556 = vmatprep.subr.mxu0 0.0
        %4557 = vmatpush1.msra.mxu0 0.0
        %4558 = vmatprep.mubr.f32.mxu0 0.0
        %4559 = vmatmul.mubr.f32.gmra.mrb[0].mxu0 %v4489
        %v4560 = vpop.f32.mrb[0].mxu0
        %v4561 = vadd.f32 %v4487, %v4560
        %v4562 = vpop.f32.mrb[0].mxu0
        %4563 = vdwg.mxu0
        %v4564 = vxor.u32 %v4561, 2147483648
        %v4565 = vmul.f32 %v4564, 1.442695
        %v4566 = vpow.pop %v4565
        %v4567 = vadd.f32 %v4566, 1.0
        %v4568 = vrcp.pop %v4567
        %v4569 = vmul.f32 1.0, %v4568
        %v4570 = vpack.c.bf16 %v4569, %v4569
        %v4572 = vpack.i.b16 %v4570, %v4570
        %v4574 = vlaneseq
        %v4575 = vshrl.u32 %v4574, 7
        %v4576 = vsub.s32 0, %v4575
        %v4577 = vrot.slane %v4572, %v4576
        %v4579 = vunpack.c.l.b16 %v4577
        %v4580 = vpack.c.b16 %v4579, %v4579
        %v4582 = vmul.bf16 %v4234, %v4580
        %v4583 = vmul.bf16 %v4235, %v4580
        %v4584 = vmul.bf16 %v4236, %v4580
        %v4585 = vmul.bf16 %v4237, %v4580
        %v4586 = vmul.bf16 %v4238, %v4580
        %v4587 = vmul.bf16 %v4239, %v4580
        %v4588 = vmul.bf16 %v4240, %v4580
        %v4589 = vmul.bf16 %v4241, %v4580
        %v4590 = vmul.bf16 %v4242, %v4580
        %v4591 = vmul.bf16 %v4243, %v4580
        %v4592 = vmul.bf16 %v4244, %v4580
        %v4593 = vmul.bf16 %v4245, %v4580
        %v4594 = vmul.bf16 %v4246, %v4580
        %v4595 = vmul.bf16 %v4247, %v4580
        %v4596 = vmul.bf16 %v4248, %v4580
        %v4597 = vmul.bf16 %v4249, %v4580
        %v4598 = vmul.bf16 %v4250, %v4580
        %v4599 = vmul.bf16 %v4251, %v4580
        %v4600 = vmul.bf16 %v4252, %v4580
        %v4601 = vmul.bf16 %v4253, %v4580
        %v4602 = vmul.bf16 %v4254, %v4580
        %v4603 = vmul.bf16 %v4255, %v4580
        %v4604 = vmul.bf16 %v4256, %v4580
        %v4605 = vmul.bf16 %v4257, %v4580
        %v4606 = vmul.bf16 %v4258, %v4580
        %v4607 = vmul.bf16 %v4259, %v4580
        %v4608 = vmul.bf16 %v4260, %v4580
        %v4609 = vmul.bf16 %v4261, %v4580
        %v4610 = vmul.bf16 %v4262, %v4580
        %v4611 = vmul.bf16 %v4263, %v4580
        %v4612 = vmul.bf16 %v4264, %v4580
        %v4613 = vmul.bf16 %v4265, %v4580
        %v4646 = vunpack.c.l.b16 %v4582
        %v4647 = vunpack.c.l.b16 %v4583
        %v4648 = vunpack.c.l.b16 %v4584
        %v4649 = vunpack.c.l.b16 %v4585
        %v4650 = vunpack.c.l.b16 %v4586
        %v4651 = vunpack.c.l.b16 %v4587
        %v4652 = vunpack.c.l.b16 %v4588
        %v4653 = vunpack.c.l.b16 %v4589
        %v4654 = vunpack.c.l.b16 %v4590
        %v4655 = vunpack.c.l.b16 %v4591
        %v4656 = vunpack.c.l.b16 %v4592
        %v4657 = vunpack.c.l.b16 %v4593
        %v4658 = vunpack.c.l.b16 %v4594
        %v4659 = vunpack.c.l.b16 %v4595
        %v4660 = vunpack.c.l.b16 %v4596
        %v4661 = vunpack.c.l.b16 %v4597
        %v4662 = vunpack.c.l.b16 %v4598
        %v4663 = vunpack.c.l.b16 %v4599
        %v4664 = vunpack.c.l.b16 %v4600
        %v4665 = vunpack.c.l.b16 %v4601
        %v4666 = vunpack.c.l.b16 %v4602
        %v4667 = vunpack.c.l.b16 %v4603
        %v4668 = vunpack.c.l.b16 %v4604
        %v4669 = vunpack.c.l.b16 %v4605
        %v4670 = vunpack.c.l.b16 %v4606
        %v4671 = vunpack.c.l.b16 %v4607
        %v4672 = vunpack.c.l.b16 %v4608
        %v4673 = vunpack.c.l.b16 %v4609
        %v4674 = vunpack.c.l.b16 %v4610
        %v4675 = vunpack.c.l.b16 %v4611
        %v4676 = vunpack.c.l.b16 %v4612
        %v4677 = vunpack.c.l.b16 %v4613
        %v4678 = vpack.c.b16 %v4646, %v4646
        %v4679 = vpack.c.b16 %v4647, %v4647
        %v4680 = vpack.c.b16 %v4648, %v4648
        %v4681 = vpack.c.b16 %v4649, %v4649
        %v4682 = vpack.c.b16 %v4650, %v4650
        %v4683 = vpack.c.b16 %v4651, %v4651
        %v4684 = vpack.c.b16 %v4652, %v4652
        %v4685 = vpack.c.b16 %v4653, %v4653
        %v4686 = vpack.c.b16 %v4654, %v4654
        %v4687 = vpack.c.b16 %v4655, %v4655
        %v4688 = vpack.c.b16 %v4656, %v4656
        %v4689 = vpack.c.b16 %v4657, %v4657
        %v4690 = vpack.c.b16 %v4658, %v4658
        %v4691 = vpack.c.b16 %v4659, %v4659
        %v4692 = vpack.c.b16 %v4660, %v4660
        %v4693 = vpack.c.b16 %v4661, %v4661
        %v4694 = vpack.c.b16 %v4662, %v4662
        %v4695 = vpack.c.b16 %v4663, %v4663
        %v4696 = vpack.c.b16 %v4664, %v4664
        %v4697 = vpack.c.b16 %v4665, %v4665
        %v4698 = vpack.c.b16 %v4666, %v4666
        %v4699 = vpack.c.b16 %v4667, %v4667
        %v4700 = vpack.c.b16 %v4668, %v4668
        %v4701 = vpack.c.b16 %v4669, %v4669
        %v4702 = vpack.c.b16 %v4670, %v4670
        %v4703 = vpack.c.b16 %v4671, %v4671
        %v4704 = vpack.c.b16 %v4672, %v4672
        %v4705 = vpack.c.b16 %v4673, %v4673
        %v4706 = vpack.c.b16 %v4674, %v4674
        %v4707 = vpack.c.b16 %v4675, %v4675
        %v4708 = vpack.c.b16 %v4676, %v4676
        %v4709 = vpack.c.b16 %v4677, %v4677
        %4742 = vst.msk [vmem:[%s487] sm:$0xf0] %vm505, %v4678
        %4743 = vst.msk [vmem:[%s487 + $0x8] sm:$0xf] %vm488, %v4679
        %4744 = vst.msk [vmem:[%s487 + $0x10] sm:$0xf0] %vm505, %v4680
        %4745 = vst.msk [vmem:[%s487 + $0x18] sm:$0xf] %vm488, %v4681
        %4746 = vst.msk [vmem:[%s487 + $0x20] sm:$0xf0] %vm505, %v4682
        %4747 = vst.msk [vmem:[%s487 + $0x28] sm:$0xf] %vm488, %v4683
        %4748 = vst.msk [vmem:[%s487 + $0x30] sm:$0xf0] %vm505, %v4684
        %4749 = vst.msk [vmem:[%s487 + $0x38] sm:$0xf] %vm488, %v4685
        %4750 = vst.msk [vmem:[%s487 + $0x40] sm:$0xf0] %vm505, %v4686
        %4751 = vst.msk [vmem:[%s487 + $0x48] sm:$0xf] %vm488, %v4687
        %4752 = vst.msk [vmem:[%s487 + $0x50] sm:$0xf0] %vm505, %v4688
        %4753 = vst.msk [vmem:[%s487 + $0x58] sm:$0xf] %vm488, %v4689
        %4754 = vst.msk [vmem:[%s487 + $0x60] sm:$0xf0] %vm505, %v4690
        %4755 = vst.msk [vmem:[%s487 + $0x68] sm:$0xf] %vm488, %v4691
        %4756 = vst.msk [vmem:[%s487 + $0x70] sm:$0xf0] %vm505, %v4692
        %4757 = vst.msk [vmem:[%s487 + $0x78] sm:$0xf] %vm488, %v4693
        %4758 = vst.msk [vmem:[%s487 + $0x80] sm:$0xf0] %vm505, %v4694
        %4759 = vst.msk [vmem:[%s487 + $0x88] sm:$0xf] %vm488, %v4695
        %4760 = vst.msk [vmem:[%s487 + $0x90] sm:$0xf0] %vm505, %v4696
        %4761 = vst.msk [vmem:[%s487 + $0x98] sm:$0xf] %vm488, %v4697
        %4762 = vst.msk [vmem:[%s487 + $0xa0] sm:$0xf0] %vm505, %v4698
        %4763 = vst.msk [vmem:[%s487 + $0xa8] sm:$0xf] %vm488, %v4699
        %4764 = vst.msk [vmem:[%s487 + $0xb0] sm:$0xf0] %vm505, %v4700
        %4765 = vst.msk [vmem:[%s487 + $0xb8] sm:$0xf] %vm488, %v4701
        %4766 = vst.msk [vmem:[%s487 + $0xc0] sm:$0xf0] %vm505, %v4702
        %4767 = vst.msk [vmem:[%s487 + $0xc8] sm:$0xf] %vm488, %v4703
        %4768 = vst.msk [vmem:[%s487 + $0xd0] sm:$0xf0] %vm505, %v4704
        %4769 = vst.msk [vmem:[%s487 + $0xd8] sm:$0xf] %vm488, %v4705
        %4770 = vst.msk [vmem:[%s487 + $0xe0] sm:$0xf0] %vm505, %v4706
        %4771 = vst.msk [vmem:[%s487 + $0xe8] sm:$0xf] %vm488, %v4707
        %4772 = vst.msk [vmem:[%s487 + $0xf0] sm:$0xf0] %vm505, %v4708
        %4773 = vst.msk [vmem:[%s487 + $0xf8] sm:$0xf] %vm488, %v4709
        %v4774 = vld [vmem:[#allocation2] sm:$0xf8]
        %v4775 = vld [vmem:[#allocation2 + $0x8] sm:$0xf]
        %v4776 = vld [vmem:[#allocation2 + $0x10] sm:$0xf8]
        %v4777 = vld [vmem:[#allocation2 + $0x18] sm:$0xf]
        %v4778 = vld [vmem:[#allocation2 + $0x20] sm:$0xf8]
        %v4779 = vld [vmem:[#allocation2 + $0x28] sm:$0xf]
        %v4780 = vld [vmem:[#allocation2 + $0x30] sm:$0xf8]
        %v4781 = vld [vmem:[#allocation2 + $0x38] sm:$0xf]
        %v4782 = vld [vmem:[#allocation2 + $0x40] sm:$0xf8]
        %v4783 = vld [vmem:[#allocation2 + $0x48] sm:$0xf]
        %v4784 = vld [vmem:[#allocation2 + $0x50] sm:$0xf8]
        %v4785 = vld [vmem:[#allocation2 + $0x58] sm:$0xf]
        %v4786 = vld [vmem:[#allocation2 + $0x60] sm:$0xf8]
        %v4787 = vld [vmem:[#allocation2 + $0x68] sm:$0xf]
        %v4788 = vld [vmem:[#allocation2 + $0x70] sm:$0xf8]
        %v4789 = vld [vmem:[#allocation2 + $0x78] sm:$0xf]
        %v4790 = vld [vmem:[#allocation2 + $0x80] sm:$0xf8]
        %v4791 = vld [vmem:[#allocation2 + $0x88] sm:$0xf]
        %v4792 = vld [vmem:[#allocation2 + $0x90] sm:$0xf8]
        %v4793 = vld [vmem:[#allocation2 + $0x98] sm:$0xf]
        %v4794 = vld [vmem:[#allocation2 + $0xa0] sm:$0xf8]
        %v4795 = vld [vmem:[#allocation2 + $0xa8] sm:$0xf]
        %v4796 = vld [vmem:[#allocation2 + $0xb0] sm:$0xf8]
        %v4797 = vld [vmem:[#allocation2 + $0xb8] sm:$0xf]
        %v4798 = vld [vmem:[#allocation2 + $0xc0] sm:$0xf8]
        %v4799 = vld [vmem:[#allocation2 + $0xc8] sm:$0xf]
        %v4800 = vld [vmem:[#allocation2 + $0xd0] sm:$0xf8]
        %v4801 = vld [vmem:[#allocation2 + $0xd8] sm:$0xf]
        %v4802 = vld [vmem:[#allocation2 + $0xe0] sm:$0xf8]
        %v4803 = vld [vmem:[#allocation2 + $0xe8] sm:$0xf]
        %v4804 = vld [vmem:[#allocation2 + $0xf0] sm:$0xf8]
        %v4805 = vld [vmem:[#allocation2 + $0xf8] sm:$0xf]
        %v4807 = vshrl.u32 %v4774, 16
        %v4809 = vrot.slane %v4807, 3
        %v4810 = vshll.u32 %v4774, 16
        %v4812 = vrot.slane %v4810, 4
        %v4813 = vor.u32 %v4809, %v4812
        %v4815 = vshrl.u32 %v4775, 16
        %v4817 = vrot.slane %v4815, 3
        %v4818 = vshll.u32 %v4775, 16
        %v4820 = vrot.slane %v4818, 4
        %v4821 = vor.u32 %v4817, %v4820
        %v4822 = vsel %vm1092, %v4813, %v4821
        %v4824 = vshrl.u32 %v4776, 16
        %v4826 = vrot.slane %v4824, 3
        %v4827 = vshll.u32 %v4776, 16
        %v4829 = vrot.slane %v4827, 4
        %v4830 = vor.u32 %v4826, %v4829
        %v4832 = vshrl.u32 %v4777, 16
        %v4834 = vrot.slane %v4832, 3
        %v4835 = vshll.u32 %v4777, 16
        %v4837 = vrot.slane %v4835, 4
        %v4838 = vor.u32 %v4834, %v4837
        %v4839 = vsel %vm1092, %v4830, %v4838
        %v4841 = vshrl.u32 %v4778, 16
        %v4843 = vrot.slane %v4841, 3
        %v4844 = vshll.u32 %v4778, 16
        %v4846 = vrot.slane %v4844, 4
        %v4847 = vor.u32 %v4843, %v4846
        %v4849 = vshrl.u32 %v4779, 16
        %v4851 = vrot.slane %v4849, 3
        %v4852 = vshll.u32 %v4779, 16
        %v4854 = vrot.slane %v4852, 4
        %v4855 = vor.u32 %v4851, %v4854
        %v4856 = vsel %vm1092, %v4847, %v4855
        %v4858 = vshrl.u32 %v4780, 16
        %v4860 = vrot.slane %v4858, 3
        %v4861 = vshll.u32 %v4780, 16
        %v4863 = vrot.slane %v4861, 4
        %v4864 = vor.u32 %v4860, %v4863
        %v4866 = vshrl.u32 %v4781, 16
        %v4868 = vrot.slane %v4866, 3
        %v4869 = vshll.u32 %v4781, 16
        %v4871 = vrot.slane %v4869, 4
        %v4872 = vor.u32 %v4868, %v4871
        %v4873 = vsel %vm1092, %v4864, %v4872
        %v4875 = vshrl.u32 %v4782, 16
        %v4877 = vrot.slane %v4875, 3
        %v4878 = vshll.u32 %v4782, 16
        %v4880 = vrot.slane %v4878, 4
        %v4881 = vor.u32 %v4877, %v4880
        %v4883 = vshrl.u32 %v4783, 16
        %v4885 = vrot.slane %v4883, 3
        %v4886 = vshll.u32 %v4783, 16
        %v4888 = vrot.slane %v4886, 4
        %v4889 = vor.u32 %v4885, %v4888
        %v4890 = vsel %vm1092, %v4881, %v4889
        %v4892 = vshrl.u32 %v4784, 16
        %v4894 = vrot.slane %v4892, 3
        %v4895 = vshll.u32 %v4784, 16
        %v4897 = vrot.slane %v4895, 4
        %v4898 = vor.u32 %v4894, %v4897
        %v4900 = vshrl.u32 %v4785, 16
        %v4902 = vrot.slane %v4900, 3
        %v4903 = vshll.u32 %v4785, 16
        %v4905 = vrot.slane %v4903, 4
        %v4906 = vor.u32 %v4902, %v4905
        %v4907 = vsel %vm1092, %v4898, %v4906
        %v4909 = vshrl.u32 %v4786, 16
        %v4911 = vrot.slane %v4909, 3
        %v4912 = vshll.u32 %v4786, 16
        %v4914 = vrot.slane %v4912, 4
        %v4915 = vor.u32 %v4911, %v4914
        %v4917 = vshrl.u32 %v4787, 16
        %v4919 = vrot.slane %v4917, 3
        %v4920 = vshll.u32 %v4787, 16
        %v4922 = vrot.slane %v4920, 4
        %v4923 = vor.u32 %v4919, %v4922
        %v4924 = vsel %vm1092, %v4915, %v4923
        %v4926 = vshrl.u32 %v4788, 16
        %v4928 = vrot.slane %v4926, 3
        %v4929 = vshll.u32 %v4788, 16
        %v4931 = vrot.slane %v4929, 4
        %v4932 = vor.u32 %v4928, %v4931
        %v4934 = vshrl.u32 %v4789, 16
        %v4936 = vrot.slane %v4934, 3
        %v4937 = vshll.u32 %v4789, 16
        %v4939 = vrot.slane %v4937, 4
        %v4940 = vor.u32 %v4936, %v4939
        %v4941 = vsel %vm1092, %v4932, %v4940
        %v4943 = vshrl.u32 %v4790, 16
        %v4945 = vrot.slane %v4943, 3
        %v4946 = vshll.u32 %v4790, 16
        %v4948 = vrot.slane %v4946, 4
        %v4949 = vor.u32 %v4945, %v4948
        %v4951 = vshrl.u32 %v4791, 16
        %v4953 = vrot.slane %v4951, 3
        %v4954 = vshll.u32 %v4791, 16
        %v4956 = vrot.slane %v4954, 4
        %v4957 = vor.u32 %v4953, %v4956
        %v4958 = vsel %vm1092, %v4949, %v4957
        %v4960 = vshrl.u32 %v4792, 16
        %v4962 = vrot.slane %v4960, 3
        %v4963 = vshll.u32 %v4792, 16
        %v4965 = vrot.slane %v4963, 4
        %v4966 = vor.u32 %v4962, %v4965
        %v4968 = vshrl.u32 %v4793, 16
        %v4970 = vrot.slane %v4968, 3
        %v4971 = vshll.u32 %v4793, 16
        %v4973 = vrot.slane %v4971, 4
        %v4974 = vor.u32 %v4970, %v4973
        %v4975 = vsel %vm1092, %v4966, %v4974
        %v4977 = vshrl.u32 %v4794, 16
        %v4979 = vrot.slane %v4977, 3
        %v4980 = vshll.u32 %v4794, 16
        %v4982 = vrot.slane %v4980, 4
        %v4983 = vor.u32 %v4979, %v4982
        %v4985 = vshrl.u32 %v4795, 16
        %v4987 = vrot.slane %v4985, 3
        %v4988 = vshll.u32 %v4795, 16
        %v4990 = vrot.slane %v4988, 4
        %v4991 = vor.u32 %v4987, %v4990
        %v4992 = vsel %vm1092, %v4983, %v4991
        %v4994 = vshrl.u32 %v4796, 16
        %v4996 = vrot.slane %v4994, 3
        %v4997 = vshll.u32 %v4796, 16
        %v4999 = vrot.slane %v4997, 4
        %v5000 = vor.u32 %v4996, %v4999
        %v5002 = vshrl.u32 %v4797, 16
        %v5004 = vrot.slane %v5002, 3
        %v5005 = vshll.u32 %v4797, 16
        %v5007 = vrot.slane %v5005, 4
        %v5008 = vor.u32 %v5004, %v5007
        %v5009 = vsel %vm1092, %v5000, %v5008
        %v5011 = vshrl.u32 %v4798, 16
        %v5013 = vrot.slane %v5011, 3
        %v5014 = vshll.u32 %v4798, 16
        %v5016 = vrot.slane %v5014, 4
        %v5017 = vor.u32 %v5013, %v5016
        %v5019 = vshrl.u32 %v4799, 16
        %v5021 = vrot.slane %v5019, 3
        %v5022 = vshll.u32 %v4799, 16
        %v5024 = vrot.slane %v5022, 4
        %v5025 = vor.u32 %v5021, %v5024
        %v5026 = vsel %vm1092, %v5017, %v5025
        %v5028 = vshrl.u32 %v4800, 16
        %v5030 = vrot.slane %v5028, 3
        %v5031 = vshll.u32 %v4800, 16
        %v5033 = vrot.slane %v5031, 4
        %v5034 = vor.u32 %v5030, %v5033
        %v5036 = vshrl.u32 %v4801, 16
        %v5038 = vrot.slane %v5036, 3
        %v5039 = vshll.u32 %v4801, 16
        %v5041 = vrot.slane %v5039, 4
        %v5042 = vor.u32 %v5038, %v5041
        %v5043 = vsel %vm1092, %v5034, %v5042
        %v5045 = vshrl.u32 %v4802, 16
        %v5047 = vrot.slane %v5045, 3
        %v5048 = vshll.u32 %v4802, 16
        %v5050 = vrot.slane %v5048, 4
        %v5051 = vor.u32 %v5047, %v5050
        %v5053 = vshrl.u32 %v4803, 16
        %v5055 = vrot.slane %v5053, 3
        %v5056 = vshll.u32 %v4803, 16
        %v5058 = vrot.slane %v5056, 4
        %v5059 = vor.u32 %v5055, %v5058
        %v5060 = vsel %vm1092, %v5051, %v5059
        %v5062 = vshrl.u32 %v4804, 16
        %v5064 = vrot.slane %v5062, 3
        %v5065 = vshll.u32 %v4804, 16
        %v5067 = vrot.slane %v5065, 4
        %v5068 = vor.u32 %v5064, %v5067
        %v5070 = vshrl.u32 %v4805, 16
        %v5072 = vrot.slane %v5070, 3
        %v5073 = vshll.u32 %v4805, 16
        %v5075 = vrot.slane %v5073, 4
        %v5076 = vor.u32 %v5072, %v5075
        %v5077 = vsel %vm1092, %v5068, %v5076
        %v5078 = vld [vmem:[#allocation2] sm:$0xf0]
        %v5079 = vld [vmem:[#allocation2 + $0x10] sm:$0xf0]
        %v5080 = vld [vmem:[#allocation2 + $0x20] sm:$0xf0]
        %v5081 = vld [vmem:[#allocation2 + $0x30] sm:$0xf0]
        %v5082 = vld [vmem:[#allocation2 + $0x40] sm:$0xf0]
        %v5083 = vld [vmem:[#allocation2 + $0x50] sm:$0xf0]
        %v5084 = vld [vmem:[#allocation2 + $0x60] sm:$0xf0]
        %v5085 = vld [vmem:[#allocation2 + $0x70] sm:$0xf0]
        %v5086 = vld [vmem:[#allocation2 + $0x80] sm:$0xf0]
        %v5087 = vld [vmem:[#allocation2 + $0x90] sm:$0xf0]
        %v5088 = vld [vmem:[#allocation2 + $0xa0] sm:$0xf0]
        %v5089 = vld [vmem:[#allocation2 + $0xb0] sm:$0xf0]
        %v5090 = vld [vmem:[#allocation2 + $0xc0] sm:$0xf0]
        %v5091 = vld [vmem:[#allocation2 + $0xd0] sm:$0xf0]
        %v5092 = vld [vmem:[#allocation2 + $0xe0] sm:$0xf0]
        %v5093 = vld [vmem:[#allocation2 + $0xf0] sm:$0xf0]
        %v5126 = vrot.slane %v5078, 4
        %v5127 = vrot.slane %v4775, 4
        %v5128 = vsel %vm1413, %v5126, %v5127
        %v5129 = vrot.slane %v5079, 4
        %v5130 = vrot.slane %v4777, 4
        %v5131 = vsel %vm1413, %v5129, %v5130
        %v5132 = vrot.slane %v5080, 4
        %v5133 = vrot.slane %v4779, 4
        %v5134 = vsel %vm1413, %v5132, %v5133
        %v5135 = vrot.slane %v5081, 4
        %v5136 = vrot.slane %v4781, 4
        %v5137 = vsel %vm1413, %v5135, %v5136
        %v5138 = vrot.slane %v5082, 4
        %v5139 = vrot.slane %v4783, 4
        %v5140 = vsel %vm1413, %v5138, %v5139
        %v5141 = vrot.slane %v5083, 4
        %v5142 = vrot.slane %v4785, 4
        %v5143 = vsel %vm1413, %v5141, %v5142
        %v5144 = vrot.slane %v5084, 4
        %v5145 = vrot.slane %v4787, 4
        %v5146 = vsel %vm1413, %v5144, %v5145
        %v5147 = vrot.slane %v5085, 4
        %v5148 = vrot.slane %v4789, 4
        %v5149 = vsel %vm1413, %v5147, %v5148
        %v5150 = vrot.slane %v5086, 4
        %v5151 = vrot.slane %v4791, 4
        %v5152 = vsel %vm1413, %v5150, %v5151
        %v5153 = vrot.slane %v5087, 4
        %v5154 = vrot.slane %v4793, 4
        %v5155 = vsel %vm1413, %v5153, %v5154
        %v5156 = vrot.slane %v5088, 4
        %v5157 = vrot.slane %v4795, 4
        %v5158 = vsel %vm1413, %v5156, %v5157
        %v5159 = vrot.slane %v5089, 4
        %v5160 = vrot.slane %v4797, 4
        %v5161 = vsel %vm1413, %v5159, %v5160
        %v5162 = vrot.slane %v5090, 4
        %v5163 = vrot.slane %v4799, 4
        %v5164 = vsel %vm1413, %v5162, %v5163
        %v5165 = vrot.slane %v5091, 4
        %v5166 = vrot.slane %v4801, 4
        %v5167 = vsel %vm1413, %v5165, %v5166
        %v5168 = vrot.slane %v5092, 4
        %v5169 = vrot.slane %v4803, 4
        %v5170 = vsel %vm1413, %v5168, %v5169
        %v5171 = vrot.slane %v5093, 4
        %v5172 = vrot.slane %v4805, 4
        %v5173 = vsel %vm1413, %v5171, %v5172
        %v5174 = vld [vmem:[#allocation2 + $0x8] sm:$0x1f]
        %v5175 = vld [vmem:[#allocation2 + $0x18] sm:$0x1f]
        %v5176 = vld [vmem:[#allocation2 + $0x28] sm:$0x1f]
        %v5177 = vld [vmem:[#allocation2 + $0x38] sm:$0x1f]
        %v5178 = vld [vmem:[#allocation2 + $0x48] sm:$0x1f]
        %v5179 = vld [vmem:[#allocation2 + $0x58] sm:$0x1f]
        %v5180 = vld [vmem:[#allocation2 + $0x68] sm:$0x1f]
        %v5181 = vld [vmem:[#allocation2 + $0x78] sm:$0x1f]
        %v5182 = vld [vmem:[#allocation2 + $0x88] sm:$0x1f]
        %v5183 = vld [vmem:[#allocation2 + $0x98] sm:$0x1f]
        %v5184 = vld [vmem:[#allocation2 + $0xa8] sm:$0x1f]
        %v5185 = vld [vmem:[#allocation2 + $0xb8] sm:$0x1f]
        %v5186 = vld [vmem:[#allocation2 + $0xc8] sm:$0x1f]
        %v5187 = vld [vmem:[#allocation2 + $0xd8] sm:$0x1f]
        %v5188 = vld [vmem:[#allocation2 + $0xe8] sm:$0x1f]
        %v5189 = vld [vmem:[#allocation2 + $0xf8] sm:$0x1f]
        %v5191 = vshrl.u32 %v5078, 16
        %v5193 = vrot.slane %v5191, 4
        %v5194 = vshll.u32 %v5078, 16
        %v5196 = vrot.slane %v5194, 5
        %v5197 = vor.u32 %v5193, %v5196
        %v5199 = vshrl.u32 %v5174, 16
        %v5201 = vrot.slane %v5199, 4
        %v5202 = vshll.u32 %v5174, 16
        %v5204 = vrot.slane %v5202, 5
        %v5205 = vor.u32 %v5201, %v5204
        %v5206 = vsel %vm1478, %v5197, %v5205
        %v5208 = vshrl.u32 %v5079, 16
        %v5210 = vrot.slane %v5208, 4
        %v5211 = vshll.u32 %v5079, 16
        %v5213 = vrot.slane %v5211, 5
        %v5214 = vor.u32 %v5210, %v5213
        %v5216 = vshrl.u32 %v5175, 16
        %v5218 = vrot.slane %v5216, 4
        %v5219 = vshll.u32 %v5175, 16
        %v5221 = vrot.slane %v5219, 5
        %v5222 = vor.u32 %v5218, %v5221
        %v5223 = vsel %vm1478, %v5214, %v5222
        %v5225 = vshrl.u32 %v5080, 16
        %v5227 = vrot.slane %v5225, 4
        %v5228 = vshll.u32 %v5080, 16
        %v5230 = vrot.slane %v5228, 5
        %v5231 = vor.u32 %v5227, %v5230
        %v5233 = vshrl.u32 %v5176, 16
        %v5235 = vrot.slane %v5233, 4
        %v5236 = vshll.u32 %v5176, 16
        %v5238 = vrot.slane %v5236, 5
        %v5239 = vor.u32 %v5235, %v5238
        %v5240 = vsel %vm1478, %v5231, %v5239
        %v5242 = vshrl.u32 %v5081, 16
        %v5244 = vrot.slane %v5242, 4
        %v5245 = vshll.u32 %v5081, 16
        %v5247 = vrot.slane %v5245, 5
        %v5248 = vor.u32 %v5244, %v5247
        %v5250 = vshrl.u32 %v5177, 16
        %v5252 = vrot.slane %v5250, 4
        %v5253 = vshll.u32 %v5177, 16
        %v5255 = vrot.slane %v5253, 5
        %v5256 = vor.u32 %v5252, %v5255
        %v5257 = vsel %vm1478, %v5248, %v5256
        %v5259 = vshrl.u32 %v5082, 16
        %v5261 = vrot.slane %v5259, 4
        %v5262 = vshll.u32 %v5082, 16
        %v5264 = vrot.slane %v5262, 5
        %v5265 = vor.u32 %v5261, %v5264
        %v5267 = vshrl.u32 %v5178, 16
        %v5269 = vrot.slane %v5267, 4
        %v5270 = vshll.u32 %v5178, 16
        %v5272 = vrot.slane %v5270, 5
        %v5273 = vor.u32 %v5269, %v5272
        %v5274 = vsel %vm1478, %v5265, %v5273
        %v5276 = vshrl.u32 %v5083, 16
        %v5278 = vrot.slane %v5276, 4
        %v5279 = vshll.u32 %v5083, 16
        %v5281 = vrot.slane %v5279, 5
        %v5282 = vor.u32 %v5278, %v5281
        %v5284 = vshrl.u32 %v5179, 16
        %v5286 = vrot.slane %v5284, 4
        %v5287 = vshll.u32 %v5179, 16
        %v5289 = vrot.slane %v5287, 5
        %v5290 = vor.u32 %v5286, %v5289
        %v5291 = vsel %vm1478, %v5282, %v5290
        %v5293 = vshrl.u32 %v5084, 16
        %v5295 = vrot.slane %v5293, 4
        %v5296 = vshll.u32 %v5084, 16
        %v5298 = vrot.slane %v5296, 5
        %v5299 = vor.u32 %v5295, %v5298
        %v5301 = vshrl.u32 %v5180, 16
        %v5303 = vrot.slane %v5301, 4
        %v5304 = vshll.u32 %v5180, 16
        %v5306 = vrot.slane %v5304, 5
        %v5307 = vor.u32 %v5303, %v5306
        %v5308 = vsel %vm1478, %v5299, %v5307
        %v5310 = vshrl.u32 %v5085, 16
        %v5312 = vrot.slane %v5310, 4
        %v5313 = vshll.u32 %v5085, 16
        %v5315 = vrot.slane %v5313, 5
        %v5316 = vor.u32 %v5312, %v5315
        %v5318 = vshrl.u32 %v5181, 16
        %v5320 = vrot.slane %v5318, 4
        %v5321 = vshll.u32 %v5181, 16
        %v5323 = vrot.slane %v5321, 5
        %v5324 = vor.u32 %v5320, %v5323
        %v5325 = vsel %vm1478, %v5316, %v5324
        %v5327 = vshrl.u32 %v5086, 16
        %v5329 = vrot.slane %v5327, 4
        %v5330 = vshll.u32 %v5086, 16
        %v5332 = vrot.slane %v5330, 5
        %v5333 = vor.u32 %v5329, %v5332
        %v5335 = vshrl.u32 %v5182, 16
        %v5337 = vrot.slane %v5335, 4
        %v5338 = vshll.u32 %v5182, 16
        %v5340 = vrot.slane %v5338, 5
        %v5341 = vor.u32 %v5337, %v5340
        %v5342 = vsel %vm1478, %v5333, %v5341
        %v5344 = vshrl.u32 %v5087, 16
        %v5346 = vrot.slane %v5344, 4
        %v5347 = vshll.u32 %v5087, 16
        %v5349 = vrot.slane %v5347, 5
        %v5350 = vor.u32 %v5346, %v5349
        %v5352 = vshrl.u32 %v5183, 16
        %v5354 = vrot.slane %v5352, 4
        %v5355 = vshll.u32 %v5183, 16
        %v5357 = vrot.slane %v5355, 5
        %v5358 = vor.u32 %v5354, %v5357
        %v5359 = vsel %vm1478, %v5350, %v5358
        %v5361 = vshrl.u32 %v5088, 16
        %v5363 = vrot.slane %v5361, 4
        %v5364 = vshll.u32 %v5088, 16
        %v5366 = vrot.slane %v5364, 5
        %v5367 = vor.u32 %v5363, %v5366
        %v5369 = vshrl.u32 %v5184, 16
        %v5371 = vrot.slane %v5369, 4
        %v5372 = vshll.u32 %v5184, 16
        %v5374 = vrot.slane %v5372, 5
        %v5375 = vor.u32 %v5371, %v5374
        %v5376 = vsel %vm1478, %v5367, %v5375
        %v5378 = vshrl.u32 %v5089, 16
        %v5380 = vrot.slane %v5378, 4
        %v5381 = vshll.u32 %v5089, 16
        %v5383 = vrot.slane %v5381, 5
        %v5384 = vor.u32 %v5380, %v5383
        %v5386 = vshrl.u32 %v5185, 16
        %v5388 = vrot.slane %v5386, 4
        %v5389 = vshll.u32 %v5185, 16
        %v5391 = vrot.slane %v5389, 5
        %v5392 = vor.u32 %v5388, %v5391
        %v5393 = vsel %vm1478, %v5384, %v5392
        %v5395 = vshrl.u32 %v5090, 16
        %v5397 = vrot.slane %v5395, 4
        %v5398 = vshll.u32 %v5090, 16
        %v5400 = vrot.slane %v5398, 5
        %v5401 = vor.u32 %v5397, %v5400
        %v5403 = vshrl.u32 %v5186, 16
        %v5405 = vrot.slane %v5403, 4
        %v5406 = vshll.u32 %v5186, 16
        %v5408 = vrot.slane %v5406, 5
        %v5409 = vor.u32 %v5405, %v5408
        %v5410 = vsel %vm1478, %v5401, %v5409
        %v5412 = vshrl.u32 %v5091, 16
        %v5414 = vrot.slane %v5412, 4
        %v5415 = vshll.u32 %v5091, 16
        %v5417 = vrot.slane %v5415, 5
        %v5418 = vor.u32 %v5414, %v5417
        %v5420 = vshrl.u32 %v5187, 16
        %v5422 = vrot.slane %v5420, 4
        %v5423 = vshll.u32 %v5187, 16
        %v5425 = vrot.slane %v5423, 5
        %v5426 = vor.u32 %v5422, %v5425
        %v5427 = vsel %vm1478, %v5418, %v5426
        %v5429 = vshrl.u32 %v5092, 16
        %v5431 = vrot.slane %v5429, 4
        %v5432 = vshll.u32 %v5092, 16
        %v5434 = vrot.slane %v5432, 5
        %v5435 = vor.u32 %v5431, %v5434
        %v5437 = vshrl.u32 %v5188, 16
        %v5439 = vrot.slane %v5437, 4
        %v5440 = vshll.u32 %v5188, 16
        %v5442 = vrot.slane %v5440, 5
        %v5443 = vor.u32 %v5439, %v5442
        %v5444 = vsel %vm1478, %v5435, %v5443
        %v5446 = vshrl.u32 %v5093, 16
        %v5448 = vrot.slane %v5446, 4
        %v5449 = vshll.u32 %v5093, 16
        %v5451 = vrot.slane %v5449, 5
        %v5452 = vor.u32 %v5448, %v5451
        %v5454 = vshrl.u32 %v5189, 16
        %v5456 = vrot.slane %v5454, 4
        %v5457 = vshll.u32 %v5189, 16
        %v5459 = vrot.slane %v5457, 5
        %v5460 = vor.u32 %v5456, %v5459
        %v5461 = vsel %vm1478, %v5452, %v5460
        %v5462 = vld [vmem:[%s487] sm:$0xf8]
        %v5463 = vld [vmem:[%s487 + $0x8] sm:$0xf]
        %v5464 = vld [vmem:[%s487 + $0x10] sm:$0xf8]
        %v5465 = vld [vmem:[%s487 + $0x18] sm:$0xf]
        %v5466 = vld [vmem:[%s487 + $0x20] sm:$0xf8]
        %v5467 = vld [vmem:[%s487 + $0x28] sm:$0xf]
        %v5468 = vld [vmem:[%s487 + $0x30] sm:$0xf8]
        %v5469 = vld [vmem:[%s487 + $0x38] sm:$0xf]
        %v5470 = vld [vmem:[%s487 + $0x40] sm:$0xf8]
        %v5471 = vld [vmem:[%s487 + $0x48] sm:$0xf]
        %v5472 = vld [vmem:[%s487 + $0x50] sm:$0xf8]
        %v5473 = vld [vmem:[%s487 + $0x58] sm:$0xf]
        %v5474 = vld [vmem:[%s487 + $0x60] sm:$0xf8]
        %v5475 = vld [vmem:[%s487 + $0x68] sm:$0xf]
        %v5476 = vld [vmem:[%s487 + $0x70] sm:$0xf8]
        %v5477 = vld [vmem:[%s487 + $0x78] sm:$0xf]
        %v5478 = vld [vmem:[%s487 + $0x80] sm:$0xf8]
        %v5479 = vld [vmem:[%s487 + $0x88] sm:$0xf]
        %v5480 = vld [vmem:[%s487 + $0x90] sm:$0xf8]
        %v5481 = vld [vmem:[%s487 + $0x98] sm:$0xf]
        %v5482 = vld [vmem:[%s487 + $0xa0] sm:$0xf8]
        %v5483 = vld [vmem:[%s487 + $0xa8] sm:$0xf]
        %v5484 = vld [vmem:[%s487 + $0xb0] sm:$0xf8]
        %v5485 = vld [vmem:[%s487 + $0xb8] sm:$0xf]
        %v5486 = vld [vmem:[%s487 + $0xc0] sm:$0xf8]
        %v5487 = vld [vmem:[%s487 + $0xc8] sm:$0xf]
        %v5488 = vld [vmem:[%s487 + $0xd0] sm:$0xf8]
        %v5489 = vld [vmem:[%s487 + $0xd8] sm:$0xf]
        %v5490 = vld [vmem:[%s487 + $0xe0] sm:$0xf8]
        %v5491 = vld [vmem:[%s487 + $0xe8] sm:$0xf]
        %v5492 = vld [vmem:[%s487 + $0xf0] sm:$0xf8]
        %v5493 = vld [vmem:[%s487 + $0xf8] sm:$0xf]
        %v5495 = vshrl.u32 %v5462, 16
        %v5497 = vrot.slane %v5495, 3
        %v5498 = vshll.u32 %v5462, 16
        %v5500 = vrot.slane %v5498, 4
        %v5501 = vor.u32 %v5497, %v5500
        %v5503 = vshrl.u32 %v5463, 16
        %v5505 = vrot.slane %v5503, 3
        %v5506 = vshll.u32 %v5463, 16
        %v5508 = vrot.slane %v5506, 4
        %v5509 = vor.u32 %v5505, %v5508
        %v5510 = vsel %vm1092, %v5501, %v5509
        %v5512 = vshrl.u32 %v5464, 16
        %v5514 = vrot.slane %v5512, 3
        %v5515 = vshll.u32 %v5464, 16
        %v5517 = vrot.slane %v5515, 4
        %v5518 = vor.u32 %v5514, %v5517
        %v5520 = vshrl.u32 %v5465, 16
        %v5522 = vrot.slane %v5520, 3
        %v5523 = vshll.u32 %v5465, 16
        %v5525 = vrot.slane %v5523, 4
        %v5526 = vor.u32 %v5522, %v5525
        %v5527 = vsel %vm1092, %v5518, %v5526
        %v5529 = vshrl.u32 %v5466, 16
        %v5531 = vrot.slane %v5529, 3
        %v5532 = vshll.u32 %v5466, 16
        %v5534 = vrot.slane %v5532, 4
        %v5535 = vor.u32 %v5531, %v5534
        %v5537 = vshrl.u32 %v5467, 16
        %v5539 = vrot.slane %v5537, 3
        %v5540 = vshll.u32 %v5467, 16
        %v5542 = vrot.slane %v5540, 4
        %v5543 = vor.u32 %v5539, %v5542
        %v5544 = vsel %vm1092, %v5535, %v5543
        %v5546 = vshrl.u32 %v5468, 16
        %v5548 = vrot.slane %v5546, 3
        %v5549 = vshll.u32 %v5468, 16
        %v5551 = vrot.slane %v5549, 4
        %v5552 = vor.u32 %v5548, %v5551
        %v5554 = vshrl.u32 %v5469, 16
        %v5556 = vrot.slane %v5554, 3
        %v5557 = vshll.u32 %v5469, 16
        %v5559 = vrot.slane %v5557, 4
        %v5560 = vor.u32 %v5556, %v5559
        %v5561 = vsel %vm1092, %v5552, %v5560
        %v5563 = vshrl.u32 %v5470, 16
        %v5565 = vrot.slane %v5563, 3
        %v5566 = vshll.u32 %v5470, 16
        %v5568 = vrot.slane %v5566, 4
        %v5569 = vor.u32 %v5565, %v5568
        %v5571 = vshrl.u32 %v5471, 16
        %v5573 = vrot.slane %v5571, 3
        %v5574 = vshll.u32 %v5471, 16
        %v5576 = vrot.slane %v5574, 4
        %v5577 = vor.u32 %v5573, %v5576
        %v5578 = vsel %vm1092, %v5569, %v5577
        %v5580 = vshrl.u32 %v5472, 16
        %v5582 = vrot.slane %v5580, 3
        %v5583 = vshll.u32 %v5472, 16
        %v5585 = vrot.slane %v5583, 4
        %v5586 = vor.u32 %v5582, %v5585
        %v5588 = vshrl.u32 %v5473, 16
        %v5590 = vrot.slane %v5588, 3
        %v5591 = vshll.u32 %v5473, 16
        %v5593 = vrot.slane %v5591, 4
        %v5594 = vor.u32 %v5590, %v5593
        %v5595 = vsel %vm1092, %v5586, %v5594
        %v5597 = vshrl.u32 %v5474, 16
        %v5599 = vrot.slane %v5597, 3
        %v5600 = vshll.u32 %v5474, 16
        %v5602 = vrot.slane %v5600, 4
        %v5603 = vor.u32 %v5599, %v5602
        %v5605 = vshrl.u32 %v5475, 16
        %v5607 = vrot.slane %v5605, 3
        %v5608 = vshll.u32 %v5475, 16
        %v5610 = vrot.slane %v5608, 4
        %v5611 = vor.u32 %v5607, %v5610
        %v5612 = vsel %vm1092, %v5603, %v5611
        %v5614 = vshrl.u32 %v5476, 16
        %v5616 = vrot.slane %v5614, 3
        %v5617 = vshll.u32 %v5476, 16
        %v5619 = vrot.slane %v5617, 4
        %v5620 = vor.u32 %v5616, %v5619
        %v5622 = vshrl.u32 %v5477, 16
        %v5624 = vrot.slane %v5622, 3
        %v5625 = vshll.u32 %v5477, 16
        %v5627 = vrot.slane %v5625, 4
        %v5628 = vor.u32 %v5624, %v5627
        %v5629 = vsel %vm1092, %v5620, %v5628
        %v5631 = vshrl.u32 %v5478, 16
        %v5633 = vrot.slane %v5631, 3
        %v5634 = vshll.u32 %v5478, 16
        %v5636 = vrot.slane %v5634, 4
        %v5637 = vor.u32 %v5633, %v5636
        %v5639 = vshrl.u32 %v5479, 16
        %v5641 = vrot.slane %v5639, 3
        %v5642 = vshll.u32 %v5479, 16
        %v5644 = vrot.slane %v5642, 4
        %v5645 = vor.u32 %v5641, %v5644
        %v5646 = vsel %vm1092, %v5637, %v5645
        %v5648 = vshrl.u32 %v5480, 16
        %v5650 = vrot.slane %v5648, 3
        %v5651 = vshll.u32 %v5480, 16
        %v5653 = vrot.slane %v5651, 4
        %v5654 = vor.u32 %v5650, %v5653
        %v5656 = vshrl.u32 %v5481, 16
        %v5658 = vrot.slane %v5656, 3
        %v5659 = vshll.u32 %v5481, 16
        %v5661 = vrot.slane %v5659, 4
        %v5662 = vor.u32 %v5658, %v5661
        %v5663 = vsel %vm1092, %v5654, %v5662
        %v5665 = vshrl.u32 %v5482, 16
        %v5667 = vrot.slane %v5665, 3
        %v5668 = vshll.u32 %v5482, 16
        %v5670 = vrot.slane %v5668, 4
        %v5671 = vor.u32 %v5667, %v5670
        %v5673 = vshrl.u32 %v5483, 16
        %v5675 = vrot.slane %v5673, 3
        %v5676 = vshll.u32 %v5483, 16
        %v5678 = vrot.slane %v5676, 4
        %v5679 = vor.u32 %v5675, %v5678
        %v5680 = vsel %vm1092, %v5671, %v5679
        %v5682 = vshrl.u32 %v5484, 16
        %v5684 = vrot.slane %v5682, 3
        %v5685 = vshll.u32 %v5484, 16
        %v5687 = vrot.slane %v5685, 4
        %v5688 = vor.u32 %v5684, %v5687
        %v5690 = vshrl.u32 %v5485, 16
        %v5692 = vrot.slane %v5690, 3
        %v5693 = vshll.u32 %v5485, 16
        %v5695 = vrot.slane %v5693, 4
        %v5696 = vor.u32 %v5692, %v5695
        %v5697 = vsel %vm1092, %v5688, %v5696
        %v5699 = vshrl.u32 %v5486, 16
        %v5701 = vrot.slane %v5699, 3
        %v5702 = vshll.u32 %v5486, 16
        %v5704 = vrot.slane %v5702, 4
        %v5705 = vor.u32 %v5701, %v5704
        %v5707 = vshrl.u32 %v5487, 16
        %v5709 = vrot.slane %v5707, 3
        %v5710 = vshll.u32 %v5487, 16
        %v5712 = vrot.slane %v5710, 4
        %v5713 = vor.u32 %v5709, %v5712
        %v5714 = vsel %vm1092, %v5705, %v5713
        %v5716 = vshrl.u32 %v5488, 16
        %v5718 = vrot.slane %v5716, 3
        %v5719 = vshll.u32 %v5488, 16
        %v5721 = vrot.slane %v5719, 4
        %v5722 = vor.u32 %v5718, %v5721
        %v5724 = vshrl.u32 %v5489, 16
        %v5726 = vrot.slane %v5724, 3
        %v5727 = vshll.u32 %v5489, 16
        %v5729 = vrot.slane %v5727, 4
        %v5730 = vor.u32 %v5726, %v5729
        %v5731 = vsel %vm1092, %v5722, %v5730
        %v5733 = vshrl.u32 %v5490, 16
        %v5735 = vrot.slane %v5733, 3
        %v5736 = vshll.u32 %v5490, 16
        %v5738 = vrot.slane %v5736, 4
        %v5739 = vor.u32 %v5735, %v5738
        %v5741 = vshrl.u32 %v5491, 16
        %v5743 = vrot.slane %v5741, 3
        %v5744 = vshll.u32 %v5491, 16
        %v5746 = vrot.slane %v5744, 4
        %v5747 = vor.u32 %v5743, %v5746
        %v5748 = vsel %vm1092, %v5739, %v5747
        %v5750 = vshrl.u32 %v5492, 16
        %v5752 = vrot.slane %v5750, 3
        %v5753 = vshll.u32 %v5492, 16
        %v5755 = vrot.slane %v5753, 4
        %v5756 = vor.u32 %v5752, %v5755
        %v5758 = vshrl.u32 %v5493, 16
        %v5760 = vrot.slane %v5758, 3
        %v5761 = vshll.u32 %v5493, 16
        %v5763 = vrot.slane %v5761, 4
        %v5764 = vor.u32 %v5760, %v5763
        %v5765 = vsel %vm1092, %v5756, %v5764
        %v5766 = vld [vmem:[%s487] sm:$0xf0]
        %v5767 = vld [vmem:[%s487 + $0x10] sm:$0xf0]
        %v5768 = vld [vmem:[%s487 + $0x20] sm:$0xf0]
        %v5769 = vld [vmem:[%s487 + $0x30] sm:$0xf0]
        %v5770 = vld [vmem:[%s487 + $0x40] sm:$0xf0]
        %v5771 = vld [vmem:[%s487 + $0x50] sm:$0xf0]
        %v5772 = vld [vmem:[%s487 + $0x60] sm:$0xf0]
        %v5773 = vld [vmem:[%s487 + $0x70] sm:$0xf0]
        %v5774 = vld [vmem:[%s487 + $0x80] sm:$0xf0]
        %v5775 = vld [vmem:[%s487 + $0x90] sm:$0xf0]
        %v5776 = vld [vmem:[%s487 + $0xa0] sm:$0xf0]
        %v5777 = vld [vmem:[%s487 + $0xb0] sm:$0xf0]
        %v5778 = vld [vmem:[%s487 + $0xc0] sm:$0xf0]
        %v5779 = vld [vmem:[%s487 + $0xd0] sm:$0xf0]
        %v5780 = vld [vmem:[%s487 + $0xe0] sm:$0xf0]
        %v5781 = vld [vmem:[%s487 + $0xf0] sm:$0xf0]
        %v5814 = vrot.slane %v5766, 4
        %v5815 = vrot.slane %v5463, 4
        %v5816 = vsel %vm1413, %v5814, %v5815
        %v5817 = vrot.slane %v5767, 4
        %v5818 = vrot.slane %v5465, 4
        %v5819 = vsel %vm1413, %v5817, %v5818
        %v5820 = vrot.slane %v5768, 4
        %v5821 = vrot.slane %v5467, 4
        %v5822 = vsel %vm1413, %v5820, %v5821
        %v5823 = vrot.slane %v5769, 4
        %v5824 = vrot.slane %v5469, 4
        %v5825 = vsel %vm1413, %v5823, %v5824
        %v5826 = vrot.slane %v5770, 4
        %v5827 = vrot.slane %v5471, 4
        %v5828 = vsel %vm1413, %v5826, %v5827
        %v5829 = vrot.slane %v5771, 4
        %v5830 = vrot.slane %v5473, 4
        %v5831 = vsel %vm1413, %v5829, %v5830
        %v5832 = vrot.slane %v5772, 4
        %v5833 = vrot.slane %v5475, 4
        %v5834 = vsel %vm1413, %v5832, %v5833
        %v5835 = vrot.slane %v5773, 4
        %v5836 = vrot.slane %v5477, 4
        %v5837 = vsel %vm1413, %v5835, %v5836
        %v5838 = vrot.slane %v5774, 4
        %v5839 = vrot.slane %v5479, 4
        %v5840 = vsel %vm1413, %v5838, %v5839
        %v5841 = vrot.slane %v5775, 4
        %v5842 = vrot.slane %v5481, 4
        %v5843 = vsel %vm1413, %v5841, %v5842
        %v5844 = vrot.slane %v5776, 4
        %v5845 = vrot.slane %v5483, 4
        %v5846 = vsel %vm1413, %v5844, %v5845
        %v5847 = vrot.slane %v5777, 4
        %v5848 = vrot.slane %v5485, 4
        %v5849 = vsel %vm1413, %v5847, %v5848
        %v5850 = vrot.slane %v5778, 4
        %v5851 = vrot.slane %v5487, 4
        %v5852 = vsel %vm1413, %v5850, %v5851
        %v5853 = vrot.slane %v5779, 4
        %v5854 = vrot.slane %v5489, 4
        %v5855 = vsel %vm1413, %v5853, %v5854
        %v5856 = vrot.slane %v5780, 4
        %v5857 = vrot.slane %v5491, 4
        %v5858 = vsel %vm1413, %v5856, %v5857
        %v5859 = vrot.slane %v5781, 4
        %v5860 = vrot.slane %v5493, 4
        %v5861 = vsel %vm1413, %v5859, %v5860
        %v5862 = vld [vmem:[%s487 + $0x8] sm:$0x1f]
        %v5863 = vld [vmem:[%s487 + $0x18] sm:$0x1f]
        %v5864 = vld [vmem:[%s487 + $0x28] sm:$0x1f]
        %v5865 = vld [vmem:[%s487 + $0x38] sm:$0x1f]
        %v5866 = vld [vmem:[%s487 + $0x48] sm:$0x1f]
        %v5867 = vld [vmem:[%s487 + $0x58] sm:$0x1f]
        %v5868 = vld [vmem:[%s487 + $0x68] sm:$0x1f]
        %v5869 = vld [vmem:[%s487 + $0x78] sm:$0x1f]
        %v5870 = vld [vmem:[%s487 + $0x88] sm:$0x1f]
        %v5871 = vld [vmem:[%s487 + $0x98] sm:$0x1f]
        %v5872 = vld [vmem:[%s487 + $0xa8] sm:$0x1f]
        %v5873 = vld [vmem:[%s487 + $0xb8] sm:$0x1f]
        %v5874 = vld [vmem:[%s487 + $0xc8] sm:$0x1f]
        %v5875 = vld [vmem:[%s487 + $0xd8] sm:$0x1f]
        %v5876 = vld [vmem:[%s487 + $0xe8] sm:$0x1f]
        %v5877 = vld [vmem:[%s487 + $0xf8] sm:$0x1f]
        %v5879 = vshrl.u32 %v5766, 16
        %v5881 = vrot.slane %v5879, 4
        %v5882 = vshll.u32 %v5766, 16
        %v5884 = vrot.slane %v5882, 5
        %v5885 = vor.u32 %v5881, %v5884
        %v5887 = vshrl.u32 %v5862, 16
        %v5889 = vrot.slane %v5887, 4
        %v5890 = vshll.u32 %v5862, 16
        %v5892 = vrot.slane %v5890, 5
        %v5893 = vor.u32 %v5889, %v5892
        %v5894 = vsel %vm1478, %v5885, %v5893
        %v5896 = vshrl.u32 %v5767, 16
        %v5898 = vrot.slane %v5896, 4
        %v5899 = vshll.u32 %v5767, 16
        %v5901 = vrot.slane %v5899, 5
        %v5902 = vor.u32 %v5898, %v5901
        %v5904 = vshrl.u32 %v5863, 16
        %v5906 = vrot.slane %v5904, 4
        %v5907 = vshll.u32 %v5863, 16
        %v5909 = vrot.slane %v5907, 5
        %v5910 = vor.u32 %v5906, %v5909
        %v5911 = vsel %vm1478, %v5902, %v5910
        %v5913 = vshrl.u32 %v5768, 16
        %v5915 = vrot.slane %v5913, 4
        %v5916 = vshll.u32 %v5768, 16
        %v5918 = vrot.slane %v5916, 5
        %v5919 = vor.u32 %v5915, %v5918
        %v5921 = vshrl.u32 %v5864, 16
        %v5923 = vrot.slane %v5921, 4
        %v5924 = vshll.u32 %v5864, 16
        %v5926 = vrot.slane %v5924, 5
        %v5927 = vor.u32 %v5923, %v5926
        %v5928 = vsel %vm1478, %v5919, %v5927
        %v5930 = vshrl.u32 %v5769, 16
        %v5932 = vrot.slane %v5930, 4
        %v5933 = vshll.u32 %v5769, 16
        %v5935 = vrot.slane %v5933, 5
        %v5936 = vor.u32 %v5932, %v5935
        %v5938 = vshrl.u32 %v5865, 16
        %v5940 = vrot.slane %v5938, 4
        %v5941 = vshll.u32 %v5865, 16
        %v5943 = vrot.slane %v5941, 5
        %v5944 = vor.u32 %v5940, %v5943
        %v5945 = vsel %vm1478, %v5936, %v5944
        %v5947 = vshrl.u32 %v5770, 16
        %v5949 = vrot.slane %v5947, 4
        %v5950 = vshll.u32 %v5770, 16
        %v5952 = vrot.slane %v5950, 5
        %v5953 = vor.u32 %v5949, %v5952
        %v5955 = vshrl.u32 %v5866, 16
        %v5957 = vrot.slane %v5955, 4
        %v5958 = vshll.u32 %v5866, 16
        %v5960 = vrot.slane %v5958, 5
        %v5961 = vor.u32 %v5957, %v5960
        %v5962 = vsel %vm1478, %v5953, %v5961
        %v5964 = vshrl.u32 %v5771, 16
        %v5966 = vrot.slane %v5964, 4
        %v5967 = vshll.u32 %v5771, 16
        %v5969 = vrot.slane %v5967, 5
        %v5970 = vor.u32 %v5966, %v5969
        %v5972 = vshrl.u32 %v5867, 16
        %v5974 = vrot.slane %v5972, 4
        %v5975 = vshll.u32 %v5867, 16
        %v5977 = vrot.slane %v5975, 5
        %v5978 = vor.u32 %v5974, %v5977
        %v5979 = vsel %vm1478, %v5970, %v5978
        %v5981 = vshrl.u32 %v5772, 16
        %v5983 = vrot.slane %v5981, 4
        %v5984 = vshll.u32 %v5772, 16
        %v5986 = vrot.slane %v5984, 5
        %v5987 = vor.u32 %v5983, %v5986
        %v5989 = vshrl.u32 %v5868, 16
        %v5991 = vrot.slane %v5989, 4
        %v5992 = vshll.u32 %v5868, 16
        %v5994 = vrot.slane %v5992, 5
        %v5995 = vor.u32 %v5991, %v5994
        %v5996 = vsel %vm1478, %v5987, %v5995
        %v5998 = vshrl.u32 %v5773, 16
        %v6000 = vrot.slane %v5998, 4
        %v6001 = vshll.u32 %v5773, 16
        %v6003 = vrot.slane %v6001, 5
        %v6004 = vor.u32 %v6000, %v6003
        %v6006 = vshrl.u32 %v5869, 16
        %v6008 = vrot.slane %v6006, 4
        %v6009 = vshll.u32 %v5869, 16
        %v6011 = vrot.slane %v6009, 5
        %v6012 = vor.u32 %v6008, %v6011
        %v6013 = vsel %vm1478, %v6004, %v6012
        %v6015 = vshrl.u32 %v5774, 16
        %v6017 = vrot.slane %v6015, 4
        %v6018 = vshll.u32 %v5774, 16
        %v6020 = vrot.slane %v6018, 5
        %v6021 = vor.u32 %v6017, %v6020
        %v6023 = vshrl.u32 %v5870, 16
        %v6025 = vrot.slane %v6023, 4
        %v6026 = vshll.u32 %v5870, 16
        %v6028 = vrot.slane %v6026, 5
        %v6029 = vor.u32 %v6025, %v6028
        %v6030 = vsel %vm1478, %v6021, %v6029
        %v6032 = vshrl.u32 %v5775, 16
        %v6034 = vrot.slane %v6032, 4
        %v6035 = vshll.u32 %v5775, 16
        %v6037 = vrot.slane %v6035, 5
        %v6038 = vor.u32 %v6034, %v6037
        %v6040 = vshrl.u32 %v5871, 16
        %v6042 = vrot.slane %v6040, 4
        %v6043 = vshll.u32 %v5871, 16
        %v6045 = vrot.slane %v6043, 5
        %v6046 = vor.u32 %v6042, %v6045
        %v6047 = vsel %vm1478, %v6038, %v6046
        %v6049 = vshrl.u32 %v5776, 16
        %v6051 = vrot.slane %v6049, 4
        %v6052 = vshll.u32 %v5776, 16
        %v6054 = vrot.slane %v6052, 5
        %v6055 = vor.u32 %v6051, %v6054
        %v6057 = vshrl.u32 %v5872, 16
        %v6059 = vrot.slane %v6057, 4
        %v6060 = vshll.u32 %v5872, 16
        %v6062 = vrot.slane %v6060, 5
        %v6063 = vor.u32 %v6059, %v6062
        %v6064 = vsel %vm1478, %v6055, %v6063
        %v6066 = vshrl.u32 %v5777, 16
        %v6068 = vrot.slane %v6066, 4
        %v6069 = vshll.u32 %v5777, 16
        %v6071 = vrot.slane %v6069, 5
        %v6072 = vor.u32 %v6068, %v6071
        %v6074 = vshrl.u32 %v5873, 16
        %v6076 = vrot.slane %v6074, 4
        %v6077 = vshll.u32 %v5873, 16
        %v6079 = vrot.slane %v6077, 5
        %v6080 = vor.u32 %v6076, %v6079
        %v6081 = vsel %vm1478, %v6072, %v6080
        %v6083 = vshrl.u32 %v5778, 16
        %v6085 = vrot.slane %v6083, 4
        %v6086 = vshll.u32 %v5778, 16
        %v6088 = vrot.slane %v6086, 5
        %v6089 = vor.u32 %v6085, %v6088
        %v6091 = vshrl.u32 %v5874, 16
        %v6093 = vrot.slane %v6091, 4
        %v6094 = vshll.u32 %v5874, 16
        %v6096 = vrot.slane %v6094, 5
        %v6097 = vor.u32 %v6093, %v6096
        %v6098 = vsel %vm1478, %v6089, %v6097
        %v6100 = vshrl.u32 %v5779, 16
        %v6102 = vrot.slane %v6100, 4
        %v6103 = vshll.u32 %v5779, 16
        %v6105 = vrot.slane %v6103, 5
        %v6106 = vor.u32 %v6102, %v6105
        %v6108 = vshrl.u32 %v5875, 16
        %v6110 = vrot.slane %v6108, 4
        %v6111 = vshll.u32 %v5875, 16
        %v6113 = vrot.slane %v6111, 5
        %v6114 = vor.u32 %v6110, %v6113
        %v6115 = vsel %vm1478, %v6106, %v6114
        %v6117 = vshrl.u32 %v5780, 16
        %v6119 = vrot.slane %v6117, 4
        %v6120 = vshll.u32 %v5780, 16
        %v6122 = vrot.slane %v6120, 5
        %v6123 = vor.u32 %v6119, %v6122
        %v6125 = vshrl.u32 %v5876, 16
        %v6127 = vrot.slane %v6125, 4
        %v6128 = vshll.u32 %v5876, 16
        %v6130 = vrot.slane %v6128, 5
        %v6131 = vor.u32 %v6127, %v6130
        %v6132 = vsel %vm1478, %v6123, %v6131
        %v6134 = vshrl.u32 %v5781, 16
        %v6136 = vrot.slane %v6134, 4
        %v6137 = vshll.u32 %v5781, 16
        %v6139 = vrot.slane %v6137, 5
        %v6140 = vor.u32 %v6136, %v6139
        %v6142 = vshrl.u32 %v5877, 16
        %v6144 = vrot.slane %v6142, 4
        %v6145 = vshll.u32 %v5877, 16
        %v6147 = vrot.slane %v6145, 5
        %v6148 = vor.u32 %v6144, %v6147
        %v6149 = vsel %vm1478, %v6140, %v6148
        %v6150 = vld [vmem:[%s2439] sm:$0xf8]
        %v6151 = vld [vmem:[%s2439 + $0x8] sm:$0xf]
        %v6152 = vld [vmem:[%s2439 + $0x10] sm:$0xf8]
        %v6153 = vld [vmem:[%s2439 + $0x18] sm:$0xf]
        %v6154 = vld [vmem:[%s2439 + $0x20] sm:$0xf8]
        %v6155 = vld [vmem:[%s2439 + $0x28] sm:$0xf]
        %v6156 = vld [vmem:[%s2439 + $0x30] sm:$0xf8]
        %v6157 = vld [vmem:[%s2439 + $0x38] sm:$0xf]
        %v6158 = vld [vmem:[%s2439 + $0x40] sm:$0xf8]
        %v6159 = vld [vmem:[%s2439 + $0x48] sm:$0xf]
        %v6160 = vld [vmem:[%s2439 + $0x50] sm:$0xf8]
        %v6161 = vld [vmem:[%s2439 + $0x58] sm:$0xf]
        %v6162 = vld [vmem:[%s2439 + $0x60] sm:$0xf8]
        %v6163 = vld [vmem:[%s2439 + $0x68] sm:$0xf]
        %v6164 = vld [vmem:[%s2439 + $0x70] sm:$0xf8]
        %v6165 = vld [vmem:[%s2439 + $0x78] sm:$0xf]
        %v6166 = vld [vmem:[%s2439 + $0x80] sm:$0xf8]
        %v6167 = vld [vmem:[%s2439 + $0x88] sm:$0xf]
        %v6168 = vld [vmem:[%s2439 + $0x90] sm:$0xf8]
        %v6169 = vld [vmem:[%s2439 + $0x98] sm:$0xf]
        %v6170 = vld [vmem:[%s2439 + $0xa0] sm:$0xf8]
        %v6171 = vld [vmem:[%s2439 + $0xa8] sm:$0xf]
        %v6172 = vld [vmem:[%s2439 + $0xb0] sm:$0xf8]
        %v6173 = vld [vmem:[%s2439 + $0xb8] sm:$0xf]
        %v6174 = vld [vmem:[%s2439 + $0xc0] sm:$0xf8]
        %v6175 = vld [vmem:[%s2439 + $0xc8] sm:$0xf]
        %v6176 = vld [vmem:[%s2439 + $0xd0] sm:$0xf8]
        %v6177 = vld [vmem:[%s2439 + $0xd8] sm:$0xf]
        %v6178 = vld [vmem:[%s2439 + $0xe0] sm:$0xf8]
        %v6179 = vld [vmem:[%s2439 + $0xe8] sm:$0xf]
        %v6180 = vld [vmem:[%s2439 + $0xf0] sm:$0xf8]
        %v6181 = vld [vmem:[%s2439 + $0xf8] sm:$0xf]
        %v6183 = vshrl.u32 %v6150, 16
        %v6185 = vrot.slane %v6183, 3
        %v6186 = vshll.u32 %v6150, 16
        %v6188 = vrot.slane %v6186, 4
        %v6189 = vor.u32 %v6185, %v6188
        %v6191 = vshrl.u32 %v6151, 16
        %v6193 = vrot.slane %v6191, 3
        %v6194 = vshll.u32 %v6151, 16
        %v6196 = vrot.slane %v6194, 4
        %v6197 = vor.u32 %v6193, %v6196
        %v6198 = vsel %vm1092, %v6189, %v6197
        %v6200 = vshrl.u32 %v6152, 16
        %v6202 = vrot.slane %v6200, 3
        %v6203 = vshll.u32 %v6152, 16
        %v6205 = vrot.slane %v6203, 4
        %v6206 = vor.u32 %v6202, %v6205
        %v6208 = vshrl.u32 %v6153, 16
        %v6210 = vrot.slane %v6208, 3
        %v6211 = vshll.u32 %v6153, 16
        %v6213 = vrot.slane %v6211, 4
        %v6214 = vor.u32 %v6210, %v6213
        %v6215 = vsel %vm1092, %v6206, %v6214
        %v6217 = vshrl.u32 %v6154, 16
        %v6219 = vrot.slane %v6217, 3
        %v6220 = vshll.u32 %v6154, 16
        %v6222 = vrot.slane %v6220, 4
        %v6223 = vor.u32 %v6219, %v6222
        %v6225 = vshrl.u32 %v6155, 16
        %v6227 = vrot.slane %v6225, 3
        %v6228 = vshll.u32 %v6155, 16
        %v6230 = vrot.slane %v6228, 4
        %v6231 = vor.u32 %v6227, %v6230
        %v6232 = vsel %vm1092, %v6223, %v6231
        %v6234 = vshrl.u32 %v6156, 16
        %v6236 = vrot.slane %v6234, 3
        %v6237 = vshll.u32 %v6156, 16
        %v6239 = vrot.slane %v6237, 4
        %v6240 = vor.u32 %v6236, %v6239
        %v6242 = vshrl.u32 %v6157, 16
        %v6244 = vrot.slane %v6242, 3
        %v6245 = vshll.u32 %v6157, 16
        %v6247 = vrot.slane %v6245, 4
        %v6248 = vor.u32 %v6244, %v6247
        %v6249 = vsel %vm1092, %v6240, %v6248
        %v6251 = vshrl.u32 %v6158, 16
        %v6253 = vrot.slane %v6251, 3
        %v6254 = vshll.u32 %v6158, 16
        %v6256 = vrot.slane %v6254, 4
        %v6257 = vor.u32 %v6253, %v6256
        %v6259 = vshrl.u32 %v6159, 16
        %v6261 = vrot.slane %v6259, 3
        %v6262 = vshll.u32 %v6159, 16
        %v6264 = vrot.slane %v6262, 4
        %v6265 = vor.u32 %v6261, %v6264
        %v6266 = vsel %vm1092, %v6257, %v6265
        %v6268 = vshrl.u32 %v6160, 16
        %v6270 = vrot.slane %v6268, 3
        %v6271 = vshll.u32 %v6160, 16
        %v6273 = vrot.slane %v6271, 4
        %v6274 = vor.u32 %v6270, %v6273
        %v6276 = vshrl.u32 %v6161, 16
        %v6278 = vrot.slane %v6276, 3
        %v6279 = vshll.u32 %v6161, 16
        %v6281 = vrot.slane %v6279, 4
        %v6282 = vor.u32 %v6278, %v6281
        %v6283 = vsel %vm1092, %v6274, %v6282
        %v6285 = vshrl.u32 %v6162, 16
        %v6287 = vrot.slane %v6285, 3
        %v6288 = vshll.u32 %v6162, 16
        %v6290 = vrot.slane %v6288, 4
        %v6291 = vor.u32 %v6287, %v6290
        %v6293 = vshrl.u32 %v6163, 16
        %v6295 = vrot.slane %v6293, 3
        %v6296 = vshll.u32 %v6163, 16
        %v6298 = vrot.slane %v6296, 4
        %v6299 = vor.u32 %v6295, %v6298
        %v6300 = vsel %vm1092, %v6291, %v6299
        %v6302 = vshrl.u32 %v6164, 16
        %v6304 = vrot.slane %v6302, 3
        %v6305 = vshll.u32 %v6164, 16
        %v6307 = vrot.slane %v6305, 4
        %v6308 = vor.u32 %v6304, %v6307
        %v6310 = vshrl.u32 %v6165, 16
        %v6312 = vrot.slane %v6310, 3
        %v6313 = vshll.u32 %v6165, 16
        %v6315 = vrot.slane %v6313, 4
        %v6316 = vor.u32 %v6312, %v6315
        %v6317 = vsel %vm1092, %v6308, %v6316
        %v6319 = vshrl.u32 %v6166, 16
        %v6321 = vrot.slane %v6319, 3
        %v6322 = vshll.u32 %v6166, 16
        %v6324 = vrot.slane %v6322, 4
        %v6325 = vor.u32 %v6321, %v6324
        %v6327 = vshrl.u32 %v6167, 16
        %v6329 = vrot.slane %v6327, 3
        %v6330 = vshll.u32 %v6167, 16
        %v6332 = vrot.slane %v6330, 4
        %v6333 = vor.u32 %v6329, %v6332
        %v6334 = vsel %vm1092, %v6325, %v6333
        %v6336 = vshrl.u32 %v6168, 16
        %v6338 = vrot.slane %v6336, 3
        %v6339 = vshll.u32 %v6168, 16
        %v6341 = vrot.slane %v6339, 4
        %v6342 = vor.u32 %v6338, %v6341
        %v6344 = vshrl.u32 %v6169, 16
        %v6346 = vrot.slane %v6344, 3
        %v6347 = vshll.u32 %v6169, 16
        %v6349 = vrot.slane %v6347, 4
        %v6350 = vor.u32 %v6346, %v6349
        %v6351 = vsel %vm1092, %v6342, %v6350
        %v6353 = vshrl.u32 %v6170, 16
        %v6355 = vrot.slane %v6353, 3
        %v6356 = vshll.u32 %v6170, 16
        %v6358 = vrot.slane %v6356, 4
        %v6359 = vor.u32 %v6355, %v6358
        %v6361 = vshrl.u32 %v6171, 16
        %v6363 = vrot.slane %v6361, 3
        %v6364 = vshll.u32 %v6171, 16
        %v6366 = vrot.slane %v6364, 4
        %v6367 = vor.u32 %v6363, %v6366
        %v6368 = vsel %vm1092, %v6359, %v6367
        %v6370 = vshrl.u32 %v6172, 16
        %v6372 = vrot.slane %v6370, 3
        %v6373 = vshll.u32 %v6172, 16
        %v6375 = vrot.slane %v6373, 4
        %v6376 = vor.u32 %v6372, %v6375
        %v6378 = vshrl.u32 %v6173, 16
        %v6380 = vrot.slane %v6378, 3
        %v6381 = vshll.u32 %v6173, 16
        %v6383 = vrot.slane %v6381, 4
        %v6384 = vor.u32 %v6380, %v6383
        %v6385 = vsel %vm1092, %v6376, %v6384
        %v6387 = vshrl.u32 %v6174, 16
        %v6389 = vrot.slane %v6387, 3
        %v6390 = vshll.u32 %v6174, 16
        %v6392 = vrot.slane %v6390, 4
        %v6393 = vor.u32 %v6389, %v6392
        %v6395 = vshrl.u32 %v6175, 16
        %v6397 = vrot.slane %v6395, 3
        %v6398 = vshll.u32 %v6175, 16
        %v6400 = vrot.slane %v6398, 4
        %v6401 = vor.u32 %v6397, %v6400
        %v6402 = vsel %vm1092, %v6393, %v6401
        %v6404 = vshrl.u32 %v6176, 16
        %v6406 = vrot.slane %v6404, 3
        %v6407 = vshll.u32 %v6176, 16
        %v6409 = vrot.slane %v6407, 4
        %v6410 = vor.u32 %v6406, %v6409
        %v6412 = vshrl.u32 %v6177, 16
        %v6414 = vrot.slane %v6412, 3
        %v6415 = vshll.u32 %v6177, 16
        %v6417 = vrot.slane %v6415, 4
        %v6418 = vor.u32 %v6414, %v6417
        %v6419 = vsel %vm1092, %v6410, %v6418
        %v6421 = vshrl.u32 %v6178, 16
        %v6423 = vrot.slane %v6421, 3
        %v6424 = vshll.u32 %v6178, 16
        %v6426 = vrot.slane %v6424, 4
        %v6427 = vor.u32 %v6423, %v6426
        %v6429 = vshrl.u32 %v6179, 16
        %v6431 = vrot.slane %v6429, 3
        %v6432 = vshll.u32 %v6179, 16
        %v6434 = vrot.slane %v6432, 4
        %v6435 = vor.u32 %v6431, %v6434
        %v6436 = vsel %vm1092, %v6427, %v6435
        %v6438 = vshrl.u32 %v6180, 16
        %v6440 = vrot.slane %v6438, 3
        %v6441 = vshll.u32 %v6180, 16
        %v6443 = vrot.slane %v6441, 4
        %v6444 = vor.u32 %v6440, %v6443
        %v6446 = vshrl.u32 %v6181, 16
        %v6448 = vrot.slane %v6446, 3
        %v6449 = vshll.u32 %v6181, 16
        %v6451 = vrot.slane %v6449, 4
        %v6452 = vor.u32 %v6448, %v6451
        %v6453 = vsel %vm1092, %v6444, %v6452
        %v6454 = vld [vmem:[%s2439] sm:$0xf0]
        %v6455 = vld [vmem:[%s2439 + $0x10] sm:$0xf0]
        %v6456 = vld [vmem:[%s2439 + $0x20] sm:$0xf0]
        %v6457 = vld [vmem:[%s2439 + $0x30] sm:$0xf0]
        %v6458 = vld [vmem:[%s2439 + $0x40] sm:$0xf0]
        %v6459 = vld [vmem:[%s2439 + $0x50] sm:$0xf0]
        %v6460 = vld [vmem:[%s2439 + $0x60] sm:$0xf0]
        %v6461 = vld [vmem:[%s2439 + $0x70] sm:$0xf0]
        %v6462 = vld [vmem:[%s2439 + $0x80] sm:$0xf0]
        %v6463 = vld [vmem:[%s2439 + $0x90] sm:$0xf0]
        %v6464 = vld [vmem:[%s2439 + $0xa0] sm:$0xf0]
        %v6465 = vld [vmem:[%s2439 + $0xb0] sm:$0xf0]
        %v6466 = vld [vmem:[%s2439 + $0xc0] sm:$0xf0]
        %v6467 = vld [vmem:[%s2439 + $0xd0] sm:$0xf0]
        %v6468 = vld [vmem:[%s2439 + $0xe0] sm:$0xf0]
        %v6469 = vld [vmem:[%s2439 + $0xf0] sm:$0xf0]
        %v6502 = vrot.slane %v6454, 4
        %v6503 = vrot.slane %v6151, 4
        %v6504 = vsel %vm1413, %v6502, %v6503
        %v6505 = vrot.slane %v6455, 4
        %v6506 = vrot.slane %v6153, 4
        %v6507 = vsel %vm1413, %v6505, %v6506
        %v6508 = vrot.slane %v6456, 4
        %v6509 = vrot.slane %v6155, 4
        %v6510 = vsel %vm1413, %v6508, %v6509
        %v6511 = vrot.slane %v6457, 4
        %v6512 = vrot.slane %v6157, 4
        %v6513 = vsel %vm1413, %v6511, %v6512
        %v6514 = vrot.slane %v6458, 4
        %v6515 = vrot.slane %v6159, 4
        %v6516 = vsel %vm1413, %v6514, %v6515
        %v6517 = vrot.slane %v6459, 4
        %v6518 = vrot.slane %v6161, 4
        %v6519 = vsel %vm1413, %v6517, %v6518
        %v6520 = vrot.slane %v6460, 4
        %v6521 = vrot.slane %v6163, 4
        %v6522 = vsel %vm1413, %v6520, %v6521
        %v6523 = vrot.slane %v6461, 4
        %v6524 = vrot.slane %v6165, 4
        %v6525 = vsel %vm1413, %v6523, %v6524
        %v6526 = vrot.slane %v6462, 4
        %v6527 = vrot.slane %v6167, 4
        %v6528 = vsel %vm1413, %v6526, %v6527
        %v6529 = vrot.slane %v6463, 4
        %v6530 = vrot.slane %v6169, 4
        %v6531 = vsel %vm1413, %v6529, %v6530
        %v6532 = vrot.slane %v6464, 4
        %v6533 = vrot.slane %v6171, 4
        %v6534 = vsel %vm1413, %v6532, %v6533
        %v6535 = vrot.slane %v6465, 4
        %v6536 = vrot.slane %v6173, 4
        %v6537 = vsel %vm1413, %v6535, %v6536
        %v6538 = vrot.slane %v6466, 4
        %v6539 = vrot.slane %v6175, 4
        %v6540 = vsel %vm1413, %v6538, %v6539
        %v6541 = vrot.slane %v6467, 4
        %v6542 = vrot.slane %v6177, 4
        %v6543 = vsel %vm1413, %v6541, %v6542
        %v6544 = vrot.slane %v6468, 4
        %v6545 = vrot.slane %v6179, 4
        %v6546 = vsel %vm1413, %v6544, %v6545
        %v6547 = vrot.slane %v6469, 4
        %v6548 = vrot.slane %v6181, 4
        %v6549 = vsel %vm1413, %v6547, %v6548
        %v6550 = vld [vmem:[%s2439 + $0x8] sm:$0x1f]
        %v6551 = vld [vmem:[%s2439 + $0x18] sm:$0x1f]
        %v6552 = vld [vmem:[%s2439 + $0x28] sm:$0x1f]
        %v6553 = vld [vmem:[%s2439 + $0x38] sm:$0x1f]
        %v6554 = vld [vmem:[%s2439 + $0x48] sm:$0x1f]
        %v6555 = vld [vmem:[%s2439 + $0x58] sm:$0x1f]
        %v6556 = vld [vmem:[%s2439 + $0x68] sm:$0x1f]
        %v6557 = vld [vmem:[%s2439 + $0x78] sm:$0x1f]
        %v6558 = vld [vmem:[%s2439 + $0x88] sm:$0x1f]
        %v6559 = vld [vmem:[%s2439 + $0x98] sm:$0x1f]
        %v6560 = vld [vmem:[%s2439 + $0xa8] sm:$0x1f]
        %v6561 = vld [vmem:[%s2439 + $0xb8] sm:$0x1f]
        %v6562 = vld [vmem:[%s2439 + $0xc8] sm:$0x1f]
        %v6563 = vld [vmem:[%s2439 + $0xd8] sm:$0x1f]
        %v6564 = vld [vmem:[%s2439 + $0xe8] sm:$0x1f]
        %v6565 = vld [vmem:[%s2439 + $0xf8] sm:$0x1f]
        %v6567 = vshrl.u32 %v6454, 16
        %v6569 = vrot.slane %v6567, 4
        %v6570 = vshll.u32 %v6454, 16
        %v6572 = vrot.slane %v6570, 5
        %v6573 = vor.u32 %v6569, %v6572
        %v6575 = vshrl.u32 %v6550, 16
        %v6577 = vrot.slane %v6575, 4
        %v6578 = vshll.u32 %v6550, 16
        %v6580 = vrot.slane %v6578, 5
        %v6581 = vor.u32 %v6577, %v6580
        %v6582 = vsel %vm1478, %v6573, %v6581
        %v6584 = vshrl.u32 %v6455, 16
        %v6586 = vrot.slane %v6584, 4
        %v6587 = vshll.u32 %v6455, 16
        %v6589 = vrot.slane %v6587, 5
        %v6590 = vor.u32 %v6586, %v6589
        %v6592 = vshrl.u32 %v6551, 16
        %v6594 = vrot.slane %v6592, 4
        %v6595 = vshll.u32 %v6551, 16
        %v6597 = vrot.slane %v6595, 5
        %v6598 = vor.u32 %v6594, %v6597
        %v6599 = vsel %vm1478, %v6590, %v6598
        %v6601 = vshrl.u32 %v6456, 16
        %v6603 = vrot.slane %v6601, 4
        %v6604 = vshll.u32 %v6456, 16
        %v6606 = vrot.slane %v6604, 5
        %v6607 = vor.u32 %v6603, %v6606
        %v6609 = vshrl.u32 %v6552, 16
        %v6611 = vrot.slane %v6609, 4
        %v6612 = vshll.u32 %v6552, 16
        %v6614 = vrot.slane %v6612, 5
        %v6615 = vor.u32 %v6611, %v6614
        %v6616 = vsel %vm1478, %v6607, %v6615
        %v6618 = vshrl.u32 %v6457, 16
        %v6620 = vrot.slane %v6618, 4
        %v6621 = vshll.u32 %v6457, 16
        %v6623 = vrot.slane %v6621, 5
        %v6624 = vor.u32 %v6620, %v6623
        %v6626 = vshrl.u32 %v6553, 16
        %v6628 = vrot.slane %v6626, 4
        %v6629 = vshll.u32 %v6553, 16
        %v6631 = vrot.slane %v6629, 5
        %v6632 = vor.u32 %v6628, %v6631
        %v6633 = vsel %vm1478, %v6624, %v6632
        %v6635 = vshrl.u32 %v6458, 16
        %v6637 = vrot.slane %v6635, 4
        %v6638 = vshll.u32 %v6458, 16
        %v6640 = vrot.slane %v6638, 5
        %v6641 = vor.u32 %v6637, %v6640
        %v6643 = vshrl.u32 %v6554, 16
        %v6645 = vrot.slane %v6643, 4
        %v6646 = vshll.u32 %v6554, 16
        %v6648 = vrot.slane %v6646, 5
        %v6649 = vor.u32 %v6645, %v6648
        %v6650 = vsel %vm1478, %v6641, %v6649
        %v6652 = vshrl.u32 %v6459, 16
        %v6654 = vrot.slane %v6652, 4
        %v6655 = vshll.u32 %v6459, 16
        %v6657 = vrot.slane %v6655, 5
        %v6658 = vor.u32 %v6654, %v6657
        %v6660 = vshrl.u32 %v6555, 16
        %v6662 = vrot.slane %v6660, 4
        %v6663 = vshll.u32 %v6555, 16
        %v6665 = vrot.slane %v6663, 5
        %v6666 = vor.u32 %v6662, %v6665
        %v6667 = vsel %vm1478, %v6658, %v6666
        %v6669 = vshrl.u32 %v6460, 16
        %v6671 = vrot.slane %v6669, 4
        %v6672 = vshll.u32 %v6460, 16
        %v6674 = vrot.slane %v6672, 5
        %v6675 = vor.u32 %v6671, %v6674
        %v6677 = vshrl.u32 %v6556, 16
        %v6679 = vrot.slane %v6677, 4
        %v6680 = vshll.u32 %v6556, 16
        %v6682 = vrot.slane %v6680, 5
        %v6683 = vor.u32 %v6679, %v6682
        %v6684 = vsel %vm1478, %v6675, %v6683
        %v6686 = vshrl.u32 %v6461, 16
        %v6688 = vrot.slane %v6686, 4
        %v6689 = vshll.u32 %v6461, 16
        %v6691 = vrot.slane %v6689, 5
        %v6692 = vor.u32 %v6688, %v6691
        %v6694 = vshrl.u32 %v6557, 16
        %v6696 = vrot.slane %v6694, 4
        %v6697 = vshll.u32 %v6557, 16
        %v6699 = vrot.slane %v6697, 5
        %v6700 = vor.u32 %v6696, %v6699
        %v6701 = vsel %vm1478, %v6692, %v6700
        %v6703 = vshrl.u32 %v6462, 16
        %v6705 = vrot.slane %v6703, 4
        %v6706 = vshll.u32 %v6462, 16
        %v6708 = vrot.slane %v6706, 5
        %v6709 = vor.u32 %v6705, %v6708
        %v6711 = vshrl.u32 %v6558, 16
        %v6713 = vrot.slane %v6711, 4
        %v6714 = vshll.u32 %v6558, 16
        %v6716 = vrot.slane %v6714, 5
        %v6717 = vor.u32 %v6713, %v6716
        %v6718 = vsel %vm1478, %v6709, %v6717
        %v6720 = vshrl.u32 %v6463, 16
        %v6722 = vrot.slane %v6720, 4
        %v6723 = vshll.u32 %v6463, 16
        %v6725 = vrot.slane %v6723, 5
        %v6726 = vor.u32 %v6722, %v6725
        %v6728 = vshrl.u32 %v6559, 16
        %v6730 = vrot.slane %v6728, 4
        %v6731 = vshll.u32 %v6559, 16
        %v6733 = vrot.slane %v6731, 5
        %v6734 = vor.u32 %v6730, %v6733
        %v6735 = vsel %vm1478, %v6726, %v6734
        %v6737 = vshrl.u32 %v6464, 16
        %v6739 = vrot.slane %v6737, 4
        %v6740 = vshll.u32 %v6464, 16
        %v6742 = vrot.slane %v6740, 5
        %v6743 = vor.u32 %v6739, %v6742
        %v6745 = vshrl.u32 %v6560, 16
        %v6747 = vrot.slane %v6745, 4
        %v6748 = vshll.u32 %v6560, 16
        %v6750 = vrot.slane %v6748, 5
        %v6751 = vor.u32 %v6747, %v6750
        %v6752 = vsel %vm1478, %v6743, %v6751
        %v6754 = vshrl.u32 %v6465, 16
        %v6756 = vrot.slane %v6754, 4
        %v6757 = vshll.u32 %v6465, 16
        %v6759 = vrot.slane %v6757, 5
        %v6760 = vor.u32 %v6756, %v6759
        %v6762 = vshrl.u32 %v6561, 16
        %v6764 = vrot.slane %v6762, 4
        %v6765 = vshll.u32 %v6561, 16
        %v6767 = vrot.slane %v6765, 5
        %v6768 = vor.u32 %v6764, %v6767
        %v6769 = vsel %vm1478, %v6760, %v6768
        %v6771 = vshrl.u32 %v6466, 16
        %v6773 = vrot.slane %v6771, 4
        %v6774 = vshll.u32 %v6466, 16
        %v6776 = vrot.slane %v6774, 5
        %v6777 = vor.u32 %v6773, %v6776
        %v6779 = vshrl.u32 %v6562, 16
        %v6781 = vrot.slane %v6779, 4
        %v6782 = vshll.u32 %v6562, 16
        %v6784 = vrot.slane %v6782, 5
        %v6785 = vor.u32 %v6781, %v6784
        %v6786 = vsel %vm1478, %v6777, %v6785
        %v6788 = vshrl.u32 %v6467, 16
        %v6790 = vrot.slane %v6788, 4
        %v6791 = vshll.u32 %v6467, 16
        %v6793 = vrot.slane %v6791, 5
        %v6794 = vor.u32 %v6790, %v6793
        %v6796 = vshrl.u32 %v6563, 16
        %v6798 = vrot.slane %v6796, 4
        %v6799 = vshll.u32 %v6563, 16
        %v6801 = vrot.slane %v6799, 5
        %v6802 = vor.u32 %v6798, %v6801
        %v6803 = vsel %vm1478, %v6794, %v6802
        %v6805 = vshrl.u32 %v6468, 16
        %v6807 = vrot.slane %v6805, 4
        %v6808 = vshll.u32 %v6468, 16
        %v6810 = vrot.slane %v6808, 5
        %v6811 = vor.u32 %v6807, %v6810
        %v6813 = vshrl.u32 %v6564, 16
        %v6815 = vrot.slane %v6813, 4
        %v6816 = vshll.u32 %v6564, 16
        %v6818 = vrot.slane %v6816, 5
        %v6819 = vor.u32 %v6815, %v6818
        %v6820 = vsel %vm1478, %v6811, %v6819
        %v6822 = vshrl.u32 %v6469, 16
        %v6824 = vrot.slane %v6822, 4
        %v6825 = vshll.u32 %v6469, 16
        %v6827 = vrot.slane %v6825, 5
        %v6828 = vor.u32 %v6824, %v6827
        %v6830 = vshrl.u32 %v6565, 16
        %v6832 = vrot.slane %v6830, 4
        %v6833 = vshll.u32 %v6565, 16
        %v6835 = vrot.slane %v6833, 5
        %v6836 = vor.u32 %v6832, %v6835
        %v6837 = vsel %vm1478, %v6828, %v6836
        %6838 = vrot.lane.b32.xlu0 %v5128, 32
        %v6839 = vpop.permute.xlu0 %6838
        %6840 = vrot.lane.b32.xlu0 %v5131, 32
        %v6841 = vpop.permute.xlu0 %6840
        %6842 = vrot.lane.b32.xlu0 %v5134, 32
        %v6843 = vpop.permute.xlu0 %6842
        %6844 = vrot.lane.b32.xlu0 %v5137, 32
        %v6845 = vpop.permute.xlu0 %6844
        %6846 = vrot.lane.b32.xlu0 %v5140, 32
        %v6847 = vpop.permute.xlu0 %6846
        %6848 = vrot.lane.b32.xlu0 %v5143, 32
        %v6849 = vpop.permute.xlu0 %6848
        %6850 = vrot.lane.b32.xlu0 %v5146, 32
        %v6851 = vpop.permute.xlu0 %6850
        %6852 = vrot.lane.b32.xlu0 %v5149, 32
        %v6853 = vpop.permute.xlu0 %6852
        %6854 = vrot.lane.b32.xlu0 %v5152, 32
        %v6855 = vpop.permute.xlu0 %6854
        %6856 = vrot.lane.b32.xlu0 %v5155, 32
        %v6857 = vpop.permute.xlu0 %6856
        %6858 = vrot.lane.b32.xlu0 %v5158, 32
        %v6859 = vpop.permute.xlu0 %6858
        %6860 = vrot.lane.b32.xlu0 %v5161, 32
        %v6861 = vpop.permute.xlu0 %6860
        %6862 = vrot.lane.b32.xlu0 %v5164, 32
        %v6863 = vpop.permute.xlu0 %6862
        %6864 = vrot.lane.b32.xlu0 %v5167, 32
        %v6865 = vpop.permute.xlu0 %6864
        %6866 = vrot.lane.b32.xlu0 %v5170, 32
        %v6867 = vpop.permute.xlu0 %6866
        %6868 = vrot.lane.b32.xlu0 %v5173, 32
        %v6869 = vpop.permute.xlu0 %6868
        %6870 = vrot.lane.b32.xlu0 %v5206, 64
        %v6871 = vpop.permute.xlu0 %6870
        %6872 = vrot.lane.b32.xlu0 %v5223, 64
        %v6873 = vpop.permute.xlu0 %6872
        %6874 = vrot.lane.b32.xlu0 %v5240, 64
        %v6875 = vpop.permute.xlu0 %6874
        %6876 = vrot.lane.b32.xlu0 %v5257, 64
        %v6877 = vpop.permute.xlu0 %6876
        %6878 = vrot.lane.b32.xlu0 %v5274, 64
        %v6879 = vpop.permute.xlu0 %6878
        %6880 = vrot.lane.b32.xlu0 %v5291, 64
        %v6881 = vpop.permute.xlu0 %6880
        %6882 = vrot.lane.b32.xlu0 %v5308, 64
        %v6883 = vpop.permute.xlu0 %6882
        %6884 = vrot.lane.b32.xlu0 %v5325, 64
        %v6885 = vpop.permute.xlu0 %6884
        %6886 = vrot.lane.b32.xlu0 %v5342, 64
        %v6887 = vpop.permute.xlu0 %6886
        %6888 = vrot.lane.b32.xlu0 %v5359, 64
        %v6889 = vpop.permute.xlu0 %6888
        %6890 = vrot.lane.b32.xlu0 %v5376, 64
        %v6891 = vpop.permute.xlu0 %6890
        %6892 = vrot.lane.b32.xlu0 %v5393, 64
        %v6893 = vpop.permute.xlu0 %6892
        %6894 = vrot.lane.b32.xlu0 %v5410, 64
        %v6895 = vpop.permute.xlu0 %6894
        %6896 = vrot.lane.b32.xlu0 %v5427, 64
        %v6897 = vpop.permute.xlu0 %6896
        %6898 = vrot.lane.b32.xlu0 %v5444, 64
        %v6899 = vpop.permute.xlu0 %6898
        %6900 = vrot.lane.b32.xlu0 %v5461, 64
        %v6901 = vpop.permute.xlu0 %6900
        %6902 = vrot.lane.b32.xlu0 %v5510, 96
        %v6903 = vpop.permute.xlu0 %6902
        %6904 = vrot.lane.b32.xlu0 %v5527, 96
        %v6905 = vpop.permute.xlu0 %6904
        %6906 = vrot.lane.b32.xlu0 %v5544, 96
        %v6907 = vpop.permute.xlu0 %6906
        %6908 = vrot.lane.b32.xlu0 %v5561, 96
        %v6909 = vpop.permute.xlu0 %6908
        %6910 = vrot.lane.b32.xlu0 %v5578, 96
        %v6911 = vpop.permute.xlu0 %6910
        %6912 = vrot.lane.b32.xlu0 %v5595, 96
        %v6913 = vpop.permute.xlu0 %6912
        %6914 = vrot.lane.b32.xlu0 %v5612, 96
        %v6915 = vpop.permute.xlu0 %6914
        %6916 = vrot.lane.b32.xlu0 %v5629, 96
        %v6917 = vpop.permute.xlu0 %6916
        %6918 = vrot.lane.b32.xlu0 %v5646, 96
        %v6919 = vpop.permute.xlu0 %6918
        %6920 = vrot.lane.b32.xlu0 %v5663, 96
        %v6921 = vpop.permute.xlu0 %6920
        %6922 = vrot.lane.b32.xlu0 %v5680, 96
        %v6923 = vpop.permute.xlu0 %6922
        %6924 = vrot.lane.b32.xlu0 %v5697, 96
        %v6925 = vpop.permute.xlu0 %6924
        %6926 = vrot.lane.b32.xlu0 %v5714, 96
        %v6927 = vpop.permute.xlu0 %6926
        %6928 = vrot.lane.b32.xlu0 %v5731, 96
        %v6929 = vpop.permute.xlu0 %6928
        %6930 = vrot.lane.b32.xlu0 %v5748, 96
        %v6931 = vpop.permute.xlu0 %6930
        %6932 = vrot.lane.b32.xlu0 %v5765, 96
        %v6933 = vpop.permute.xlu0 %6932
        %6934 = vrot.lane.b32.xlu0 %v5894, 32
        %v6935 = vpop.permute.xlu0 %6934
        %6936 = vrot.lane.b32.xlu0 %v5911, 32
        %v6937 = vpop.permute.xlu0 %6936
        %6938 = vrot.lane.b32.xlu0 %v5928, 32
        %v6939 = vpop.permute.xlu0 %6938
        %6940 = vrot.lane.b32.xlu0 %v5945, 32
        %v6941 = vpop.permute.xlu0 %6940
        %6942 = vrot.lane.b32.xlu0 %v5962, 32
        %v6943 = vpop.permute.xlu0 %6942
        %6944 = vrot.lane.b32.xlu0 %v5979, 32
        %v6945 = vpop.permute.xlu0 %6944
        %6946 = vrot.lane.b32.xlu0 %v5996, 32
        %v6947 = vpop.permute.xlu0 %6946
        %6948 = vrot.lane.b32.xlu0 %v6013, 32
        %v6949 = vpop.permute.xlu0 %6948
        %6950 = vrot.lane.b32.xlu0 %v6030, 32
        %v6951 = vpop.permute.xlu0 %6950
        %6952 = vrot.lane.b32.xlu0 %v6047, 32
        %v6953 = vpop.permute.xlu0 %6952
        %6954 = vrot.lane.b32.xlu0 %v6064, 32
        %v6955 = vpop.permute.xlu0 %6954
        %6956 = vrot.lane.b32.xlu0 %v6081, 32
        %v6957 = vpop.permute.xlu0 %6956
        %6958 = vrot.lane.b32.xlu0 %v6098, 32
        %v6959 = vpop.permute.xlu0 %6958
        %6960 = vrot.lane.b32.xlu0 %v6115, 32
        %v6961 = vpop.permute.xlu0 %6960
        %6962 = vrot.lane.b32.xlu0 %v6132, 32
        %v6963 = vpop.permute.xlu0 %6962
        %6964 = vrot.lane.b32.xlu0 %v6149, 32
        %v6965 = vpop.permute.xlu0 %6964
        %6966 = vrot.lane.b32.xlu0 %v6198, 64
        %v6967 = vpop.permute.xlu0 %6966
        %6968 = vrot.lane.b32.xlu0 %v6215, 64
        %v6969 = vpop.permute.xlu0 %6968
        %6970 = vrot.lane.b32.xlu0 %v6232, 64
        %v6971 = vpop.permute.xlu0 %6970
        %6972 = vrot.lane.b32.xlu0 %v6249, 64
        %v6973 = vpop.permute.xlu0 %6972
        %6974 = vrot.lane.b32.xlu0 %v6266, 64
        %v6975 = vpop.permute.xlu0 %6974
        %6976 = vrot.lane.b32.xlu0 %v6283, 64
        %v6977 = vpop.permute.xlu0 %6976
        %6978 = vrot.lane.b32.xlu0 %v6300, 64
        %v6979 = vpop.permute.xlu0 %6978
        %6980 = vrot.lane.b32.xlu0 %v6317, 64
        %v6981 = vpop.permute.xlu0 %6980
        %6982 = vrot.lane.b32.xlu0 %v6334, 64
        %v6983 = vpop.permute.xlu0 %6982
        %6984 = vrot.lane.b32.xlu0 %v6351, 64
        %v6985 = vpop.permute.xlu0 %6984
        %6986 = vrot.lane.b32.xlu0 %v6368, 64
        %v6987 = vpop.permute.xlu0 %6986
        %6988 = vrot.lane.b32.xlu0 %v6385, 64
        %v6989 = vpop.permute.xlu0 %6988
        %6990 = vrot.lane.b32.xlu0 %v6402, 64
        %v6991 = vpop.permute.xlu0 %6990
        %6992 = vrot.lane.b32.xlu0 %v6419, 64
        %v6993 = vpop.permute.xlu0 %6992
        %6994 = vrot.lane.b32.xlu0 %v6436, 64
        %v6995 = vpop.permute.xlu0 %6994
        %6996 = vrot.lane.b32.xlu0 %v6453, 64
        %v6997 = vpop.permute.xlu0 %6996
        %6998 = vrot.lane.b32.xlu0 %v6504, 96
        %v6999 = vpop.permute.xlu0 %6998
        %7000 = vrot.lane.b32.xlu0 %v6507, 96
        %v7001 = vpop.permute.xlu0 %7000
        %7002 = vrot.lane.b32.xlu0 %v6510, 96
        %v7003 = vpop.permute.xlu0 %7002
        %7004 = vrot.lane.b32.xlu0 %v6513, 96
        %v7005 = vpop.permute.xlu0 %7004
        %7006 = vrot.lane.b32.xlu0 %v6516, 96
        %v7007 = vpop.permute.xlu0 %7006
        %7008 = vrot.lane.b32.xlu0 %v6519, 96
        %v7009 = vpop.permute.xlu0 %7008
        %7010 = vrot.lane.b32.xlu0 %v6522, 96
        %v7011 = vpop.permute.xlu0 %7010
        %7012 = vrot.lane.b32.xlu0 %v6525, 96
        %v7013 = vpop.permute.xlu0 %7012
        %7014 = vrot.lane.b32.xlu0 %v6528, 96
        %v7015 = vpop.permute.xlu0 %7014
        %7016 = vrot.lane.b32.xlu0 %v6531, 96
        %v7017 = vpop.permute.xlu0 %7016
        %7018 = vrot.lane.b32.xlu0 %v6534, 96
        %v7019 = vpop.permute.xlu0 %7018
        %7020 = vrot.lane.b32.xlu0 %v6537, 96
        %v7021 = vpop.permute.xlu0 %7020
        %7022 = vrot.lane.b32.xlu0 %v6540, 96
        %v7023 = vpop.permute.xlu0 %7022
        %7024 = vrot.lane.b32.xlu0 %v6543, 96
        %v7025 = vpop.permute.xlu0 %7024
        %7026 = vrot.lane.b32.xlu0 %v6546, 96
        %v7027 = vpop.permute.xlu0 %7026
        %7028 = vrot.lane.b32.xlu0 %v6549, 96
        %v7029 = vpop.permute.xlu0 %7028
        %v7032 = vsel %vm481, %v4822, %v6839
        %v7035 = vsel %vm481, %v4839, %v6841
        %v7038 = vsel %vm481, %v4856, %v6843
        %v7041 = vsel %vm481, %v4873, %v6845
        %v7044 = vsel %vm481, %v4890, %v6847
        %v7047 = vsel %vm481, %v4907, %v6849
        %v7050 = vsel %vm481, %v4924, %v6851
        %v7053 = vsel %vm481, %v4941, %v6853
        %v7056 = vsel %vm481, %v4958, %v6855
        %v7059 = vsel %vm481, %v4975, %v6857
        %v7062 = vsel %vm481, %v4992, %v6859
        %v7065 = vsel %vm481, %v5009, %v6861
        %v7068 = vsel %vm481, %v5026, %v6863
        %v7071 = vsel %vm481, %v5043, %v6865
        %v7074 = vsel %vm481, %v5060, %v6867
        %v7077 = vsel %vm481, %v5077, %v6869
        %v7079 = vsel %vm3368, %v7032, %v6871
        %v7081 = vsel %vm3368, %v7035, %v6873
        %v7083 = vsel %vm3368, %v7038, %v6875
        %v7085 = vsel %vm3368, %v7041, %v6877
        %v7087 = vsel %vm3368, %v7044, %v6879
        %v7089 = vsel %vm3368, %v7047, %v6881
        %v7091 = vsel %vm3368, %v7050, %v6883
        %v7093 = vsel %vm3368, %v7053, %v6885
        %v7095 = vsel %vm3368, %v7056, %v6887
        %v7097 = vsel %vm3368, %v7059, %v6889
        %v7099 = vsel %vm3368, %v7062, %v6891
        %v7101 = vsel %vm3368, %v7065, %v6893
        %v7103 = vsel %vm3368, %v7068, %v6895
        %v7105 = vsel %vm3368, %v7071, %v6897
        %v7107 = vsel %vm3368, %v7074, %v6899
        %v7109 = vsel %vm3368, %v7077, %v6901
        %v7111 = vsel %vm3401, %v7079, %v6903
        %v7114 = vsel %vm3401, %v7081, %v6905
        %v7117 = vsel %vm3401, %v7083, %v6907
        %v7120 = vsel %vm3401, %v7085, %v6909
        %v7123 = vsel %vm3401, %v7087, %v6911
        %v7126 = vsel %vm3401, %v7089, %v6913
        %v7129 = vsel %vm3401, %v7091, %v6915
        %v7132 = vsel %vm3401, %v7093, %v6917
        %v7135 = vsel %vm3401, %v7095, %v6919
        %v7138 = vsel %vm3401, %v7097, %v6921
        %v7141 = vsel %vm3401, %v7099, %v6923
        %v7144 = vsel %vm3401, %v7101, %v6925
        %v7147 = vsel %vm3401, %v7103, %v6927
        %v7150 = vsel %vm3401, %v7105, %v6929
        %v7153 = vsel %vm3401, %v7107, %v6931
        %v7156 = vsel %vm3401, %v7109, %v6933
        %v7160 = vsel %vm481, %v5816, %v6935
        %v7163 = vsel %vm481, %v5819, %v6937
        %v7166 = vsel %vm481, %v5822, %v6939
        %v7169 = vsel %vm481, %v5825, %v6941
        %v7172 = vsel %vm481, %v5828, %v6943
        %v7175 = vsel %vm481, %v5831, %v6945
        %v7178 = vsel %vm481, %v5834, %v6947
        %v7181 = vsel %vm481, %v5837, %v6949
        %v7184 = vsel %vm481, %v5840, %v6951
        %v7187 = vsel %vm481, %v5843, %v6953
        %v7190 = vsel %vm481, %v5846, %v6955
        %v7193 = vsel %vm481, %v5849, %v6957
        %v7196 = vsel %vm481, %v5852, %v6959
        %v7199 = vsel %vm481, %v5855, %v6961
        %v7202 = vsel %vm481, %v5858, %v6963
        %v7205 = vsel %vm481, %v5861, %v6965
        %v7207 = vsel %vm3368, %v7160, %v6967
        %v7209 = vsel %vm3368, %v7163, %v6969
        %v7211 = vsel %vm3368, %v7166, %v6971
        %v7213 = vsel %vm3368, %v7169, %v6973
        %v7215 = vsel %vm3368, %v7172, %v6975
        %v7217 = vsel %vm3368, %v7175, %v6977
        %v7219 = vsel %vm3368, %v7178, %v6979
        %v7221 = vsel %vm3368, %v7181, %v6981
        %v7223 = vsel %vm3368, %v7184, %v6983
        %v7225 = vsel %vm3368, %v7187, %v6985
        %v7227 = vsel %vm3368, %v7190, %v6987
        %v7229 = vsel %vm3368, %v7193, %v6989
        %v7231 = vsel %vm3368, %v7196, %v6991
        %v7233 = vsel %vm3368, %v7199, %v6993
        %v7235 = vsel %vm3368, %v7202, %v6995
        %v7237 = vsel %vm3368, %v7205, %v6997
        %v7239 = vsel %vm3401, %v7207, %v6999
        %v7242 = vsel %vm3401, %v7209, %v7001
        %v7245 = vsel %vm3401, %v7211, %v7003
        %v7248 = vsel %vm3401, %v7213, %v7005
        %v7251 = vsel %vm3401, %v7215, %v7007
        %v7254 = vsel %vm3401, %v7217, %v7009
        %v7257 = vsel %vm3401, %v7219, %v7011
        %v7260 = vsel %vm3401, %v7221, %v7013
        %v7263 = vsel %vm3401, %v7223, %v7015
        %v7266 = vsel %vm3401, %v7225, %v7017
        %v7269 = vsel %vm3401, %v7227, %v7019
        %v7272 = vsel %vm3401, %v7229, %v7021
        %v7275 = vsel %vm3401, %v7231, %v7023
        %v7278 = vsel %vm3401, %v7233, %v7025
        %v7281 = vsel %vm3401, %v7235, %v7027
        %v7284 = vsel %vm3401, %v7237, %v7029
        %s7286 = scalar_lea.vmem %s7, 144
        %v7287 = vld [vmem:[%s7286] sm:$0xf]
        %v7288 = vld [vmem:[%s7286 + $0x4] sm:$0xf]
        %v7289 = vld [vmem:[%s7286 + $0x8] sm:$0xf]
        %v7290 = vld [vmem:[%s7286 + $0xc] sm:$0xf]
        %v7291 = vld [vmem:[%s7286 + $0x10] sm:$0xf]
        %v7292 = vld [vmem:[%s7286 + $0x14] sm:$0xf]
        %v7293 = vld [vmem:[%s7286 + $0x18] sm:$0xf]
        %v7294 = vld [vmem:[%s7286 + $0x1c] sm:$0xf]
        %v7295 = vld [vmem:[%s7286 + $0x20] sm:$0xf]
        %v7296 = vld [vmem:[%s7286 + $0x24] sm:$0xf]
        %v7297 = vld [vmem:[%s7286 + $0x28] sm:$0xf]
        %v7298 = vld [vmem:[%s7286 + $0x2c] sm:$0xf]
        %v7299 = vld [vmem:[%s7286 + $0x30] sm:$0xf]
        %v7300 = vld [vmem:[%s7286 + $0x34] sm:$0xf]
        %v7301 = vld [vmem:[%s7286 + $0x38] sm:$0xf]
        %v7302 = vld [vmem:[%s7286 + $0x3c] sm:$0xf]
        %v7303 = vld [vmem:[%s7286 + $0x40] sm:$0xf]
        %v7304 = vld [vmem:[%s7286 + $0x44] sm:$0xf]
        %v7305 = vld [vmem:[%s7286 + $0x48] sm:$0xf]
        %v7306 = vld [vmem:[%s7286 + $0x4c] sm:$0xf]
        %v7307 = vld [vmem:[%s7286 + $0x50] sm:$0xf]
        %v7308 = vld [vmem:[%s7286 + $0x54] sm:$0xf]
        %v7309 = vld [vmem:[%s7286 + $0x58] sm:$0xf]
        %v7310 = vld [vmem:[%s7286 + $0x5c] sm:$0xf]
        %v7311 = vld [vmem:[%s7286 + $0x60] sm:$0xf]
        %v7312 = vld [vmem:[%s7286 + $0x64] sm:$0xf]
        %v7313 = vld [vmem:[%s7286 + $0x68] sm:$0xf]
        %v7314 = vld [vmem:[%s7286 + $0x6c] sm:$0xf]
        %v7315 = vld [vmem:[%s7286 + $0x70] sm:$0xf]
        %v7316 = vld [vmem:[%s7286 + $0x74] sm:$0xf]
        %v7317 = vld [vmem:[%s7286 + $0x78] sm:$0xf]
        %v7318 = vld [vmem:[%s7286 + $0x7c] sm:$0xf]
        %v7319 = vld [vmem:[%s7286 + $0x80] sm:$0xf]
        %v7320 = vld [vmem:[%s7286 + $0x84] sm:$0xf]
        %v7321 = vld [vmem:[%s7286 + $0x88] sm:$0xf]
        %v7322 = vld [vmem:[%s7286 + $0x8c] sm:$0xf]
        %v7359 = vunpack.c.l.b16 %v7287
        %v7360 = vunpack.c.l.b16 %v7288
        %v7361 = vunpack.c.l.b16 %v7289
        %v7362 = vunpack.c.l.b16 %v7290
        %v7363 = vunpack.c.l.b16 %v7291
        %v7364 = vunpack.c.l.b16 %v7292
        %v7365 = vunpack.c.l.b16 %v7293
        %v7366 = vunpack.c.l.b16 %v7294
        %v7367 = vunpack.c.l.b16 %v7295
        %v7368 = vunpack.c.l.b16 %v7296
        %v7369 = vunpack.c.l.b16 %v7297
        %v7370 = vunpack.c.l.b16 %v7298
        %v7371 = vunpack.c.l.b16 %v7299
        %v7372 = vunpack.c.l.b16 %v7300
        %v7373 = vunpack.c.l.b16 %v7301
        %v7374 = vunpack.c.l.b16 %v7302
        %v7375 = vunpack.c.l.b16 %v7303
        %v7376 = vunpack.c.l.b16 %v7304
        %v7377 = vunpack.c.l.b16 %v7305
        %v7378 = vunpack.c.l.b16 %v7306
        %v7379 = vunpack.c.l.b16 %v7307
        %v7380 = vunpack.c.l.b16 %v7308
        %v7381 = vunpack.c.l.b16 %v7309
        %v7382 = vunpack.c.l.b16 %v7310
        %v7383 = vunpack.c.l.b16 %v7311
        %v7384 = vunpack.c.l.b16 %v7312
        %v7385 = vunpack.c.l.b16 %v7313
        %v7386 = vunpack.c.l.b16 %v7314
        %v7387 = vunpack.c.l.b16 %v7315
        %v7388 = vunpack.c.l.b16 %v7316
        %v7389 = vunpack.c.l.b16 %v7317
        %v7390 = vunpack.c.l.b16 %v7318
        %v7391 = vunpack.c.l.b16 %v7319
        %v7392 = vunpack.c.l.b16 %v7320
        %v7393 = vunpack.c.l.b16 %v7321
        %v7394 = vunpack.c.l.b16 %v7322
        %v7395 = vpack.c.b16 %v7360, %v7359
        %v7396 = vpack.c.b16 %v7362, %v7361
        %v7397 = vpack.c.b16 %v7364, %v7363
        %v7398 = vpack.c.b16 %v7366, %v7365
        %v7399 = vpack.c.b16 %v7368, %v7367
        %v7400 = vpack.c.b16 %v7370, %v7369
        %v7401 = vpack.c.b16 %v7372, %v7371
        %v7402 = vpack.c.b16 %v7374, %v7373
        %v7403 = vpack.c.b16 %v7376, %v7375
        %v7404 = vpack.c.b16 %v7378, %v7377
        %v7405 = vpack.c.b16 %v7380, %v7379
        %v7406 = vpack.c.b16 %v7382, %v7381
        %v7407 = vpack.c.b16 %v7384, %v7383
        %v7408 = vpack.c.b16 %v7386, %v7385
        %v7409 = vpack.c.b16 %v7388, %v7387
        %v7410 = vpack.c.b16 %v7390, %v7389
        %v7411 = vpack.c.b16 %v7392, %v7391
        %v7412 = vpack.c.b16 %v7394, %v7393
        %v7432 = vsel %vm481, %v6582, 0
        %v7435 = vsel %vm481, %v6599, 0
        %v7438 = vsel %vm481, %v6616, 0
        %v7441 = vsel %vm481, %v6633, 0
        %v7444 = vsel %vm481, %v6650, 0
        %v7447 = vsel %vm481, %v6667, 0
        %v7450 = vsel %vm481, %v6684, 0
        %v7453 = vsel %vm481, %v6701, 0
        %v7456 = vsel %vm481, %v6718, 0
        %v7459 = vsel %vm481, %v6735, 0
        %v7462 = vsel %vm481, %v6752, 0
        %v7465 = vsel %vm481, %v6769, 0
        %v7468 = vsel %vm481, %v6786, 0
        %v7471 = vsel %vm481, %v6803, 0
        %v7474 = vsel %vm481, %v6820, 0
        %v7477 = vsel %vm481, %v6837, 0
        %7479 = vmatprep.subr.bf16.mxu0 0
        %7480 = vmatpush1.bf16.msra.mxu0 %v7395
        %7481 = vmatprep.subr.bf16.mxu0 0
        %7482 = vmatpush1.bf16.msra.mxu0 %v7396
        %7483 = vmatprep.subr.bf16.mxu0 0
        %7484 = vmatpush1.bf16.msra.mxu0 %v7397
        %7485 = vmatprep.subr.bf16.mxu0 0
        %7486 = vmatpush1.bf16.msra.mxu0 %v7398
        %7487 = vmatprep.subr.bf16.mxu0 0
        %7488 = vmatpush1.bf16.msra.mxu0 %v7399
        %7489 = vmatprep.subr.bf16.mxu0 0
        %7490 = vmatpush1.bf16.msra.mxu0 %v7400
        %7491 = vmatprep.subr.bf16.mxu0 0
        %7492 = vmatpush1.bf16.msra.mxu0 %v7401
        %7493 = vmatprep.subr.bf16.mxu0 0
        %7494 = vmatpush1.bf16.msra.mxu0 %v7402
        %7495 = vmatprep.subr.bf16.mxu0 0
        %7496 = vmatpush1.bf16.msra.mxu0 %v7403
        %7497 = vmatprep.subr.bf16.mxu0 0
        %7498 = vmatpush1.bf16.msra.mxu0 %v7404
        %7499 = vmatprep.subr.bf16.mxu0 0
        %7500 = vmatpush1.bf16.msra.mxu0 %v7405
        %7501 = vmatprep.subr.bf16.mxu0 0
        %7502 = vmatpush1.bf16.msra.mxu0 %v7406
        %7503 = vmatprep.subr.bf16.mxu0 0
        %7504 = vmatpush1.bf16.msra.mxu0 %v7407
        %7505 = vmatprep.subr.bf16.mxu0 0
        %7506 = vmatpush1.bf16.msra.mxu0 %v7408
        %7507 = vmatprep.subr.bf16.mxu0 0
        %7508 = vmatpush1.bf16.msra.mxu0 %v7409
        %7509 = vmatprep.subr.bf16.mxu0 0
        %7510 = vmatpush1.bf16.msra.mxu0 %v7410
        %7511 = vmatprep.mubr.bf16.mxu0 %v7239
        %7512 = vmatmul.mubr.bf16.gmra.mrb[0].mxu0 %v7111
        %v7513 = vpop.f32.mrb[0].mxu0
        %v7514 = vadd.f32 0.0, %v7513
        %v7515 = vpop.f32.mrb[0].mxu0
        %v7516 = vpop.f32.mrb[0].mxu0
        %v7517 = vadd.f32 0.0, %v7516
        %v7518 = vpop.f32.mrb[0].mxu0
        %7519 = vmatprep.mubr.bf16.mxu0 %v7242
        %7520 = vmatmul.mubr.bf16.gmra.mrb[0].mxu0 %v7114
        %v7521 = vpop.f32.mrb[0].mxu0
        %v7522 = vadd.f32 0.0, %v7521
        %v7523 = vpop.f32.mrb[0].mxu0
        %v7524 = vpop.f32.mrb[0].mxu0
        %v7525 = vadd.f32 0.0, %v7524
        %v7526 = vpop.f32.mrb[0].mxu0
        %7527 = vmatprep.mubr.bf16.mxu0 %v7245
        %7528 = vmatmul.mubr.bf16.gmra.mrb[0].mxu0 %v7117
        %v7529 = vpop.f32.mrb[0].mxu0
        %v7530 = vadd.f32 0.0, %v7529
        %v7531 = vpop.f32.mrb[0].mxu0
        %v7532 = vpop.f32.mrb[0].mxu0
        %v7533 = vadd.f32 0.0, %v7532
        %v7534 = vpop.f32.mrb[0].mxu0
        %7535 = vmatprep.mubr.bf16.mxu0 %v7248
        %7536 = vmatmul.mubr.bf16.gmra.mrb[0].mxu0 %v7120
        %v7537 = vpop.f32.mrb[0].mxu0
        %v7538 = vadd.f32 0.0, %v7537
        %v7539 = vpop.f32.mrb[0].mxu0
        %v7540 = vpop.f32.mrb[0].mxu0
        %v7541 = vadd.f32 0.0, %v7540
        %v7542 = vpop.f32.mrb[0].mxu0
        %7543 = vmatprep.mubr.bf16.mxu0 %v7251
        %7544 = vmatmul.mubr.bf16.gmra.mrb[0].mxu0 %v7123
        %v7545 = vpop.f32.mrb[0].mxu0
        %v7546 = vadd.f32 0.0, %v7545
        %v7547 = vpop.f32.mrb[0].mxu0
        %v7548 = vpop.f32.mrb[0].mxu0
        %v7549 = vadd.f32 0.0, %v7548
        %v7550 = vpop.f32.mrb[0].mxu0
        %7551 = vmatprep.mubr.bf16.mxu0 %v7254
        %7552 = vmatmul.mubr.bf16.gmra.mrb[0].mxu0 %v7126
        %v7553 = vpop.f32.mrb[0].mxu0
        %v7554 = vadd.f32 0.0, %v7553
        %v7555 = vpop.f32.mrb[0].mxu0
        %v7556 = vpop.f32.mrb[0].mxu0
        %v7557 = vadd.f32 0.0, %v7556
        %v7558 = vpop.f32.mrb[0].mxu0
        %7559 = vmatprep.mubr.bf16.mxu0 %v7257
        %7560 = vmatmul.mubr.bf16.gmra.mrb[0].mxu0 %v7129
        %v7561 = vpop.f32.mrb[0].mxu0
        %v7562 = vadd.f32 0.0, %v7561
        %v7563 = vpop.f32.mrb[0].mxu0
        %v7564 = vpop.f32.mrb[0].mxu0
        %v7565 = vadd.f32 0.0, %v7564
        %v7566 = vpop.f32.mrb[0].mxu0
        %7567 = vmatprep.mubr.bf16.mxu0 %v7260
        %7568 = vmatmul.mubr.bf16.gmra.mrb[0].mxu0 %v7132
        %v7569 = vpop.f32.mrb[0].mxu0
        %v7570 = vadd.f32 0.0, %v7569
        %v7571 = vpop.f32.mrb[0].mxu0
        %v7572 = vpop.f32.mrb[0].mxu0
        %v7573 = vadd.f32 0.0, %v7572
        %v7574 = vpop.f32.mrb[0].mxu0
        %7575 = vmatprep.mubr.bf16.mxu0 %v7263
        %7576 = vmatmul.mubr.bf16.gmra.mrb[0].mxu0 %v7135
        %v7577 = vpop.f32.mrb[0].mxu0
        %v7578 = vadd.f32 0.0, %v7577
        %v7579 = vpop.f32.mrb[0].mxu0
        %v7580 = vpop.f32.mrb[0].mxu0
        %v7581 = vadd.f32 0.0, %v7580
        %v7582 = vpop.f32.mrb[0].mxu0
        %7583 = vmatprep.mubr.bf16.mxu0 %v7266
        %7584 = vmatmul.mubr.bf16.gmra.mrb[0].mxu0 %v7138
        %v7585 = vpop.f32.mrb[0].mxu0
        %v7586 = vadd.f32 0.0, %v7585
        %v7587 = vpop.f32.mrb[0].mxu0
        %v7588 = vpop.f32.mrb[0].mxu0
        %v7589 = vadd.f32 0.0, %v7588
        %v7590 = vpop.f32.mrb[0].mxu0
        %7591 = vmatprep.mubr.bf16.mxu0 %v7269
        %7592 = vmatmul.mubr.bf16.gmra.mrb[0].mxu0 %v7141
        %v7593 = vpop.f32.mrb[0].mxu0
        %v7594 = vadd.f32 0.0, %v7593
        %v7595 = vpop.f32.mrb[0].mxu0
        %v7596 = vpop.f32.mrb[0].mxu0
        %v7597 = vadd.f32 0.0, %v7596
        %v7598 = vpop.f32.mrb[0].mxu0
        %7599 = vmatprep.mubr.bf16.mxu0 %v7272
        %7600 = vmatmul.mubr.bf16.gmra.mrb[0].mxu0 %v7144
        %v7601 = vpop.f32.mrb[0].mxu0
        %v7602 = vadd.f32 0.0, %v7601
        %v7603 = vpop.f32.mrb[0].mxu0
        %v7604 = vpop.f32.mrb[0].mxu0
        %v7605 = vadd.f32 0.0, %v7604
        %v7606 = vpop.f32.mrb[0].mxu0
        %7607 = vmatprep.mubr.bf16.mxu0 %v7275
        %7608 = vmatmul.mubr.bf16.gmra.mrb[0].mxu0 %v7147
        %v7609 = vpop.f32.mrb[0].mxu0
        %v7610 = vadd.f32 0.0, %v7609
        %v7611 = vpop.f32.mrb[0].mxu0
        %v7612 = vpop.f32.mrb[0].mxu0
        %v7613 = vadd.f32 0.0, %v7612
        %v7614 = vpop.f32.mrb[0].mxu0
        %7615 = vmatprep.mubr.bf16.mxu0 %v7278
        %7616 = vmatmul.mubr.bf16.gmra.mrb[0].mxu0 %v7150
        %v7617 = vpop.f32.mrb[0].mxu0
        %v7618 = vadd.f32 0.0, %v7617
        %v7619 = vpop.f32.mrb[0].mxu0
        %v7620 = vpop.f32.mrb[0].mxu0
        %v7621 = vadd.f32 0.0, %v7620
        %v7622 = vpop.f32.mrb[0].mxu0
        %7623 = vmatprep.mubr.bf16.mxu0 %v7281
        %7624 = vmatmul.mubr.bf16.gmra.mrb[0].mxu0 %v7153
        %v7625 = vpop.f32.mrb[0].mxu0
        %v7626 = vadd.f32 0.0, %v7625
        %v7627 = vpop.f32.mrb[0].mxu0
        %v7628 = vpop.f32.mrb[0].mxu0
        %v7629 = vadd.f32 0.0, %v7628
        %v7630 = vpop.f32.mrb[0].mxu0
        %7631 = vmatprep.mubr.bf16.mxu0 %v7284
        %7632 = vmatmul.mubr.bf16.gmra.mrb[0].mxu0 %v7156
        %v7633 = vpop.f32.mrb[0].mxu0
        %v7634 = vadd.f32 0.0, %v7633
        %v7635 = vpop.f32.mrb[0].mxu0
        %v7636 = vpop.f32.mrb[0].mxu0
        %v7637 = vadd.f32 0.0, %v7636
        %v7638 = vpop.f32.mrb[0].mxu0
        %7639 = vdwg.mxu0
        %7640 = vmatprep.subr.bf16.mxu0 0
        %7641 = vmatpush1.bf16.msra.mxu0 %v7411
        %7642 = vmatprep.subr.bf16.mxu0 0
        %7643 = vmatpush1.bf16.msra.mxu0 %v7412
        %7644 = vmatprep.subr.bf16.mxu0 0
        %7645 = vmatpush1.bf16.msra.mxu0 0
        %7646 = vmatprep.subr.bf16.mxu0 0
        %7647 = vmatpush1.bf16.msra.mxu0 0
        %7648 = vmatprep.subr.bf16.mxu0 0
        %7649 = vmatpush1.bf16.msra.mxu0 0
        %7650 = vmatprep.subr.bf16.mxu0 0
        %7651 = vmatpush1.bf16.msra.mxu0 0
        %7652 = vmatprep.subr.bf16.mxu0 0
        %7653 = vmatpush1.bf16.msra.mxu0 0
        %7654 = vmatprep.subr.bf16.mxu0 0
        %7655 = vmatpush1.bf16.msra.mxu0 0
        %7656 = vmatprep.subr.bf16.mxu0 0
        %7657 = vmatpush1.bf16.msra.mxu0 0
        %7658 = vmatprep.subr.bf16.mxu0 0
        %7659 = vmatpush1.bf16.msra.mxu0 0
        %7660 = vmatprep.subr.bf16.mxu0 0
        %7661 = vmatpush1.bf16.msra.mxu0 0
        %7662 = vmatprep.subr.bf16.mxu0 0
        %7663 = vmatpush1.bf16.msra.mxu0 0
        %7664 = vmatprep.subr.bf16.mxu0 0
        %7665 = vmatpush1.bf16.msra.mxu0 0
        %7666 = vmatprep.subr.bf16.mxu0 0
        %7667 = vmatpush1.bf16.msra.mxu0 0
        %7668 = vmatprep.subr.bf16.mxu0 0
        %7669 = vmatpush1.bf16.msra.mxu0 0
        %7670 = vmatprep.subr.bf16.mxu0 0
        %7671 = vmatpush1.bf16.msra.mxu0 0
        %7672 = vmatprep.mubr.bf16.mxu0 0
        %7673 = vmatmul.mubr.bf16.gmra.mrb[0].mxu0 %v7432
        %v7674 = vpop.f32.mrb[0].mxu0
        %v7675 = vadd.f32 %v7514, %v7674
        %v7676 = vpop.f32.mrb[0].mxu0
        %v7677 = vpop.f32.mrb[0].mxu0
        %v7678 = vadd.f32 %v7517, %v7677
        %v7679 = vpop.f32.mrb[0].mxu0
        %7680 = vmatprep.mubr.bf16.mxu0 0
        %7681 = vmatmul.mubr.bf16.gmra.mrb[0].mxu0 %v7435
        %v7682 = vpop.f32.mrb[0].mxu0
        %v7683 = vadd.f32 %v7522, %v7682
        %v7684 = vpop.f32.mrb[0].mxu0
        %v7685 = vpop.f32.mrb[0].mxu0
        %v7686 = vadd.f32 %v7525, %v7685
        %v7687 = vpop.f32.mrb[0].mxu0
        %7688 = vmatprep.mubr.bf16.mxu0 0
        %7689 = vmatmul.mubr.bf16.gmra.mrb[0].mxu0 %v7438
        %v7690 = vpop.f32.mrb[0].mxu0
        %v7691 = vadd.f32 %v7530, %v7690
        %v7692 = vpop.f32.mrb[0].mxu0
        %v7693 = vpop.f32.mrb[0].mxu0
        %v7694 = vadd.f32 %v7533, %v7693
        %v7695 = vpop.f32.mrb[0].mxu0
        %7696 = vmatprep.mubr.bf16.mxu0 0
        %7697 = vmatmul.mubr.bf16.gmra.mrb[0].mxu0 %v7441
        %v7698 = vpop.f32.mrb[0].mxu0
        %v7699 = vadd.f32 %v7538, %v7698
        %v7700 = vpop.f32.mrb[0].mxu0
        %v7701 = vpop.f32.mrb[0].mxu0
        %v7702 = vadd.f32 %v7541, %v7701
        %v7703 = vpop.f32.mrb[0].mxu0
        %7704 = vmatprep.mubr.bf16.mxu0 0
        %7705 = vmatmul.mubr.bf16.gmra.mrb[0].mxu0 %v7444
        %v7706 = vpop.f32.mrb[0].mxu0
        %v7707 = vadd.f32 %v7546, %v7706
        %v7708 = vpop.f32.mrb[0].mxu0
        %v7709 = vpop.f32.mrb[0].mxu0
        %v7710 = vadd.f32 %v7549, %v7709
        %v7711 = vpop.f32.mrb[0].mxu0
        %7712 = vmatprep.mubr.bf16.mxu0 0
        %7713 = vmatmul.mubr.bf16.gmra.mrb[0].mxu0 %v7447
        %v7714 = vpop.f32.mrb[0].mxu0
        %v7715 = vadd.f32 %v7554, %v7714
        %v7716 = vpop.f32.mrb[0].mxu0
        %v7717 = vpop.f32.mrb[0].mxu0
        %v7718 = vadd.f32 %v7557, %v7717
        %v7719 = vpop.f32.mrb[0].mxu0
        %7720 = vmatprep.mubr.bf16.mxu0 0
        %7721 = vmatmul.mubr.bf16.gmra.mrb[0].mxu0 %v7450
        %v7722 = vpop.f32.mrb[0].mxu0
        %v7723 = vadd.f32 %v7562, %v7722
        %v7724 = vpop.f32.mrb[0].mxu0
        %v7725 = vpop.f32.mrb[0].mxu0
        %v7726 = vadd.f32 %v7565, %v7725
        %v7727 = vpop.f32.mrb[0].mxu0
        %7728 = vmatprep.mubr.bf16.mxu0 0
        %7729 = vmatmul.mubr.bf16.gmra.mrb[0].mxu0 %v7453
        %v7730 = vpop.f32.mrb[0].mxu0
        %v7731 = vadd.f32 %v7570, %v7730
        %v7732 = vpop.f32.mrb[0].mxu0
        %v7733 = vpop.f32.mrb[0].mxu0
        %v7734 = vadd.f32 %v7573, %v7733
        %v7735 = vpop.f32.mrb[0].mxu0
        %7736 = vmatprep.mubr.bf16.mxu0 0
        %7737 = vmatmul.mubr.bf16.gmra.mrb[0].mxu0 %v7456
        %v7738 = vpop.f32.mrb[0].mxu0
        %v7739 = vadd.f32 %v7578, %v7738
        %v7740 = vpop.f32.mrb[0].mxu0
        %v7741 = vpop.f32.mrb[0].mxu0
        %v7742 = vadd.f32 %v7581, %v7741
        %v7743 = vpop.f32.mrb[0].mxu0
        %7744 = vmatprep.mubr.bf16.mxu0 0
        %7745 = vmatmul.mubr.bf16.gmra.mrb[0].mxu0 %v7459
        %v7746 = vpop.f32.mrb[0].mxu0
        %v7747 = vadd.f32 %v7586, %v7746
        %v7748 = vpop.f32.mrb[0].mxu0
        %v7749 = vpop.f32.mrb[0].mxu0
        %v7750 = vadd.f32 %v7589, %v7749
        %v7751 = vpop.f32.mrb[0].mxu0
        %7752 = vmatprep.mubr.bf16.mxu0 0
        %7753 = vmatmul.mubr.bf16.gmra.mrb[0].mxu0 %v7462
        %v7754 = vpop.f32.mrb[0].mxu0
        %v7755 = vadd.f32 %v7594, %v7754
        %v7756 = vpop.f32.mrb[0].mxu0
        %v7757 = vpop.f32.mrb[0].mxu0
        %v7758 = vadd.f32 %v7597, %v7757
        %v7759 = vpop.f32.mrb[0].mxu0
        %7760 = vmatprep.mubr.bf16.mxu0 0
        %7761 = vmatmul.mubr.bf16.gmra.mrb[0].mxu0 %v7465
        %v7762 = vpop.f32.mrb[0].mxu0
        %v7763 = vadd.f32 %v7602, %v7762
        %v7764 = vpop.f32.mrb[0].mxu0
        %v7765 = vpop.f32.mrb[0].mxu0
        %v7766 = vadd.f32 %v7605, %v7765
        %v7767 = vpop.f32.mrb[0].mxu0
        %7768 = vmatprep.mubr.bf16.mxu0 0
        %7769 = vmatmul.mubr.bf16.gmra.mrb[0].mxu0 %v7468
        %v7770 = vpop.f32.mrb[0].mxu0
        %v7771 = vadd.f32 %v7610, %v7770
        %v7772 = vpop.f32.mrb[0].mxu0
        %v7773 = vpop.f32.mrb[0].mxu0
        %v7774 = vadd.f32 %v7613, %v7773
        %v7775 = vpop.f32.mrb[0].mxu0
        %7776 = vmatprep.mubr.bf16.mxu0 0
        %7777 = vmatmul.mubr.bf16.gmra.mrb[0].mxu0 %v7471
        %v7778 = vpop.f32.mrb[0].mxu0
        %v7779 = vadd.f32 %v7618, %v7778
        %v7780 = vpop.f32.mrb[0].mxu0
        %v7781 = vpop.f32.mrb[0].mxu0
        %v7782 = vadd.f32 %v7621, %v7781
        %v7783 = vpop.f32.mrb[0].mxu0
        %7784 = vmatprep.mubr.bf16.mxu0 0
        %7785 = vmatmul.mubr.bf16.gmra.mrb[0].mxu0 %v7474
        %v7786 = vpop.f32.mrb[0].mxu0
        %v7787 = vadd.f32 %v7626, %v7786
        %v7788 = vpop.f32.mrb[0].mxu0
        %v7789 = vpop.f32.mrb[0].mxu0
        %v7790 = vadd.f32 %v7629, %v7789
        %v7791 = vpop.f32.mrb[0].mxu0
        %7792 = vmatprep.mubr.bf16.mxu0 0
        %7793 = vmatmul.mubr.bf16.gmra.mrb[0].mxu0 %v7477
        %v7794 = vpop.f32.mrb[0].mxu0
        %v7795 = vadd.f32 %v7634, %v7794
        %v7796 = vpop.f32.mrb[0].mxu0
        %v7797 = vpop.f32.mrb[0].mxu0
        %v7798 = vadd.f32 %v7637, %v7797
        %v7799 = vpop.f32.mrb[0].mxu0
        %7800 = vdwg.mxu0
        %s7801 = scalar_lea.vmem %s8, 1
        %v7802 = vld [vmem:[%s7801] sm:$0x1]
        %v7804 = vlaneseq
        %v7805 = vshrl.u32 %v7804, 7
        %v7806 = vsub.s32 0, %v7805
        %v7807 = vrot.slane %v7802, %v7806
        %v7809 = vmul.f32 %v7675, %v7807
        %v7810 = vmul.f32 %v7678, %v7807
        %v7811 = vmul.f32 %v7683, %v7807
        %v7812 = vmul.f32 %v7686, %v7807
        %v7813 = vmul.f32 %v7691, %v7807
        %v7814 = vmul.f32 %v7694, %v7807
        %v7815 = vmul.f32 %v7699, %v7807
        %v7816 = vmul.f32 %v7702, %v7807
        %v7817 = vmul.f32 %v7707, %v7807
        %v7818 = vmul.f32 %v7710, %v7807
        %v7819 = vmul.f32 %v7715, %v7807
        %v7820 = vmul.f32 %v7718, %v7807
        %v7821 = vmul.f32 %v7723, %v7807
        %v7822 = vmul.f32 %v7726, %v7807
        %v7823 = vmul.f32 %v7731, %v7807
        %v7824 = vmul.f32 %v7734, %v7807
        %v7825 = vmul.f32 %v7739, %v7807
        %v7826 = vmul.f32 %v7742, %v7807
        %v7827 = vmul.f32 %v7747, %v7807
        %v7828 = vmul.f32 %v7750, %v7807
        %v7829 = vmul.f32 %v7755, %v7807
        %v7830 = vmul.f32 %v7758, %v7807
        %v7831 = vmul.f32 %v7763, %v7807
        %v7832 = vmul.f32 %v7766, %v7807
        %v7833 = vmul.f32 %v7771, %v7807
        %v7834 = vmul.f32 %v7774, %v7807
        %v7835 = vmul.f32 %v7779, %v7807
        %v7836 = vmul.f32 %v7782, %v7807
        %v7837 = vmul.f32 %v7787, %v7807
        %v7838 = vmul.f32 %v7790, %v7807
        %v7839 = vmul.f32 %v7795, %v7807
        %v7840 = vmul.f32 %v7798, %v7807
        %s7841 = scalar_lea.vmem %s9, 1
        %v7842 = vld [vmem:[%s7841] sm:$0x1]
        %v7844 = vlaneseq
        %v7845 = vshrl.u32 %v7844, 7
        %v7846 = vsub.s32 0, %v7845
        %v7847 = vrot.slane %v7842, %v7846
        %v7849 = vadd.f32 %v7809, %v7847
        %v7850 = vadd.f32 %v7810, %v7847
        %v7851 = vadd.f32 %v7811, %v7847
        %v7852 = vadd.f32 %v7812, %v7847
        %v7853 = vadd.f32 %v7813, %v7847
        %v7854 = vadd.f32 %v7814, %v7847
        %v7855 = vadd.f32 %v7815, %v7847
        %v7856 = vadd.f32 %v7816, %v7847
        %v7857 = vadd.f32 %v7817, %v7847
        %v7858 = vadd.f32 %v7818, %v7847
        %v7859 = vadd.f32 %v7819, %v7847
        %v7860 = vadd.f32 %v7820, %v7847
        %v7861 = vadd.f32 %v7821, %v7847
        %v7862 = vadd.f32 %v7822, %v7847
        %v7863 = vadd.f32 %v7823, %v7847
        %v7864 = vadd.f32 %v7824, %v7847
        %v7865 = vadd.f32 %v7825, %v7847
        %v7866 = vadd.f32 %v7826, %v7847
        %v7867 = vadd.f32 %v7827, %v7847
        %v7868 = vadd.f32 %v7828, %v7847
        %v7869 = vadd.f32 %v7829, %v7847
        %v7870 = vadd.f32 %v7830, %v7847
        %v7871 = vadd.f32 %v7831, %v7847
        %v7872 = vadd.f32 %v7832, %v7847
        %v7873 = vadd.f32 %v7833, %v7847
        %v7874 = vadd.f32 %v7834, %v7847
        %v7875 = vadd.f32 %v7835, %v7847
        %v7876 = vadd.f32 %v7836, %v7847
        %v7877 = vadd.f32 %v7837, %v7847
        %v7878 = vadd.f32 %v7838, %v7847
        %v7879 = vadd.f32 %v7839, %v7847
        %v7880 = vadd.f32 %v7840, %v7847
        %v7881 = vmax.f32 %v7849, 0.0
        %v7882 = vmax.f32 %v7850, 0.0
        %v7883 = vmax.f32 %v7851, 0.0
        %v7884 = vmax.f32 %v7852, 0.0
        %v7885 = vmax.f32 %v7853, 0.0
        %v7886 = vmax.f32 %v7854, 0.0
        %v7887 = vmax.f32 %v7855, 0.0
        %v7888 = vmax.f32 %v7856, 0.0
        %v7889 = vmax.f32 %v7857, 0.0
        %v7890 = vmax.f32 %v7858, 0.0
        %v7891 = vmax.f32 %v7859, 0.0
        %v7892 = vmax.f32 %v7860, 0.0
        %v7893 = vmax.f32 %v7861, 0.0
        %v7894 = vmax.f32 %v7862, 0.0
        %v7895 = vmax.f32 %v7863, 0.0
        %v7896 = vmax.f32 %v7864, 0.0
        %v7897 = vmax.f32 %v7865, 0.0
        %v7898 = vmax.f32 %v7866, 0.0
        %v7899 = vmax.f32 %v7867, 0.0
        %v7900 = vmax.f32 %v7868, 0.0
        %v7901 = vmax.f32 %v7869, 0.0
        %v7902 = vmax.f32 %v7870, 0.0
        %v7903 = vmax.f32 %v7871, 0.0
        %v7904 = vmax.f32 %v7872, 0.0
        %v7905 = vmax.f32 %v7873, 0.0
        %v7906 = vmax.f32 %v7874, 0.0
        %v7907 = vmax.f32 %v7875, 0.0
        %v7908 = vmax.f32 %v7876, 0.0
        %v7909 = vmax.f32 %v7877, 0.0
        %v7910 = vmax.f32 %v7878, 0.0
        %v7911 = vmax.f32 %v7879, 0.0
        %v7912 = vmax.f32 %v7880, 0.0
        %v7913 = vpack.c.bf16 %v7882, %v7881
        %v7914 = vpack.c.bf16 %v7884, %v7883
        %v7915 = vpack.c.bf16 %v7886, %v7885
        %v7916 = vpack.c.bf16 %v7888, %v7887
        %v7917 = vpack.c.bf16 %v7890, %v7889
        %v7918 = vpack.c.bf16 %v7892, %v7891
        %v7919 = vpack.c.bf16 %v7894, %v7893
        %v7920 = vpack.c.bf16 %v7896, %v7895
        %v7921 = vpack.c.bf16 %v7898, %v7897
        %v7922 = vpack.c.bf16 %v7900, %v7899
        %v7923 = vpack.c.bf16 %v7902, %v7901
        %v7924 = vpack.c.bf16 %v7904, %v7903
        %v7925 = vpack.c.bf16 %v7906, %v7905
        %v7926 = vpack.c.bf16 %v7908, %v7907
        %v7927 = vpack.c.bf16 %v7910, %v7909
        %v7928 = vpack.c.bf16 %v7912, %v7911
        %7929 = vst [vmem:[#allocation3 + $0x8] sm:$0xff] %v7913
        %7930 = vst [vmem:[#allocation3 + $0x20] sm:$0xff] %v7914
        %7931 = vst [vmem:[#allocation3 + $0x38] sm:$0xff] %v7915
        %7932 = vst [vmem:[#allocation3 + $0x50] sm:$0xff] %v7916
        %7933 = vst [vmem:[#allocation3 + $0x68] sm:$0xff] %v7917
        %7934 = vst [vmem:[#allocation3 + $0x80] sm:$0xff] %v7918
        %7935 = vst [vmem:[#allocation3 + $0x98] sm:$0xff] %v7919
        %7936 = vst [vmem:[#allocation3 + $0xb0] sm:$0xff] %v7920
        %7937 = vst [vmem:[#allocation3 + $0xc8] sm:$0xff] %v7921
        %7938 = vst [vmem:[#allocation3 + $0xe0] sm:$0xff] %v7922
        %7939 = vst [vmem:[#allocation3 + $0xf8] sm:$0xff] %v7923
        %7940 = vst [vmem:[#allocation3 + $0x110] sm:$0xff] %v7924
        %7941 = vst [vmem:[#allocation3 + $0x128] sm:$0xff] %v7925
        %7942 = vst [vmem:[#allocation3 + $0x140] sm:$0xff] %v7926
        %7943 = vst [vmem:[#allocation3 + $0x158] sm:$0xff] %v7927
        %7944 = vst [vmem:[#allocation3 + $0x170] sm:$0xff] %v7928
        %v7945 = vld [vmem:[%s478] sm:$0xf]
        %v7946 = vld [vmem:[%s478 + $0x4] sm:$0xf]
        %v7947 = vld [vmem:[%s478 + $0x8] sm:$0xf]
        %v7948 = vld [vmem:[%s478 + $0xc] sm:$0xf]
        %v7949 = vld [vmem:[%s478 + $0x10] sm:$0xf]
        %v7950 = vld [vmem:[%s478 + $0x14] sm:$0xf]
        %v7951 = vld [vmem:[%s478 + $0x18] sm:$0xf]
        %v7952 = vld [vmem:[%s478 + $0x1c] sm:$0xf]
        %v7953 = vld [vmem:[%s478 + $0x20] sm:$0xf]
        %v7954 = vld [vmem:[%s478 + $0x24] sm:$0xf]
        %v7955 = vld [vmem:[%s478 + $0x28] sm:$0xf]
        %v7956 = vld [vmem:[%s478 + $0x2c] sm:$0xf]
        %v7957 = vld [vmem:[%s478 + $0x30] sm:$0xf]
        %v7958 = vld [vmem:[%s478 + $0x34] sm:$0xf]
        %v7959 = vld [vmem:[%s478 + $0x38] sm:$0xf]
        %v7960 = vld [vmem:[%s478 + $0x3c] sm:$0xf]
        %v7961 = vld [vmem:[%s478 + $0x40] sm:$0xf]
        %v7962 = vld [vmem:[%s478 + $0x44] sm:$0xf]
        %v7963 = vld [vmem:[%s478 + $0x48] sm:$0xf]
        %v7964 = vld [vmem:[%s478 + $0x4c] sm:$0xf]
        %v7965 = vld [vmem:[%s478 + $0x50] sm:$0xf]
        %v7966 = vld [vmem:[%s478 + $0x54] sm:$0xf]
        %v7967 = vld [vmem:[%s478 + $0x58] sm:$0xf]
        %v7968 = vld [vmem:[%s478 + $0x5c] sm:$0xf]
        %v7969 = vld [vmem:[%s478 + $0x60] sm:$0xf]
        %v7970 = vld [vmem:[%s478 + $0x64] sm:$0xf]
        %v7971 = vld [vmem:[%s478 + $0x68] sm:$0xf]
        %v7972 = vld [vmem:[%s478 + $0x6c] sm:$0xf]
        %v7973 = vld [vmem:[%s478 + $0x70] sm:$0xf]
        %v7974 = vld [vmem:[%s478 + $0x74] sm:$0xf]
        %v7975 = vld [vmem:[%s478 + $0x78] sm:$0xf]
        %v7976 = vld [vmem:[%s478 + $0x7c] sm:$0xf]
        %v8009 = vunpack.c.l.b16 %v7945
        %v8010 = vunpack.c.l.b16 %v7946
        %v8011 = vunpack.c.l.b16 %v7947
        %v8012 = vunpack.c.l.b16 %v7948
        %v8013 = vunpack.c.l.b16 %v7949
        %v8014 = vunpack.c.l.b16 %v7950
        %v8015 = vunpack.c.l.b16 %v7951
        %v8016 = vunpack.c.l.b16 %v7952
        %v8017 = vunpack.c.l.b16 %v7953
        %v8018 = vunpack.c.l.b16 %v7954
        %v8019 = vunpack.c.l.b16 %v7955
        %v8020 = vunpack.c.l.b16 %v7956
        %v8021 = vunpack.c.l.b16 %v7957
        %v8022 = vunpack.c.l.b16 %v7958
        %v8023 = vunpack.c.l.b16 %v7959
        %v8024 = vunpack.c.l.b16 %v7960
        %v8025 = vunpack.c.l.b16 %v7961
        %v8026 = vunpack.c.l.b16 %v7962
        %v8027 = vunpack.c.l.b16 %v7963
        %v8028 = vunpack.c.l.b16 %v7964
        %v8029 = vunpack.c.l.b16 %v7965
        %v8030 = vunpack.c.l.b16 %v7966
        %v8031 = vunpack.c.l.b16 %v7967
        %v8032 = vunpack.c.l.b16 %v7968
        %v8033 = vunpack.c.l.b16 %v7969
        %v8034 = vunpack.c.l.b16 %v7970
        %v8035 = vunpack.c.l.b16 %v7971
        %v8036 = vunpack.c.l.b16 %v7972
        %v8037 = vunpack.c.l.b16 %v7973
        %v8038 = vunpack.c.l.b16 %v7974
        %v8039 = vunpack.c.l.b16 %v7975
        %v8040 = vunpack.c.l.b16 %v7976
        %v8041 = vpack.c.b16 %v8010, %v8009
        %v8042 = vpack.c.b16 %v8012, %v8011
        %v8043 = vpack.c.b16 %v8014, %v8013
        %v8044 = vpack.c.b16 %v8016, %v8015
        %v8045 = vpack.c.b16 %v8018, %v8017
        %v8046 = vpack.c.b16 %v8020, %v8019
        %v8047 = vpack.c.b16 %v8022, %v8021
        %v8048 = vpack.c.b16 %v8024, %v8023
        %v8049 = vpack.c.b16 %v8026, %v8025
        %v8050 = vpack.c.b16 %v8028, %v8027
        %v8051 = vpack.c.b16 %v8030, %v8029
        %v8052 = vpack.c.b16 %v8032, %v8031
        %v8053 = vpack.c.b16 %v8034, %v8033
        %v8054 = vpack.c.b16 %v8036, %v8035
        %v8055 = vpack.c.b16 %v8038, %v8037
        %v8056 = vpack.c.b16 %v8040, %v8039
        %8073 = vmatprep.subr.bf16.mxu0 0
        %8074 = vmatpush1.bf16.msra.mxu0 %v8041
        %8075 = vmatprep.subr.bf16.mxu0 0
        %8076 = vmatpush1.bf16.msra.mxu0 %v8042
        %8077 = vmatprep.subr.bf16.mxu0 0
        %8078 = vmatpush1.bf16.msra.mxu0 %v8043
        %8079 = vmatprep.subr.bf16.mxu0 0
        %8080 = vmatpush1.bf16.msra.mxu0 %v8044
        %8081 = vmatprep.subr.bf16.mxu0 0
        %8082 = vmatpush1.bf16.msra.mxu0 %v8045
        %8083 = vmatprep.subr.bf16.mxu0 0
        %8084 = vmatpush1.bf16.msra.mxu0 %v8046
        %8085 = vmatprep.subr.bf16.mxu0 0
        %8086 = vmatpush1.bf16.msra.mxu0 %v8047
        %8087 = vmatprep.subr.bf16.mxu0 0
        %8088 = vmatpush1.bf16.msra.mxu0 %v8048
        %8089 = vmatprep.subr.bf16.mxu0 0
        %8090 = vmatpush1.bf16.msra.mxu0 %v8049
        %8091 = vmatprep.subr.bf16.mxu0 0
        %8092 = vmatpush1.bf16.msra.mxu0 %v8050
        %8093 = vmatprep.subr.bf16.mxu0 0
        %8094 = vmatpush1.bf16.msra.mxu0 %v8051
        %8095 = vmatprep.subr.bf16.mxu0 0
        %8096 = vmatpush1.bf16.msra.mxu0 %v8052
        %8097 = vmatprep.subr.bf16.mxu0 0
        %8098 = vmatpush1.bf16.msra.mxu0 %v8053
        %8099 = vmatprep.subr.bf16.mxu0 0
        %8100 = vmatpush1.bf16.msra.mxu0 %v8054
        %8101 = vmatprep.subr.bf16.mxu0 0
        %8102 = vmatpush1.bf16.msra.mxu0 %v8055
        %8103 = vmatprep.subr.bf16.mxu0 0
        %8104 = vmatpush1.bf16.msra.mxu0 %v8056
        %8105 = vmatprep.mubr.bf16.mxu0 1065369472
        %8106 = vmatmul.mubr.bf16.gmra.mrb[0].mxu0 1065369472
        %v8107 = vpop.f32.mrb[0].mxu0
        %v8108 = vadd.f32 0.0, %v8107
        %v8109 = vpop.f32.mrb[0].mxu0
        %v8110 = vpop.f32.mrb[0].mxu0
        %v8111 = vpop.f32.mrb[0].mxu0
        %8112 = vdwg.mxu0
        %v8113 = vmul.f32 %v8108, 0.00390625
        %s8114 = scalar_lea.vmem %s3, 64
        %v8115 = vld [vmem:[%s8114] sm:$0xff]
        %v8116 = vld [vmem:[%s8114 + $0x8] sm:$0xff]
        %v8117 = vld [vmem:[%s8114 + $0x10] sm:$0xff]
        %v8118 = vld [vmem:[%s8114 + $0x18] sm:$0xff]
        %s8119 = scalar_lea.vmem %s4, 2
        %v8120 = vld [vmem:[%s8119] sm:$0x1]
        %v8122 = vsel %vm481, %v8113, 0
        %8124 = vmatprep.subr.mxu0 0.0
        %8125 = vmatpush1.msra.mxu0 %v8115
        %8126 = vmatprep.subr.mxu0 0.0
        %8127 = vmatpush1.msra.mxu0 %v8116
        %8128 = vmatprep.subr.mxu0 0.0
        %8129 = vmatpush1.msra.mxu0 %v8117
        %8130 = vmatprep.subr.mxu0 0.0
        %8131 = vmatpush1.msra.mxu0 %v8118
        %8132 = vmatprep.subr.mxu0 0.0
        %8133 = vmatpush1.msra.mxu0 0.0
        %8134 = vmatprep.subr.mxu0 0.0
        %8135 = vmatpush1.msra.mxu0 0.0
        %8136 = vmatprep.subr.mxu0 0.0
        %8137 = vmatpush1.msra.mxu0 0.0
        %8138 = vmatprep.subr.mxu0 0.0
        %8139 = vmatpush1.msra.mxu0 0.0
        %8140 = vmatprep.subr.mxu0 0.0
        %8141 = vmatpush1.msra.mxu0 0.0
        %8142 = vmatprep.subr.mxu0 0.0
        %8143 = vmatpush1.msra.mxu0 0.0
        %8144 = vmatprep.subr.mxu0 0.0
        %8145 = vmatpush1.msra.mxu0 0.0
        %8146 = vmatprep.subr.mxu0 0.0
        %8147 = vmatpush1.msra.mxu0 0.0
        %8148 = vmatprep.subr.mxu0 0.0
        %8149 = vmatpush1.msra.mxu0 0.0
        %8150 = vmatprep.subr.mxu0 0.0
        %8151 = vmatpush1.msra.mxu0 0.0
        %8152 = vmatprep.subr.mxu0 0.0
        %8153 = vmatpush1.msra.mxu0 0.0
        %8154 = vmatprep.subr.mxu0 0.0
        %8155 = vmatpush1.msra.mxu0 0.0
        %8156 = vmatprep.subr.mxu0 0.0
        %8157 = vmatpush1.msra.mxu0 0.0
        %8158 = vmatprep.subr.mxu0 0.0
        %8159 = vmatpush1.msra.mxu0 0.0
        %8160 = vmatprep.subr.mxu0 0.0
        %8161 = vmatpush1.msra.mxu0 0.0
        %8162 = vmatprep.subr.mxu0 0.0
        %8163 = vmatpush1.msra.mxu0 0.0
        %8164 = vmatprep.subr.mxu0 0.0
        %8165 = vmatpush1.msra.mxu0 0.0
        %8166 = vmatprep.subr.mxu0 0.0
        %8167 = vmatpush1.msra.mxu0 0.0
        %8168 = vmatprep.subr.mxu0 0.0
        %8169 = vmatpush1.msra.mxu0 0.0
        %8170 = vmatprep.subr.mxu0 0.0
        %8171 = vmatpush1.msra.mxu0 0.0
        %8172 = vmatprep.subr.mxu0 0.0
        %8173 = vmatpush1.msra.mxu0 0.0
        %8174 = vmatprep.subr.mxu0 0.0
        %8175 = vmatpush1.msra.mxu0 0.0
        %8176 = vmatprep.subr.mxu0 0.0
        %8177 = vmatpush1.msra.mxu0 0.0
        %8178 = vmatprep.subr.mxu0 0.0
        %8179 = vmatpush1.msra.mxu0 0.0
        %8180 = vmatprep.subr.mxu0 0.0
        %8181 = vmatpush1.msra.mxu0 0.0
        %8182 = vmatprep.subr.mxu0 0.0
        %8183 = vmatpush1.msra.mxu0 0.0
        %8184 = vmatprep.subr.mxu0 0.0
        %8185 = vmatpush1.msra.mxu0 0.0
        %8186 = vmatprep.subr.mxu0 0.0
        %8187 = vmatpush1.msra.mxu0 0.0
        %8188 = vmatprep.mubr.f32.mxu0 0.0
        %8189 = vmatmul.mubr.f32.gmra.mrb[0].mxu0 %v8122
        %v8190 = vpop.f32.mrb[0].mxu0
        %v8191 = vadd.f32 %v8120, %v8190
        %v8192 = vpop.f32.mrb[0].mxu0
        %8193 = vdwg.mxu0
        %v8194 = vmax.f32 %v8191, 0.0
        %s8195 = scalar_lea.vmem %s5, 4
        %v8196 = vld [vmem:[%s8195] sm:$0x3]
        %s8197 = scalar_lea.vmem %s6, 2
        %v8198 = vld [vmem:[%s8197] sm:$0x1]
        %v8200 = vsel %vm772, %v8194, 0
        %v8203 = vsel %vm776, %v8196, 0
        %8205 = vmatprep.subr.mxu0 0.0
        %8206 = vmatpush1.msra.mxu0 %v8203
        %8207 = vmatprep.subr.mxu0 0.0
        %8208 = vmatpush1.msra.mxu0 0.0
        %8209 = vmatprep.subr.mxu0 0.0
        %8210 = vmatpush1.msra.mxu0 0.0
        %8211 = vmatprep.subr.mxu0 0.0
        %8212 = vmatpush1.msra.mxu0 0.0
        %8213 = vmatprep.subr.mxu0 0.0
        %8214 = vmatpush1.msra.mxu0 0.0
        %8215 = vmatprep.subr.mxu0 0.0
        %8216 = vmatpush1.msra.mxu0 0.0
        %8217 = vmatprep.subr.mxu0 0.0
        %8218 = vmatpush1.msra.mxu0 0.0
        %8219 = vmatprep.subr.mxu0 0.0
        %8220 = vmatpush1.msra.mxu0 0.0
        %8221 = vmatprep.subr.mxu0 0.0
        %8222 = vmatpush1.msra.mxu0 0.0
        %8223 = vmatprep.subr.mxu0 0.0
        %8224 = vmatpush1.msra.mxu0 0.0
        %8225 = vmatprep.subr.mxu0 0.0
        %8226 = vmatpush1.msra.mxu0 0.0
        %8227 = vmatprep.subr.mxu0 0.0
        %8228 = vmatpush1.msra.mxu0 0.0
        %8229 = vmatprep.subr.mxu0 0.0
        %8230 = vmatpush1.msra.mxu0 0.0
        %8231 = vmatprep.subr.mxu0 0.0
        %8232 = vmatpush1.msra.mxu0 0.0
        %8233 = vmatprep.subr.mxu0 0.0
        %8234 = vmatpush1.msra.mxu0 0.0
        %8235 = vmatprep.subr.mxu0 0.0
        %8236 = vmatpush1.msra.mxu0 0.0
        %8237 = vmatprep.subr.mxu0 0.0
        %8238 = vmatpush1.msra.mxu0 0.0
        %8239 = vmatprep.subr.mxu0 0.0
        %8240 = vmatpush1.msra.mxu0 0.0
        %8241 = vmatprep.subr.mxu0 0.0
        %8242 = vmatpush1.msra.mxu0 0.0
        %8243 = vmatprep.subr.mxu0 0.0
        %8244 = vmatpush1.msra.mxu0 0.0
        %8245 = vmatprep.subr.mxu0 0.0
        %8246 = vmatpush1.msra.mxu0 0.0
        %8247 = vmatprep.subr.mxu0 0.0
        %8248 = vmatpush1.msra.mxu0 0.0
        %8249 = vmatprep.subr.mxu0 0.0
        %8250 = vmatpush1.msra.mxu0 0.0
        %8251 = vmatprep.subr.mxu0 0.0
        %8252 = vmatpush1.msra.mxu0 0.0
        %8253 = vmatprep.subr.mxu0 0.0
        %8254 = vmatpush1.msra.mxu0 0.0
        %8255 = vmatprep.subr.mxu0 0.0
        %8256 = vmatpush1.msra.mxu0 0.0
        %8257 = vmatprep.subr.mxu0 0.0
        %8258 = vmatpush1.msra.mxu0 0.0
        %8259 = vmatprep.subr.mxu0 0.0
        %8260 = vmatpush1.msra.mxu0 0.0
        %8261 = vmatprep.subr.mxu0 0.0
        %8262 = vmatpush1.msra.mxu0 0.0
        %8263 = vmatprep.subr.mxu0 0.0
        %8264 = vmatpush1.msra.mxu0 0.0
        %8265 = vmatprep.subr.mxu0 0.0
        %8266 = vmatpush1.msra.mxu0 0.0
        %8267 = vmatprep.subr.mxu0 0.0
        %8268 = vmatpush1.msra.mxu0 0.0
        %8269 = vmatprep.mubr.f32.mxu0 0.0
        %8270 = vmatmul.mubr.f32.gmra.mrb[0].mxu0 %v8200
        %v8271 = vpop.f32.mrb[0].mxu0
        %v8272 = vadd.f32 %v8198, %v8271
        %v8273 = vpop.f32.mrb[0].mxu0
        %8274 = vdwg.mxu0
        %v8275 = vxor.u32 %v8272, 2147483648
        %v8276 = vmul.f32 %v8275, 1.442695
        %v8277 = vpow.pop %v8276
        %v8278 = vadd.f32 %v8277, 1.0
        %v8279 = vrcp.pop %v8278
        %v8280 = vmul.f32 1.0, %v8279
        %v8281 = vpack.c.bf16 %v8280, %v8280
        %v8283 = vpack.i.b16 %v8281, %v8281
        %v8285 = vlaneseq
        %v8286 = vshrl.u32 %v8285, 7
        %v8287 = vsub.s32 0, %v8286
        %v8288 = vrot.slane %v8283, %v8287
        %v8290 = vunpack.c.l.b16 %v8288
        %v8291 = vpack.c.b16 %v8290, %v8290
        %v8293 = vmul.bf16 %v7945, %v8291
        %v8294 = vmul.bf16 %v7946, %v8291
        %v8295 = vmul.bf16 %v7947, %v8291
        %v8296 = vmul.bf16 %v7948, %v8291
        %v8297 = vmul.bf16 %v7949, %v8291
        %v8298 = vmul.bf16 %v7950, %v8291
        %v8299 = vmul.bf16 %v7951, %v8291
        %v8300 = vmul.bf16 %v7952, %v8291
        %v8301 = vmul.bf16 %v7953, %v8291
        %v8302 = vmul.bf16 %v7954, %v8291
        %v8303 = vmul.bf16 %v7955, %v8291
        %v8304 = vmul.bf16 %v7956, %v8291
        %v8305 = vmul.bf16 %v7957, %v8291
        %v8306 = vmul.bf16 %v7958, %v8291
        %v8307 = vmul.bf16 %v7959, %v8291
        %v8308 = vmul.bf16 %v7960, %v8291
        %v8309 = vmul.bf16 %v7961, %v8291
        %v8310 = vmul.bf16 %v7962, %v8291
        %v8311 = vmul.bf16 %v7963, %v8291
        %v8312 = vmul.bf16 %v7964, %v8291
        %v8313 = vmul.bf16 %v7965, %v8291
        %v8314 = vmul.bf16 %v7966, %v8291
        %v8315 = vmul.bf16 %v7967, %v8291
        %v8316 = vmul.bf16 %v7968, %v8291
        %v8317 = vmul.bf16 %v7969, %v8291
        %v8318 = vmul.bf16 %v7970, %v8291
        %v8319 = vmul.bf16 %v7971, %v8291
        %v8320 = vmul.bf16 %v7972, %v8291
        %v8321 = vmul.bf16 %v7973, %v8291
        %v8322 = vmul.bf16 %v7974, %v8291
        %v8323 = vmul.bf16 %v7975, %v8291
        %v8324 = vmul.bf16 %v7976, %v8291
        %v8357 = vunpack.c.l.b16 %v8293
        %v8358 = vunpack.c.l.b16 %v8294
        %v8359 = vunpack.c.l.b16 %v8295
        %v8360 = vunpack.c.l.b16 %v8296
        %v8361 = vunpack.c.l.b16 %v8297
        %v8362 = vunpack.c.l.b16 %v8298
        %v8363 = vunpack.c.l.b16 %v8299
        %v8364 = vunpack.c.l.b16 %v8300
        %v8365 = vunpack.c.l.b16 %v8301
        %v8366 = vunpack.c.l.b16 %v8302
        %v8367 = vunpack.c.l.b16 %v8303
        %v8368 = vunpack.c.l.b16 %v8304
        %v8369 = vunpack.c.l.b16 %v8305
        %v8370 = vunpack.c.l.b16 %v8306
        %v8371 = vunpack.c.l.b16 %v8307
        %v8372 = vunpack.c.l.b16 %v8308
        %v8373 = vunpack.c.l.b16 %v8309
        %v8374 = vunpack.c.l.b16 %v8310
        %v8375 = vunpack.c.l.b16 %v8311
        %v8376 = vunpack.c.l.b16 %v8312
        %v8377 = vunpack.c.l.b16 %v8313
        %v8378 = vunpack.c.l.b16 %v8314
        %v8379 = vunpack.c.l.b16 %v8315
        %v8380 = vunpack.c.l.b16 %v8316
        %v8381 = vunpack.c.l.b16 %v8317
        %v8382 = vunpack.c.l.b16 %v8318
        %v8383 = vunpack.c.l.b16 %v8319
        %v8384 = vunpack.c.l.b16 %v8320
        %v8385 = vunpack.c.l.b16 %v8321
        %v8386 = vunpack.c.l.b16 %v8322
        %v8387 = vunpack.c.l.b16 %v8323
        %v8388 = vunpack.c.l.b16 %v8324
        %v8389 = vpack.c.b16 %v8357, %v8357
        %v8390 = vpack.c.b16 %v8358, %v8358
        %v8391 = vpack.c.b16 %v8359, %v8359
        %v8392 = vpack.c.b16 %v8360, %v8360
        %v8393 = vpack.c.b16 %v8361, %v8361
        %v8394 = vpack.c.b16 %v8362, %v8362
        %v8395 = vpack.c.b16 %v8363, %v8363
        %v8396 = vpack.c.b16 %v8364, %v8364
        %v8397 = vpack.c.b16 %v8365, %v8365
        %v8398 = vpack.c.b16 %v8366, %v8366
        %v8399 = vpack.c.b16 %v8367, %v8367
        %v8400 = vpack.c.b16 %v8368, %v8368
        %v8401 = vpack.c.b16 %v8369, %v8369
        %v8402 = vpack.c.b16 %v8370, %v8370
        %v8403 = vpack.c.b16 %v8371, %v8371
        %v8404 = vpack.c.b16 %v8372, %v8372
        %v8405 = vpack.c.b16 %v8373, %v8373
        %v8406 = vpack.c.b16 %v8374, %v8374
        %v8407 = vpack.c.b16 %v8375, %v8375
        %v8408 = vpack.c.b16 %v8376, %v8376
        %v8409 = vpack.c.b16 %v8377, %v8377
        %v8410 = vpack.c.b16 %v8378, %v8378
        %v8411 = vpack.c.b16 %v8379, %v8379
        %v8412 = vpack.c.b16 %v8380, %v8380
        %v8413 = vpack.c.b16 %v8381, %v8381
        %v8414 = vpack.c.b16 %v8382, %v8382
        %v8415 = vpack.c.b16 %v8383, %v8383
        %v8416 = vpack.c.b16 %v8384, %v8384
        %v8417 = vpack.c.b16 %v8385, %v8385
        %v8418 = vpack.c.b16 %v8386, %v8386
        %v8419 = vpack.c.b16 %v8387, %v8387
        %v8420 = vpack.c.b16 %v8388, %v8388
        %8453 = vst.msk [vmem:[%s487] sm:$0xf0] %vm505, %v8389
        %8454 = vst.msk [vmem:[%s487 + $0x8] sm:$0xf] %vm488, %v8390
        %8455 = vst.msk [vmem:[%s487 + $0x10] sm:$0xf0] %vm505, %v8391
        %8456 = vst.msk [vmem:[%s487 + $0x18] sm:$0xf] %vm488, %v8392
        %8457 = vst.msk [vmem:[%s487 + $0x20] sm:$0xf0] %vm505, %v8393
        %8458 = vst.msk [vmem:[%s487 + $0x28] sm:$0xf] %vm488, %v8394
        %8459 = vst.msk [vmem:[%s487 + $0x30] sm:$0xf0] %vm505, %v8395
        %8460 = vst.msk [vmem:[%s487 + $0x38] sm:$0xf] %vm488, %v8396
        %8461 = vst.msk [vmem:[%s487 + $0x40] sm:$0xf0] %vm505, %v8397
        %8462 = vst.msk [vmem:[%s487 + $0x48] sm:$0xf] %vm488, %v8398
        %8463 = vst.msk [vmem:[%s487 + $0x50] sm:$0xf0] %vm505, %v8399
        %8464 = vst.msk [vmem:[%s487 + $0x58] sm:$0xf] %vm488, %v8400
        %8465 = vst.msk [vmem:[%s487 + $0x60] sm:$0xf0] %vm505, %v8401
        %8466 = vst.msk [vmem:[%s487 + $0x68] sm:$0xf] %vm488, %v8402
        %8467 = vst.msk [vmem:[%s487 + $0x70] sm:$0xf0] %vm505, %v8403
        %8468 = vst.msk [vmem:[%s487 + $0x78] sm:$0xf] %vm488, %v8404
        %8469 = vst.msk [vmem:[%s487 + $0x80] sm:$0xf0] %vm505, %v8405
        %8470 = vst.msk [vmem:[%s487 + $0x88] sm:$0xf] %vm488, %v8406
        %8471 = vst.msk [vmem:[%s487 + $0x90] sm:$0xf0] %vm505, %v8407
        %8472 = vst.msk [vmem:[%s487 + $0x98] sm:$0xf] %vm488, %v8408
        %8473 = vst.msk [vmem:[%s487 + $0xa0] sm:$0xf0] %vm505, %v8409
        %8474 = vst.msk [vmem:[%s487 + $0xa8] sm:$0xf] %vm488, %v8410
        %8475 = vst.msk [vmem:[%s487 + $0xb0] sm:$0xf0] %vm505, %v8411
        %8476 = vst.msk [vmem:[%s487 + $0xb8] sm:$0xf] %vm488, %v8412
        %8477 = vst.msk [vmem:[%s487 + $0xc0] sm:$0xf0] %vm505, %v8413
        %8478 = vst.msk [vmem:[%s487 + $0xc8] sm:$0xf] %vm488, %v8414
        %8479 = vst.msk [vmem:[%s487 + $0xd0] sm:$0xf0] %vm505, %v8415
        %8480 = vst.msk [vmem:[%s487 + $0xd8] sm:$0xf] %vm488, %v8416
        %8481 = vst.msk [vmem:[%s487 + $0xe0] sm:$0xf0] %vm505, %v8417
        %8482 = vst.msk [vmem:[%s487 + $0xe8] sm:$0xf] %vm488, %v8418
        %8483 = vst.msk [vmem:[%s487 + $0xf0] sm:$0xf0] %vm505, %v8419
        %8484 = vst.msk [vmem:[%s487 + $0xf8] sm:$0xf] %vm488, %v8420
        %v8485 = vld [vmem:[#allocation2] sm:$0xf8]
        %v8486 = vld [vmem:[#allocation2 + $0x8] sm:$0xf]
        %v8487 = vld [vmem:[#allocation2 + $0x10] sm:$0xf8]
        %v8488 = vld [vmem:[#allocation2 + $0x18] sm:$0xf]
        %v8489 = vld [vmem:[#allocation2 + $0x20] sm:$0xf8]
        %v8490 = vld [vmem:[#allocation2 + $0x28] sm:$0xf]
        %v8491 = vld [vmem:[#allocation2 + $0x30] sm:$0xf8]
        %v8492 = vld [vmem:[#allocation2 + $0x38] sm:$0xf]
        %v8493 = vld [vmem:[#allocation2 + $0x40] sm:$0xf8]
        %v8494 = vld [vmem:[#allocation2 + $0x48] sm:$0xf]
        %v8495 = vld [vmem:[#allocation2 + $0x50] sm:$0xf8]
        %v8496 = vld [vmem:[#allocation2 + $0x58] sm:$0xf]
        %v8497 = vld [vmem:[#allocation2 + $0x60] sm:$0xf8]
        %v8498 = vld [vmem:[#allocation2 + $0x68] sm:$0xf]
        %v8499 = vld [vmem:[#allocation2 + $0x70] sm:$0xf8]
        %v8500 = vld [vmem:[#allocation2 + $0x78] sm:$0xf]
        %v8501 = vld [vmem:[#allocation2 + $0x80] sm:$0xf8]
        %v8502 = vld [vmem:[#allocation2 + $0x88] sm:$0xf]
        %v8503 = vld [vmem:[#allocation2 + $0x90] sm:$0xf8]
        %v8504 = vld [vmem:[#allocation2 + $0x98] sm:$0xf]
        %v8505 = vld [vmem:[#allocation2 + $0xa0] sm:$0xf8]
        %v8506 = vld [vmem:[#allocation2 + $0xa8] sm:$0xf]
        %v8507 = vld [vmem:[#allocation2 + $0xb0] sm:$0xf8]
        %v8508 = vld [vmem:[#allocation2 + $0xb8] sm:$0xf]
        %v8509 = vld [vmem:[#allocation2 + $0xc0] sm:$0xf8]
        %v8510 = vld [vmem:[#allocation2 + $0xc8] sm:$0xf]
        %v8511 = vld [vmem:[#allocation2 + $0xd0] sm:$0xf8]
        %v8512 = vld [vmem:[#allocation2 + $0xd8] sm:$0xf]
        %v8513 = vld [vmem:[#allocation2 + $0xe0] sm:$0xf8]
        %v8514 = vld [vmem:[#allocation2 + $0xe8] sm:$0xf]
        %v8515 = vld [vmem:[#allocation2 + $0xf0] sm:$0xf8]
        %v8516 = vld [vmem:[#allocation2 + $0xf8] sm:$0xf]
        %v8518 = vshrl.u32 %v8485, 16
        %v8520 = vrot.slane %v8518, 3
        %v8521 = vshll.u32 %v8485, 16
        %v8523 = vrot.slane %v8521, 4
        %v8524 = vor.u32 %v8520, %v8523
        %v8526 = vshrl.u32 %v8486, 16
        %v8528 = vrot.slane %v8526, 3
        %v8529 = vshll.u32 %v8486, 16
        %v8531 = vrot.slane %v8529, 4
        %v8532 = vor.u32 %v8528, %v8531
        %v8533 = vsel %vm1092, %v8524, %v8532
        %v8535 = vshrl.u32 %v8487, 16
        %v8537 = vrot.slane %v8535, 3
        %v8538 = vshll.u32 %v8487, 16
        %v8540 = vrot.slane %v8538, 4
        %v8541 = vor.u32 %v8537, %v8540
        %v8543 = vshrl.u32 %v8488, 16
        %v8545 = vrot.slane %v8543, 3
        %v8546 = vshll.u32 %v8488, 16
        %v8548 = vrot.slane %v8546, 4
        %v8549 = vor.u32 %v8545, %v8548
        %v8550 = vsel %vm1092, %v8541, %v8549
        %v8552 = vshrl.u32 %v8489, 16
        %v8554 = vrot.slane %v8552, 3
        %v8555 = vshll.u32 %v8489, 16
        %v8557 = vrot.slane %v8555, 4
        %v8558 = vor.u32 %v8554, %v8557
        %v8560 = vshrl.u32 %v8490, 16
        %v8562 = vrot.slane %v8560, 3
        %v8563 = vshll.u32 %v8490, 16
        %v8565 = vrot.slane %v8563, 4
        %v8566 = vor.u32 %v8562, %v8565
        %v8567 = vsel %vm1092, %v8558, %v8566
        %v8569 = vshrl.u32 %v8491, 16
        %v8571 = vrot.slane %v8569, 3
        %v8572 = vshll.u32 %v8491, 16
        %v8574 = vrot.slane %v8572, 4
        %v8575 = vor.u32 %v8571, %v8574
        %v8577 = vshrl.u32 %v8492, 16
        %v8579 = vrot.slane %v8577, 3
        %v8580 = vshll.u32 %v8492, 16
        %v8582 = vrot.slane %v8580, 4
        %v8583 = vor.u32 %v8579, %v8582
        %v8584 = vsel %vm1092, %v8575, %v8583
        %v8586 = vshrl.u32 %v8493, 16
        %v8588 = vrot.slane %v8586, 3
        %v8589 = vshll.u32 %v8493, 16
        %v8591 = vrot.slane %v8589, 4
        %v8592 = vor.u32 %v8588, %v8591
        %v8594 = vshrl.u32 %v8494, 16
        %v8596 = vrot.slane %v8594, 3
        %v8597 = vshll.u32 %v8494, 16
        %v8599 = vrot.slane %v8597, 4
        %v8600 = vor.u32 %v8596, %v8599
        %v8601 = vsel %vm1092, %v8592, %v8600
        %v8603 = vshrl.u32 %v8495, 16
        %v8605 = vrot.slane %v8603, 3
        %v8606 = vshll.u32 %v8495, 16
        %v8608 = vrot.slane %v8606, 4
        %v8609 = vor.u32 %v8605, %v8608
        %v8611 = vshrl.u32 %v8496, 16
        %v8613 = vrot.slane %v8611, 3
        %v8614 = vshll.u32 %v8496, 16
        %v8616 = vrot.slane %v8614, 4
        %v8617 = vor.u32 %v8613, %v8616
        %v8618 = vsel %vm1092, %v8609, %v8617
        %v8620 = vshrl.u32 %v8497, 16
        %v8622 = vrot.slane %v8620, 3
        %v8623 = vshll.u32 %v8497, 16
        %v8625 = vrot.slane %v8623, 4
        %v8626 = vor.u32 %v8622, %v8625
        %v8628 = vshrl.u32 %v8498, 16
        %v8630 = vrot.slane %v8628, 3
        %v8631 = vshll.u32 %v8498, 16
        %v8633 = vrot.slane %v8631, 4
        %v8634 = vor.u32 %v8630, %v8633
        %v8635 = vsel %vm1092, %v8626, %v8634
        %v8637 = vshrl.u32 %v8499, 16
        %v8639 = vrot.slane %v8637, 3
        %v8640 = vshll.u32 %v8499, 16
        %v8642 = vrot.slane %v8640, 4
        %v8643 = vor.u32 %v8639, %v8642
        %v8645 = vshrl.u32 %v8500, 16
        %v8647 = vrot.slane %v8645, 3
        %v8648 = vshll.u32 %v8500, 16
        %v8650 = vrot.slane %v8648, 4
        %v8651 = vor.u32 %v8647, %v8650
        %v8652 = vsel %vm1092, %v8643, %v8651
        %v8654 = vshrl.u32 %v8501, 16
        %v8656 = vrot.slane %v8654, 3
        %v8657 = vshll.u32 %v8501, 16
        %v8659 = vrot.slane %v8657, 4
        %v8660 = vor.u32 %v8656, %v8659
        %v8662 = vshrl.u32 %v8502, 16
        %v8664 = vrot.slane %v8662, 3
        %v8665 = vshll.u32 %v8502, 16
        %v8667 = vrot.slane %v8665, 4
        %v8668 = vor.u32 %v8664, %v8667
        %v8669 = vsel %vm1092, %v8660, %v8668
        %v8671 = vshrl.u32 %v8503, 16
        %v8673 = vrot.slane %v8671, 3
        %v8674 = vshll.u32 %v8503, 16
        %v8676 = vrot.slane %v8674, 4
        %v8677 = vor.u32 %v8673, %v8676
        %v8679 = vshrl.u32 %v8504, 16
        %v8681 = vrot.slane %v8679, 3
        %v8682 = vshll.u32 %v8504, 16
        %v8684 = vrot.slane %v8682, 4
        %v8685 = vor.u32 %v8681, %v8684
        %v8686 = vsel %vm1092, %v8677, %v8685
        %v8688 = vshrl.u32 %v8505, 16
        %v8690 = vrot.slane %v8688, 3
        %v8691 = vshll.u32 %v8505, 16
        %v8693 = vrot.slane %v8691, 4
        %v8694 = vor.u32 %v8690, %v8693
        %v8696 = vshrl.u32 %v8506, 16
        %v8698 = vrot.slane %v8696, 3
        %v8699 = vshll.u32 %v8506, 16
        %v8701 = vrot.slane %v8699, 4
        %v8702 = vor.u32 %v8698, %v8701
        %v8703 = vsel %vm1092, %v8694, %v8702
        %v8705 = vshrl.u32 %v8507, 16
        %v8707 = vrot.slane %v8705, 3
        %v8708 = vshll.u32 %v8507, 16
        %v8710 = vrot.slane %v8708, 4
        %v8711 = vor.u32 %v8707, %v8710
        %v8713 = vshrl.u32 %v8508, 16
        %v8715 = vrot.slane %v8713, 3
        %v8716 = vshll.u32 %v8508, 16
        %v8718 = vrot.slane %v8716, 4
        %v8719 = vor.u32 %v8715, %v8718
        %v8720 = vsel %vm1092, %v8711, %v8719
        %v8722 = vshrl.u32 %v8509, 16
        %v8724 = vrot.slane %v8722, 3
        %v8725 = vshll.u32 %v8509, 16
        %v8727 = vrot.slane %v8725, 4
        %v8728 = vor.u32 %v8724, %v8727
        %v8730 = vshrl.u32 %v8510, 16
        %v8732 = vrot.slane %v8730, 3
        %v8733 = vshll.u32 %v8510, 16
        %v8735 = vrot.slane %v8733, 4
        %v8736 = vor.u32 %v8732, %v8735
        %v8737 = vsel %vm1092, %v8728, %v8736
        %v8739 = vshrl.u32 %v8511, 16
        %v8741 = vrot.slane %v8739, 3
        %v8742 = vshll.u32 %v8511, 16
        %v8744 = vrot.slane %v8742, 4
        %v8745 = vor.u32 %v8741, %v8744
        %v8747 = vshrl.u32 %v8512, 16
        %v8749 = vrot.slane %v8747, 3
        %v8750 = vshll.u32 %v8512, 16
        %v8752 = vrot.slane %v8750, 4
        %v8753 = vor.u32 %v8749, %v8752
        %v8754 = vsel %vm1092, %v8745, %v8753
        %v8756 = vshrl.u32 %v8513, 16
        %v8758 = vrot.slane %v8756, 3
        %v8759 = vshll.u32 %v8513, 16
        %v8761 = vrot.slane %v8759, 4
        %v8762 = vor.u32 %v8758, %v8761
        %v8764 = vshrl.u32 %v8514, 16
        %v8766 = vrot.slane %v8764, 3
        %v8767 = vshll.u32 %v8514, 16
        %v8769 = vrot.slane %v8767, 4
        %v8770 = vor.u32 %v8766, %v8769
        %v8771 = vsel %vm1092, %v8762, %v8770
        %v8773 = vshrl.u32 %v8515, 16
        %v8775 = vrot.slane %v8773, 3
        %v8776 = vshll.u32 %v8515, 16
        %v8778 = vrot.slane %v8776, 4
        %v8779 = vor.u32 %v8775, %v8778
        %v8781 = vshrl.u32 %v8516, 16
        %v8783 = vrot.slane %v8781, 3
        %v8784 = vshll.u32 %v8516, 16
        %v8786 = vrot.slane %v8784, 4
        %v8787 = vor.u32 %v8783, %v8786
        %v8788 = vsel %vm1092, %v8779, %v8787
        %v8789 = vld [vmem:[#allocation2] sm:$0xf0]
        %v8790 = vld [vmem:[#allocation2 + $0x10] sm:$0xf0]
        %v8791 = vld [vmem:[#allocation2 + $0x20] sm:$0xf0]
        %v8792 = vld [vmem:[#allocation2 + $0x30] sm:$0xf0]
        %v8793 = vld [vmem:[#allocation2 + $0x40] sm:$0xf0]
        %v8794 = vld [vmem:[#allocation2 + $0x50] sm:$0xf0]
        %v8795 = vld [vmem:[#allocation2 + $0x60] sm:$0xf0]
        %v8796 = vld [vmem:[#allocation2 + $0x70] sm:$0xf0]
        %v8797 = vld [vmem:[#allocation2 + $0x80] sm:$0xf0]
        %v8798 = vld [vmem:[#allocation2 + $0x90] sm:$0xf0]
        %v8799 = vld [vmem:[#allocation2 + $0xa0] sm:$0xf0]
        %v8800 = vld [vmem:[#allocation2 + $0xb0] sm:$0xf0]
        %v8801 = vld [vmem:[#allocation2 + $0xc0] sm:$0xf0]
        %v8802 = vld [vmem:[#allocation2 + $0xd0] sm:$0xf0]
        %v8803 = vld [vmem:[#allocation2 + $0xe0] sm:$0xf0]
        %v8804 = vld [vmem:[#allocation2 + $0xf0] sm:$0xf0]
        %v8837 = vrot.slane %v8789, 4
        %v8838 = vrot.slane %v8486, 4
        %v8839 = vsel %vm1413, %v8837, %v8838
        %v8840 = vrot.slane %v8790, 4
        %v8841 = vrot.slane %v8488, 4
        %v8842 = vsel %vm1413, %v8840, %v8841
        %v8843 = vrot.slane %v8791, 4
        %v8844 = vrot.slane %v8490, 4
        %v8845 = vsel %vm1413, %v8843, %v8844
        %v8846 = vrot.slane %v8792, 4
        %v8847 = vrot.slane %v8492, 4
        %v8848 = vsel %vm1413, %v8846, %v8847
        %v8849 = vrot.slane %v8793, 4
        %v8850 = vrot.slane %v8494, 4
        %v8851 = vsel %vm1413, %v8849, %v8850
        %v8852 = vrot.slane %v8794, 4
        %v8853 = vrot.slane %v8496, 4
        %v8854 = vsel %vm1413, %v8852, %v8853
        %v8855 = vrot.slane %v8795, 4
        %v8856 = vrot.slane %v8498, 4
        %v8857 = vsel %vm1413, %v8855, %v8856
        %v8858 = vrot.slane %v8796, 4
        %v8859 = vrot.slane %v8500, 4
        %v8860 = vsel %vm1413, %v8858, %v8859
        %v8861 = vrot.slane %v8797, 4
        %v8862 = vrot.slane %v8502, 4
        %v8863 = vsel %vm1413, %v8861, %v8862
        %v8864 = vrot.slane %v8798, 4
        %v8865 = vrot.slane %v8504, 4
        %v8866 = vsel %vm1413, %v8864, %v8865
        %v8867 = vrot.slane %v8799, 4
        %v8868 = vrot.slane %v8506, 4
        %v8869 = vsel %vm1413, %v8867, %v8868
        %v8870 = vrot.slane %v8800, 4
        %v8871 = vrot.slane %v8508, 4
        %v8872 = vsel %vm1413, %v8870, %v8871
        %v8873 = vrot.slane %v8801, 4
        %v8874 = vrot.slane %v8510, 4
        %v8875 = vsel %vm1413, %v8873, %v8874
        %v8876 = vrot.slane %v8802, 4
        %v8877 = vrot.slane %v8512, 4
        %v8878 = vsel %vm1413, %v8876, %v8877
        %v8879 = vrot.slane %v8803, 4
        %v8880 = vrot.slane %v8514, 4
        %v8881 = vsel %vm1413, %v8879, %v8880
        %v8882 = vrot.slane %v8804, 4
        %v8883 = vrot.slane %v8516, 4
        %v8884 = vsel %vm1413, %v8882, %v8883
        %v8885 = vld [vmem:[#allocation2 + $0x8] sm:$0x1f]
        %v8886 = vld [vmem:[#allocation2 + $0x18] sm:$0x1f]
        %v8887 = vld [vmem:[#allocation2 + $0x28] sm:$0x1f]
        %v8888 = vld [vmem:[#allocation2 + $0x38] sm:$0x1f]
        %v8889 = vld [vmem:[#allocation2 + $0x48] sm:$0x1f]
        %v8890 = vld [vmem:[#allocation2 + $0x58] sm:$0x1f]
        %v8891 = vld [vmem:[#allocation2 + $0x68] sm:$0x1f]
        %v8892 = vld [vmem:[#allocation2 + $0x78] sm:$0x1f]
        %v8893 = vld [vmem:[#allocation2 + $0x88] sm:$0x1f]
        %v8894 = vld [vmem:[#allocation2 + $0x98] sm:$0x1f]
        %v8895 = vld [vmem:[#allocation2 + $0xa8] sm:$0x1f]
        %v8896 = vld [vmem:[#allocation2 + $0xb8] sm:$0x1f]
        %v8897 = vld [vmem:[#allocation2 + $0xc8] sm:$0x1f]
        %v8898 = vld [vmem:[#allocation2 + $0xd8] sm:$0x1f]
        %v8899 = vld [vmem:[#allocation2 + $0xe8] sm:$0x1f]
        %v8900 = vld [vmem:[#allocation2 + $0xf8] sm:$0x1f]
        %v8902 = vshrl.u32 %v8789, 16
        %v8904 = vrot.slane %v8902, 4
        %v8905 = vshll.u32 %v8789, 16
        %v8907 = vrot.slane %v8905, 5
        %v8908 = vor.u32 %v8904, %v8907
        %v8910 = vshrl.u32 %v8885, 16
        %v8912 = vrot.slane %v8910, 4
        %v8913 = vshll.u32 %v8885, 16
        %v8915 = vrot.slane %v8913, 5
        %v8916 = vor.u32 %v8912, %v8915
        %v8917 = vsel %vm1478, %v8908, %v8916
        %v8919 = vshrl.u32 %v8790, 16
        %v8921 = vrot.slane %v8919, 4
        %v8922 = vshll.u32 %v8790, 16
        %v8924 = vrot.slane %v8922, 5
        %v8925 = vor.u32 %v8921, %v8924
        %v8927 = vshrl.u32 %v8886, 16
        %v8929 = vrot.slane %v8927, 4
        %v8930 = vshll.u32 %v8886, 16
        %v8932 = vrot.slane %v8930, 5
        %v8933 = vor.u32 %v8929, %v8932
        %v8934 = vsel %vm1478, %v8925, %v8933
        %v8936 = vshrl.u32 %v8791, 16
        %v8938 = vrot.slane %v8936, 4
        %v8939 = vshll.u32 %v8791, 16
        %v8941 = vrot.slane %v8939, 5
        %v8942 = vor.u32 %v8938, %v8941
        %v8944 = vshrl.u32 %v8887, 16
        %v8946 = vrot.slane %v8944, 4
        %v8947 = vshll.u32 %v8887, 16
        %v8949 = vrot.slane %v8947, 5
        %v8950 = vor.u32 %v8946, %v8949
        %v8951 = vsel %vm1478, %v8942, %v8950
        %v8953 = vshrl.u32 %v8792, 16
        %v8955 = vrot.slane %v8953, 4
        %v8956 = vshll.u32 %v8792, 16
        %v8958 = vrot.slane %v8956, 5
        %v8959 = vor.u32 %v8955, %v8958
        %v8961 = vshrl.u32 %v8888, 16
        %v8963 = vrot.slane %v8961, 4
        %v8964 = vshll.u32 %v8888, 16
        %v8966 = vrot.slane %v8964, 5
        %v8967 = vor.u32 %v8963, %v8966
        %v8968 = vsel %vm1478, %v8959, %v8967
        %v8970 = vshrl.u32 %v8793, 16
        %v8972 = vrot.slane %v8970, 4
        %v8973 = vshll.u32 %v8793, 16
        %v8975 = vrot.slane %v8973, 5
        %v8976 = vor.u32 %v8972, %v8975
        %v8978 = vshrl.u32 %v8889, 16
        %v8980 = vrot.slane %v8978, 4
        %v8981 = vshll.u32 %v8889, 16
        %v8983 = vrot.slane %v8981, 5
        %v8984 = vor.u32 %v8980, %v8983
        %v8985 = vsel %vm1478, %v8976, %v8984
        %v8987 = vshrl.u32 %v8794, 16
        %v8989 = vrot.slane %v8987, 4
        %v8990 = vshll.u32 %v8794, 16
        %v8992 = vrot.slane %v8990, 5
        %v8993 = vor.u32 %v8989, %v8992
        %v8995 = vshrl.u32 %v8890, 16
        %v8997 = vrot.slane %v8995, 4
        %v8998 = vshll.u32 %v8890, 16
        %v9000 = vrot.slane %v8998, 5
        %v9001 = vor.u32 %v8997, %v9000
        %v9002 = vsel %vm1478, %v8993, %v9001
        %v9004 = vshrl.u32 %v8795, 16
        %v9006 = vrot.slane %v9004, 4
        %v9007 = vshll.u32 %v8795, 16
        %v9009 = vrot.slane %v9007, 5
        %v9010 = vor.u32 %v9006, %v9009
        %v9012 = vshrl.u32 %v8891, 16
        %v9014 = vrot.slane %v9012, 4
        %v9015 = vshll.u32 %v8891, 16
        %v9017 = vrot.slane %v9015, 5
        %v9018 = vor.u32 %v9014, %v9017
        %v9019 = vsel %vm1478, %v9010, %v9018
        %v9021 = vshrl.u32 %v8796, 16
        %v9023 = vrot.slane %v9021, 4
        %v9024 = vshll.u32 %v8796, 16
        %v9026 = vrot.slane %v9024, 5
        %v9027 = vor.u32 %v9023, %v9026
        %v9029 = vshrl.u32 %v8892, 16
        %v9031 = vrot.slane %v9029, 4
        %v9032 = vshll.u32 %v8892, 16
        %v9034 = vrot.slane %v9032, 5
        %v9035 = vor.u32 %v9031, %v9034
        %v9036 = vsel %vm1478, %v9027, %v9035
        %v9038 = vshrl.u32 %v8797, 16
        %v9040 = vrot.slane %v9038, 4
        %v9041 = vshll.u32 %v8797, 16
        %v9043 = vrot.slane %v9041, 5
        %v9044 = vor.u32 %v9040, %v9043
        %v9046 = vshrl.u32 %v8893, 16
        %v9048 = vrot.slane %v9046, 4
        %v9049 = vshll.u32 %v8893, 16
        %v9051 = vrot.slane %v9049, 5
        %v9052 = vor.u32 %v9048, %v9051
        %v9053 = vsel %vm1478, %v9044, %v9052
        %v9055 = vshrl.u32 %v8798, 16
        %v9057 = vrot.slane %v9055, 4
        %v9058 = vshll.u32 %v8798, 16
        %v9060 = vrot.slane %v9058, 5
        %v9061 = vor.u32 %v9057, %v9060
        %v9063 = vshrl.u32 %v8894, 16
        %v9065 = vrot.slane %v9063, 4
        %v9066 = vshll.u32 %v8894, 16
        %v9068 = vrot.slane %v9066, 5
        %v9069 = vor.u32 %v9065, %v9068
        %v9070 = vsel %vm1478, %v9061, %v9069
        %v9072 = vshrl.u32 %v8799, 16
        %v9074 = vrot.slane %v9072, 4
        %v9075 = vshll.u32 %v8799, 16
        %v9077 = vrot.slane %v9075, 5
        %v9078 = vor.u32 %v9074, %v9077
        %v9080 = vshrl.u32 %v8895, 16
        %v9082 = vrot.slane %v9080, 4
        %v9083 = vshll.u32 %v8895, 16
        %v9085 = vrot.slane %v9083, 5
        %v9086 = vor.u32 %v9082, %v9085
        %v9087 = vsel %vm1478, %v9078, %v9086
        %v9089 = vshrl.u32 %v8800, 16
        %v9091 = vrot.slane %v9089, 4
        %v9092 = vshll.u32 %v8800, 16
        %v9094 = vrot.slane %v9092, 5
        %v9095 = vor.u32 %v9091, %v9094
        %v9097 = vshrl.u32 %v8896, 16
        %v9099 = vrot.slane %v9097, 4
        %v9100 = vshll.u32 %v8896, 16
        %v9102 = vrot.slane %v9100, 5
        %v9103 = vor.u32 %v9099, %v9102
        %v9104 = vsel %vm1478, %v9095, %v9103
        %v9106 = vshrl.u32 %v8801, 16
        %v9108 = vrot.slane %v9106, 4
        %v9109 = vshll.u32 %v8801, 16
        %v9111 = vrot.slane %v9109, 5
        %v9112 = vor.u32 %v9108, %v9111
        %v9114 = vshrl.u32 %v8897, 16
        %v9116 = vrot.slane %v9114, 4
        %v9117 = vshll.u32 %v8897, 16
        %v9119 = vrot.slane %v9117, 5
        %v9120 = vor.u32 %v9116, %v9119
        %v9121 = vsel %vm1478, %v9112, %v9120
        %v9123 = vshrl.u32 %v8802, 16
        %v9125 = vrot.slane %v9123, 4
        %v9126 = vshll.u32 %v8802, 16
        %v9128 = vrot.slane %v9126, 5
        %v9129 = vor.u32 %v9125, %v9128
        %v9131 = vshrl.u32 %v8898, 16
        %v9133 = vrot.slane %v9131, 4
        %v9134 = vshll.u32 %v8898, 16
        %v9136 = vrot.slane %v9134, 5
        %v9137 = vor.u32 %v9133, %v9136
        %v9138 = vsel %vm1478, %v9129, %v9137
        %v9140 = vshrl.u32 %v8803, 16
        %v9142 = vrot.slane %v9140, 4
        %v9143 = vshll.u32 %v8803, 16
        %v9145 = vrot.slane %v9143, 5
        %v9146 = vor.u32 %v9142, %v9145
        %v9148 = vshrl.u32 %v8899, 16
        %v9150 = vrot.slane %v9148, 4
        %v9151 = vshll.u32 %v8899, 16
        %v9153 = vrot.slane %v9151, 5
        %v9154 = vor.u32 %v9150, %v9153
        %v9155 = vsel %vm1478, %v9146, %v9154
        %v9157 = vshrl.u32 %v8804, 16
        %v9159 = vrot.slane %v9157, 4
        %v9160 = vshll.u32 %v8804, 16
        %v9162 = vrot.slane %v9160, 5
        %v9163 = vor.u32 %v9159, %v9162
        %v9165 = vshrl.u32 %v8900, 16
        %v9167 = vrot.slane %v9165, 4
        %v9168 = vshll.u32 %v8900, 16
        %v9170 = vrot.slane %v9168, 5
        %v9171 = vor.u32 %v9167, %v9170
        %v9172 = vsel %vm1478, %v9163, %v9171
        %v9173 = vld [vmem:[%s487] sm:$0xf8]
        %v9174 = vld [vmem:[%s487 + $0x8] sm:$0xf]
        %v9175 = vld [vmem:[%s487 + $0x10] sm:$0xf8]
        %v9176 = vld [vmem:[%s487 + $0x18] sm:$0xf]
        %v9177 = vld [vmem:[%s487 + $0x20] sm:$0xf8]
        %v9178 = vld [vmem:[%s487 + $0x28] sm:$0xf]
        %v9179 = vld [vmem:[%s487 + $0x30] sm:$0xf8]
        %v9180 = vld [vmem:[%s487 + $0x38] sm:$0xf]
        %v9181 = vld [vmem:[%s487 + $0x40] sm:$0xf8]
        %v9182 = vld [vmem:[%s487 + $0x48] sm:$0xf]
        %v9183 = vld [vmem:[%s487 + $0x50] sm:$0xf8]
        %v9184 = vld [vmem:[%s487 + $0x58] sm:$0xf]
        %v9185 = vld [vmem:[%s487 + $0x60] sm:$0xf8]
        %v9186 = vld [vmem:[%s487 + $0x68] sm:$0xf]
        %v9187 = vld [vmem:[%s487 + $0x70] sm:$0xf8]
        %v9188 = vld [vmem:[%s487 + $0x78] sm:$0xf]
        %v9189 = vld [vmem:[%s487 + $0x80] sm:$0xf8]
        %v9190 = vld [vmem:[%s487 + $0x88] sm:$0xf]
        %v9191 = vld [vmem:[%s487 + $0x90] sm:$0xf8]
        %v9192 = vld [vmem:[%s487 + $0x98] sm:$0xf]
        %v9193 = vld [vmem:[%s487 + $0xa0] sm:$0xf8]
        %v9194 = vld [vmem:[%s487 + $0xa8] sm:$0xf]
        %v9195 = vld [vmem:[%s487 + $0xb0] sm:$0xf8]
        %v9196 = vld [vmem:[%s487 + $0xb8] sm:$0xf]
        %v9197 = vld [vmem:[%s487 + $0xc0] sm:$0xf8]
        %v9198 = vld [vmem:[%s487 + $0xc8] sm:$0xf]
        %v9199 = vld [vmem:[%s487 + $0xd0] sm:$0xf8]
        %v9200 = vld [vmem:[%s487 + $0xd8] sm:$0xf]
        %v9201 = vld [vmem:[%s487 + $0xe0] sm:$0xf8]
        %v9202 = vld [vmem:[%s487 + $0xe8] sm:$0xf]
        %v9203 = vld [vmem:[%s487 + $0xf0] sm:$0xf8]
        %v9204 = vld [vmem:[%s487 + $0xf8] sm:$0xf]
        %v9206 = vshrl.u32 %v9173, 16
        %v9208 = vrot.slane %v9206, 3
        %v9209 = vshll.u32 %v9173, 16
        %v9211 = vrot.slane %v9209, 4
        %v9212 = vor.u32 %v9208, %v9211
        %v9214 = vshrl.u32 %v9174, 16
        %v9216 = vrot.slane %v9214, 3
        %v9217 = vshll.u32 %v9174, 16
        %v9219 = vrot.slane %v9217, 4
        %v9220 = vor.u32 %v9216, %v9219
        %v9221 = vsel %vm1092, %v9212, %v9220
        %v9223 = vshrl.u32 %v9175, 16
        %v9225 = vrot.slane %v9223, 3
        %v9226 = vshll.u32 %v9175, 16
        %v9228 = vrot.slane %v9226, 4
        %v9229 = vor.u32 %v9225, %v9228
        %v9231 = vshrl.u32 %v9176, 16
        %v9233 = vrot.slane %v9231, 3
        %v9234 = vshll.u32 %v9176, 16
        %v9236 = vrot.slane %v9234, 4
        %v9237 = vor.u32 %v9233, %v9236
        %v9238 = vsel %vm1092, %v9229, %v9237
        %v9240 = vshrl.u32 %v9177, 16
        %v9242 = vrot.slane %v9240, 3
        %v9243 = vshll.u32 %v9177, 16
        %v9245 = vrot.slane %v9243, 4
        %v9246 = vor.u32 %v9242, %v9245
        %v9248 = vshrl.u32 %v9178, 16
        %v9250 = vrot.slane %v9248, 3
        %v9251 = vshll.u32 %v9178, 16
        %v9253 = vrot.slane %v9251, 4
        %v9254 = vor.u32 %v9250, %v9253
        %v9255 = vsel %vm1092, %v9246, %v9254
        %v9257 = vshrl.u32 %v9179, 16
        %v9259 = vrot.slane %v9257, 3
        %v9260 = vshll.u32 %v9179, 16
        %v9262 = vrot.slane %v9260, 4
        %v9263 = vor.u32 %v9259, %v9262
        %v9265 = vshrl.u32 %v9180, 16
        %v9267 = vrot.slane %v9265, 3
        %v9268 = vshll.u32 %v9180, 16
        %v9270 = vrot.slane %v9268, 4
        %v9271 = vor.u32 %v9267, %v9270
        %v9272 = vsel %vm1092, %v9263, %v9271
        %v9274 = vshrl.u32 %v9181, 16
        %v9276 = vrot.slane %v9274, 3
        %v9277 = vshll.u32 %v9181, 16
        %v9279 = vrot.slane %v9277, 4
        %v9280 = vor.u32 %v9276, %v9279
        %v9282 = vshrl.u32 %v9182, 16
        %v9284 = vrot.slane %v9282, 3
        %v9285 = vshll.u32 %v9182, 16
        %v9287 = vrot.slane %v9285, 4
        %v9288 = vor.u32 %v9284, %v9287
        %v9289 = vsel %vm1092, %v9280, %v9288
        %v9291 = vshrl.u32 %v9183, 16
        %v9293 = vrot.slane %v9291, 3
        %v9294 = vshll.u32 %v9183, 16
        %v9296 = vrot.slane %v9294, 4
        %v9297 = vor.u32 %v9293, %v9296
        %v9299 = vshrl.u32 %v9184, 16
        %v9301 = vrot.slane %v9299, 3
        %v9302 = vshll.u32 %v9184, 16
        %v9304 = vrot.slane %v9302, 4
        %v9305 = vor.u32 %v9301, %v9304
        %v9306 = vsel %vm1092, %v9297, %v9305
        %v9308 = vshrl.u32 %v9185, 16
        %v9310 = vrot.slane %v9308, 3
        %v9311 = vshll.u32 %v9185, 16
        %v9313 = vrot.slane %v9311, 4
        %v9314 = vor.u32 %v9310, %v9313
        %v9316 = vshrl.u32 %v9186, 16
        %v9318 = vrot.slane %v9316, 3
        %v9319 = vshll.u32 %v9186, 16
        %v9321 = vrot.slane %v9319, 4
        %v9322 = vor.u32 %v9318, %v9321
        %v9323 = vsel %vm1092, %v9314, %v9322
        %v9325 = vshrl.u32 %v9187, 16
        %v9327 = vrot.slane %v9325, 3
        %v9328 = vshll.u32 %v9187, 16
        %v9330 = vrot.slane %v9328, 4
        %v9331 = vor.u32 %v9327, %v9330
        %v9333 = vshrl.u32 %v9188, 16
        %v9335 = vrot.slane %v9333, 3
        %v9336 = vshll.u32 %v9188, 16
        %v9338 = vrot.slane %v9336, 4
        %v9339 = vor.u32 %v9335, %v9338
        %v9340 = vsel %vm1092, %v9331, %v9339
        %v9342 = vshrl.u32 %v9189, 16
        %v9344 = vrot.slane %v9342, 3
        %v9345 = vshll.u32 %v9189, 16
        %v9347 = vrot.slane %v9345, 4
        %v9348 = vor.u32 %v9344, %v9347
        %v9350 = vshrl.u32 %v9190, 16
        %v9352 = vrot.slane %v9350, 3
        %v9353 = vshll.u32 %v9190, 16
        %v9355 = vrot.slane %v9353, 4
        %v9356 = vor.u32 %v9352, %v9355
        %v9357 = vsel %vm1092, %v9348, %v9356
        %v9359 = vshrl.u32 %v9191, 16
        %v9361 = vrot.slane %v9359, 3
        %v9362 = vshll.u32 %v9191, 16
        %v9364 = vrot.slane %v9362, 4
        %v9365 = vor.u32 %v9361, %v9364
        %v9367 = vshrl.u32 %v9192, 16
        %v9369 = vrot.slane %v9367, 3
        %v9370 = vshll.u32 %v9192, 16
        %v9372 = vrot.slane %v9370, 4
        %v9373 = vor.u32 %v9369, %v9372
        %v9374 = vsel %vm1092, %v9365, %v9373
        %v9376 = vshrl.u32 %v9193, 16
        %v9378 = vrot.slane %v9376, 3
        %v9379 = vshll.u32 %v9193, 16
        %v9381 = vrot.slane %v9379, 4
        %v9382 = vor.u32 %v9378, %v9381
        %v9384 = vshrl.u32 %v9194, 16
        %v9386 = vrot.slane %v9384, 3
        %v9387 = vshll.u32 %v9194, 16
        %v9389 = vrot.slane %v9387, 4
        %v9390 = vor.u32 %v9386, %v9389
        %v9391 = vsel %vm1092, %v9382, %v9390
        %v9393 = vshrl.u32 %v9195, 16
        %v9395 = vrot.slane %v9393, 3
        %v9396 = vshll.u32 %v9195, 16
        %v9398 = vrot.slane %v9396, 4
        %v9399 = vor.u32 %v9395, %v9398
        %v9401 = vshrl.u32 %v9196, 16
        %v9403 = vrot.slane %v9401, 3
        %v9404 = vshll.u32 %v9196, 16
        %v9406 = vrot.slane %v9404, 4
        %v9407 = vor.u32 %v9403, %v9406
        %v9408 = vsel %vm1092, %v9399, %v9407
        %v9410 = vshrl.u32 %v9197, 16
        %v9412 = vrot.slane %v9410, 3
        %v9413 = vshll.u32 %v9197, 16
        %v9415 = vrot.slane %v9413, 4
        %v9416 = vor.u32 %v9412, %v9415
        %v9418 = vshrl.u32 %v9198, 16
        %v9420 = vrot.slane %v9418, 3
        %v9421 = vshll.u32 %v9198, 16
        %v9423 = vrot.slane %v9421, 4
        %v9424 = vor.u32 %v9420, %v9423
        %v9425 = vsel %vm1092, %v9416, %v9424
        %v9427 = vshrl.u32 %v9199, 16
        %v9429 = vrot.slane %v9427, 3
        %v9430 = vshll.u32 %v9199, 16
        %v9432 = vrot.slane %v9430, 4
        %v9433 = vor.u32 %v9429, %v9432
        %v9435 = vshrl.u32 %v9200, 16
        %v9437 = vrot.slane %v9435, 3
        %v9438 = vshll.u32 %v9200, 16
        %v9440 = vrot.slane %v9438, 4
        %v9441 = vor.u32 %v9437, %v9440
        %v9442 = vsel %vm1092, %v9433, %v9441
        %v9444 = vshrl.u32 %v9201, 16
        %v9446 = vrot.slane %v9444, 3
        %v9447 = vshll.u32 %v9201, 16
        %v9449 = vrot.slane %v9447, 4
        %v9450 = vor.u32 %v9446, %v9449
        %v9452 = vshrl.u32 %v9202, 16
        %v9454 = vrot.slane %v9452, 3
        %v9455 = vshll.u32 %v9202, 16
        %v9457 = vrot.slane %v9455, 4
        %v9458 = vor.u32 %v9454, %v9457
        %v9459 = vsel %vm1092, %v9450, %v9458
        %v9461 = vshrl.u32 %v9203, 16
        %v9463 = vrot.slane %v9461, 3
        %v9464 = vshll.u32 %v9203, 16
        %v9466 = vrot.slane %v9464, 4
        %v9467 = vor.u32 %v9463, %v9466
        %v9469 = vshrl.u32 %v9204, 16
        %v9471 = vrot.slane %v9469, 3
        %v9472 = vshll.u32 %v9204, 16
        %v9474 = vrot.slane %v9472, 4
        %v9475 = vor.u32 %v9471, %v9474
        %v9476 = vsel %vm1092, %v9467, %v9475
        %v9477 = vld [vmem:[%s487] sm:$0xf0]
        %v9478 = vld [vmem:[%s487 + $0x10] sm:$0xf0]
        %v9479 = vld [vmem:[%s487 + $0x20] sm:$0xf0]
        %v9480 = vld [vmem:[%s487 + $0x30] sm:$0xf0]
        %v9481 = vld [vmem:[%s487 + $0x40] sm:$0xf0]
        %v9482 = vld [vmem:[%s487 + $0x50] sm:$0xf0]
        %v9483 = vld [vmem:[%s487 + $0x60] sm:$0xf0]
        %v9484 = vld [vmem:[%s487 + $0x70] sm:$0xf0]
        %v9485 = vld [vmem:[%s487 + $0x80] sm:$0xf0]
        %v9486 = vld [vmem:[%s487 + $0x90] sm:$0xf0]
        %v9487 = vld [vmem:[%s487 + $0xa0] sm:$0xf0]
        %v9488 = vld [vmem:[%s487 + $0xb0] sm:$0xf0]
        %v9489 = vld [vmem:[%s487 + $0xc0] sm:$0xf0]
        %v9490 = vld [vmem:[%s487 + $0xd0] sm:$0xf0]
        %v9491 = vld [vmem:[%s487 + $0xe0] sm:$0xf0]
        %v9492 = vld [vmem:[%s487 + $0xf0] sm:$0xf0]
        %v9525 = vrot.slane %v9477, 4
        %v9526 = vrot.slane %v9174, 4
        %v9527 = vsel %vm1413, %v9525, %v9526
        %v9528 = vrot.slane %v9478, 4
        %v9529 = vrot.slane %v9176, 4
        %v9530 = vsel %vm1413, %v9528, %v9529
        %v9531 = vrot.slane %v9479, 4
        %v9532 = vrot.slane %v9178, 4
        %v9533 = vsel %vm1413, %v9531, %v9532
        %v9534 = vrot.slane %v9480, 4
        %v9535 = vrot.slane %v9180, 4
        %v9536 = vsel %vm1413, %v9534, %v9535
        %v9537 = vrot.slane %v9481, 4
        %v9538 = vrot.slane %v9182, 4
        %v9539 = vsel %vm1413, %v9537, %v9538
        %v9540 = vrot.slane %v9482, 4
        %v9541 = vrot.slane %v9184, 4
        %v9542 = vsel %vm1413, %v9540, %v9541
        %v9543 = vrot.slane %v9483, 4
        %v9544 = vrot.slane %v9186, 4
        %v9545 = vsel %vm1413, %v9543, %v9544
        %v9546 = vrot.slane %v9484, 4
        %v9547 = vrot.slane %v9188, 4
        %v9548 = vsel %vm1413, %v9546, %v9547
        %v9549 = vrot.slane %v9485, 4
        %v9550 = vrot.slane %v9190, 4
        %v9551 = vsel %vm1413, %v9549, %v9550
        %v9552 = vrot.slane %v9486, 4
        %v9553 = vrot.slane %v9192, 4
        %v9554 = vsel %vm1413, %v9552, %v9553
        %v9555 = vrot.slane %v9487, 4
        %v9556 = vrot.slane %v9194, 4
        %v9557 = vsel %vm1413, %v9555, %v9556
        %v9558 = vrot.slane %v9488, 4
        %v9559 = vrot.slane %v9196, 4
        %v9560 = vsel %vm1413, %v9558, %v9559
        %v9561 = vrot.slane %v9489, 4
        %v9562 = vrot.slane %v9198, 4
        %v9563 = vsel %vm1413, %v9561, %v9562
        %v9564 = vrot.slane %v9490, 4
        %v9565 = vrot.slane %v9200, 4
        %v9566 = vsel %vm1413, %v9564, %v9565
        %v9567 = vrot.slane %v9491, 4
        %v9568 = vrot.slane %v9202, 4
        %v9569 = vsel %vm1413, %v9567, %v9568
        %v9570 = vrot.slane %v9492, 4
        %v9571 = vrot.slane %v9204, 4
        %v9572 = vsel %vm1413, %v9570, %v9571
        %v9573 = vld [vmem:[%s487 + $0x8] sm:$0x1f]
        %v9574 = vld [vmem:[%s487 + $0x18] sm:$0x1f]
        %v9575 = vld [vmem:[%s487 + $0x28] sm:$0x1f]
        %v9576 = vld [vmem:[%s487 + $0x38] sm:$0x1f]
        %v9577 = vld [vmem:[%s487 + $0x48] sm:$0x1f]
        %v9578 = vld [vmem:[%s487 + $0x58] sm:$0x1f]
        %v9579 = vld [vmem:[%s487 + $0x68] sm:$0x1f]
        %v9580 = vld [vmem:[%s487 + $0x78] sm:$0x1f]
        %v9581 = vld [vmem:[%s487 + $0x88] sm:$0x1f]
        %v9582 = vld [vmem:[%s487 + $0x98] sm:$0x1f]
        %v9583 = vld [vmem:[%s487 + $0xa8] sm:$0x1f]
        %v9584 = vld [vmem:[%s487 + $0xb8] sm:$0x1f]
        %v9585 = vld [vmem:[%s487 + $0xc8] sm:$0x1f]
        %v9586 = vld [vmem:[%s487 + $0xd8] sm:$0x1f]
        %v9587 = vld [vmem:[%s487 + $0xe8] sm:$0x1f]
        %v9588 = vld [vmem:[%s487 + $0xf8] sm:$0x1f]
        %v9590 = vshrl.u32 %v9477, 16
        %v9592 = vrot.slane %v9590, 4
        %v9593 = vshll.u32 %v9477, 16
        %v9595 = vrot.slane %v9593, 5
        %v9596 = vor.u32 %v9592, %v9595
        %v9598 = vshrl.u32 %v9573, 16
        %v9600 = vrot.slane %v9598, 4
        %v9601 = vshll.u32 %v9573, 16
        %v9603 = vrot.slane %v9601, 5
        %v9604 = vor.u32 %v9600, %v9603
        %v9605 = vsel %vm1478, %v9596, %v9604
        %v9607 = vshrl.u32 %v9478, 16
        %v9609 = vrot.slane %v9607, 4
        %v9610 = vshll.u32 %v9478, 16
        %v9612 = vrot.slane %v9610, 5
        %v9613 = vor.u32 %v9609, %v9612
        %v9615 = vshrl.u32 %v9574, 16
        %v9617 = vrot.slane %v9615, 4
        %v9618 = vshll.u32 %v9574, 16
        %v9620 = vrot.slane %v9618, 5
        %v9621 = vor.u32 %v9617, %v9620
        %v9622 = vsel %vm1478, %v9613, %v9621
        %v9624 = vshrl.u32 %v9479, 16
        %v9626 = vrot.slane %v9624, 4
        %v9627 = vshll.u32 %v9479, 16
        %v9629 = vrot.slane %v9627, 5
        %v9630 = vor.u32 %v9626, %v9629
        %v9632 = vshrl.u32 %v9575, 16
        %v9634 = vrot.slane %v9632, 4
        %v9635 = vshll.u32 %v9575, 16
        %v9637 = vrot.slane %v9635, 5
        %v9638 = vor.u32 %v9634, %v9637
        %v9639 = vsel %vm1478, %v9630, %v9638
        %v9641 = vshrl.u32 %v9480, 16
        %v9643 = vrot.slane %v9641, 4
        %v9644 = vshll.u32 %v9480, 16
        %v9646 = vrot.slane %v9644, 5
        %v9647 = vor.u32 %v9643, %v9646
        %v9649 = vshrl.u32 %v9576, 16
        %v9651 = vrot.slane %v9649, 4
        %v9652 = vshll.u32 %v9576, 16
        %v9654 = vrot.slane %v9652, 5
        %v9655 = vor.u32 %v9651, %v9654
        %v9656 = vsel %vm1478, %v9647, %v9655
        %v9658 = vshrl.u32 %v9481, 16
        %v9660 = vrot.slane %v9658, 4
        %v9661 = vshll.u32 %v9481, 16
        %v9663 = vrot.slane %v9661, 5
        %v9664 = vor.u32 %v9660, %v9663
        %v9666 = vshrl.u32 %v9577, 16
        %v9668 = vrot.slane %v9666, 4
        %v9669 = vshll.u32 %v9577, 16
        %v9671 = vrot.slane %v9669, 5
        %v9672 = vor.u32 %v9668, %v9671
        %v9673 = vsel %vm1478, %v9664, %v9672
        %v9675 = vshrl.u32 %v9482, 16
        %v9677 = vrot.slane %v9675, 4
        %v9678 = vshll.u32 %v9482, 16
        %v9680 = vrot.slane %v9678, 5
        %v9681 = vor.u32 %v9677, %v9680
        %v9683 = vshrl.u32 %v9578, 16
        %v9685 = vrot.slane %v9683, 4
        %v9686 = vshll.u32 %v9578, 16
        %v9688 = vrot.slane %v9686, 5
        %v9689 = vor.u32 %v9685, %v9688
        %v9690 = vsel %vm1478, %v9681, %v9689
        %v9692 = vshrl.u32 %v9483, 16
        %v9694 = vrot.slane %v9692, 4
        %v9695 = vshll.u32 %v9483, 16
        %v9697 = vrot.slane %v9695, 5
        %v9698 = vor.u32 %v9694, %v9697
        %v9700 = vshrl.u32 %v9579, 16
        %v9702 = vrot.slane %v9700, 4
        %v9703 = vshll.u32 %v9579, 16
        %v9705 = vrot.slane %v9703, 5
        %v9706 = vor.u32 %v9702, %v9705
        %v9707 = vsel %vm1478, %v9698, %v9706
        %v9709 = vshrl.u32 %v9484, 16
        %v9711 = vrot.slane %v9709, 4
        %v9712 = vshll.u32 %v9484, 16
        %v9714 = vrot.slane %v9712, 5
        %v9715 = vor.u32 %v9711, %v9714
        %v9717 = vshrl.u32 %v9580, 16
        %v9719 = vrot.slane %v9717, 4
        %v9720 = vshll.u32 %v9580, 16
        %v9722 = vrot.slane %v9720, 5
        %v9723 = vor.u32 %v9719, %v9722
        %v9724 = vsel %vm1478, %v9715, %v9723
        %v9726 = vshrl.u32 %v9485, 16
        %v9728 = vrot.slane %v9726, 4
        %v9729 = vshll.u32 %v9485, 16
        %v9731 = vrot.slane %v9729, 5
        %v9732 = vor.u32 %v9728, %v9731
        %v9734 = vshrl.u32 %v9581, 16
        %v9736 = vrot.slane %v9734, 4
        %v9737 = vshll.u32 %v9581, 16
        %v9739 = vrot.slane %v9737, 5
        %v9740 = vor.u32 %v9736, %v9739
        %v9741 = vsel %vm1478, %v9732, %v9740
        %v9743 = vshrl.u32 %v9486, 16
        %v9745 = vrot.slane %v9743, 4
        %v9746 = vshll.u32 %v9486, 16
        %v9748 = vrot.slane %v9746, 5
        %v9749 = vor.u32 %v9745, %v9748
        %v9751 = vshrl.u32 %v9582, 16
        %v9753 = vrot.slane %v9751, 4
        %v9754 = vshll.u32 %v9582, 16
        %v9756 = vrot.slane %v9754, 5
        %v9757 = vor.u32 %v9753, %v9756
        %v9758 = vsel %vm1478, %v9749, %v9757
        %v9760 = vshrl.u32 %v9487, 16
        %v9762 = vrot.slane %v9760, 4
        %v9763 = vshll.u32 %v9487, 16
        %v9765 = vrot.slane %v9763, 5
        %v9766 = vor.u32 %v9762, %v9765
        %v9768 = vshrl.u32 %v9583, 16
        %v9770 = vrot.slane %v9768, 4
        %v9771 = vshll.u32 %v9583, 16
        %v9773 = vrot.slane %v9771, 5
        %v9774 = vor.u32 %v9770, %v9773
        %v9775 = vsel %vm1478, %v9766, %v9774
        %v9777 = vshrl.u32 %v9488, 16
        %v9779 = vrot.slane %v9777, 4
        %v9780 = vshll.u32 %v9488, 16
        %v9782 = vrot.slane %v9780, 5
        %v9783 = vor.u32 %v9779, %v9782
        %v9785 = vshrl.u32 %v9584, 16
        %v9787 = vrot.slane %v9785, 4
        %v9788 = vshll.u32 %v9584, 16
        %v9790 = vrot.slane %v9788, 5
        %v9791 = vor.u32 %v9787, %v9790
        %v9792 = vsel %vm1478, %v9783, %v9791
        %v9794 = vshrl.u32 %v9489, 16
        %v9796 = vrot.slane %v9794, 4
        %v9797 = vshll.u32 %v9489, 16
        %v9799 = vrot.slane %v9797, 5
        %v9800 = vor.u32 %v9796, %v9799
        %v9802 = vshrl.u32 %v9585, 16
        %v9804 = vrot.slane %v9802, 4
        %v9805 = vshll.u32 %v9585, 16
        %v9807 = vrot.slane %v9805, 5
        %v9808 = vor.u32 %v9804, %v9807
        %v9809 = vsel %vm1478, %v9800, %v9808
        %v9811 = vshrl.u32 %v9490, 16
        %v9813 = vrot.slane %v9811, 4
        %v9814 = vshll.u32 %v9490, 16
        %v9816 = vrot.slane %v9814, 5
        %v9817 = vor.u32 %v9813, %v9816
        %v9819 = vshrl.u32 %v9586, 16
        %v9821 = vrot.slane %v9819, 4
        %v9822 = vshll.u32 %v9586, 16
        %v9824 = vrot.slane %v9822, 5
        %v9825 = vor.u32 %v9821, %v9824
        %v9826 = vsel %vm1478, %v9817, %v9825
        %v9828 = vshrl.u32 %v9491, 16
        %v9830 = vrot.slane %v9828, 4
        %v9831 = vshll.u32 %v9491, 16
        %v9833 = vrot.slane %v9831, 5
        %v9834 = vor.u32 %v9830, %v9833
        %v9836 = vshrl.u32 %v9587, 16
        %v9838 = vrot.slane %v9836, 4
        %v9839 = vshll.u32 %v9587, 16
        %v9841 = vrot.slane %v9839, 5
        %v9842 = vor.u32 %v9838, %v9841
        %v9843 = vsel %vm1478, %v9834, %v9842
        %v9845 = vshrl.u32 %v9492, 16
        %v9847 = vrot.slane %v9845, 4
        %v9848 = vshll.u32 %v9492, 16
        %v9850 = vrot.slane %v9848, 5
        %v9851 = vor.u32 %v9847, %v9850
        %v9853 = vshrl.u32 %v9588, 16
        %v9855 = vrot.slane %v9853, 4
        %v9856 = vshll.u32 %v9588, 16
        %v9858 = vrot.slane %v9856, 5
        %v9859 = vor.u32 %v9855, %v9858
        %v9860 = vsel %vm1478, %v9851, %v9859
        %v9861 = vld [vmem:[%s2439] sm:$0xf8]
        %v9862 = vld [vmem:[%s2439 + $0x8] sm:$0xf]
        %v9863 = vld [vmem:[%s2439 + $0x10] sm:$0xf8]
        %v9864 = vld [vmem:[%s2439 + $0x18] sm:$0xf]
        %v9865 = vld [vmem:[%s2439 + $0x20] sm:$0xf8]
        %v9866 = vld [vmem:[%s2439 + $0x28] sm:$0xf]
        %v9867 = vld [vmem:[%s2439 + $0x30] sm:$0xf8]
        %v9868 = vld [vmem:[%s2439 + $0x38] sm:$0xf]
        %v9869 = vld [vmem:[%s2439 + $0x40] sm:$0xf8]
        %v9870 = vld [vmem:[%s2439 + $0x48] sm:$0xf]
        %v9871 = vld [vmem:[%s2439 + $0x50] sm:$0xf8]
        %v9872 = vld [vmem:[%s2439 + $0x58] sm:$0xf]
        %v9873 = vld [vmem:[%s2439 + $0x60] sm:$0xf8]
        %v9874 = vld [vmem:[%s2439 + $0x68] sm:$0xf]
        %v9875 = vld [vmem:[%s2439 + $0x70] sm:$0xf8]
        %v9876 = vld [vmem:[%s2439 + $0x78] sm:$0xf]
        %v9877 = vld [vmem:[%s2439 + $0x80] sm:$0xf8]
        %v9878 = vld [vmem:[%s2439 + $0x88] sm:$0xf]
        %v9879 = vld [vmem:[%s2439 + $0x90] sm:$0xf8]
        %v9880 = vld [vmem:[%s2439 + $0x98] sm:$0xf]
        %v9881 = vld [vmem:[%s2439 + $0xa0] sm:$0xf8]
        %v9882 = vld [vmem:[%s2439 + $0xa8] sm:$0xf]
        %v9883 = vld [vmem:[%s2439 + $0xb0] sm:$0xf8]
        %v9884 = vld [vmem:[%s2439 + $0xb8] sm:$0xf]
        %v9885 = vld [vmem:[%s2439 + $0xc0] sm:$0xf8]
        %v9886 = vld [vmem:[%s2439 + $0xc8] sm:$0xf]
        %v9887 = vld [vmem:[%s2439 + $0xd0] sm:$0xf8]
        %v9888 = vld [vmem:[%s2439 + $0xd8] sm:$0xf]
        %v9889 = vld [vmem:[%s2439 + $0xe0] sm:$0xf8]
        %v9890 = vld [vmem:[%s2439 + $0xe8] sm:$0xf]
        %v9891 = vld [vmem:[%s2439 + $0xf0] sm:$0xf8]
        %v9892 = vld [vmem:[%s2439 + $0xf8] sm:$0xf]
        %v9894 = vshrl.u32 %v9861, 16
        %v9896 = vrot.slane %v9894, 3
        %v9897 = vshll.u32 %v9861, 16
        %v9899 = vrot.slane %v9897, 4
        %v9900 = vor.u32 %v9896, %v9899
        %v9902 = vshrl.u32 %v9862, 16
        %v9904 = vrot.slane %v9902, 3
        %v9905 = vshll.u32 %v9862, 16
        %v9907 = vrot.slane %v9905, 4
        %v9908 = vor.u32 %v9904, %v9907
        %v9909 = vsel %vm1092, %v9900, %v9908
        %v9911 = vshrl.u32 %v9863, 16
        %v9913 = vrot.slane %v9911, 3
        %v9914 = vshll.u32 %v9863, 16
        %v9916 = vrot.slane %v9914, 4
        %v9917 = vor.u32 %v9913, %v9916
        %v9919 = vshrl.u32 %v9864, 16
        %v9921 = vrot.slane %v9919, 3
        %v9922 = vshll.u32 %v9864, 16
        %v9924 = vrot.slane %v9922, 4
        %v9925 = vor.u32 %v9921, %v9924
        %v9926 = vsel %vm1092, %v9917, %v9925
        %v9928 = vshrl.u32 %v9865, 16
        %v9930 = vrot.slane %v9928, 3
        %v9931 = vshll.u32 %v9865, 16
        %v9933 = vrot.slane %v9931, 4
        %v9934 = vor.u32 %v9930, %v9933
        %v9936 = vshrl.u32 %v9866, 16
        %v9938 = vrot.slane %v9936, 3
        %v9939 = vshll.u32 %v9866, 16
        %v9941 = vrot.slane %v9939, 4
        %v9942 = vor.u32 %v9938, %v9941
        %v9943 = vsel %vm1092, %v9934, %v9942
        %v9945 = vshrl.u32 %v9867, 16
        %v9947 = vrot.slane %v9945, 3
        %v9948 = vshll.u32 %v9867, 16
        %v9950 = vrot.slane %v9948, 4
        %v9951 = vor.u32 %v9947, %v9950
        %v9953 = vshrl.u32 %v9868, 16
        %v9955 = vrot.slane %v9953, 3
        %v9956 = vshll.u32 %v9868, 16
        %v9958 = vrot.slane %v9956, 4
        %v9959 = vor.u32 %v9955, %v9958
        %v9960 = vsel %vm1092, %v9951, %v9959
        %v9962 = vshrl.u32 %v9869, 16
        %v9964 = vrot.slane %v9962, 3
        %v9965 = vshll.u32 %v9869, 16
        %v9967 = vrot.slane %v9965, 4
        %v9968 = vor.u32 %v9964, %v9967
        %v9970 = vshrl.u32 %v9870, 16
        %v9972 = vrot.slane %v9970, 3
        %v9973 = vshll.u32 %v9870, 16
        %v9975 = vrot.slane %v9973, 4
        %v9976 = vor.u32 %v9972, %v9975
        %v9977 = vsel %vm1092, %v9968, %v9976
        %v9979 = vshrl.u32 %v9871, 16
        %v9981 = vrot.slane %v9979, 3
        %v9982 = vshll.u32 %v9871, 16
        %v9984 = vrot.slane %v9982, 4
        %v9985 = vor.u32 %v9981, %v9984
        %v9987 = vshrl.u32 %v9872, 16
        %v9989 = vrot.slane %v9987, 3
        %v9990 = vshll.u32 %v9872, 16
        %v9992 = vrot.slane %v9990, 4
        %v9993 = vor.u32 %v9989, %v9992
        %v9994 = vsel %vm1092, %v9985, %v9993
        %v9996 = vshrl.u32 %v9873, 16
        %v9998 = vrot.slane %v9996, 3
        %v9999 = vshll.u32 %v9873, 16
        %v10001 = vrot.slane %v9999, 4
        %v10002 = vor.u32 %v9998, %v10001
        %v10004 = vshrl.u32 %v9874, 16
        %v10006 = vrot.slane %v10004, 3
        %v10007 = vshll.u32 %v9874, 16
        %v10009 = vrot.slane %v10007, 4
        %v10010 = vor.u32 %v10006, %v10009
        %v10011 = vsel %vm1092, %v10002, %v10010
        %v10013 = vshrl.u32 %v9875, 16
        %v10015 = vrot.slane %v10013, 3
        %v10016 = vshll.u32 %v9875, 16
        %v10018 = vrot.slane %v10016, 4
        %v10019 = vor.u32 %v10015, %v10018
        %v10021 = vshrl.u32 %v9876, 16
        %v10023 = vrot.slane %v10021, 3
        %v10024 = vshll.u32 %v9876, 16
        %v10026 = vrot.slane %v10024, 4
        %v10027 = vor.u32 %v10023, %v10026
        %v10028 = vsel %vm1092, %v10019, %v10027
        %v10030 = vshrl.u32 %v9877, 16
        %v10032 = vrot.slane %v10030, 3
        %v10033 = vshll.u32 %v9877, 16
        %v10035 = vrot.slane %v10033, 4
        %v10036 = vor.u32 %v10032, %v10035
        %v10038 = vshrl.u32 %v9878, 16
        %v10040 = vrot.slane %v10038, 3
        %v10041 = vshll.u32 %v9878, 16
        %v10043 = vrot.slane %v10041, 4
        %v10044 = vor.u32 %v10040, %v10043
        %v10045 = vsel %vm1092, %v10036, %v10044
        %v10047 = vshrl.u32 %v9879, 16
        %v10049 = vrot.slane %v10047, 3
        %v10050 = vshll.u32 %v9879, 16
        %v10052 = vrot.slane %v10050, 4
        %v10053 = vor.u32 %v10049, %v10052
        %v10055 = vshrl.u32 %v9880, 16
        %v10057 = vrot.slane %v10055, 3
        %v10058 = vshll.u32 %v9880, 16
        %v10060 = vrot.slane %v10058, 4
        %v10061 = vor.u32 %v10057, %v10060
        %v10062 = vsel %vm1092, %v10053, %v10061
        %v10064 = vshrl.u32 %v9881, 16
        %v10066 = vrot.slane %v10064, 3
        %v10067 = vshll.u32 %v9881, 16
        %v10069 = vrot.slane %v10067, 4
        %v10070 = vor.u32 %v10066, %v10069
        %v10072 = vshrl.u32 %v9882, 16
        %v10074 = vrot.slane %v10072, 3
        %v10075 = vshll.u32 %v9882, 16
        %v10077 = vrot.slane %v10075, 4
        %v10078 = vor.u32 %v10074, %v10077
        %v10079 = vsel %vm1092, %v10070, %v10078
        %v10081 = vshrl.u32 %v9883, 16
        %v10083 = vrot.slane %v10081, 3
        %v10084 = vshll.u32 %v9883, 16
        %v10086 = vrot.slane %v10084, 4
        %v10087 = vor.u32 %v10083, %v10086
        %v10089 = vshrl.u32 %v9884, 16
        %v10091 = vrot.slane %v10089, 3
        %v10092 = vshll.u32 %v9884, 16
        %v10094 = vrot.slane %v10092, 4
        %v10095 = vor.u32 %v10091, %v10094
        %v10096 = vsel %vm1092, %v10087, %v10095
        %v10098 = vshrl.u32 %v9885, 16
        %v10100 = vrot.slane %v10098, 3
        %v10101 = vshll.u32 %v9885, 16
        %v10103 = vrot.slane %v10101, 4
        %v10104 = vor.u32 %v10100, %v10103
        %v10106 = vshrl.u32 %v9886, 16
        %v10108 = vrot.slane %v10106, 3
        %v10109 = vshll.u32 %v9886, 16
        %v10111 = vrot.slane %v10109, 4
        %v10112 = vor.u32 %v10108, %v10111
        %v10113 = vsel %vm1092, %v10104, %v10112
        %v10115 = vshrl.u32 %v9887, 16
        %v10117 = vrot.slane %v10115, 3
        %v10118 = vshll.u32 %v9887, 16
        %v10120 = vrot.slane %v10118, 4
        %v10121 = vor.u32 %v10117, %v10120
        %v10123 = vshrl.u32 %v9888, 16
        %v10125 = vrot.slane %v10123, 3
        %v10126 = vshll.u32 %v9888, 16
        %v10128 = vrot.slane %v10126, 4
        %v10129 = vor.u32 %v10125, %v10128
        %v10130 = vsel %vm1092, %v10121, %v10129
        %v10132 = vshrl.u32 %v9889, 16
        %v10134 = vrot.slane %v10132, 3
        %v10135 = vshll.u32 %v9889, 16
        %v10137 = vrot.slane %v10135, 4
        %v10138 = vor.u32 %v10134, %v10137
        %v10140 = vshrl.u32 %v9890, 16
        %v10142 = vrot.slane %v10140, 3
        %v10143 = vshll.u32 %v9890, 16
        %v10145 = vrot.slane %v10143, 4
        %v10146 = vor.u32 %v10142, %v10145
        %v10147 = vsel %vm1092, %v10138, %v10146
        %v10149 = vshrl.u32 %v9891, 16
        %v10151 = vrot.slane %v10149, 3
        %v10152 = vshll.u32 %v9891, 16
        %v10154 = vrot.slane %v10152, 4
        %v10155 = vor.u32 %v10151, %v10154
        %v10157 = vshrl.u32 %v9892, 16
        %v10159 = vrot.slane %v10157, 3
        %v10160 = vshll.u32 %v9892, 16
        %v10162 = vrot.slane %v10160, 4
        %v10163 = vor.u32 %v10159, %v10162
        %v10164 = vsel %vm1092, %v10155, %v10163
        %v10165 = vld [vmem:[%s2439] sm:$0xf0]
        %v10166 = vld [vmem:[%s2439 + $0x10] sm:$0xf0]
        %v10167 = vld [vmem:[%s2439 + $0x20] sm:$0xf0]
        %v10168 = vld [vmem:[%s2439 + $0x30] sm:$0xf0]
        %v10169 = vld [vmem:[%s2439 + $0x40] sm:$0xf0]
        %v10170 = vld [vmem:[%s2439 + $0x50] sm:$0xf0]
        %v10171 = vld [vmem:[%s2439 + $0x60] sm:$0xf0]
        %v10172 = vld [vmem:[%s2439 + $0x70] sm:$0xf0]
        %v10173 = vld [vmem:[%s2439 + $0x80] sm:$0xf0]
        %v10174 = vld [vmem:[%s2439 + $0x90] sm:$0xf0]
        %v10175 = vld [vmem:[%s2439 + $0xa0] sm:$0xf0]
        %v10176 = vld [vmem:[%s2439 + $0xb0] sm:$0xf0]
        %v10177 = vld [vmem:[%s2439 + $0xc0] sm:$0xf0]
        %v10178 = vld [vmem:[%s2439 + $0xd0] sm:$0xf0]
        %v10179 = vld [vmem:[%s2439 + $0xe0] sm:$0xf0]
        %v10180 = vld [vmem:[%s2439 + $0xf0] sm:$0xf0]
        %v10213 = vrot.slane %v10165, 4
        %v10214 = vrot.slane %v9862, 4
        %v10215 = vsel %vm1413, %v10213, %v10214
        %v10216 = vrot.slane %v10166, 4
        %v10217 = vrot.slane %v9864, 4
        %v10218 = vsel %vm1413, %v10216, %v10217
        %v10219 = vrot.slane %v10167, 4
        %v10220 = vrot.slane %v9866, 4
        %v10221 = vsel %vm1413, %v10219, %v10220
        %v10222 = vrot.slane %v10168, 4
        %v10223 = vrot.slane %v9868, 4
        %v10224 = vsel %vm1413, %v10222, %v10223
        %v10225 = vrot.slane %v10169, 4
        %v10226 = vrot.slane %v9870, 4
        %v10227 = vsel %vm1413, %v10225, %v10226
        %v10228 = vrot.slane %v10170, 4
        %v10229 = vrot.slane %v9872, 4
        %v10230 = vsel %vm1413, %v10228, %v10229
        %v10231 = vrot.slane %v10171, 4
        %v10232 = vrot.slane %v9874, 4
        %v10233 = vsel %vm1413, %v10231, %v10232
        %v10234 = vrot.slane %v10172, 4
        %v10235 = vrot.slane %v9876, 4
        %v10236 = vsel %vm1413, %v10234, %v10235
        %v10237 = vrot.slane %v10173, 4
        %v10238 = vrot.slane %v9878, 4
        %v10239 = vsel %vm1413, %v10237, %v10238
        %v10240 = vrot.slane %v10174, 4
        %v10241 = vrot.slane %v9880, 4
        %v10242 = vsel %vm1413, %v10240, %v10241
        %v10243 = vrot.slane %v10175, 4
        %v10244 = vrot.slane %v9882, 4
        %v10245 = vsel %vm1413, %v10243, %v10244
        %v10246 = vrot.slane %v10176, 4
        %v10247 = vrot.slane %v9884, 4
        %v10248 = vsel %vm1413, %v10246, %v10247
        %v10249 = vrot.slane %v10177, 4
        %v10250 = vrot.slane %v9886, 4
        %v10251 = vsel %vm1413, %v10249, %v10250
        %v10252 = vrot.slane %v10178, 4
        %v10253 = vrot.slane %v9888, 4
        %v10254 = vsel %vm1413, %v10252, %v10253
        %v10255 = vrot.slane %v10179, 4
        %v10256 = vrot.slane %v9890, 4
        %v10257 = vsel %vm1413, %v10255, %v10256
        %v10258 = vrot.slane %v10180, 4
        %v10259 = vrot.slane %v9892, 4
        %v10260 = vsel %vm1413, %v10258, %v10259
        %v10261 = vld [vmem:[%s2439 + $0x8] sm:$0x1f]
        %v10262 = vld [vmem:[%s2439 + $0x18] sm:$0x1f]
        %v10263 = vld [vmem:[%s2439 + $0x28] sm:$0x1f]
        %v10264 = vld [vmem:[%s2439 + $0x38] sm:$0x1f]
        %v10265 = vld [vmem:[%s2439 + $0x48] sm:$0x1f]
        %v10266 = vld [vmem:[%s2439 + $0x58] sm:$0x1f]
        %v10267 = vld [vmem:[%s2439 + $0x68] sm:$0x1f]
        %v10268 = vld [vmem:[%s2439 + $0x78] sm:$0x1f]
        %v10269 = vld [vmem:[%s2439 + $0x88] sm:$0x1f]
        %v10270 = vld [vmem:[%s2439 + $0x98] sm:$0x1f]
        %v10271 = vld [vmem:[%s2439 + $0xa8] sm:$0x1f]
        %v10272 = vld [vmem:[%s2439 + $0xb8] sm:$0x1f]
        %v10273 = vld [vmem:[%s2439 + $0xc8] sm:$0x1f]
        %v10274 = vld [vmem:[%s2439 + $0xd8] sm:$0x1f]
        %v10275 = vld [vmem:[%s2439 + $0xe8] sm:$0x1f]
        %v10276 = vld [vmem:[%s2439 + $0xf8] sm:$0x1f]
        %v10278 = vshrl.u32 %v10165, 16
        %v10280 = vrot.slane %v10278, 4
        %v10281 = vshll.u32 %v10165, 16
        %v10283 = vrot.slane %v10281, 5
        %v10284 = vor.u32 %v10280, %v10283
        %v10286 = vshrl.u32 %v10261, 16
        %v10288 = vrot.slane %v10286, 4
        %v10289 = vshll.u32 %v10261, 16
        %v10291 = vrot.slane %v10289, 5
        %v10292 = vor.u32 %v10288, %v10291
        %v10293 = vsel %vm1478, %v10284, %v10292
        %v10295 = vshrl.u32 %v10166, 16
        %v10297 = vrot.slane %v10295, 4
        %v10298 = vshll.u32 %v10166, 16
        %v10300 = vrot.slane %v10298, 5
        %v10301 = vor.u32 %v10297, %v10300
        %v10303 = vshrl.u32 %v10262, 16
        %v10305 = vrot.slane %v10303, 4
        %v10306 = vshll.u32 %v10262, 16
        %v10308 = vrot.slane %v10306, 5
        %v10309 = vor.u32 %v10305, %v10308
        %v10310 = vsel %vm1478, %v10301, %v10309
        %v10312 = vshrl.u32 %v10167, 16
        %v10314 = vrot.slane %v10312, 4
        %v10315 = vshll.u32 %v10167, 16
        %v10317 = vrot.slane %v10315, 5
        %v10318 = vor.u32 %v10314, %v10317
        %v10320 = vshrl.u32 %v10263, 16
        %v10322 = vrot.slane %v10320, 4
        %v10323 = vshll.u32 %v10263, 16
        %v10325 = vrot.slane %v10323, 5
        %v10326 = vor.u32 %v10322, %v10325
        %v10327 = vsel %vm1478, %v10318, %v10326
        %v10329 = vshrl.u32 %v10168, 16
        %v10331 = vrot.slane %v10329, 4
        %v10332 = vshll.u32 %v10168, 16
        %v10334 = vrot.slane %v10332, 5
        %v10335 = vor.u32 %v10331, %v10334
        %v10337 = vshrl.u32 %v10264, 16
        %v10339 = vrot.slane %v10337, 4
        %v10340 = vshll.u32 %v10264, 16
        %v10342 = vrot.slane %v10340, 5
        %v10343 = vor.u32 %v10339, %v10342
        %v10344 = vsel %vm1478, %v10335, %v10343
        %v10346 = vshrl.u32 %v10169, 16
        %v10348 = vrot.slane %v10346, 4
        %v10349 = vshll.u32 %v10169, 16
        %v10351 = vrot.slane %v10349, 5
        %v10352 = vor.u32 %v10348, %v10351
        %v10354 = vshrl.u32 %v10265, 16
        %v10356 = vrot.slane %v10354, 4
        %v10357 = vshll.u32 %v10265, 16
        %v10359 = vrot.slane %v10357, 5
        %v10360 = vor.u32 %v10356, %v10359
        %v10361 = vsel %vm1478, %v10352, %v10360
        %v10363 = vshrl.u32 %v10170, 16
        %v10365 = vrot.slane %v10363, 4
        %v10366 = vshll.u32 %v10170, 16
        %v10368 = vrot.slane %v10366, 5
        %v10369 = vor.u32 %v10365, %v10368
        %v10371 = vshrl.u32 %v10266, 16
        %v10373 = vrot.slane %v10371, 4
        %v10374 = vshll.u32 %v10266, 16
        %v10376 = vrot.slane %v10374, 5
        %v10377 = vor.u32 %v10373, %v10376
        %v10378 = vsel %vm1478, %v10369, %v10377
        %v10380 = vshrl.u32 %v10171, 16
        %v10382 = vrot.slane %v10380, 4
        %v10383 = vshll.u32 %v10171, 16
        %v10385 = vrot.slane %v10383, 5
        %v10386 = vor.u32 %v10382, %v10385
        %v10388 = vshrl.u32 %v10267, 16
        %v10390 = vrot.slane %v10388, 4
        %v10391 = vshll.u32 %v10267, 16
        %v10393 = vrot.slane %v10391, 5
        %v10394 = vor.u32 %v10390, %v10393
        %v10395 = vsel %vm1478, %v10386, %v10394
        %v10397 = vshrl.u32 %v10172, 16
        %v10399 = vrot.slane %v10397, 4
        %v10400 = vshll.u32 %v10172, 16
        %v10402 = vrot.slane %v10400, 5
        %v10403 = vor.u32 %v10399, %v10402
        %v10405 = vshrl.u32 %v10268, 16
        %v10407 = vrot.slane %v10405, 4
        %v10408 = vshll.u32 %v10268, 16
        %v10410 = vrot.slane %v10408, 5
        %v10411 = vor.u32 %v10407, %v10410
        %v10412 = vsel %vm1478, %v10403, %v10411
        %v10414 = vshrl.u32 %v10173, 16
        %v10416 = vrot.slane %v10414, 4
        %v10417 = vshll.u32 %v10173, 16
        %v10419 = vrot.slane %v10417, 5
        %v10420 = vor.u32 %v10416, %v10419
        %v10422 = vshrl.u32 %v10269, 16
        %v10424 = vrot.slane %v10422, 4
        %v10425 = vshll.u32 %v10269, 16
        %v10427 = vrot.slane %v10425, 5
        %v10428 = vor.u32 %v10424, %v10427
        %v10429 = vsel %vm1478, %v10420, %v10428
        %v10431 = vshrl.u32 %v10174, 16
        %v10433 = vrot.slane %v10431, 4
        %v10434 = vshll.u32 %v10174, 16
        %v10436 = vrot.slane %v10434, 5
        %v10437 = vor.u32 %v10433, %v10436
        %v10439 = vshrl.u32 %v10270, 16
        %v10441 = vrot.slane %v10439, 4
        %v10442 = vshll.u32 %v10270, 16
        %v10444 = vrot.slane %v10442, 5
        %v10445 = vor.u32 %v10441, %v10444
        %v10446 = vsel %vm1478, %v10437, %v10445
        %v10448 = vshrl.u32 %v10175, 16
        %v10450 = vrot.slane %v10448, 4
        %v10451 = vshll.u32 %v10175, 16
        %v10453 = vrot.slane %v10451, 5
        %v10454 = vor.u32 %v10450, %v10453
        %v10456 = vshrl.u32 %v10271, 16
        %v10458 = vrot.slane %v10456, 4
        %v10459 = vshll.u32 %v10271, 16
        %v10461 = vrot.slane %v10459, 5
        %v10462 = vor.u32 %v10458, %v10461
        %v10463 = vsel %vm1478, %v10454, %v10462
        %v10465 = vshrl.u32 %v10176, 16
        %v10467 = vrot.slane %v10465, 4
        %v10468 = vshll.u32 %v10176, 16
        %v10470 = vrot.slane %v10468, 5
        %v10471 = vor.u32 %v10467, %v10470
        %v10473 = vshrl.u32 %v10272, 16
        %v10475 = vrot.slane %v10473, 4
        %v10476 = vshll.u32 %v10272, 16
        %v10478 = vrot.slane %v10476, 5
        %v10479 = vor.u32 %v10475, %v10478
        %v10480 = vsel %vm1478, %v10471, %v10479
        %v10482 = vshrl.u32 %v10177, 16
        %v10484 = vrot.slane %v10482, 4
        %v10485 = vshll.u32 %v10177, 16
        %v10487 = vrot.slane %v10485, 5
        %v10488 = vor.u32 %v10484, %v10487
        %v10490 = vshrl.u32 %v10273, 16
        %v10492 = vrot.slane %v10490, 4
        %v10493 = vshll.u32 %v10273, 16
        %v10495 = vrot.slane %v10493, 5
        %v10496 = vor.u32 %v10492, %v10495
        %v10497 = vsel %vm1478, %v10488, %v10496
        %v10499 = vshrl.u32 %v10178, 16
        %v10501 = vrot.slane %v10499, 4
        %v10502 = vshll.u32 %v10178, 16
        %v10504 = vrot.slane %v10502, 5
        %v10505 = vor.u32 %v10501, %v10504
        %v10507 = vshrl.u32 %v10274, 16
        %v10509 = vrot.slane %v10507, 4
        %v10510 = vshll.u32 %v10274, 16
        %v10512 = vrot.slane %v10510, 5
        %v10513 = vor.u32 %v10509, %v10512
        %v10514 = vsel %vm1478, %v10505, %v10513
        %v10516 = vshrl.u32 %v10179, 16
        %v10518 = vrot.slane %v10516, 4
        %v10519 = vshll.u32 %v10179, 16
        %v10521 = vrot.slane %v10519, 5
        %v10522 = vor.u32 %v10518, %v10521
        %v10524 = vshrl.u32 %v10275, 16
        %v10526 = vrot.slane %v10524, 4
        %v10527 = vshll.u32 %v10275, 16
        %v10529 = vrot.slane %v10527, 5
        %v10530 = vor.u32 %v10526, %v10529
        %v10531 = vsel %vm1478, %v10522, %v10530
        %v10533 = vshrl.u32 %v10180, 16
        %v10535 = vrot.slane %v10533, 4
        %v10536 = vshll.u32 %v10180, 16
        %v10538 = vrot.slane %v10536, 5
        %v10539 = vor.u32 %v10535, %v10538
        %v10541 = vshrl.u32 %v10276, 16
        %v10543 = vrot.slane %v10541, 4
        %v10544 = vshll.u32 %v10276, 16
        %v10546 = vrot.slane %v10544, 5
        %v10547 = vor.u32 %v10543, %v10546
        %v10548 = vsel %vm1478, %v10539, %v10547
        %10549 = vrot.lane.b32.xlu0 %v8839, 32
        %v10550 = vpop.permute.xlu0 %10549
        %10551 = vrot.lane.b32.xlu0 %v8842, 32
        %v10552 = vpop.permute.xlu0 %10551
        %10553 = vrot.lane.b32.xlu0 %v8845, 32
        %v10554 = vpop.permute.xlu0 %10553
        %10555 = vrot.lane.b32.xlu0 %v8848, 32
        %v10556 = vpop.permute.xlu0 %10555
        %10557 = vrot.lane.b32.xlu0 %v8851, 32
        %v10558 = vpop.permute.xlu0 %10557
        %10559 = vrot.lane.b32.xlu0 %v8854, 32
        %v10560 = vpop.permute.xlu0 %10559
        %10561 = vrot.lane.b32.xlu0 %v8857, 32
        %v10562 = vpop.permute.xlu0 %10561
        %10563 = vrot.lane.b32.xlu0 %v8860, 32
        %v10564 = vpop.permute.xlu0 %10563
        %10565 = vrot.lane.b32.xlu0 %v8863, 32
        %v10566 = vpop.permute.xlu0 %10565
        %10567 = vrot.lane.b32.xlu0 %v8866, 32
        %v10568 = vpop.permute.xlu0 %10567
        %10569 = vrot.lane.b32.xlu0 %v8869, 32
        %v10570 = vpop.permute.xlu0 %10569
        %10571 = vrot.lane.b32.xlu0 %v8872, 32
        %v10572 = vpop.permute.xlu0 %10571
        %10573 = vrot.lane.b32.xlu0 %v8875, 32
        %v10574 = vpop.permute.xlu0 %10573
        %10575 = vrot.lane.b32.xlu0 %v8878, 32
        %v10576 = vpop.permute.xlu0 %10575
        %10577 = vrot.lane.b32.xlu0 %v8881, 32
        %v10578 = vpop.permute.xlu0 %10577
        %10579 = vrot.lane.b32.xlu0 %v8884, 32
        %v10580 = vpop.permute.xlu0 %10579
        %10581 = vrot.lane.b32.xlu0 %v8917, 64
        %v10582 = vpop.permute.xlu0 %10581
        %10583 = vrot.lane.b32.xlu0 %v8934, 64
        %v10584 = vpop.permute.xlu0 %10583
        %10585 = vrot.lane.b32.xlu0 %v8951, 64
        %v10586 = vpop.permute.xlu0 %10585
        %10587 = vrot.lane.b32.xlu0 %v8968, 64
        %v10588 = vpop.permute.xlu0 %10587
        %10589 = vrot.lane.b32.xlu0 %v8985, 64
        %v10590 = vpop.permute.xlu0 %10589
        %10591 = vrot.lane.b32.xlu0 %v9002, 64
        %v10592 = vpop.permute.xlu0 %10591
        %10593 = vrot.lane.b32.xlu0 %v9019, 64
        %v10594 = vpop.permute.xlu0 %10593
        %10595 = vrot.lane.b32.xlu0 %v9036, 64
        %v10596 = vpop.permute.xlu0 %10595
        %10597 = vrot.lane.b32.xlu0 %v9053, 64
        %v10598 = vpop.permute.xlu0 %10597
        %10599 = vrot.lane.b32.xlu0 %v9070, 64
        %v10600 = vpop.permute.xlu0 %10599
        %10601 = vrot.lane.b32.xlu0 %v9087, 64
        %v10602 = vpop.permute.xlu0 %10601
        %10603 = vrot.lane.b32.xlu0 %v9104, 64
        %v10604 = vpop.permute.xlu0 %10603
        %10605 = vrot.lane.b32.xlu0 %v9121, 64
        %v10606 = vpop.permute.xlu0 %10605
        %10607 = vrot.lane.b32.xlu0 %v9138, 64
        %v10608 = vpop.permute.xlu0 %10607
        %10609 = vrot.lane.b32.xlu0 %v9155, 64
        %v10610 = vpop.permute.xlu0 %10609
        %10611 = vrot.lane.b32.xlu0 %v9172, 64
        %v10612 = vpop.permute.xlu0 %10611
        %10613 = vrot.lane.b32.xlu0 %v9221, 96
        %v10614 = vpop.permute.xlu0 %10613
        %10615 = vrot.lane.b32.xlu0 %v9238, 96
        %v10616 = vpop.permute.xlu0 %10615
        %10617 = vrot.lane.b32.xlu0 %v9255, 96
        %v10618 = vpop.permute.xlu0 %10617
        %10619 = vrot.lane.b32.xlu0 %v9272, 96
        %v10620 = vpop.permute.xlu0 %10619
        %10621 = vrot.lane.b32.xlu0 %v9289, 96
        %v10622 = vpop.permute.xlu0 %10621
        %10623 = vrot.lane.b32.xlu0 %v9306, 96
        %v10624 = vpop.permute.xlu0 %10623
        %10625 = vrot.lane.b32.xlu0 %v9323, 96
        %v10626 = vpop.permute.xlu0 %10625
        %10627 = vrot.lane.b32.xlu0 %v9340, 96
        %v10628 = vpop.permute.xlu0 %10627
        %10629 = vrot.lane.b32.xlu0 %v9357, 96
        %v10630 = vpop.permute.xlu0 %10629
        %10631 = vrot.lane.b32.xlu0 %v9374, 96
        %v10632 = vpop.permute.xlu0 %10631
        %10633 = vrot.lane.b32.xlu0 %v9391, 96
        %v10634 = vpop.permute.xlu0 %10633
        %10635 = vrot.lane.b32.xlu0 %v9408, 96
        %v10636 = vpop.permute.xlu0 %10635
        %10637 = vrot.lane.b32.xlu0 %v9425, 96
        %v10638 = vpop.permute.xlu0 %10637
        %10639 = vrot.lane.b32.xlu0 %v9442, 96
        %v10640 = vpop.permute.xlu0 %10639
        %10641 = vrot.lane.b32.xlu0 %v9459, 96
        %v10642 = vpop.permute.xlu0 %10641
        %10643 = vrot.lane.b32.xlu0 %v9476, 96
        %v10644 = vpop.permute.xlu0 %10643
        %10645 = vrot.lane.b32.xlu0 %v9605, 32
        %v10646 = vpop.permute.xlu0 %10645
        %10647 = vrot.lane.b32.xlu0 %v9622, 32
        %v10648 = vpop.permute.xlu0 %10647
        %10649 = vrot.lane.b32.xlu0 %v9639, 32
        %v10650 = vpop.permute.xlu0 %10649
        %10651 = vrot.lane.b32.xlu0 %v9656, 32
        %v10652 = vpop.permute.xlu0 %10651
        %10653 = vrot.lane.b32.xlu0 %v9673, 32
        %v10654 = vpop.permute.xlu0 %10653
        %10655 = vrot.lane.b32.xlu0 %v9690, 32
        %v10656 = vpop.permute.xlu0 %10655
        %10657 = vrot.lane.b32.xlu0 %v9707, 32
        %v10658 = vpop.permute.xlu0 %10657
        %10659 = vrot.lane.b32.xlu0 %v9724, 32
        %v10660 = vpop.permute.xlu0 %10659
        %10661 = vrot.lane.b32.xlu0 %v9741, 32
        %v10662 = vpop.permute.xlu0 %10661
        %10663 = vrot.lane.b32.xlu0 %v9758, 32
        %v10664 = vpop.permute.xlu0 %10663
        %10665 = vrot.lane.b32.xlu0 %v9775, 32
        %v10666 = vpop.permute.xlu0 %10665
        %10667 = vrot.lane.b32.xlu0 %v9792, 32
        %v10668 = vpop.permute.xlu0 %10667
        %10669 = vrot.lane.b32.xlu0 %v9809, 32
        %v10670 = vpop.permute.xlu0 %10669
        %10671 = vrot.lane.b32.xlu0 %v9826, 32
        %v10672 = vpop.permute.xlu0 %10671
        %10673 = vrot.lane.b32.xlu0 %v9843, 32
        %v10674 = vpop.permute.xlu0 %10673
        %10675 = vrot.lane.b32.xlu0 %v9860, 32
        %v10676 = vpop.permute.xlu0 %10675
        %10677 = vrot.lane.b32.xlu0 %v9909, 64
        %v10678 = vpop.permute.xlu0 %10677
        %10679 = vrot.lane.b32.xlu0 %v9926, 64
        %v10680 = vpop.permute.xlu0 %10679
        %10681 = vrot.lane.b32.xlu0 %v9943, 64
        %v10682 = vpop.permute.xlu0 %10681
        %10683 = vrot.lane.b32.xlu0 %v9960, 64
        %v10684 = vpop.permute.xlu0 %10683
        %10685 = vrot.lane.b32.xlu0 %v9977, 64
        %v10686 = vpop.permute.xlu0 %10685
        %10687 = vrot.lane.b32.xlu0 %v9994, 64
        %v10688 = vpop.permute.xlu0 %10687
        %10689 = vrot.lane.b32.xlu0 %v10011, 64
        %v10690 = vpop.permute.xlu0 %10689
        %10691 = vrot.lane.b32.xlu0 %v10028, 64
        %v10692 = vpop.permute.xlu0 %10691
        %10693 = vrot.lane.b32.xlu0 %v10045, 64
        %v10694 = vpop.permute.xlu0 %10693
        %10695 = vrot.lane.b32.xlu0 %v10062, 64
        %v10696 = vpop.permute.xlu0 %10695
        %10697 = vrot.lane.b32.xlu0 %v10079, 64
        %v10698 = vpop.permute.xlu0 %10697
        %10699 = vrot.lane.b32.xlu0 %v10096, 64
        %v10700 = vpop.permute.xlu0 %10699
        %10701 = vrot.lane.b32.xlu0 %v10113, 64
        %v10702 = vpop.permute.xlu0 %10701
        %10703 = vrot.lane.b32.xlu0 %v10130, 64
        %v10704 = vpop.permute.xlu0 %10703
        %10705 = vrot.lane.b32.xlu0 %v10147, 64
        %v10706 = vpop.permute.xlu0 %10705
        %10707 = vrot.lane.b32.xlu0 %v10164, 64
        %v10708 = vpop.permute.xlu0 %10707
        %10709 = vrot.lane.b32.xlu0 %v10215, 96
        %v10710 = vpop.permute.xlu0 %10709
        %10711 = vrot.lane.b32.xlu0 %v10218, 96
        %v10712 = vpop.permute.xlu0 %10711
        %10713 = vrot.lane.b32.xlu0 %v10221, 96
        %v10714 = vpop.permute.xlu0 %10713
        %10715 = vrot.lane.b32.xlu0 %v10224, 96
        %v10716 = vpop.permute.xlu0 %10715
        %10717 = vrot.lane.b32.xlu0 %v10227, 96
        %v10718 = vpop.permute.xlu0 %10717
        %10719 = vrot.lane.b32.xlu0 %v10230, 96
        %v10720 = vpop.permute.xlu0 %10719
        %10721 = vrot.lane.b32.xlu0 %v10233, 96
        %v10722 = vpop.permute.xlu0 %10721
        %10723 = vrot.lane.b32.xlu0 %v10236, 96
        %v10724 = vpop.permute.xlu0 %10723
        %10725 = vrot.lane.b32.xlu0 %v10239, 96
        %v10726 = vpop.permute.xlu0 %10725
        %10727 = vrot.lane.b32.xlu0 %v10242, 96
        %v10728 = vpop.permute.xlu0 %10727
        %10729 = vrot.lane.b32.xlu0 %v10245, 96
        %v10730 = vpop.permute.xlu0 %10729
        %10731 = vrot.lane.b32.xlu0 %v10248, 96
        %v10732 = vpop.permute.xlu0 %10731
        %10733 = vrot.lane.b32.xlu0 %v10251, 96
        %v10734 = vpop.permute.xlu0 %10733
        %10735 = vrot.lane.b32.xlu0 %v10254, 96
        %v10736 = vpop.permute.xlu0 %10735
        %10737 = vrot.lane.b32.xlu0 %v10257, 96
        %v10738 = vpop.permute.xlu0 %10737
        %10739 = vrot.lane.b32.xlu0 %v10260, 96
        %v10740 = vpop.permute.xlu0 %10739
        %v10743 = vsel %vm481, %v8533, %v10550
        %v10746 = vsel %vm481, %v8550, %v10552
        %v10749 = vsel %vm481, %v8567, %v10554
        %v10752 = vsel %vm481, %v8584, %v10556
        %v10755 = vsel %vm481, %v8601, %v10558
        %v10758 = vsel %vm481, %v8618, %v10560
        %v10761 = vsel %vm481, %v8635, %v10562
        %v10764 = vsel %vm481, %v8652, %v10564
        %v10767 = vsel %vm481, %v8669, %v10566
        %v10770 = vsel %vm481, %v8686, %v10568
        %v10773 = vsel %vm481, %v8703, %v10570
        %v10776 = vsel %vm481, %v8720, %v10572
        %v10779 = vsel %vm481, %v8737, %v10574
        %v10782 = vsel %vm481, %v8754, %v10576
        %v10785 = vsel %vm481, %v8771, %v10578
        %v10788 = vsel %vm481, %v8788, %v10580
        %v10790 = vsel %vm3368, %v10743, %v10582
        %v10792 = vsel %vm3368, %v10746, %v10584
        %v10794 = vsel %vm3368, %v10749, %v10586
        %v10796 = vsel %vm3368, %v10752, %v10588
        %v10798 = vsel %vm3368, %v10755, %v10590
        %v10800 = vsel %vm3368, %v10758, %v10592
        %v10802 = vsel %vm3368, %v10761, %v10594
        %v10804 = vsel %vm3368, %v10764, %v10596
        %v10806 = vsel %vm3368, %v10767, %v10598
        %v10808 = vsel %vm3368, %v10770, %v10600
        %v10810 = vsel %vm3368, %v10773, %v10602
        %v10812 = vsel %vm3368, %v10776, %v10604
        %v10814 = vsel %vm3368, %v10779, %v10606
        %v10816 = vsel %vm3368, %v10782, %v10608
        %v10818 = vsel %vm3368, %v10785, %v10610
        %v10820 = vsel %vm3368, %v10788, %v10612
        %v10822 = vsel %vm3401, %v10790, %v10614
        %v10825 = vsel %vm3401, %v10792, %v10616
        %v10828 = vsel %vm3401, %v10794, %v10618
        %v10831 = vsel %vm3401, %v10796, %v10620
        %v10834 = vsel %vm3401, %v10798, %v10622
        %v10837 = vsel %vm3401, %v10800, %v10624
        %v10840 = vsel %vm3401, %v10802, %v10626
        %v10843 = vsel %vm3401, %v10804, %v10628
        %v10846 = vsel %vm3401, %v10806, %v10630
        %v10849 = vsel %vm3401, %v10808, %v10632
        %v10852 = vsel %vm3401, %v10810, %v10634
        %v10855 = vsel %vm3401, %v10812, %v10636
        %v10858 = vsel %vm3401, %v10814, %v10638
        %v10861 = vsel %vm3401, %v10816, %v10640
        %v10864 = vsel %vm3401, %v10818, %v10642
        %v10867 = vsel %vm3401, %v10820, %v10644
        %v10871 = vsel %vm481, %v9527, %v10646
        %v10874 = vsel %vm481, %v9530, %v10648
        %v10877 = vsel %vm481, %v9533, %v10650
        %v10880 = vsel %vm481, %v9536, %v10652
        %v10883 = vsel %vm481, %v9539, %v10654
        %v10886 = vsel %vm481, %v9542, %v10656
        %v10889 = vsel %vm481, %v9545, %v10658
        %v10892 = vsel %vm481, %v9548, %v10660
        %v10895 = vsel %vm481, %v9551, %v10662
        %v10898 = vsel %vm481, %v9554, %v10664
        %v10901 = vsel %vm481, %v9557, %v10666
        %v10904 = vsel %vm481, %v9560, %v10668
        %v10907 = vsel %vm481, %v9563, %v10670
        %v10910 = vsel %vm481, %v9566, %v10672
        %v10913 = vsel %vm481, %v9569, %v10674
        %v10916 = vsel %vm481, %v9572, %v10676
        %v10918 = vsel %vm3368, %v10871, %v10678
        %v10920 = vsel %vm3368, %v10874, %v10680
        %v10922 = vsel %vm3368, %v10877, %v10682
        %v10924 = vsel %vm3368, %v10880, %v10684
        %v10926 = vsel %vm3368, %v10883, %v10686
        %v10928 = vsel %vm3368, %v10886, %v10688
        %v10930 = vsel %vm3368, %v10889, %v10690
        %v10932 = vsel %vm3368, %v10892, %v10692
        %v10934 = vsel %vm3368, %v10895, %v10694
        %v10936 = vsel %vm3368, %v10898, %v10696
        %v10938 = vsel %vm3368, %v10901, %v10698
        %v10940 = vsel %vm3368, %v10904, %v10700
        %v10942 = vsel %vm3368, %v10907, %v10702
        %v10944 = vsel %vm3368, %v10910, %v10704
        %v10946 = vsel %vm3368, %v10913, %v10706
        %v10948 = vsel %vm3368, %v10916, %v10708
        %v10950 = vsel %vm3401, %v10918, %v10710
        %v10953 = vsel %vm3401, %v10920, %v10712
        %v10956 = vsel %vm3401, %v10922, %v10714
        %v10959 = vsel %vm3401, %v10924, %v10716
        %v10962 = vsel %vm3401, %v10926, %v10718
        %v10965 = vsel %vm3401, %v10928, %v10720
        %v10968 = vsel %vm3401, %v10930, %v10722
        %v10971 = vsel %vm3401, %v10932, %v10724
        %v10974 = vsel %vm3401, %v10934, %v10726
        %v10977 = vsel %vm3401, %v10936, %v10728
        %v10980 = vsel %vm3401, %v10938, %v10730
        %v10983 = vsel %vm3401, %v10940, %v10732
        %v10986 = vsel %vm3401, %v10942, %v10734
        %v10989 = vsel %vm3401, %v10944, %v10736
        %v10992 = vsel %vm3401, %v10946, %v10738
        %v10995 = vsel %vm3401, %v10948, %v10740
        %s10997 = scalar_lea.vmem %s7, 288
        %v10998 = vld [vmem:[%s10997] sm:$0xf]
        %v10999 = vld [vmem:[%s10997 + $0x4] sm:$0xf]
        %v11000 = vld [vmem:[%s10997 + $0x8] sm:$0xf]
        %v11001 = vld [vmem:[%s10997 + $0xc] sm:$0xf]
        %v11002 = vld [vmem:[%s10997 + $0x10] sm:$0xf]
        %v11003 = vld [vmem:[%s10997 + $0x14] sm:$0xf]
        %v11004 = vld [vmem:[%s10997 + $0x18] sm:$0xf]
        %v11005 = vld [vmem:[%s10997 + $0x1c] sm:$0xf]
        %v11006 = vld [vmem:[%s10997 + $0x20] sm:$0xf]
        %v11007 = vld [vmem:[%s10997 + $0x24] sm:$0xf]
        %v11008 = vld [vmem:[%s10997 + $0x28] sm:$0xf]
        %v11009 = vld [vmem:[%s10997 + $0x2c] sm:$0xf]
        %v11010 = vld [vmem:[%s10997 + $0x30] sm:$0xf]
        %v11011 = vld [vmem:[%s10997 + $0x34] sm:$0xf]
        %v11012 = vld [vmem:[%s10997 + $0x38] sm:$0xf]
        %v11013 = vld [vmem:[%s10997 + $0x3c] sm:$0xf]
        %v11014 = vld [vmem:[%s10997 + $0x40] sm:$0xf]
        %v11015 = vld [vmem:[%s10997 + $0x44] sm:$0xf]
        %v11016 = vld [vmem:[%s10997 + $0x48] sm:$0xf]
        %v11017 = vld [vmem:[%s10997 + $0x4c] sm:$0xf]
        %v11018 = vld [vmem:[%s10997 + $0x50] sm:$0xf]
        %v11019 = vld [vmem:[%s10997 + $0x54] sm:$0xf]
        %v11020 = vld [vmem:[%s10997 + $0x58] sm:$0xf]
        %v11021 = vld [vmem:[%s10997 + $0x5c] sm:$0xf]
        %v11022 = vld [vmem:[%s10997 + $0x60] sm:$0xf]
        %v11023 = vld [vmem:[%s10997 + $0x64] sm:$0xf]
        %v11024 = vld [vmem:[%s10997 + $0x68] sm:$0xf]
        %v11025 = vld [vmem:[%s10997 + $0x6c] sm:$0xf]
        %v11026 = vld [vmem:[%s10997 + $0x70] sm:$0xf]
        %v11027 = vld [vmem:[%s10997 + $0x74] sm:$0xf]
        %v11028 = vld [vmem:[%s10997 + $0x78] sm:$0xf]
        %v11029 = vld [vmem:[%s10997 + $0x7c] sm:$0xf]
        %v11030 = vld [vmem:[%s10997 + $0x80] sm:$0xf]
        %v11031 = vld [vmem:[%s10997 + $0x84] sm:$0xf]
        %v11032 = vld [vmem:[%s10997 + $0x88] sm:$0xf]
        %v11033 = vld [vmem:[%s10997 + $0x8c] sm:$0xf]
        %v11070 = vunpack.c.l.b16 %v10998
        %v11071 = vunpack.c.l.b16 %v10999
        %v11072 = vunpack.c.l.b16 %v11000
        %v11073 = vunpack.c.l.b16 %v11001
        %v11074 = vunpack.c.l.b16 %v11002
        %v11075 = vunpack.c.l.b16 %v11003
        %v11076 = vunpack.c.l.b16 %v11004
        %v11077 = vunpack.c.l.b16 %v11005
        %v11078 = vunpack.c.l.b16 %v11006
        %v11079 = vunpack.c.l.b16 %v11007
        %v11080 = vunpack.c.l.b16 %v11008
        %v11081 = vunpack.c.l.b16 %v11009
        %v11082 = vunpack.c.l.b16 %v11010
        %v11083 = vunpack.c.l.b16 %v11011
        %v11084 = vunpack.c.l.b16 %v11012
        %v11085 = vunpack.c.l.b16 %v11013
        %v11086 = vunpack.c.l.b16 %v11014
        %v11087 = vunpack.c.l.b16 %v11015
        %v11088 = vunpack.c.l.b16 %v11016
        %v11089 = vunpack.c.l.b16 %v11017
        %v11090 = vunpack.c.l.b16 %v11018
        %v11091 = vunpack.c.l.b16 %v11019
        %v11092 = vunpack.c.l.b16 %v11020
        %v11093 = vunpack.c.l.b16 %v11021
        %v11094 = vunpack.c.l.b16 %v11022
        %v11095 = vunpack.c.l.b16 %v11023
        %v11096 = vunpack.c.l.b16 %v11024
        %v11097 = vunpack.c.l.b16 %v11025
        %v11098 = vunpack.c.l.b16 %v11026
        %v11099 = vunpack.c.l.b16 %v11027
        %v11100 = vunpack.c.l.b16 %v11028
        %v11101 = vunpack.c.l.b16 %v11029
        %v11102 = vunpack.c.l.b16 %v11030
        %v11103 = vunpack.c.l.b16 %v11031
        %v11104 = vunpack.c.l.b16 %v11032
        %v11105 = vunpack.c.l.b16 %v11033
        %v11106 = vpack.c.b16 %v11071, %v11070
        %v11107 = vpack.c.b16 %v11073, %v11072
        %v11108 = vpack.c.b16 %v11075, %v11074
        %v11109 = vpack.c.b16 %v11077, %v11076
        %v11110 = vpack.c.b16 %v11079, %v11078
        %v11111 = vpack.c.b16 %v11081, %v11080
        %v11112 = vpack.c.b16 %v11083, %v11082
        %v11113 = vpack.c.b16 %v11085, %v11084
        %v11114 = vpack.c.b16 %v11087, %v11086
        %v11115 = vpack.c.b16 %v11089, %v11088
        %v11116 = vpack.c.b16 %v11091, %v11090
        %v11117 = vpack.c.b16 %v11093, %v11092
        %v11118 = vpack.c.b16 %v11095, %v11094
        %v11119 = vpack.c.b16 %v11097, %v11096
        %v11120 = vpack.c.b16 %v11099, %v11098
        %v11121 = vpack.c.b16 %v11101, %v11100
        %v11122 = vpack.c.b16 %v11103, %v11102
        %v11123 = vpack.c.b16 %v11105, %v11104
        %v11143 = vsel %vm481, %v10293, 0
        %v11146 = vsel %vm481, %v10310, 0
        %v11149 = vsel %vm481, %v10327, 0
        %v11152 = vsel %vm481, %v10344, 0
        %v11155 = vsel %vm481, %v10361, 0
        %v11158 = vsel %vm481, %v10378, 0
        %v11161 = vsel %vm481, %v10395, 0
        %v11164 = vsel %vm481, %v10412, 0
        %v11167 = vsel %vm481, %v10429, 0
        %v11170 = vsel %vm481, %v10446, 0
        %v11173 = vsel %vm481, %v10463, 0
        %v11176 = vsel %vm481, %v10480, 0
        %v11179 = vsel %vm481, %v10497, 0
        %v11182 = vsel %vm481, %v10514, 0
        %v11185 = vsel %vm481, %v10531, 0
        %v11188 = vsel %vm481, %v10548, 0
        %11190 = vmatprep.subr.bf16.mxu0 0
        %11191 = vmatpush1.bf16.msra.mxu0 %v11106
        %11192 = vmatprep.subr.bf16.mxu0 0
        %11193 = vmatpush1.bf16.msra.mxu0 %v11107
        %11194 = vmatprep.subr.bf16.mxu0 0
        %11195 = vmatpush1.bf16.msra.mxu0 %v11108
        %11196 = vmatprep.subr.bf16.mxu0 0
        %11197 = vmatpush1.bf16.msra.mxu0 %v11109
        %11198 = vmatprep.subr.bf16.mxu0 0
        %11199 = vmatpush1.bf16.msra.mxu0 %v11110
        %11200 = vmatprep.subr.bf16.mxu0 0
        %11201 = vmatpush1.bf16.msra.mxu0 %v11111
        %11202 = vmatprep.subr.bf16.mxu0 0
        %11203 = vmatpush1.bf16.msra.mxu0 %v11112
        %11204 = vmatprep.subr.bf16.mxu0 0
        %11205 = vmatpush1.bf16.msra.mxu0 %v11113
        %11206 = vmatprep.subr.bf16.mxu0 0
        %11207 = vmatpush1.bf16.msra.mxu0 %v11114
        %11208 = vmatprep.subr.bf16.mxu0 0
        %11209 = vmatpush1.bf16.msra.mxu0 %v11115
        %11210 = vmatprep.subr.bf16.mxu0 0
        %11211 = vmatpush1.bf16.msra.mxu0 %v11116
        %11212 = vmatprep.subr.bf16.mxu0 0
        %11213 = vmatpush1.bf16.msra.mxu0 %v11117
        %11214 = vmatprep.subr.bf16.mxu0 0
        %11215 = vmatpush1.bf16.msra.mxu0 %v11118
        %11216 = vmatprep.subr.bf16.mxu0 0
        %11217 = vmatpush1.bf16.msra.mxu0 %v11119
        %11218 = vmatprep.subr.bf16.mxu0 0
        %11219 = vmatpush1.bf16.msra.mxu0 %v11120
        %11220 = vmatprep.subr.bf16.mxu0 0
        %11221 = vmatpush1.bf16.msra.mxu0 %v11121
        %11222 = vmatprep.mubr.bf16.mxu0 %v10950
        %11223 = vmatmul.mubr.bf16.gmra.mrb[0].mxu0 %v10822
        %v11224 = vpop.f32.mrb[0].mxu0
        %v11225 = vadd.f32 0.0, %v11224
        %v11226 = vpop.f32.mrb[0].mxu0
        %v11227 = vpop.f32.mrb[0].mxu0
        %v11228 = vadd.f32 0.0, %v11227
        %v11229 = vpop.f32.mrb[0].mxu0
        %11230 = vmatprep.mubr.bf16.mxu0 %v10953
        %11231 = vmatmul.mubr.bf16.gmra.mrb[0].mxu0 %v10825
        %v11232 = vpop.f32.mrb[0].mxu0
        %v11233 = vadd.f32 0.0, %v11232
        %v11234 = vpop.f32.mrb[0].mxu0
        %v11235 = vpop.f32.mrb[0].mxu0
        %v11236 = vadd.f32 0.0, %v11235
        %v11237 = vpop.f32.mrb[0].mxu0
        %11238 = vmatprep.mubr.bf16.mxu0 %v10956
        %11239 = vmatmul.mubr.bf16.gmra.mrb[0].mxu0 %v10828
        %v11240 = vpop.f32.mrb[0].mxu0
        %v11241 = vadd.f32 0.0, %v11240
        %v11242 = vpop.f32.mrb[0].mxu0
        %v11243 = vpop.f32.mrb[0].mxu0
        %v11244 = vadd.f32 0.0, %v11243
        %v11245 = vpop.f32.mrb[0].mxu0
        %11246 = vmatprep.mubr.bf16.mxu0 %v10959
        %11247 = vmatmul.mubr.bf16.gmra.mrb[0].mxu0 %v10831
        %v11248 = vpop.f32.mrb[0].mxu0
        %v11249 = vadd.f32 0.0, %v11248
        %v11250 = vpop.f32.mrb[0].mxu0
        %v11251 = vpop.f32.mrb[0].mxu0
        %v11252 = vadd.f32 0.0, %v11251
        %v11253 = vpop.f32.mrb[0].mxu0
        %11254 = vmatprep.mubr.bf16.mxu0 %v10962
        %11255 = vmatmul.mubr.bf16.gmra.mrb[0].mxu0 %v10834
        %v11256 = vpop.f32.mrb[0].mxu0
        %v11257 = vadd.f32 0.0, %v11256
        %v11258 = vpop.f32.mrb[0].mxu0
        %v11259 = vpop.f32.mrb[0].mxu0
        %v11260 = vadd.f32 0.0, %v11259
        %v11261 = vpop.f32.mrb[0].mxu0
        %11262 = vmatprep.mubr.bf16.mxu0 %v10965
        %11263 = vmatmul.mubr.bf16.gmra.mrb[0].mxu0 %v10837
        %v11264 = vpop.f32.mrb[0].mxu0
        %v11265 = vadd.f32 0.0, %v11264
        %v11266 = vpop.f32.mrb[0].mxu0
        %v11267 = vpop.f32.mrb[0].mxu0
        %v11268 = vadd.f32 0.0, %v11267
        %v11269 = vpop.f32.mrb[0].mxu0
        %11270 = vmatprep.mubr.bf16.mxu0 %v10968
        %11271 = vmatmul.mubr.bf16.gmra.mrb[0].mxu0 %v10840
        %v11272 = vpop.f32.mrb[0].mxu0
        %v11273 = vadd.f32 0.0, %v11272
        %v11274 = vpop.f32.mrb[0].mxu0
        %v11275 = vpop.f32.mrb[0].mxu0
        %v11276 = vadd.f32 0.0, %v11275
        %v11277 = vpop.f32.mrb[0].mxu0
        %11278 = vmatprep.mubr.bf16.mxu0 %v10971
        %11279 = vmatmul.mubr.bf16.gmra.mrb[0].mxu0 %v10843
        %v11280 = vpop.f32.mrb[0].mxu0
        %v11281 = vadd.f32 0.0, %v11280
        %v11282 = vpop.f32.mrb[0].mxu0
        %v11283 = vpop.f32.mrb[0].mxu0
        %v11284 = vadd.f32 0.0, %v11283
        %v11285 = vpop.f32.mrb[0].mxu0
        %11286 = vmatprep.mubr.bf16.mxu0 %v10974
        %11287 = vmatmul.mubr.bf16.gmra.mrb[0].mxu0 %v10846
        %v11288 = vpop.f32.mrb[0].mxu0
        %v11289 = vadd.f32 0.0, %v11288
        %v11290 = vpop.f32.mrb[0].mxu0
        %v11291 = vpop.f32.mrb[0].mxu0
        %v11292 = vadd.f32 0.0, %v11291
        %v11293 = vpop.f32.mrb[0].mxu0
        %11294 = vmatprep.mubr.bf16.mxu0 %v10977
        %11295 = vmatmul.mubr.bf16.gmra.mrb[0].mxu0 %v10849
        %v11296 = vpop.f32.mrb[0].mxu0
        %v11297 = vadd.f32 0.0, %v11296
        %v11298 = vpop.f32.mrb[0].mxu0
        %v11299 = vpop.f32.mrb[0].mxu0
        %v11300 = vadd.f32 0.0, %v11299
        %v11301 = vpop.f32.mrb[0].mxu0
        %11302 = vmatprep.mubr.bf16.mxu0 %v10980
        %11303 = vmatmul.mubr.bf16.gmra.mrb[0].mxu0 %v10852
        %v11304 = vpop.f32.mrb[0].mxu0
        %v11305 = vadd.f32 0.0, %v11304
        %v11306 = vpop.f32.mrb[0].mxu0
        %v11307 = vpop.f32.mrb[0].mxu0
        %v11308 = vadd.f32 0.0, %v11307
        %v11309 = vpop.f32.mrb[0].mxu0
        %11310 = vmatprep.mubr.bf16.mxu0 %v10983
        %11311 = vmatmul.mubr.bf16.gmra.mrb[0].mxu0 %v10855
        %v11312 = vpop.f32.mrb[0].mxu0
        %v11313 = vadd.f32 0.0, %v11312
        %v11314 = vpop.f32.mrb[0].mxu0
        %v11315 = vpop.f32.mrb[0].mxu0
        %v11316 = vadd.f32 0.0, %v11315
        %v11317 = vpop.f32.mrb[0].mxu0
        %11318 = vmatprep.mubr.bf16.mxu0 %v10986
        %11319 = vmatmul.mubr.bf16.gmra.mrb[0].mxu0 %v10858
        %v11320 = vpop.f32.mrb[0].mxu0
        %v11321 = vadd.f32 0.0, %v11320
        %v11322 = vpop.f32.mrb[0].mxu0
        %v11323 = vpop.f32.mrb[0].mxu0
        %v11324 = vadd.f32 0.0, %v11323
        %v11325 = vpop.f32.mrb[0].mxu0
        %11326 = vmatprep.mubr.bf16.mxu0 %v10989
        %11327 = vmatmul.mubr.bf16.gmra.mrb[0].mxu0 %v10861
        %v11328 = vpop.f32.mrb[0].mxu0
        %v11329 = vadd.f32 0.0, %v11328
        %v11330 = vpop.f32.mrb[0].mxu0
        %v11331 = vpop.f32.mrb[0].mxu0
        %v11332 = vadd.f32 0.0, %v11331
        %v11333 = vpop.f32.mrb[0].mxu0
        %11334 = vmatprep.mubr.bf16.mxu0 %v10992
        %11335 = vmatmul.mubr.bf16.gmra.mrb[0].mxu0 %v10864
        %v11336 = vpop.f32.mrb[0].mxu0
        %v11337 = vadd.f32 0.0, %v11336
        %v11338 = vpop.f32.mrb[0].mxu0
        %v11339 = vpop.f32.mrb[0].mxu0
        %v11340 = vadd.f32 0.0, %v11339
        %v11341 = vpop.f32.mrb[0].mxu0
        %11342 = vmatprep.mubr.bf16.mxu0 %v10995
        %11343 = vmatmul.mubr.bf16.gmra.mrb[0].mxu0 %v10867
        %v11344 = vpop.f32.mrb[0].mxu0
        %v11345 = vadd.f32 0.0, %v11344
        %v11346 = vpop.f32.mrb[0].mxu0
        %v11347 = vpop.f32.mrb[0].mxu0
        %v11348 = vadd.f32 0.0, %v11347
        %v11349 = vpop.f32.mrb[0].mxu0
        %11350 = vdwg.mxu0
        %11351 = vmatprep.subr.bf16.mxu0 0
        %11352 = vmatpush1.bf16.msra.mxu0 %v11122
        %11353 = vmatprep.subr.bf16.mxu0 0
        %11354 = vmatpush1.bf16.msra.mxu0 %v11123
        %11355 = vmatprep.subr.bf16.mxu0 0
        %11356 = vmatpush1.bf16.msra.mxu0 0
        %11357 = vmatprep.subr.bf16.mxu0 0
        %11358 = vmatpush1.bf16.msra.mxu0 0
        %11359 = vmatprep.subr.bf16.mxu0 0
        %11360 = vmatpush1.bf16.msra.mxu0 0
        %11361 = vmatprep.subr.bf16.mxu0 0
        %11362 = vmatpush1.bf16.msra.mxu0 0
        %11363 = vmatprep.subr.bf16.mxu0 0
        %11364 = vmatpush1.bf16.msra.mxu0 0
        %11365 = vmatprep.subr.bf16.mxu0 0
        %11366 = vmatpush1.bf16.msra.mxu0 0
        %11367 = vmatprep.subr.bf16.mxu0 0
        %11368 = vmatpush1.bf16.msra.mxu0 0
        %11369 = vmatprep.subr.bf16.mxu0 0
        %11370 = vmatpush1.bf16.msra.mxu0 0
        %11371 = vmatprep.subr.bf16.mxu0 0
        %11372 = vmatpush1.bf16.msra.mxu0 0
        %11373 = vmatprep.subr.bf16.mxu0 0
        %11374 = vmatpush1.bf16.msra.mxu0 0
        %11375 = vmatprep.subr.bf16.mxu0 0
        %11376 = vmatpush1.bf16.msra.mxu0 0
        %11377 = vmatprep.subr.bf16.mxu0 0
        %11378 = vmatpush1.bf16.msra.mxu0 0
        %11379 = vmatprep.subr.bf16.mxu0 0
        %11380 = vmatpush1.bf16.msra.mxu0 0
        %11381 = vmatprep.subr.bf16.mxu0 0
        %11382 = vmatpush1.bf16.msra.mxu0 0
        %11383 = vmatprep.mubr.bf16.mxu0 0
        %11384 = vmatmul.mubr.bf16.gmra.mrb[0].mxu0 %v11143
        %v11385 = vpop.f32.mrb[0].mxu0
        %v11386 = vadd.f32 %v11225, %v11385
        %v11387 = vpop.f32.mrb[0].mxu0
        %v11388 = vpop.f32.mrb[0].mxu0
        %v11389 = vadd.f32 %v11228, %v11388
        %v11390 = vpop.f32.mrb[0].mxu0
        %11391 = vmatprep.mubr.bf16.mxu0 0
        %11392 = vmatmul.mubr.bf16.gmra.mrb[0].mxu0 %v11146
        %v11393 = vpop.f32.mrb[0].mxu0
        %v11394 = vadd.f32 %v11233, %v11393
        %v11395 = vpop.f32.mrb[0].mxu0
        %v11396 = vpop.f32.mrb[0].mxu0
        %v11397 = vadd.f32 %v11236, %v11396
        %v11398 = vpop.f32.mrb[0].mxu0
        %11399 = vmatprep.mubr.bf16.mxu0 0
        %11400 = vmatmul.mubr.bf16.gmra.mrb[0].mxu0 %v11149
        %v11401 = vpop.f32.mrb[0].mxu0
        %v11402 = vadd.f32 %v11241, %v11401
        %v11403 = vpop.f32.mrb[0].mxu0
        %v11404 = vpop.f32.mrb[0].mxu0
        %v11405 = vadd.f32 %v11244, %v11404
        %v11406 = vpop.f32.mrb[0].mxu0
        %11407 = vmatprep.mubr.bf16.mxu0 0
        %11408 = vmatmul.mubr.bf16.gmra.mrb[0].mxu0 %v11152
        %v11409 = vpop.f32.mrb[0].mxu0
        %v11410 = vadd.f32 %v11249, %v11409
        %v11411 = vpop.f32.mrb[0].mxu0
        %v11412 = vpop.f32.mrb[0].mxu0
        %v11413 = vadd.f32 %v11252, %v11412
        %v11414 = vpop.f32.mrb[0].mxu0
        %11415 = vmatprep.mubr.bf16.mxu0 0
        %11416 = vmatmul.mubr.bf16.gmra.mrb[0].mxu0 %v11155
        %v11417 = vpop.f32.mrb[0].mxu0
        %v11418 = vadd.f32 %v11257, %v11417
        %v11419 = vpop.f32.mrb[0].mxu0
        %v11420 = vpop.f32.mrb[0].mxu0
        %v11421 = vadd.f32 %v11260, %v11420
        %v11422 = vpop.f32.mrb[0].mxu0
        %11423 = vmatprep.mubr.bf16.mxu0 0
        %11424 = vmatmul.mubr.bf16.gmra.mrb[0].mxu0 %v11158
        %v11425 = vpop.f32.mrb[0].mxu0
        %v11426 = vadd.f32 %v11265, %v11425
        %v11427 = vpop.f32.mrb[0].mxu0
        %v11428 = vpop.f32.mrb[0].mxu0
        %v11429 = vadd.f32 %v11268, %v11428
        %v11430 = vpop.f32.mrb[0].mxu0
        %11431 = vmatprep.mubr.bf16.mxu0 0
        %11432 = vmatmul.mubr.bf16.gmra.mrb[0].mxu0 %v11161
        %v11433 = vpop.f32.mrb[0].mxu0
        %v11434 = vadd.f32 %v11273, %v11433
        %v11435 = vpop.f32.mrb[0].mxu0
        %v11436 = vpop.f32.mrb[0].mxu0
        %v11437 = vadd.f32 %v11276, %v11436
        %v11438 = vpop.f32.mrb[0].mxu0
        %11439 = vmatprep.mubr.bf16.mxu0 0
        %11440 = vmatmul.mubr.bf16.gmra.mrb[0].mxu0 %v11164
        %v11441 = vpop.f32.mrb[0].mxu0
        %v11442 = vadd.f32 %v11281, %v11441
        %v11443 = vpop.f32.mrb[0].mxu0
        %v11444 = vpop.f32.mrb[0].mxu0
        %v11445 = vadd.f32 %v11284, %v11444
        %v11446 = vpop.f32.mrb[0].mxu0
        %11447 = vmatprep.mubr.bf16.mxu0 0
        %11448 = vmatmul.mubr.bf16.gmra.mrb[0].mxu0 %v11167
        %v11449 = vpop.f32.mrb[0].mxu0
        %v11450 = vadd.f32 %v11289, %v11449
        %v11451 = vpop.f32.mrb[0].mxu0
        %v11452 = vpop.f32.mrb[0].mxu0
        %v11453 = vadd.f32 %v11292, %v11452
        %v11454 = vpop.f32.mrb[0].mxu0
        %11455 = vmatprep.mubr.bf16.mxu0 0
        %11456 = vmatmul.mubr.bf16.gmra.mrb[0].mxu0 %v11170
        %v11457 = vpop.f32.mrb[0].mxu0
        %v11458 = vadd.f32 %v11297, %v11457
        %v11459 = vpop.f32.mrb[0].mxu0
        %v11460 = vpop.f32.mrb[0].mxu0
        %v11461 = vadd.f32 %v11300, %v11460
        %v11462 = vpop.f32.mrb[0].mxu0
        %11463 = vmatprep.mubr.bf16.mxu0 0
        %11464 = vmatmul.mubr.bf16.gmra.mrb[0].mxu0 %v11173
        %v11465 = vpop.f32.mrb[0].mxu0
        %v11466 = vadd.f32 %v11305, %v11465
        %v11467 = vpop.f32.mrb[0].mxu0
        %v11468 = vpop.f32.mrb[0].mxu0
        %v11469 = vadd.f32 %v11308, %v11468
        %v11470 = vpop.f32.mrb[0].mxu0
        %11471 = vmatprep.mubr.bf16.mxu0 0
        %11472 = vmatmul.mubr.bf16.gmra.mrb[0].mxu0 %v11176
        %v11473 = vpop.f32.mrb[0].mxu0
        %v11474 = vadd.f32 %v11313, %v11473
        %v11475 = vpop.f32.mrb[0].mxu0
        %v11476 = vpop.f32.mrb[0].mxu0
        %v11477 = vadd.f32 %v11316, %v11476
        %v11478 = vpop.f32.mrb[0].mxu0
        %11479 = vmatprep.mubr.bf16.mxu0 0
        %11480 = vmatmul.mubr.bf16.gmra.mrb[0].mxu0 %v11179
        %v11481 = vpop.f32.mrb[0].mxu0
        %v11482 = vadd.f32 %v11321, %v11481
        %v11483 = vpop.f32.mrb[0].mxu0
        %v11484 = vpop.f32.mrb[0].mxu0
        %v11485 = vadd.f32 %v11324, %v11484
        %v11486 = vpop.f32.mrb[0].mxu0
        %11487 = vmatprep.mubr.bf16.mxu0 0
        %11488 = vmatmul.mubr.bf16.gmra.mrb[0].mxu0 %v11182
        %v11489 = vpop.f32.mrb[0].mxu0
        %v11490 = vadd.f32 %v11329, %v11489
        %v11491 = vpop.f32.mrb[0].mxu0
        %v11492 = vpop.f32.mrb[0].mxu0
        %v11493 = vadd.f32 %v11332, %v11492
        %v11494 = vpop.f32.mrb[0].mxu0
        %11495 = vmatprep.mubr.bf16.mxu0 0
        %11496 = vmatmul.mubr.bf16.gmra.mrb[0].mxu0 %v11185
        %v11497 = vpop.f32.mrb[0].mxu0
        %v11498 = vadd.f32 %v11337, %v11497
        %v11499 = vpop.f32.mrb[0].mxu0
        %v11500 = vpop.f32.mrb[0].mxu0
        %v11501 = vadd.f32 %v11340, %v11500
        %v11502 = vpop.f32.mrb[0].mxu0
        %11503 = vmatprep.mubr.bf16.mxu0 0
        %11504 = vmatmul.mubr.bf16.gmra.mrb[0].mxu0 %v11188
        %v11505 = vpop.f32.mrb[0].mxu0
        %v11506 = vadd.f32 %v11345, %v11505
        %v11507 = vpop.f32.mrb[0].mxu0
        %v11508 = vpop.f32.mrb[0].mxu0
        %v11509 = vadd.f32 %v11348, %v11508
        %v11510 = vpop.f32.mrb[0].mxu0
        %11511 = vdwg.mxu0
        %s11512 = scalar_lea.vmem %s8, 2
        %v11513 = vld [vmem:[%s11512] sm:$0x1]
        %v11515 = vlaneseq
        %v11516 = vshrl.u32 %v11515, 7
        %v11517 = vsub.s32 0, %v11516
        %v11518 = vrot.slane %v11513, %v11517
        %v11520 = vmul.f32 %v11386, %v11518
        %v11521 = vmul.f32 %v11389, %v11518
        %v11522 = vmul.f32 %v11394, %v11518
        %v11523 = vmul.f32 %v11397, %v11518
        %v11524 = vmul.f32 %v11402, %v11518
        %v11525 = vmul.f32 %v11405, %v11518
        %v11526 = vmul.f32 %v11410, %v11518
        %v11527 = vmul.f32 %v11413, %v11518
        %v11528 = vmul.f32 %v11418, %v11518
        %v11529 = vmul.f32 %v11421, %v11518
        %v11530 = vmul.f32 %v11426, %v11518
        %v11531 = vmul.f32 %v11429, %v11518
        %v11532 = vmul.f32 %v11434, %v11518
        %v11533 = vmul.f32 %v11437, %v11518
        %v11534 = vmul.f32 %v11442, %v11518
        %v11535 = vmul.f32 %v11445, %v11518
        %v11536 = vmul.f32 %v11450, %v11518
        %v11537 = vmul.f32 %v11453, %v11518
        %v11538 = vmul.f32 %v11458, %v11518
        %v11539 = vmul.f32 %v11461, %v11518
        %v11540 = vmul.f32 %v11466, %v11518
        %v11541 = vmul.f32 %v11469, %v11518
        %v11542 = vmul.f32 %v11474, %v11518
        %v11543 = vmul.f32 %v11477, %v11518
        %v11544 = vmul.f32 %v11482, %v11518
        %v11545 = vmul.f32 %v11485, %v11518
        %v11546 = vmul.f32 %v11490, %v11518
        %v11547 = vmul.f32 %v11493, %v11518
        %v11548 = vmul.f32 %v11498, %v11518
        %v11549 = vmul.f32 %v11501, %v11518
        %v11550 = vmul.f32 %v11506, %v11518
        %v11551 = vmul.f32 %v11509, %v11518
        %s11552 = scalar_lea.vmem %s9, 2
        %v11553 = vld [vmem:[%s11552] sm:$0x1]
        %v11555 = vlaneseq
        %v11556 = vshrl.u32 %v11555, 7
        %v11557 = vsub.s32 0, %v11556
        %v11558 = vrot.slane %v11553, %v11557
        %v11560 = vadd.f32 %v11520, %v11558
        %v11561 = vadd.f32 %v11521, %v11558
        %v11562 = vadd.f32 %v11522, %v11558
        %v11563 = vadd.f32 %v11523, %v11558
        %v11564 = vadd.f32 %v11524, %v11558
        %v11565 = vadd.f32 %v11525, %v11558
        %v11566 = vadd.f32 %v11526, %v11558
        %v11567 = vadd.f32 %v11527, %v11558
        %v11568 = vadd.f32 %v11528, %v11558
        %v11569 = vadd.f32 %v11529, %v11558
        %v11570 = vadd.f32 %v11530, %v11558
        %v11571 = vadd.f32 %v11531, %v11558
        %v11572 = vadd.f32 %v11532, %v11558
        %v11573 = vadd.f32 %v11533, %v11558
        %v11574 = vadd.f32 %v11534, %v11558
        %v11575 = vadd.f32 %v11535, %v11558
        %v11576 = vadd.f32 %v11536, %v11558
        %v11577 = vadd.f32 %v11537, %v11558
        %v11578 = vadd.f32 %v11538, %v11558
        %v11579 = vadd.f32 %v11539, %v11558
        %v11580 = vadd.f32 %v11540, %v11558
        %v11581 = vadd.f32 %v11541, %v11558
        %v11582 = vadd.f32 %v11542, %v11558
        %v11583 = vadd.f32 %v11543, %v11558
        %v11584 = vadd.f32 %v11544, %v11558
        %v11585 = vadd.f32 %v11545, %v11558
        %v11586 = vadd.f32 %v11546, %v11558
        %v11587 = vadd.f32 %v11547, %v11558
        %v11588 = vadd.f32 %v11548, %v11558
        %v11589 = vadd.f32 %v11549, %v11558
        %v11590 = vadd.f32 %v11550, %v11558
        %v11591 = vadd.f32 %v11551, %v11558
        %v11592 = vmax.f32 %v11560, 0.0
        %v11593 = vmax.f32 %v11561, 0.0
        %v11594 = vmax.f32 %v11562, 0.0
        %v11595 = vmax.f32 %v11563, 0.0
        %v11596 = vmax.f32 %v11564, 0.0
        %v11597 = vmax.f32 %v11565, 0.0
        %v11598 = vmax.f32 %v11566, 0.0
        %v11599 = vmax.f32 %v11567, 0.0
        %v11600 = vmax.f32 %v11568, 0.0
        %v11601 = vmax.f32 %v11569, 0.0
        %v11602 = vmax.f32 %v11570, 0.0
        %v11603 = vmax.f32 %v11571, 0.0
        %v11604 = vmax.f32 %v11572, 0.0
        %v11605 = vmax.f32 %v11573, 0.0
        %v11606 = vmax.f32 %v11574, 0.0
        %v11607 = vmax.f32 %v11575, 0.0
        %v11608 = vmax.f32 %v11576, 0.0
        %v11609 = vmax.f32 %v11577, 0.0
        %v11610 = vmax.f32 %v11578, 0.0
        %v11611 = vmax.f32 %v11579, 0.0
        %v11612 = vmax.f32 %v11580, 0.0
        %v11613 = vmax.f32 %v11581, 0.0
        %v11614 = vmax.f32 %v11582, 0.0
        %v11615 = vmax.f32 %v11583, 0.0
        %v11616 = vmax.f32 %v11584, 0.0
        %v11617 = vmax.f32 %v11585, 0.0
        %v11618 = vmax.f32 %v11586, 0.0
        %v11619 = vmax.f32 %v11587, 0.0
        %v11620 = vmax.f32 %v11588, 0.0
        %v11621 = vmax.f32 %v11589, 0.0
        %v11622 = vmax.f32 %v11590, 0.0
        %v11623 = vmax.f32 %v11591, 0.0
        %v11624 = vpack.c.bf16 %v11593, %v11592
        %v11625 = vpack.c.bf16 %v11595, %v11594
        %v11626 = vpack.c.bf16 %v11597, %v11596
        %v11627 = vpack.c.bf16 %v11599, %v11598
        %v11628 = vpack.c.bf16 %v11601, %v11600
        %v11629 = vpack.c.bf16 %v11603, %v11602
        %v11630 = vpack.c.bf16 %v11605, %v11604
        %v11631 = vpack.c.bf16 %v11607, %v11606
        %v11632 = vpack.c.bf16 %v11609, %v11608
        %v11633 = vpack.c.bf16 %v11611, %v11610
        %v11634 = vpack.c.bf16 %v11613, %v11612
        %v11635 = vpack.c.bf16 %v11615, %v11614
        %v11636 = vpack.c.bf16 %v11617, %v11616
        %v11637 = vpack.c.bf16 %v11619, %v11618
        %v11638 = vpack.c.bf16 %v11621, %v11620
        %v11639 = vpack.c.bf16 %v11623, %v11622
        %11640 = vst [vmem:[#allocation3 + $0x10] sm:$0xff] %v11624
        %11641 = vst [vmem:[#allocation3 + $0x28] sm:$0xff] %v11625
        %11642 = vst [vmem:[#allocation3 + $0x40] sm:$0xff] %v11626
        %11643 = vst [vmem:[#allocation3 + $0x58] sm:$0xff] %v11627
        %11644 = vst [vmem:[#allocation3 + $0x70] sm:$0xff] %v11628
        %11645 = vst [vmem:[#allocation3 + $0x88] sm:$0xff] %v11629
        %11646 = vst [vmem:[#allocation3 + $0xa0] sm:$0xff] %v11630
        %11647 = vst [vmem:[#allocation3 + $0xb8] sm:$0xff] %v11631
        %11648 = vst [vmem:[#allocation3 + $0xd0] sm:$0xff] %v11632
        %11649 = vst [vmem:[#allocation3 + $0xe8] sm:$0xff] %v11633
        %11650 = vst [vmem:[#allocation3 + $0x100] sm:$0xff] %v11634
        %11651 = vst [vmem:[#allocation3 + $0x118] sm:$0xff] %v11635
        %11652 = vst [vmem:[#allocation3 + $0x130] sm:$0xff] %v11636
        %11653 = vst [vmem:[#allocation3 + $0x148] sm:$0xff] %v11637
        %11654 = vst [vmem:[#allocation3 + $0x160] sm:$0xff] %v11638
        %11655 = vst [vmem:[#allocation3 + $0x178] sm:$0xff] %v11639
        %v11656 = vld [vmem:[#allocation3] sm:$0xff]
        %v11657 = vld [vmem:[#allocation3 + $0x8] sm:$0xff]
        %v11658 = vld [vmem:[#allocation3 + $0x10] sm:$0xff]
        %v11659 = vld [vmem:[#allocation3 + $0x18] sm:$0xff]
        %v11660 = vld [vmem:[#allocation3 + $0x20] sm:$0xff]
        %v11661 = vld [vmem:[#allocation3 + $0x28] sm:$0xff]
        %v11662 = vld [vmem:[#allocation3 + $0x30] sm:$0xff]
        %v11663 = vld [vmem:[#allocation3 + $0x38] sm:$0xff]
        %v11664 = vld [vmem:[#allocation3 + $0x40] sm:$0xff]
        %v11665 = vld [vmem:[#allocation3 + $0x48] sm:$0xff]
        %v11666 = vld [vmem:[#allocation3 + $0x50] sm:$0xff]
        %v11667 = vld [vmem:[#allocation3 + $0x58] sm:$0xff]
        %v11668 = vld [vmem:[#allocation3 + $0x60] sm:$0xff]
        %v11669 = vld [vmem:[#allocation3 + $0x68] sm:$0xff]
        %v11670 = vld [vmem:[#allocation3 + $0x70] sm:$0xff]
        %v11671 = vld [vmem:[#allocation3 + $0x78] sm:$0xff]
        %v11672 = vld [vmem:[#allocation3 + $0x80] sm:$0xff]
        %v11673 = vld [vmem:[#allocation3 + $0x88] sm:$0xff]
        %v11674 = vld [vmem:[#allocation3 + $0x90] sm:$0xff]
        %v11675 = vld [vmem:[#allocation3 + $0x98] sm:$0xff]
        %v11676 = vld [vmem:[#allocation3 + $0xa0] sm:$0xff]
        %v11677 = vld [vmem:[#allocation3 + $0xa8] sm:$0xff]
        %v11678 = vld [vmem:[#allocation3 + $0xb0] sm:$0xff]
        %v11679 = vld [vmem:[#allocation3 + $0xb8] sm:$0xff]
        %v11680 = vld [vmem:[#allocation3 + $0xc0] sm:$0xff]
        %v11681 = vld [vmem:[#allocation3 + $0xc8] sm:$0xff]
        %v11682 = vld [vmem:[#allocation3 + $0xd0] sm:$0xff]
        %v11683 = vld [vmem:[#allocation3 + $0xd8] sm:$0xff]
        %v11684 = vld [vmem:[#allocation3 + $0xe0] sm:$0xff]
        %v11685 = vld [vmem:[#allocation3 + $0xe8] sm:$0xff]
        %v11686 = vld [vmem:[#allocation3 + $0xf0] sm:$0xff]
        %v11687 = vld [vmem:[#allocation3 + $0xf8] sm:$0xff]
        %v11688 = vld [vmem:[#allocation3 + $0x100] sm:$0xff]
        %v11689 = vld [vmem:[#allocation3 + $0x108] sm:$0xff]
        %v11690 = vld [vmem:[#allocation3 + $0x110] sm:$0xff]
        %v11691 = vld [vmem:[#allocation3 + $0x118] sm:$0xff]
        %v11692 = vld [vmem:[#allocation3 + $0x120] sm:$0xff]
        %v11693 = vld [vmem:[#allocation3 + $0x128] sm:$0xff]
        %v11694 = vld [vmem:[#allocation3 + $0x130] sm:$0xff]
        %v11695 = vld [vmem:[#allocation3 + $0x138] sm:$0xff]
        %v11696 = vld [vmem:[#allocation3 + $0x140] sm:$0xff]
        %v11697 = vld [vmem:[#allocation3 + $0x148] sm:$0xff]
        %v11698 = vld [vmem:[#allocation3 + $0x150] sm:$0xff]
        %v11699 = vld [vmem:[#allocation3 + $0x158] sm:$0xff]
        %v11700 = vld [vmem:[#allocation3 + $0x160] sm:$0xff]
        %v11701 = vld [vmem:[#allocation3 + $0x168] sm:$0xff]
        %v11702 = vld [vmem:[#allocation3 + $0x170] sm:$0xff]
        %v11703 = vld [vmem:[#allocation3 + $0x178] sm:$0xff]
        %v11704 = vld [vmem:[%s10] sm:$0xf]
        %v11705 = vld [vmem:[%s10 + $0x4] sm:$0xf]
        %v11706 = vld [vmem:[%s10 + $0x8] sm:$0xf]
        %v11707 = vld [vmem:[%s10 + $0xc] sm:$0xf]
        %v11708 = vld [vmem:[%s10 + $0x10] sm:$0xf]
        %v11709 = vld [vmem:[%s10 + $0x14] sm:$0xf]
        %v11710 = vld [vmem:[%s10 + $0x18] sm:$0xf]
        %v11711 = vld [vmem:[%s10 + $0x1c] sm:$0xf]
        %v11712 = vld [vmem:[%s10 + $0x20] sm:$0xf]
        %v11713 = vld [vmem:[%s10 + $0x24] sm:$0xf]
        %v11714 = vld [vmem:[%s10 + $0x28] sm:$0xf]
        %v11715 = vld [vmem:[%s10 + $0x2c] sm:$0xf]
        %v11716 = vld [vmem:[%s10 + $0x30] sm:$0xf]
        %v11717 = vld [vmem:[%s10 + $0x34] sm:$0xf]
        %v11718 = vld [vmem:[%s10 + $0x38] sm:$0xf]
        %v11719 = vld [vmem:[%s10 + $0x3c] sm:$0xf]
        %v11720 = vld [vmem:[%s10 + $0x40] sm:$0xf]
        %v11721 = vld [vmem:[%s10 + $0x44] sm:$0xf]
        %v11722 = vld [vmem:[%s10 + $0x48] sm:$0xf]
        %v11723 = vld [vmem:[%s10 + $0x4c] sm:$0xf]
        %v11724 = vld [vmem:[%s10 + $0x50] sm:$0xf]
        %v11725 = vld [vmem:[%s10 + $0x54] sm:$0xf]
        %v11726 = vld [vmem:[%s10 + $0x58] sm:$0xf]
        %v11727 = vld [vmem:[%s10 + $0x5c] sm:$0xf]
        %v11728 = vld [vmem:[%s10 + $0x60] sm:$0xf]
        %v11729 = vld [vmem:[%s10 + $0x64] sm:$0xf]
        %v11730 = vld [vmem:[%s10 + $0x68] sm:$0xf]
        %v11731 = vld [vmem:[%s10 + $0x6c] sm:$0xf]
        %v11732 = vld [vmem:[%s10 + $0x70] sm:$0xf]
        %v11733 = vld [vmem:[%s10 + $0x74] sm:$0xf]
        %v11734 = vld [vmem:[%s10 + $0x78] sm:$0xf]
        %v11735 = vld [vmem:[%s10 + $0x7c] sm:$0xf]
        %v11736 = vld [vmem:[%s10 + $0x80] sm:$0xf]
        %v11737 = vld [vmem:[%s10 + $0x84] sm:$0xf]
        %v11738 = vld [vmem:[%s10 + $0x88] sm:$0xf]
        %v11739 = vld [vmem:[%s10 + $0x8c] sm:$0xf]
        %v11740 = vld [vmem:[%s10 + $0x90] sm:$0xf]
        %v11741 = vld [vmem:[%s10 + $0x94] sm:$0xf]
        %v11742 = vld [vmem:[%s10 + $0x98] sm:$0xf]
        %v11743 = vld [vmem:[%s10 + $0x9c] sm:$0xf]
        %v11744 = vld [vmem:[%s10 + $0xa0] sm:$0xf]
        %v11745 = vld [vmem:[%s10 + $0xa4] sm:$0xf]
        %v11746 = vld [vmem:[%s10 + $0xa8] sm:$0xf]
        %v11747 = vld [vmem:[%s10 + $0xac] sm:$0xf]
        %v11748 = vld [vmem:[%s10 + $0xb0] sm:$0xf]
        %v11749 = vld [vmem:[%s10 + $0xb4] sm:$0xf]
        %v11750 = vld [vmem:[%s10 + $0xb8] sm:$0xf]
        %v11751 = vld [vmem:[%s10 + $0xbc] sm:$0xf]
        %v11800 = vunpack.c.l.b16 %v11704
        %v11801 = vunpack.c.l.b16 %v11705
        %v11802 = vunpack.c.l.b16 %v11706
        %v11803 = vunpack.c.l.b16 %v11707
        %v11804 = vunpack.c.l.b16 %v11708
        %v11805 = vunpack.c.l.b16 %v11709
        %v11806 = vunpack.c.l.b16 %v11710
        %v11807 = vunpack.c.l.b16 %v11711
        %v11808 = vunpack.c.l.b16 %v11712
        %v11809 = vunpack.c.l.b16 %v11713
        %v11810 = vunpack.c.l.b16 %v11714
        %v11811 = vunpack.c.l.b16 %v11715
        %v11812 = vunpack.c.l.b16 %v11716
        %v11813 = vunpack.c.l.b16 %v11717
        %v11814 = vunpack.c.l.b16 %v11718
        %v11815 = vunpack.c.l.b16 %v11719
        %v11816 = vunpack.c.l.b16 %v11720
        %v11817 = vunpack.c.l.b16 %v11721
        %v11818 = vunpack.c.l.b16 %v11722
        %v11819 = vunpack.c.l.b16 %v11723
        %v11820 = vunpack.c.l.b16 %v11724
        %v11821 = vunpack.c.l.b16 %v11725
        %v11822 = vunpack.c.l.b16 %v11726
        %v11823 = vunpack.c.l.b16 %v11727
        %v11824 = vunpack.c.l.b16 %v11728
        %v11825 = vunpack.c.l.b16 %v11729
        %v11826 = vunpack.c.l.b16 %v11730
        %v11827 = vunpack.c.l.b16 %v11731
        %v11828 = vunpack.c.l.b16 %v11732
        %v11829 = vunpack.c.l.b16 %v11733
        %v11830 = vunpack.c.l.b16 %v11734
        %v11831 = vunpack.c.l.b16 %v11735
        %v11832 = vunpack.c.l.b16 %v11736
        %v11833 = vunpack.c.l.b16 %v11737
        %v11834 = vunpack.c.l.b16 %v11738
        %v11835 = vunpack.c.l.b16 %v11739
        %v11836 = vunpack.c.l.b16 %v11740
        %v11837 = vunpack.c.l.b16 %v11741
        %v11838 = vunpack.c.l.b16 %v11742
        %v11839 = vunpack.c.l.b16 %v11743
        %v11840 = vunpack.c.l.b16 %v11744
        %v11841 = vunpack.c.l.b16 %v11745
        %v11842 = vunpack.c.l.b16 %v11746
        %v11843 = vunpack.c.l.b16 %v11747
        %v11844 = vunpack.c.l.b16 %v11748
        %v11845 = vunpack.c.l.b16 %v11749
        %v11846 = vunpack.c.l.b16 %v11750
        %v11847 = vunpack.c.l.b16 %v11751
        %v11848 = vpack.c.b16 %v11801, %v11800
        %v11849 = vpack.c.b16 %v11803, %v11802
        %v11850 = vpack.c.b16 %v11805, %v11804
        %v11851 = vpack.c.b16 %v11807, %v11806
        %v11852 = vpack.c.b16 %v11809, %v11808
        %v11853 = vpack.c.b16 %v11811, %v11810
        %v11854 = vpack.c.b16 %v11813, %v11812
        %v11855 = vpack.c.b16 %v11815, %v11814
        %v11856 = vpack.c.b16 %v11817, %v11816
        %v11857 = vpack.c.b16 %v11819, %v11818
        %v11858 = vpack.c.b16 %v11821, %v11820
        %v11859 = vpack.c.b16 %v11823, %v11822
        %v11860 = vpack.c.b16 %v11825, %v11824
        %v11861 = vpack.c.b16 %v11827, %v11826
        %v11862 = vpack.c.b16 %v11829, %v11828
        %v11863 = vpack.c.b16 %v11831, %v11830
        %v11864 = vpack.c.b16 %v11833, %v11832
        %v11865 = vpack.c.b16 %v11835, %v11834
        %v11866 = vpack.c.b16 %v11837, %v11836
        %v11867 = vpack.c.b16 %v11839, %v11838
        %v11868 = vpack.c.b16 %v11841, %v11840
        %v11869 = vpack.c.b16 %v11843, %v11842
        %v11870 = vpack.c.b16 %v11845, %v11844
        %v11871 = vpack.c.b16 %v11847, %v11846
        %11896 = vmatprep.subr.bf16.mxu0 0
        %11897 = vmatpush1.bf16.msra.mxu0 %v11848
        %11898 = vmatprep.subr.bf16.mxu0 0
        %11899 = vmatpush1.bf16.msra.mxu0 %v11849
        %11900 = vmatprep.subr.bf16.mxu0 0
        %11901 = vmatpush1.bf16.msra.mxu0 %v11850
        %11902 = vmatprep.subr.bf16.mxu0 0
        %11903 = vmatpush1.bf16.msra.mxu0 %v11851
        %11904 = vmatprep.subr.bf16.mxu0 0
        %11905 = vmatpush1.bf16.msra.mxu0 %v11852
        %11906 = vmatprep.subr.bf16.mxu0 0
        %11907 = vmatpush1.bf16.msra.mxu0 %v11853
        %11908 = vmatprep.subr.bf16.mxu0 0
        %11909 = vmatpush1.bf16.msra.mxu0 %v11854
        %11910 = vmatprep.subr.bf16.mxu0 0
        %11911 = vmatpush1.bf16.msra.mxu0 %v11855
        %11912 = vmatprep.subr.bf16.mxu0 0
        %11913 = vmatpush1.bf16.msra.mxu0 %v11856
        %11914 = vmatprep.subr.bf16.mxu0 0
        %11915 = vmatpush1.bf16.msra.mxu0 %v11857
        %11916 = vmatprep.subr.bf16.mxu0 0
        %11917 = vmatpush1.bf16.msra.mxu0 %v11858
        %11918 = vmatprep.subr.bf16.mxu0 0
        %11919 = vmatpush1.bf16.msra.mxu0 %v11859
        %11920 = vmatprep.subr.bf16.mxu0 0
        %11921 = vmatpush1.bf16.msra.mxu0 %v11860
        %11922 = vmatprep.subr.bf16.mxu0 0
        %11923 = vmatpush1.bf16.msra.mxu0 %v11861
        %11924 = vmatprep.subr.bf16.mxu0 0
        %11925 = vmatpush1.bf16.msra.mxu0 %v11862
        %11926 = vmatprep.subr.bf16.mxu0 0
        %11927 = vmatpush1.bf16.msra.mxu0 %v11863
        %11928 = vmatprep.mubr.bf16.mxu0 %v11657
        %11929 = vmatmul.mubr.bf16.gmra.mrb[0].mxu0 %v11656
        %v11930 = vpop.f32.mrb[0].mxu0
        %v11931 = vadd.f32 0.0, %v11930
        %v11932 = vpop.f32.mrb[0].mxu0
        %v11933 = vpop.f32.mrb[0].mxu0
        %v11934 = vadd.f32 0.0, %v11933
        %v11935 = vpop.f32.mrb[0].mxu0
        %11936 = vmatprep.mubr.bf16.mxu0 %v11660
        %11937 = vmatmul.mubr.bf16.gmra.mrb[0].mxu0 %v11659
        %v11938 = vpop.f32.mrb[0].mxu0
        %v11939 = vadd.f32 0.0, %v11938
        %v11940 = vpop.f32.mrb[0].mxu0
        %v11941 = vpop.f32.mrb[0].mxu0
        %v11942 = vadd.f32 0.0, %v11941
        %v11943 = vpop.f32.mrb[0].mxu0
        %11944 = vmatprep.mubr.bf16.mxu0 %v11663
        %11945 = vmatmul.mubr.bf16.gmra.mrb[0].mxu0 %v11662
        %v11946 = vpop.f32.mrb[0].mxu0
        %v11947 = vadd.f32 0.0, %v11946
        %v11948 = vpop.f32.mrb[0].mxu0
        %v11949 = vpop.f32.mrb[0].mxu0
        %v11950 = vadd.f32 0.0, %v11949
        %v11951 = vpop.f32.mrb[0].mxu0
        %11952 = vmatprep.mubr.bf16.mxu0 %v11666
        %11953 = vmatmul.mubr.bf16.gmra.mrb[0].mxu0 %v11665
        %v11954 = vpop.f32.mrb[0].mxu0
        %v11955 = vadd.f32 0.0, %v11954
        %v11956 = vpop.f32.mrb[0].mxu0
        %v11957 = vpop.f32.mrb[0].mxu0
        %v11958 = vadd.f32 0.0, %v11957
        %v11959 = vpop.f32.mrb[0].mxu0
        %11960 = vmatprep.mubr.bf16.mxu0 %v11669
        %11961 = vmatmul.mubr.bf16.gmra.mrb[0].mxu0 %v11668
        %v11962 = vpop.f32.mrb[0].mxu0
        %v11963 = vadd.f32 0.0, %v11962
        %v11964 = vpop.f32.mrb[0].mxu0
        %v11965 = vpop.f32.mrb[0].mxu0
        %v11966 = vadd.f32 0.0, %v11965
        %v11967 = vpop.f32.mrb[0].mxu0
        %11968 = vmatprep.mubr.bf16.mxu0 %v11672
        %11969 = vmatmul.mubr.bf16.gmra.mrb[0].mxu0 %v11671
        %v11970 = vpop.f32.mrb[0].mxu0
        %v11971 = vadd.f32 0.0, %v11970
        %v11972 = vpop.f32.mrb[0].mxu0
        %v11973 = vpop.f32.mrb[0].mxu0
        %v11974 = vadd.f32 0.0, %v11973
        %v11975 = vpop.f32.mrb[0].mxu0
        %11976 = vmatprep.mubr.bf16.mxu0 %v11675
        %11977 = vmatmul.mubr.bf16.gmra.mrb[0].mxu0 %v11674
        %v11978 = vpop.f32.mrb[0].mxu0
        %v11979 = vadd.f32 0.0, %v11978
        %v11980 = vpop.f32.mrb[0].mxu0
        %v11981 = vpop.f32.mrb[0].mxu0
        %v11982 = vadd.f32 0.0, %v11981
        %v11983 = vpop.f32.mrb[0].mxu0
        %11984 = vmatprep.mubr.bf16.mxu0 %v11678
        %11985 = vmatmul.mubr.bf16.gmra.mrb[0].mxu0 %v11677
        %v11986 = vpop.f32.mrb[0].mxu0
        %v11987 = vadd.f32 0.0, %v11986
        %v11988 = vpop.f32.mrb[0].mxu0
        %v11989 = vpop.f32.mrb[0].mxu0
        %v11990 = vadd.f32 0.0, %v11989
        %v11991 = vpop.f32.mrb[0].mxu0
        %11992 = vmatprep.mubr.bf16.mxu0 %v11681
        %11993 = vmatmul.mubr.bf16.gmra.mrb[0].mxu0 %v11680
        %v11994 = vpop.f32.mrb[0].mxu0
        %v11995 = vadd.f32 0.0, %v11994
        %v11996 = vpop.f32.mrb[0].mxu0
        %v11997 = vpop.f32.mrb[0].mxu0
        %v11998 = vadd.f32 0.0, %v11997
        %v11999 = vpop.f32.mrb[0].mxu0
        %12000 = vmatprep.mubr.bf16.mxu0 %v11684
        %12001 = vmatmul.mubr.bf16.gmra.mrb[0].mxu0 %v11683
        %v12002 = vpop.f32.mrb[0].mxu0
        %v12003 = vadd.f32 0.0, %v12002
        %v12004 = vpop.f32.mrb[0].mxu0
        %v12005 = vpop.f32.mrb[0].mxu0
        %v12006 = vadd.f32 0.0, %v12005
        %v12007 = vpop.f32.mrb[0].mxu0
        %12008 = vmatprep.mubr.bf16.mxu0 %v11687
        %12009 = vmatmul.mubr.bf16.gmra.mrb[0].mxu0 %v11686
        %v12010 = vpop.f32.mrb[0].mxu0
        %v12011 = vadd.f32 0.0, %v12010
        %v12012 = vpop.f32.mrb[0].mxu0
        %v12013 = vpop.f32.mrb[0].mxu0
        %v12014 = vadd.f32 0.0, %v12013
        %v12015 = vpop.f32.mrb[0].mxu0
        %12016 = vmatprep.mubr.bf16.mxu0 %v11690
        %12017 = vmatmul.mubr.bf16.gmra.mrb[0].mxu0 %v11689
        %v12018 = vpop.f32.mrb[0].mxu0
        %v12019 = vadd.f32 0.0, %v12018
        %v12020 = vpop.f32.mrb[0].mxu0
        %v12021 = vpop.f32.mrb[0].mxu0
        %v12022 = vadd.f32 0.0, %v12021
        %v12023 = vpop.f32.mrb[0].mxu0
        %12024 = vmatprep.mubr.bf16.mxu0 %v11693
        %12025 = vmatmul.mubr.bf16.gmra.mrb[0].mxu0 %v11692
        %v12026 = vpop.f32.mrb[0].mxu0
        %v12027 = vadd.f32 0.0, %v12026
        %v12028 = vpop.f32.mrb[0].mxu0
        %v12029 = vpop.f32.mrb[0].mxu0
        %v12030 = vadd.f32 0.0, %v12029
        %v12031 = vpop.f32.mrb[0].mxu0
        %12032 = vmatprep.mubr.bf16.mxu0 %v11696
        %12033 = vmatmul.mubr.bf16.gmra.mrb[0].mxu0 %v11695
        %v12034 = vpop.f32.mrb[0].mxu0
        %v12035 = vadd.f32 0.0, %v12034
        %v12036 = vpop.f32.mrb[0].mxu0
        %v12037 = vpop.f32.mrb[0].mxu0
        %v12038 = vadd.f32 0.0, %v12037
        %v12039 = vpop.f32.mrb[0].mxu0
        %12040 = vmatprep.mubr.bf16.mxu0 %v11699
        %12041 = vmatmul.mubr.bf16.gmra.mrb[0].mxu0 %v11698
        %v12042 = vpop.f32.mrb[0].mxu0
        %v12043 = vadd.f32 0.0, %v12042
        %v12044 = vpop.f32.mrb[0].mxu0
        %v12045 = vpop.f32.mrb[0].mxu0
        %v12046 = vadd.f32 0.0, %v12045
        %v12047 = vpop.f32.mrb[0].mxu0
        %12048 = vmatprep.mubr.bf16.mxu0 %v11702
        %12049 = vmatmul.mubr.bf16.gmra.mrb[0].mxu0 %v11701
        %v12050 = vpop.f32.mrb[0].mxu0
        %v12051 = vadd.f32 0.0, %v12050
        %v12052 = vpop.f32.mrb[0].mxu0
        %v12053 = vpop.f32.mrb[0].mxu0
        %v12054 = vadd.f32 0.0, %v12053
        %v12055 = vpop.f32.mrb[0].mxu0
        %12056 = vdwg.mxu0
        %12057 = vmatprep.subr.bf16.mxu0 0
        %12058 = vmatpush1.bf16.msra.mxu0 %v11864
        %12059 = vmatprep.subr.bf16.mxu0 0
        %12060 = vmatpush1.bf16.msra.mxu0 %v11865
        %12061 = vmatprep.subr.bf16.mxu0 0
        %12062 = vmatpush1.bf16.msra.mxu0 %v11866
        %12063 = vmatprep.subr.bf16.mxu0 0
        %12064 = vmatpush1.bf16.msra.mxu0 %v11867
        %12065 = vmatprep.subr.bf16.mxu0 0
        %12066 = vmatpush1.bf16.msra.mxu0 %v11868
        %12067 = vmatprep.subr.bf16.mxu0 0
        %12068 = vmatpush1.bf16.msra.mxu0 %v11869
        %12069 = vmatprep.subr.bf16.mxu0 0
        %12070 = vmatpush1.bf16.msra.mxu0 %v11870
        %12071 = vmatprep.subr.bf16.mxu0 0
        %12072 = vmatpush1.bf16.msra.mxu0 %v11871
        %12073 = vmatprep.subr.bf16.mxu0 0
        %12074 = vmatpush1.bf16.msra.mxu0 0
        %12075 = vmatprep.subr.bf16.mxu0 0
        %12076 = vmatpush1.bf16.msra.mxu0 0
        %12077 = vmatprep.subr.bf16.mxu0 0
        %12078 = vmatpush1.bf16.msra.mxu0 0
        %12079 = vmatprep.subr.bf16.mxu0 0
        %12080 = vmatpush1.bf16.msra.mxu0 0
        %12081 = vmatprep.subr.bf16.mxu0 0
        %12082 = vmatpush1.bf16.msra.mxu0 0
        %12083 = vmatprep.subr.bf16.mxu0 0
        %12084 = vmatpush1.bf16.msra.mxu0 0
        %12085 = vmatprep.subr.bf16.mxu0 0
        %12086 = vmatpush1.bf16.msra.mxu0 0
        %12087 = vmatprep.subr.bf16.mxu0 0
        %12088 = vmatpush1.bf16.msra.mxu0 0
        %12089 = vmatprep.mubr.bf16.mxu0 0
        %12090 = vmatmul.mubr.bf16.gmra.mrb[0].mxu0 %v11658
        %v12091 = vpop.f32.mrb[0].mxu0
        %v12092 = vadd.f32 %v11931, %v12091
        %v12093 = vpop.f32.mrb[0].mxu0
        %v12094 = vpop.f32.mrb[0].mxu0
        %v12095 = vadd.f32 %v11934, %v12094
        %v12096 = vpop.f32.mrb[0].mxu0
        %12097 = vmatprep.mubr.bf16.mxu0 0
        %12098 = vmatmul.mubr.bf16.gmra.mrb[0].mxu0 %v11661
        %v12099 = vpop.f32.mrb[0].mxu0
        %v12100 = vadd.f32 %v11939, %v12099
        %v12101 = vpop.f32.mrb[0].mxu0
        %v12102 = vpop.f32.mrb[0].mxu0
        %v12103 = vadd.f32 %v11942, %v12102
        %v12104 = vpop.f32.mrb[0].mxu0
        %12105 = vmatprep.mubr.bf16.mxu0 0
        %12106 = vmatmul.mubr.bf16.gmra.mrb[0].mxu0 %v11664
        %v12107 = vpop.f32.mrb[0].mxu0
        %v12108 = vadd.f32 %v11947, %v12107
        %v12109 = vpop.f32.mrb[0].mxu0
        %v12110 = vpop.f32.mrb[0].mxu0
        %v12111 = vadd.f32 %v11950, %v12110
        %v12112 = vpop.f32.mrb[0].mxu0
        %12113 = vmatprep.mubr.bf16.mxu0 0
        %12114 = vmatmul.mubr.bf16.gmra.mrb[0].mxu0 %v11667
        %v12115 = vpop.f32.mrb[0].mxu0
        %v12116 = vadd.f32 %v11955, %v12115
        %v12117 = vpop.f32.mrb[0].mxu0
        %v12118 = vpop.f32.mrb[0].mxu0
        %v12119 = vadd.f32 %v11958, %v12118
        %v12120 = vpop.f32.mrb[0].mxu0
        %12121 = vmatprep.mubr.bf16.mxu0 0
        %12122 = vmatmul.mubr.bf16.gmra.mrb[0].mxu0 %v11670
        %v12123 = vpop.f32.mrb[0].mxu0
        %v12124 = vadd.f32 %v11963, %v12123
        %v12125 = vpop.f32.mrb[0].mxu0
        %v12126 = vpop.f32.mrb[0].mxu0
        %v12127 = vadd.f32 %v11966, %v12126
        %v12128 = vpop.f32.mrb[0].mxu0
        %12129 = vmatprep.mubr.bf16.mxu0 0
        %12130 = vmatmul.mubr.bf16.gmra.mrb[0].mxu0 %v11673
        %v12131 = vpop.f32.mrb[0].mxu0
        %v12132 = vadd.f32 %v11971, %v12131
        %v12133 = vpop.f32.mrb[0].mxu0
        %v12134 = vpop.f32.mrb[0].mxu0
        %v12135 = vadd.f32 %v11974, %v12134
        %v12136 = vpop.f32.mrb[0].mxu0
        %12137 = vmatprep.mubr.bf16.mxu0 0
        %12138 = vmatmul.mubr.bf16.gmra.mrb[0].mxu0 %v11676
        %v12139 = vpop.f32.mrb[0].mxu0
        %v12140 = vadd.f32 %v11979, %v12139
        %v12141 = vpop.f32.mrb[0].mxu0
        %v12142 = vpop.f32.mrb[0].mxu0
        %v12143 = vadd.f32 %v11982, %v12142
        %v12144 = vpop.f32.mrb[0].mxu0
        %12145 = vmatprep.mubr.bf16.mxu0 0
        %12146 = vmatmul.mubr.bf16.gmra.mrb[0].mxu0 %v11679
        %v12147 = vpop.f32.mrb[0].mxu0
        %v12148 = vadd.f32 %v11987, %v12147
        %v12149 = vpop.f32.mrb[0].mxu0
        %v12150 = vpop.f32.mrb[0].mxu0
        %v12151 = vadd.f32 %v11990, %v12150
        %v12152 = vpop.f32.mrb[0].mxu0
        %12153 = vmatprep.mubr.bf16.mxu0 0
        %12154 = vmatmul.mubr.bf16.gmra.mrb[0].mxu0 %v11682
        %v12155 = vpop.f32.mrb[0].mxu0
        %v12156 = vadd.f32 %v11995, %v12155
        %v12157 = vpop.f32.mrb[0].mxu0
        %v12158 = vpop.f32.mrb[0].mxu0
        %v12159 = vadd.f32 %v11998, %v12158
        %v12160 = vpop.f32.mrb[0].mxu0
        %12161 = vmatprep.mubr.bf16.mxu0 0
        %12162 = vmatmul.mubr.bf16.gmra.mrb[0].mxu0 %v11685
        %v12163 = vpop.f32.mrb[0].mxu0
        %v12164 = vadd.f32 %v12003, %v12163
        %v12165 = vpop.f32.mrb[0].mxu0
        %v12166 = vpop.f32.mrb[0].mxu0
        %v12167 = vadd.f32 %v12006, %v12166
        %v12168 = vpop.f32.mrb[0].mxu0
        %12169 = vmatprep.mubr.bf16.mxu0 0
        %12170 = vmatmul.mubr.bf16.gmra.mrb[0].mxu0 %v11688
        %v12171 = vpop.f32.mrb[0].mxu0
        %v12172 = vadd.f32 %v12011, %v12171
        %v12173 = vpop.f32.mrb[0].mxu0
        %v12174 = vpop.f32.mrb[0].mxu0
        %v12175 = vadd.f32 %v12014, %v12174
        %v12176 = vpop.f32.mrb[0].mxu0
        %12177 = vmatprep.mubr.bf16.mxu0 0
        %12178 = vmatmul.mubr.bf16.gmra.mrb[0].mxu0 %v11691
        %v12179 = vpop.f32.mrb[0].mxu0
        %v12180 = vadd.f32 %v12019, %v12179
        %v12181 = vpop.f32.mrb[0].mxu0
        %v12182 = vpop.f32.mrb[0].mxu0
        %v12183 = vadd.f32 %v12022, %v12182
        %v12184 = vpop.f32.mrb[0].mxu0
        %12185 = vmatprep.mubr.bf16.mxu0 0
        %12186 = vmatmul.mubr.bf16.gmra.mrb[0].mxu0 %v11694
        %v12187 = vpop.f32.mrb[0].mxu0
        %v12188 = vadd.f32 %v12027, %v12187
        %v12189 = vpop.f32.mrb[0].mxu0
        %v12190 = vpop.f32.mrb[0].mxu0
        %v12191 = vadd.f32 %v12030, %v12190
        %v12192 = vpop.f32.mrb[0].mxu0
        %12193 = vmatprep.mubr.bf16.mxu0 0
        %12194 = vmatmul.mubr.bf16.gmra.mrb[0].mxu0 %v11697
        %v12195 = vpop.f32.mrb[0].mxu0
        %v12196 = vadd.f32 %v12035, %v12195
        %v12197 = vpop.f32.mrb[0].mxu0
        %v12198 = vpop.f32.mrb[0].mxu0
        %v12199 = vadd.f32 %v12038, %v12198
        %v12200 = vpop.f32.mrb[0].mxu0
        %12201 = vmatprep.mubr.bf16.mxu0 0
        %12202 = vmatmul.mubr.bf16.gmra.mrb[0].mxu0 %v11700
        %v12203 = vpop.f32.mrb[0].mxu0
        %v12204 = vadd.f32 %v12043, %v12203
        %v12205 = vpop.f32.mrb[0].mxu0
        %v12206 = vpop.f32.mrb[0].mxu0
        %v12207 = vadd.f32 %v12046, %v12206
        %v12208 = vpop.f32.mrb[0].mxu0
        %12209 = vmatprep.mubr.bf16.mxu0 0
        %12210 = vmatmul.mubr.bf16.gmra.mrb[0].mxu0 %v11703
        %v12211 = vpop.f32.mrb[0].mxu0
        %v12212 = vadd.f32 %v12051, %v12211
        %v12213 = vpop.f32.mrb[0].mxu0
        %v12214 = vpop.f32.mrb[0].mxu0
        %v12215 = vadd.f32 %v12054, %v12214
        %v12216 = vpop.f32.mrb[0].mxu0
        %12217 = vdwg.mxu0
        %v12218 = vld [vmem:[%s11] sm:$0x1]
        %v12220 = vlaneseq
        %v12221 = vshrl.u32 %v12220, 7
        %v12222 = vsub.s32 0, %v12221
        %v12223 = vrot.slane %v12218, %v12222
        %v12225 = vmul.f32 %v12092, %v12223
        %v12226 = vmul.f32 %v12095, %v12223
        %v12227 = vmul.f32 %v12100, %v12223
        %v12228 = vmul.f32 %v12103, %v12223
        %v12229 = vmul.f32 %v12108, %v12223
        %v12230 = vmul.f32 %v12111, %v12223
        %v12231 = vmul.f32 %v12116, %v12223
        %v12232 = vmul.f32 %v12119, %v12223
        %v12233 = vmul.f32 %v12124, %v12223
        %v12234 = vmul.f32 %v12127, %v12223
        %v12235 = vmul.f32 %v12132, %v12223
        %v12236 = vmul.f32 %v12135, %v12223
        %v12237 = vmul.f32 %v12140, %v12223
        %v12238 = vmul.f32 %v12143, %v12223
        %v12239 = vmul.f32 %v12148, %v12223
        %v12240 = vmul.f32 %v12151, %v12223
        %v12241 = vmul.f32 %v12156, %v12223
        %v12242 = vmul.f32 %v12159, %v12223
        %v12243 = vmul.f32 %v12164, %v12223
        %v12244 = vmul.f32 %v12167, %v12223
        %v12245 = vmul.f32 %v12172, %v12223
        %v12246 = vmul.f32 %v12175, %v12223
        %v12247 = vmul.f32 %v12180, %v12223
        %v12248 = vmul.f32 %v12183, %v12223
        %v12249 = vmul.f32 %v12188, %v12223
        %v12250 = vmul.f32 %v12191, %v12223
        %v12251 = vmul.f32 %v12196, %v12223
        %v12252 = vmul.f32 %v12199, %v12223
        %v12253 = vmul.f32 %v12204, %v12223
        %v12254 = vmul.f32 %v12207, %v12223
        %v12255 = vmul.f32 %v12212, %v12223
        %v12256 = vmul.f32 %v12215, %v12223
        %v12257 = vld [vmem:[%s12] sm:$0x1]
        %v12259 = vlaneseq
        %v12260 = vshrl.u32 %v12259, 7
        %v12261 = vsub.s32 0, %v12260
        %v12262 = vrot.slane %v12257, %v12261
        %v12264 = vadd.f32 %v12225, %v12262
        %v12265 = vadd.f32 %v12226, %v12262
        %v12266 = vadd.f32 %v12227, %v12262
        %v12267 = vadd.f32 %v12228, %v12262
        %v12268 = vadd.f32 %v12229, %v12262
        %v12269 = vadd.f32 %v12230, %v12262
        %v12270 = vadd.f32 %v12231, %v12262
        %v12271 = vadd.f32 %v12232, %v12262
        %v12272 = vadd.f32 %v12233, %v12262
        %v12273 = vadd.f32 %v12234, %v12262
        %v12274 = vadd.f32 %v12235, %v12262
        %v12275 = vadd.f32 %v12236, %v12262
        %v12276 = vadd.f32 %v12237, %v12262
        %v12277 = vadd.f32 %v12238, %v12262
        %v12278 = vadd.f32 %v12239, %v12262
        %v12279 = vadd.f32 %v12240, %v12262
        %v12280 = vadd.f32 %v12241, %v12262
        %v12281 = vadd.f32 %v12242, %v12262
        %v12282 = vadd.f32 %v12243, %v12262
        %v12283 = vadd.f32 %v12244, %v12262
        %v12284 = vadd.f32 %v12245, %v12262
        %v12285 = vadd.f32 %v12246, %v12262
        %v12286 = vadd.f32 %v12247, %v12262
        %v12287 = vadd.f32 %v12248, %v12262
        %v12288 = vadd.f32 %v12249, %v12262
        %v12289 = vadd.f32 %v12250, %v12262
        %v12290 = vadd.f32 %v12251, %v12262
        %v12291 = vadd.f32 %v12252, %v12262
        %v12292 = vadd.f32 %v12253, %v12262
        %v12293 = vadd.f32 %v12254, %v12262
        %v12294 = vadd.f32 %v12255, %v12262
        %v12295 = vadd.f32 %v12256, %v12262
        %v12296 = vmax.f32 %v12264, 0.0
        %v12297 = vmax.f32 %v12265, 0.0
        %v12298 = vmax.f32 %v12266, 0.0
        %v12299 = vmax.f32 %v12267, 0.0
        %v12300 = vmax.f32 %v12268, 0.0
        %v12301 = vmax.f32 %v12269, 0.0
        %v12302 = vmax.f32 %v12270, 0.0
        %v12303 = vmax.f32 %v12271, 0.0
        %v12304 = vmax.f32 %v12272, 0.0
        %v12305 = vmax.f32 %v12273, 0.0
        %v12306 = vmax.f32 %v12274, 0.0
        %v12307 = vmax.f32 %v12275, 0.0
        %v12308 = vmax.f32 %v12276, 0.0
        %v12309 = vmax.f32 %v12277, 0.0
        %v12310 = vmax.f32 %v12278, 0.0
        %v12311 = vmax.f32 %v12279, 0.0
        %v12312 = vmax.f32 %v12280, 0.0
        %v12313 = vmax.f32 %v12281, 0.0
        %v12314 = vmax.f32 %v12282, 0.0
        %v12315 = vmax.f32 %v12283, 0.0
        %v12316 = vmax.f32 %v12284, 0.0
        %v12317 = vmax.f32 %v12285, 0.0
        %v12318 = vmax.f32 %v12286, 0.0
        %v12319 = vmax.f32 %v12287, 0.0
        %v12320 = vmax.f32 %v12288, 0.0
        %v12321 = vmax.f32 %v12289, 0.0
        %v12322 = vmax.f32 %v12290, 0.0
        %v12323 = vmax.f32 %v12291, 0.0
        %v12324 = vmax.f32 %v12292, 0.0
        %v12325 = vmax.f32 %v12293, 0.0
        %v12326 = vmax.f32 %v12294, 0.0
        %v12327 = vmax.f32 %v12295, 0.0
        %v12328 = vpack.c.bf16 %v12297, %v12296
        %v12329 = vpack.c.bf16 %v12299, %v12298
        %v12330 = vpack.c.bf16 %v12301, %v12300
        %v12331 = vpack.c.bf16 %v12303, %v12302
        %v12332 = vpack.c.bf16 %v12305, %v12304
        %v12333 = vpack.c.bf16 %v12307, %v12306
        %v12334 = vpack.c.bf16 %v12309, %v12308
        %v12335 = vpack.c.bf16 %v12311, %v12310
        %v12336 = vpack.c.bf16 %v12313, %v12312
        %v12337 = vpack.c.bf16 %v12315, %v12314
        %v12338 = vpack.c.bf16 %v12317, %v12316
        %v12339 = vpack.c.bf16 %v12319, %v12318
        %v12340 = vpack.c.bf16 %v12321, %v12320
        %v12341 = vpack.c.bf16 %v12323, %v12322
        %v12342 = vpack.c.bf16 %v12325, %v12324
        %v12343 = vpack.c.bf16 %v12327, %v12326
        %v12360 = vunpack.c.l.b16 %v12328
        %v12361 = vunpack.c.h.b16 %v12328
        %v12362 = vunpack.c.l.b16 %v12329
        %v12363 = vunpack.c.h.b16 %v12329
        %v12364 = vunpack.c.l.b16 %v12330
        %v12365 = vunpack.c.h.b16 %v12330
        %v12366 = vunpack.c.l.b16 %v12331
        %v12367 = vunpack.c.h.b16 %v12331
        %v12368 = vunpack.c.l.b16 %v12332
        %v12369 = vunpack.c.h.b16 %v12332
        %v12370 = vunpack.c.l.b16 %v12333
        %v12371 = vunpack.c.h.b16 %v12333
        %v12372 = vunpack.c.l.b16 %v12334
        %v12373 = vunpack.c.h.b16 %v12334
        %v12374 = vunpack.c.l.b16 %v12335
        %v12375 = vunpack.c.h.b16 %v12335
        %v12376 = vunpack.c.l.b16 %v12336
        %v12377 = vunpack.c.h.b16 %v12336
        %v12378 = vunpack.c.l.b16 %v12337
        %v12379 = vunpack.c.h.b16 %v12337
        %v12380 = vunpack.c.l.b16 %v12338
        %v12381 = vunpack.c.h.b16 %v12338
        %v12382 = vunpack.c.l.b16 %v12339
        %v12383 = vunpack.c.h.b16 %v12339
        %v12384 = vunpack.c.l.b16 %v12340
        %v12385 = vunpack.c.h.b16 %v12340
        %v12386 = vunpack.c.l.b16 %v12341
        %v12387 = vunpack.c.h.b16 %v12341
        %v12388 = vunpack.c.l.b16 %v12342
        %v12389 = vunpack.c.h.b16 %v12342
        %v12390 = vunpack.c.l.b16 %v12343
        %v12391 = vunpack.c.h.b16 %v12343
        %v12392 = vpack.c.b16 %v12360, %v12360
        %v12393 = vpack.c.b16 %v12361, %v12361
        %v12394 = vpack.c.b16 %v12362, %v12362
        %v12395 = vpack.c.b16 %v12363, %v12363
        %v12396 = vpack.c.b16 %v12364, %v12364
        %v12397 = vpack.c.b16 %v12365, %v12365
        %v12398 = vpack.c.b16 %v12366, %v12366
        %v12399 = vpack.c.b16 %v12367, %v12367
        %v12400 = vpack.c.b16 %v12368, %v12368
        %v12401 = vpack.c.b16 %v12369, %v12369
        %v12402 = vpack.c.b16 %v12370, %v12370
        %v12403 = vpack.c.b16 %v12371, %v12371
        %v12404 = vpack.c.b16 %v12372, %v12372
        %v12405 = vpack.c.b16 %v12373, %v12373
        %v12406 = vpack.c.b16 %v12374, %v12374
        %v12407 = vpack.c.b16 %v12375, %v12375
        %v12408 = vpack.c.b16 %v12376, %v12376
        %v12409 = vpack.c.b16 %v12377, %v12377
        %v12410 = vpack.c.b16 %v12378, %v12378
        %v12411 = vpack.c.b16 %v12379, %v12379
        %v12412 = vpack.c.b16 %v12380, %v12380
        %v12413 = vpack.c.b16 %v12381, %v12381
        %v12414 = vpack.c.b16 %v12382, %v12382
        %v12415 = vpack.c.b16 %v12383, %v12383
        %v12416 = vpack.c.b16 %v12384, %v12384
        %v12417 = vpack.c.b16 %v12385, %v12385
        %v12418 = vpack.c.b16 %v12386, %v12386
        %v12419 = vpack.c.b16 %v12387, %v12387
        %v12420 = vpack.c.b16 %v12388, %v12388
        %v12421 = vpack.c.b16 %v12389, %v12389
        %v12422 = vpack.c.b16 %v12390, %v12390
        %v12423 = vpack.c.b16 %v12391, %v12391
        %12456 = vst.msk [vmem:[%s463] sm:$0xf] %vm488, %v12392
        %12457 = vst.msk [vmem:[%s463 + $0x4] sm:$0xf] %vm488, %v12393
        %12458 = vst.msk [vmem:[%s463 + $0x8] sm:$0xf] %vm488, %v12394
        %12459 = vst.msk [vmem:[%s463 + $0xc] sm:$0xf] %vm488, %v12395
        %12460 = vst.msk [vmem:[%s463 + $0x10] sm:$0xf] %vm488, %v12396
        %12461 = vst.msk [vmem:[%s463 + $0x14] sm:$0xf] %vm488, %v12397
        %12462 = vst.msk [vmem:[%s463 + $0x18] sm:$0xf] %vm488, %v12398
        %12463 = vst.msk [vmem:[%s463 + $0x1c] sm:$0xf] %vm488, %v12399
        %12464 = vst.msk [vmem:[%s463 + $0x20] sm:$0xf] %vm488, %v12400
        %12465 = vst.msk [vmem:[%s463 + $0x24] sm:$0xf] %vm488, %v12401
        %12466 = vst.msk [vmem:[%s463 + $0x28] sm:$0xf] %vm488, %v12402
        %12467 = vst.msk [vmem:[%s463 + $0x2c] sm:$0xf] %vm488, %v12403
        %12468 = vst.msk [vmem:[%s463 + $0x30] sm:$0xf] %vm488, %v12404
        %12469 = vst.msk [vmem:[%s463 + $0x34] sm:$0xf] %vm488, %v12405
        %12470 = vst.msk [vmem:[%s463 + $0x38] sm:$0xf] %vm488, %v12406
        %12471 = vst.msk [vmem:[%s463 + $0x3c] sm:$0xf] %vm488, %v12407
        %12472 = vst.msk [vmem:[%s463 + $0x40] sm:$0xf] %vm488, %v12408
        %12473 = vst.msk [vmem:[%s463 + $0x44] sm:$0xf] %vm488, %v12409
        %12474 = vst.msk [vmem:[%s463 + $0x48] sm:$0xf] %vm488, %v12410
        %12475 = vst.msk [vmem:[%s463 + $0x4c] sm:$0xf] %vm488, %v12411
        %12476 = vst.msk [vmem:[%s463 + $0x50] sm:$0xf] %vm488, %v12412
        %12477 = vst.msk [vmem:[%s463 + $0x54] sm:$0xf] %vm488, %v12413
        %12478 = vst.msk [vmem:[%s463 + $0x58] sm:$0xf] %vm488, %v12414
        %12479 = vst.msk [vmem:[%s463 + $0x5c] sm:$0xf] %vm488, %v12415
        %12480 = vst.msk [vmem:[%s463 + $0x60] sm:$0xf] %vm488, %v12416
        %12481 = vst.msk [vmem:[%s463 + $0x64] sm:$0xf] %vm488, %v12417
        %12482 = vst.msk [vmem:[%s463 + $0x68] sm:$0xf] %vm488, %v12418
        %12483 = vst.msk [vmem:[%s463 + $0x6c] sm:$0xf] %vm488, %v12419
        %12484 = vst.msk [vmem:[%s463 + $0x70] sm:$0xf] %vm488, %v12420
        %12485 = vst.msk [vmem:[%s463 + $0x74] sm:$0xf] %vm488, %v12421
        %12486 = vst.msk [vmem:[%s463 + $0x78] sm:$0xf] %vm488, %v12422
        %12487 = vst.msk [vmem:[%s463 + $0x7c] sm:$0xf] %vm488, %v12423
        %s12488 = sand.u32 %s323, 1
        %s12489 = scalar_lea.sflag [#allocation5], %s12488
        %s12490 = sand.u32 %s323, 1
        %s12491 = smul.addr %s12490, 128
        %s12492 = scalar_lea.vmem [#allocation4], %s12491
        // Predicated region
        $region73: #{fuse_module_forward.1} parent=71 // pred_check
          %p12493 = pneg %p333
        $region74: #{fuse_module_forward.1} parent=71 // pred_check_branch
          %12495 = sbr.rel (%p12493) target = $region76
        $region75: #{fuse_module_forward.1} parent=71 // pred_region
          %s12497 = ssub.s32 2048, 2048
          %12498 = vsyncadd %s12489, %s12497
          %s12499 = smul.addr %s27, 32
          %s12500 = smul.addr %s12499, 64
          %s12501 = scalar_lea.hbm %s13, %s12500
          %s12502 = sshll.u32 %s12492, 4
          %s12503 = int_to_ptr.vmem [resolvable:$true] %s12502
          %12508 = dma.vmem_to_hbm [thread:$0]  %s12503, 2048, %s12501, %s12489, 64, 64, 4
        $region76: #{fuse_module_forward.1} parent=71 // pred_fallthru
          _
      $region72: #{fuse_module_forward.1} parent=5 // pred_fallthru
        _
      %p12509 = scmp.le.s32.totalorder 2, %s22
      // Predicated region
      $region77: #{fuse_module_forward.1} parent=5 // pred_check
        %p12510 = pneg %p12509
      $region78: #{fuse_module_forward.1} parent=5 // pred_check_branch
        %12512 = sbr.rel (%p12510) target = $region80
      $region79: #{fuse_module_forward.1} parent=5 // pred_region
        %s12513 = ssub.s32 %s22, 2
        // Predicated region
        $region81: #{fuse_module_forward.1} parent=79 // pred_check
          %p12514 = pneg %p339
        $region82: #{fuse_module_forward.1} parent=79 // pred_check_branch
          %12516 = sbr.rel (%p12514) target = $region84
        $region83: #{fuse_module_forward.1} parent=79 // pred_region
          %s12517 = sand.u32 %s324, 1
          %s12518 = scalar_lea.sflag [#allocation5], %s12517
          %s12519 = sand.u32 %s324, 1
          %s12520 = smul.addr %s12519, 128
          %s12521 = scalar_lea.vmem [#allocation4], %s12520
          %12522 = dma.done %s12518, 2048
        $region84: #{fuse_module_forward.1} parent=79 // pred_fallthru
          _
      $region80: #{fuse_module_forward.1} parent=5 // pred_fallthru
        _
    $region6: #{fuse_module_forward.1} parent=1 // loop_footer
      %s26 = sadd.s32 1, %s22
    $region7: #{fuse_module_forward.1} parent=1 // loop_footer_branch
      %21 = sbr.rel target = $region3
    $region8: #{fuse_module_forward.1} parent=1 // loop_exit
      _
    %12523 = vsyncpa [#allocation5], 1
    %s12524 = scalar_lea.sflag [#allocation5], 1
    %12525 = vsyncpa %s12524, 1

</llo_original>
